<compile_context>
chip_gen: v7x
topology: tpu7x:2x2x1
jax: 0.10.0
libtpu: 0.0.40
codegen_flags: <defaults>
</compile_context>

<pallas_src>
import functools
import math

import jax
import jax.numpy as jnp
from jax import lax
from jax.experimental import pallas as pl
from jax.experimental.pallas import tpu as pltpu

# ----------------------------- configuration --------------------------------
B, T, V, L = 2, 16, 4, 8                  # input x: (B, T, V, L)
T_c, L_c, V_c = 8, 4, 2                   # d_compress
d_inputs = (T, L, V)                      # per-stage sequence lengths (16, 8, 4)
d_compress = (T_c, L_c, V_c)              # per-stage compressed lengths (8, 4, 2)
d_folds = (V * L, V * T_c, T_c * L_c)     # per-stage fold widths (32, 32, 32)
d_model = 32
d_ff = 64
n_heads = 4
d_head = d_model // n_heads
BN_EPS = 1e-5
ATTN_SCALE = 1.0 / math.sqrt(d_head)
SLAB_W = 128                              # lane width of the packed parameter slabs
N_ADD = T + L + V                         # rows of the packed noise(+pos) slab (28)
OUT_W = 4 * d_model                       # lane-dense packed output width (128)


# ------------------------- static slab layouts -------------------------------
def _make_layouts():
    """Static (row_start, rows, cols) offsets of every parameter in the slabs."""
    wlay, play = {}, {}
    woff, poff = [0], [0]

    def add_w(name, r, c):                          # bf16 matmul weights
        start = -(-woff[0] // 16) * 16              # align to bf16 (16,128) tile
        wlay[name] = (start, r, c)
        woff[0] = start + r

    def add_p(name, r, c):                          # f32 biases / BN params
        start = -(-poff[0] // 8) * 8                # align to f32 (8,128) tile
        play[name] = (start, r, c)
        poff[0] = start + r

    add_w("eye32", d_model, d_model)                # identity for MXU transposes
    add_p("sel8", T_c, T_c)                         # row-placement selector (output pack)
    for i in range(3):
        S_in, d_cp, d = d_inputs[i], d_compress[i], d_folds[i]
        d_tr = 4 * S_in
        p = f"s{i}."
        add_w(p + "win", d, d_model);            add_p(p + "binp", 1, d_model)
        add_w(p + "cw1t", d_tr, S_in);           add_p(p + "cb1t", d_tr, 1)
        add_w(p + "cw2t", d_cp, d_tr);           add_p(p + "cb2t", d_cp, 1)
        add_w(p + "wq", d_model, d_model);       add_p(p + "bq", 1, d_model)
        add_w(p + "wkv", d_model, 2 * d_model);  add_p(p + "bkv", 1, 2 * d_model)
        add_w(p + "mwo", d_model, d);            add_p(p + "mbo", 1, d)
        add_w(p + "mfw1", d, d_ff);              add_p(p + "mfb1", 1, d_ff)
        add_w(p + "mfw2", d_ff, d);              add_p(p + "mfb2", 1, d)
        add_w(p + "twqkv", d, 3 * d_model);      add_p(p + "tbqkv", 1, 3 * d_model)
        add_w(p + "two", d_model, d);            add_p(p + "tbo", 1, d)
        add_w(p + "tfw1", d, d_ff);              add_p(p + "tfb1", 1, d_ff)
        add_w(p + "tfw2", d_ff, d);              add_p(p + "tfb2", 1, d)
        for nm in ("mg1", "mb1", "mg2", "mb2", "tg1", "tb1", "tg2", "tb2"):
            add_p(p + nm, d_cp, 1)
    wrows = -(-woff[0] // 16) * 16
    prows = -(-poff[0] // 8) * 8
    return wlay, play, wrows, prows


W_LAYOUT, P_LAYOUT, W_ROWS, P_ROWS = _make_layouts()


# ----------------------------- in-kernel helpers ------------------------------
def _gelu(x):
    # TODO(synk): PyTorch nn.GELU default is the exact erf formulation; the tanh
    # approximation is used (erf does not lower reliably in Mosaic).
    return 0.5 * x * (1.0 + jnp.tanh(0.7978845608028654 * (x + 0.044715 * x * x * x)))


def _mha(q, k, v, wo_bf, bo):
    """Multi-head attention fused with its output projection.

    q:(Sq,dm) f32, k/v:(Sk,dm) f32, wo_bf:(dm,dout) bf16, bo:(1,dout) f32.
    Head outputs are lane-concatenated into one (Sq,dm) bf16 tile and pushed
    through a single K=dm bf16 output-projection matmul (per perf review).
    """
    q_bf = q.astype(jnp.bfloat16)
    k_bf = k.astype(jnp.bfloat16)
    v_bf = v.astype(jnp.bfloat16)
    heads = []
    for h in range(n_heads):
        sl = slice(h * d_head, (h + 1) * d_head)
        s = lax.dot_general(q_bf[:, sl], k_bf[:, sl], (((1,), (1,)), ((), ())),
                            preferred_element_type=jnp.float32) * ATTN_SCALE
        s = s - jnp.max(s, axis=-1, keepdims=True)
        pr = jnp.exp(s)
        pr = pr / jnp.sum(pr, axis=-1, keepdims=True)          # exact softmax divide
        heads.append(jnp.dot(pr.astype(jnp.bfloat16), v_bf[:, sl],
                             preferred_element_type=jnp.float32))
    o_bf = jnp.concatenate(heads, axis=1).astype(jnp.bfloat16)  # (Sq, dm)
    return jnp.dot(o_bf, wo_bf, preferred_element_type=jnp.float32) + bo


def _post(x1, getw, getp, pfx):
    """norm_attn -> FFN(Linear/GELU/Linear) -> residual -> norm_ffn.
    BatchNorm1d eval with fresh running stats; gamma/sqrt(var+eps) pre-folded."""
    x1n = x1 * getp(pfx + "g1") + getp(pfx + "b1")
    x1n_bf = x1n.astype(jnp.bfloat16)
    h = _gelu(jnp.dot(x1n_bf, getw(pfx + "fw1"),
                      preferred_element_type=jnp.float32) + getp(pfx + "fb1"))
    h = jnp.dot(h.astype(jnp.bfloat16), getw(pfx + "fw2"),
                preferred_element_type=jnp.float32) + getp(pfx + "fb2")
    return (h + x1n) * getp(pfx + "g2") + getp(pfx + "b2")   # dropout = identity (eval)


def _stage(i, x, getw, getp):
    """mmo TransBlock + tunnel ('normal') TransBlock for stage i.

    x: (S_in, d_model) f32 = input projection + bias + noise(+pos).
    Returns (r_i (d_cp, d_fold) f32, e_i (d_cp, d_model) f32).
    """
    pre = f"s{i}."
    dm = d_model
    x_bf = x.astype(jnp.bfloat16)

    # ---- MoAttention ('mmo') ----
    # TODO(synk): MoAttention source unavailable; reconstructed as a sequence-axis
    # compression MLP (d_input -> 4*d_input -> d_compress) producing queries that
    # cross-attend over the full sequence, projected back to the fold dim.
    # Weights are pre-transposed at init so no in-kernel transpose is needed.
    hid = _gelu(jnp.dot(getw(pre + "cw1t"), x_bf,
                        preferred_element_type=jnp.float32) + getp(pre + "cb1t"))
    xc = jnp.dot(getw(pre + "cw2t"), hid.astype(jnp.bfloat16),
                 preferred_element_type=jnp.float32) + getp(pre + "cb2t")  # (d_cp, dm)
    q = jnp.dot(xc.astype(jnp.bfloat16), getw(pre + "wq"),
                preferred_element_type=jnp.float32) + getp(pre + "bq")
    kv = jnp.dot(x_bf, getw(pre + "wkv"),
                 preferred_element_type=jnp.float32) + getp(pre + "bkv")   # (S_in, 2dm)
    x1 = _mha(q, kv[:, :dm], kv[:, dm:], getw(pre + "mwo"), getp(pre + "mbo"))
    x2 = _post(x1, getw, getp, pre + "m")

    # ---- tunnel block ('normal' self-attention, n_block = 1) ----
    qkv = jnp.dot(x2.astype(jnp.bfloat16), getw(pre + "twqkv"),
                  preferred_element_type=jnp.float32) + getp(pre + "tbqkv")  # (d_cp, 3dm)
    x1 = _mha(qkv[:, :dm], qkv[:, dm:2 * dm], qkv[:, 2 * dm:],
              getw(pre + "two"), getp(pre + "tbo"))
    x2 = _post(x1, getw, getp, pre + "t")
    return x2, xc


# ----------------------------- fused encoder kernel ---------------------------
def _cap_encoder_kernel(m1_ref, add_ref, w_ref, p_ref, out_ref):
    """Fully fused CapEncoder forward for one batch element (grid=(B,))."""

    def getw(name):                    # static bf16 slab slice (free ref view)
        s, r, c = W_LAYOUT[name]
        return w_ref[s:s + r, 0:c]

    def getp(name):                    # static f32 slab slice
        s, r, c = P_LAYOUT[name]
        return p_ref[s:s + r, 0:c]

    eye = getw("eye32")                # (dm, dm) bf16 identity (MXU transposes)
    add = add_ref[0]                   # (N_ADD, dm): noise(+pos) for all stages

    # ---------------- stage 1 : sequence axis T ----------------
    x = (jnp.dot(m1_ref[0].astype(jnp.bfloat16), getw("s0.win"),
                 preferred_element_type=jnp.float32)
         + getp("s0.binp") + add[0:T])
    r1, e1 = _stage(0, x, getw, getp)                        # (T_c, 32), (T_c, dm)

    # ---- re-fold r1 -> m2 fused with input_proj2 (all inside VMEM) ----
    # m2[l, v*T_c + t] = r1[t, v*L + l]; r1^T via identity matmul, then per-v
    # partial products into win2 (avoids any jnp.transpose / concat of m2).
    r1t = lax.dot_general(eye, r1.astype(jnp.bfloat16), (((1,), (1,)), ((), ())),
                          preferred_element_type=jnp.float32)          # (V*L, T_c)
    r1t_bf = r1t.astype(jnp.bfloat16)
    win2 = getw("s1.win")                                              # (V*T_c, dm)
    x = getp("s1.binp") + add[T:T + L]                                 # (L, dm)
    for v in range(V):
        x = x + jnp.dot(r1t_bf[v * L:(v + 1) * L, :],
                        win2[v * T_c:(v + 1) * T_c, :],
                        preferred_element_type=jnp.float32)

    # ---------------- stage 2 : sequence axis L ----------------
    r2, e2 = _stage(1, x, getw, getp)                        # (L_c, 32), (L_c, dm)

    # ---- re-fold r2 -> m3 fused with input_proj3 ----
    # m3[v, t*L_c + l] = r2[l, t*V + v]
    r2t = lax.dot_general(eye, r2.astype(jnp.bfloat16), (((1,), (1,)), ((), ())),
                          preferred_element_type=jnp.float32)          # (V*T_c, L_c)
    r2t_bf = r2t.astype(jnp.bfloat16)
    win3 = getw("s2.win")                                              # (T_c*L_c, dm)
    x = getp("s2.binp") + add[T + L:T + L + V]                         # (V, dm)
    for t in range(T_c):
        x = x + jnp.dot(r2t_bf[t * V:(t + 1) * V, :],
                        win3[t * L_c:(t + 1) * L_c, :],
                        preferred_element_type=jnp.float32)

    # ---------------- stage 3 : sequence axis V ----------------
    r3, e3 = _stage(2, x, getw, getp)                        # (V_c, 32), (V_c, dm)

    # ---- pack all outputs into one lane-dense (T_c, 128) slab ----
    # cols 0:32 = r1, 32:64 = e1, 64:96 = [r2; r3; 0], 96:128 = [e2; e3; 0].
    # Row placement via exact f32 selector matmuls (no sub-tile sublane concat).
    sel = getp("sel8")                                       # (T_c, T_c) f32 identity
    left = jnp.concatenate([r1, e1], axis=1)                 # (T_c, 64)
    right = (jnp.dot(sel[:, 0:L_c], jnp.concatenate([r2, e2], axis=1),
                     preferred_element_type=jnp.float32)
             + jnp.dot(sel[:, L_c:L_c + V_c], jnp.concatenate([r3, e3], axis=1),
                       preferred_element_type=jnp.float32))  # (T_c, 64)
    out_ref[0] = jnp.concatenate([left, right], axis=1)      # (T_c, 128)


def _cap_encoder_pallas(m1, add, wslab, pslab):
    Bb = m1.shape[0]
    return pl.pallas_call(
        _cap_encoder_kernel,
        grid=(Bb,),
        in_specs=[
            pl.BlockSpec((1, T, d_folds[0]), lambda b: (b, 0, 0)),
            pl.BlockSpec((1, N_ADD, d_model), lambda b: (b, 0, 0)),
            pl.BlockSpec((W_ROWS, SLAB_W), lambda b: (0, 0)),   # fetched once
            pl.BlockSpec((P_ROWS, SLAB_W), lambda b: (0, 0)),   # fetched once
        ],
        out_specs=pl.BlockSpec((1, T_c, OUT_W), lambda b: (b, 0, 0)),
        out_shape=jax.ShapeDtypeStruct((Bb, T_c, OUT_W), jnp.float32),
        compiler_params=pltpu.CompilerParams(dimension_semantics=("parallel",)),
    )(m1, add, wslab, pslab)


# ----------------------------- parameter init ---------------------------------
def _lin_init(key, fan_in, fan_out):
    k1, k2 = jax.random.split(key)
    bound = 1.0 / math.sqrt(fan_in)
    w = jax.random.uniform(k1, (fan_in, fan_out), jnp.float32, -bound, bound)
    b = jax.random.uniform(k2, (fan_out,), jnp.float32, -bound, bound)
    return w, b


def init_params(key):
    """Kernel-ready parameters: a bf16 matmul-weight slab, an f32 bias/BN slab
    (both (rows,128), addressed by the static layouts) and the pos embedding."""
    keys = iter(jax.random.split(key, 64))
    bn_scale = 1.0 / math.sqrt(1.0 + BN_EPS)      # eval-mode BN with fresh stats

    wvals = {"eye32": jnp.eye(d_model, dtype=jnp.float32)}
    pvals = {"sel8": jnp.eye(T_c, dtype=jnp.float32)}
    for i in range(3):
        S_in, d_cp, d = d_inputs[i], d_compress[i], d_folds[i]
        d_tr = 4 * S_in
        p = f"s{i}."

        win, binp = _lin_init(next(keys), d, d_model)
        wvals[p + "win"] = win
        pvals[p + "binp"] = binp.reshape(1, -1)

        # mmo TransBlock: compression MLP (pre-transposed), Q, fused K|V, out proj
        cw1, cb1 = _lin_init(next(keys), S_in, d_tr)
        cw2, cb2 = _lin_init(next(keys), d_tr, d_cp)
        wvals[p + "cw1t"] = cw1.T; pvals[p + "cb1t"] = cb1.reshape(-1, 1)
        wvals[p + "cw2t"] = cw2.T; pvals[p + "cb2t"] = cb2.reshape(-1, 1)
        wq, bq = _lin_init(next(keys), d_model, d_model)
        wk, bk = _lin_init(next(keys), d_model, d_model)
        wv, bv = _lin_init(next(keys), d_model, d_model)
        wvals[p + "wq"] = wq;  pvals[p + "bq"] = bq.reshape(1, -1)
        wvals[p + "wkv"] = jnp.concatenate([wk, wv], axis=1)
        pvals[p + "bkv"] = jnp.concatenate([bk, bv]).reshape(1, -1)
        mwo, mbo = _lin_init(next(keys), d_model, d)
        wvals[p + "mwo"] = mwo; pvals[p + "mbo"] = mbo.reshape(1, -1)
        fw1, fb1 = _lin_init(next(keys), d, d_ff)
        fw2, fb2 = _lin_init(next(keys), d_ff, d)
        wvals[p + "mfw1"] = fw1; pvals[p + "mfb1"] = fb1.reshape(1, -1)
        wvals[p + "mfw2"] = fw2; pvals[p + "mfb2"] = fb2.reshape(1, -1)

        # tunnel 'normal' TransBlock (n_block = 1): fused Q|K|V, out proj, FFN
        twq, tbq = _lin_init(next(keys), d, d_model)
        twk, tbk = _lin_init(next(keys), d, d_model)
        twv, tbv = _lin_init(next(keys), d, d_model)
        wvals[p + "twqkv"] = jnp.concatenate([twq, twk, twv], axis=1)
        pvals[p + "tbqkv"] = jnp.concatenate([tbq, tbk, tbv]).reshape(1, -1)
        two, tbo = _lin_init(next(keys), d_model, d)
        wvals[p + "two"] = two; pvals[p + "tbo"] = tbo.reshape(1, -1)
        tfw1, tfb1 = _lin_init(next(keys), d, d_ff)
        tfw2, tfb2 = _lin_init(next(keys), d_ff, d)
        wvals[p + "tfw1"] = tfw1; pvals[p + "tfb1"] = tfb1.reshape(1, -1)
        wvals[p + "tfw2"] = tfw2; pvals[p + "tfb2"] = tfb2.reshape(1, -1)

        # BatchNorm1d (eval, fresh stats): gamma/sqrt(var+eps) pre-folded, beta
        for nm in ("mg1", "mg2", "tg1", "tg2"):
            pvals[p + nm] = jnp.full((d_cp, 1), bn_scale, jnp.float32)
        for nm in ("mb1", "mb2", "tb1", "tb2"):
            pvals[p + nm] = jnp.zeros((d_cp, 1), jnp.float32)

    wslab = jnp.zeros((W_ROWS, SLAB_W), jnp.bfloat16)
    for name, arr in wvals.items():
        s, r, c = W_LAYOUT[name]
        wslab = wslab.at[s:s + r, 0:c].set(arr.astype(jnp.bfloat16))
    pslab = jnp.zeros((P_ROWS, SLAB_W), jnp.float32)
    for name, arr in pvals.items():
        s, r, c = P_LAYOUT[name]
        pslab = pslab.at[s:s + r, 0:c].set(arr.astype(jnp.float32))

    # positional_encoding('zeros', learn_pe): uniform(-0.02, 0.02)
    pos = jax.random.uniform(next(keys), (T, d_model), jnp.float32, -0.02, 0.02)
    return {"wslab": wslab, "pslab": pslab, "pos": pos}


# ----------------------------- CapEncoder forward ------------------------------
def cap_encoder_forward(x, params, noise_key, add_noise=True):
    Bb, Tt, Vv, Ll = x.shape
    Tc, Lc, Vc = d_compress
    dm = d_model
    m1 = x.reshape(Bb, Tt, Vv * Ll)

    # noise for all three stages (+ pos embedding for stage 1), one packed slab
    if add_noise:
        noise = jax.random.normal(noise_key, (Bb, N_ADD, dm), jnp.float32)
    else:
        noise = jnp.zeros((Bb, N_ADD, dm), jnp.float32)
    add = jnp.concatenate([noise[:, :Tt] + params["pos"], noise[:, Tt:]], axis=1)

    out = _cap_encoder_pallas(m1, add, params["wslab"], params["pslab"])

    # unpack the lane-dense output slab
    r1, e1 = out[:, :, 0:dm], out[:, :, dm:2 * dm]
    r2, e2 = out[:, 0:Lc, 2 * dm:3 * dm], out[:, 0:Lc, 3 * dm:4 * dm]
    r3, e3 = out[:, Lc:Lc + Vc, 2 * dm:3 * dm], out[:, Lc:Lc + Vc, 3 * dm:4 * dm]

    # inter-stage folded views (store only; not on the kernel's critical path)
    m2 = jnp.swapaxes(r1.reshape(Bb, Tc, Vv, Ll), 1, 3).reshape(Bb, Ll, -1)
    m3 = jnp.swapaxes(r2.reshape(Bb, Lc, Tc, Vv), 1, 3).reshape(Bb, Vv, -1)

    store = {"ms": [m1, m2, m3], "rs": [r1, r2, r3],
             "attns": [None, None, None], "es": [e1, e2, e3]}
    capsule_x = jnp.transpose(r3.reshape(Bb, Vc, Lc, Tc), (0, 3, 2, 1))
    return capsule_x, store


# ----------------------------- main --------------------------------------------
if __name__ == "__main__":
    key = jax.random.PRNGKey(0)
    pkey, xkey, nkey = jax.random.split(key, 3)
    params = init_params(pkey)
    x = jax.random.normal(xkey, (B, T, V, L), jnp.float32)

    fwd = jax.jit(functools.partial(cap_encoder_forward, add_noise=True))
    capsule_x, store = fwd(x, params, nkey)
    capsule_x = jax.block_until_ready(capsule_x)

    assert capsule_x.shape == (B, T_c, L_c, V_c), capsule_x.shape
    assert store["rs"][2].shape == (B, V_c, T_c * L_c)
    assert store["es"][0].shape == (B, T_c, d_model)
    assert bool(jnp.all(jnp.isfinite(capsule_x)))
    assert bool(jnp.all(jnp.isfinite(store["rs"][0])))
    print("KERNEL_OK")
</pallas_src>

<mosaic_0001>
module attributes {stable_mosaic.version = 11 : i64} {
  func.func @_cap_encoder_kernel(%arg0: i32, %arg1: memref<1x16x32xf32, #tpu.memory_space<vmem>>, %arg2: memref<1x28x32xf32, #tpu.memory_space<vmem>>, %arg3: memref<1344x128xbf16, #tpu.memory_space<vmem>>, %arg4: memref<576x128xf32, #tpu.memory_space<vmem>>, %arg5: memref<1x8x128xf32, #tpu.memory_space<vmem>>) attributes {dimension_semantics = [#tpu.dimension_semantics<parallel>], iteration_bounds = array<i64: 2>, scalar_prefetch = 0 : i64, scratch_operands = 0 : i64, tpu.core_type = #tpu.core_type<tc>, window_params = [{transform_indices = @transform_0, window_bounds = array<i64: 1, 16, 32>}, {transform_indices = @transform_1, window_bounds = array<i64: 1, 28, 32>}, {pipeline_mode = #tpu.pipeline_mode<synchronous>, transform_indices = @transform_2, window_bounds = array<i64: 1344, 128>}, {pipeline_mode = #tpu.pipeline_mode<synchronous>, transform_indices = @transform_3, window_bounds = array<i64: 576, 128>}, {transform_indices = @transform_4, window_bounds = array<i64: 1, 8, 128>}]} {
    %c0 = arith.constant 0 : index
    %c0_0 = arith.constant 0 : index
    %0 = vector.load %arg3[%c0, %c0_0] : memref<1344x128xbf16, #tpu.memory_space<vmem>>, vector<32x32xbf16>
    %c0_1 = arith.constant 0 : index
    %c0_2 = arith.constant 0 : index
    %c0_3 = arith.constant 0 : index
    %1 = vector.load %arg2[%c0_1, %c0_2, %c0_3] : memref<1x28x32xf32, #tpu.memory_space<vmem>>, vector<1x28x32xf32>
    %2 = vector.shape_cast %1 : vector<1x28x32xf32> to vector<28x32xf32>
    %c0_4 = arith.constant 0 : index
    %c0_5 = arith.constant 0 : index
    %c0_6 = arith.constant 0 : index
    %3 = vector.load %arg1[%c0_4, %c0_5, %c0_6] : memref<1x16x32xf32, #tpu.memory_space<vmem>>, vector<1x16x32xf32>
    %4 = vector.shape_cast %3 : vector<1x16x32xf32> to vector<16x32xf32>
    %5 = arith.truncf %4 : vector<16x32xf32> to vector<16x32xbf16>
    %c32 = arith.constant 32 : index
    %c0_7 = arith.constant 0 : index
    %6 = vector.load %arg3[%c32, %c0_7] : memref<1344x128xbf16, #tpu.memory_space<vmem>>, vector<32x32xbf16>
    %cst = arith.constant dense<0.000000e+00> : vector<16x32xf32>
    %7 = tpu.matmul %5, %6, %cst {dimension_numbers = #tpu.dot_dimension_numbers<[1], [0], [0], [1], [0, 0, 1, 1], [], []>} : vector<16x32xbf16>, vector<32x32xbf16>, vector<16x32xf32> -> vector<16x32xf32>
    %c8 = arith.constant 8 : index
    %c0_8 = arith.constant 0 : index
    %8 = vector.load %arg4[%c8, %c0_8] : memref<576x128xf32, #tpu.memory_space<vmem>>, vector<1x32xf32>
    %9 = vector.broadcast %8 : vector<1x32xf32> to vector<16x32xf32>
    %10 = arith.addf %7, %9 : vector<16x32xf32>
    %11 = vector.extract_strided_slice %2 {offsets = [0, 0], sizes = [16, 32], strides = [1, 1]} : vector<28x32xf32> to vector<16x32xf32>
    %12 = arith.addf %10, %11 : vector<16x32xf32>
    %13 = arith.truncf %12 : vector<16x32xf32> to vector<16x32xbf16>
    %c64 = arith.constant 64 : index
    %c0_9 = arith.constant 0 : index
    %14 = vector.load %arg3[%c64, %c0_9] : memref<1344x128xbf16, #tpu.memory_space<vmem>>, vector<64x16xbf16>
    %cst_10 = arith.constant dense<0.000000e+00> : vector<64x32xf32>
    %15 = tpu.matmul %14, %13, %cst_10 {dimension_numbers = #tpu.dot_dimension_numbers<[1], [0], [0], [1], [0, 0, 1, 1], [], []>} : vector<64x16xbf16>, vector<16x32xbf16>, vector<64x32xf32> -> vector<64x32xf32>
    %c16 = arith.constant 16 : index
    %c0_11 = arith.constant 0 : index
    %16 = vector.load %arg4[%c16, %c0_11] : memref<576x128xf32, #tpu.memory_space<vmem>>, vector<64x1xf32>
    %17 = vector.broadcast %16 : vector<64x1xf32> to vector<64x32xf32>
    %18 = arith.addf %15, %17 : vector<64x32xf32>
    %cst_12 = arith.constant 5.000000e-01 : f32
    %19 = vector.broadcast %cst_12 : f32 to vector<64x32xf32>
    %20 = arith.mulf %19, %18 : vector<64x32xf32>
    %cst_13 = arith.constant 4.471500e-02 : f32
    %21 = vector.broadcast %cst_13 : f32 to vector<64x32xf32>
    %22 = arith.mulf %21, %18 : vector<64x32xf32>
    %23 = arith.mulf %22, %18 : vector<64x32xf32>
    %24 = arith.mulf %23, %18 : vector<64x32xf32>
    %25 = arith.addf %18, %24 : vector<64x32xf32>
    %cst_14 = arith.constant 0.797884583 : f32
    %26 = vector.broadcast %cst_14 : f32 to vector<64x32xf32>
    %27 = arith.mulf %26, %25 : vector<64x32xf32>
    %28 = math.tanh %27 : vector<64x32xf32>
    %cst_15 = arith.constant 1.000000e+00 : f32
    %29 = vector.broadcast %cst_15 : f32 to vector<64x32xf32>
    %30 = arith.addf %29, %28 : vector<64x32xf32>
    %31 = arith.mulf %20, %30 : vector<64x32xf32>
    %c128 = arith.constant 128 : index
    %c0_16 = arith.constant 0 : index
    %32 = vector.load %arg3[%c128, %c0_16] : memref<1344x128xbf16, #tpu.memory_space<vmem>>, vector<8x64xbf16>
    %33 = arith.truncf %31 : vector<64x32xf32> to vector<64x32xbf16>
    %cst_17 = arith.constant dense<0.000000e+00> : vector<8x32xf32>
    %34 = tpu.matmul %32, %33, %cst_17 {dimension_numbers = #tpu.dot_dimension_numbers<[1], [0], [0], [1], [0, 0, 1, 1], [], []>} : vector<8x64xbf16>, vector<64x32xbf16>, vector<8x32xf32> -> vector<8x32xf32>
    %c80 = arith.constant 80 : index
    %c0_18 = arith.constant 0 : index
    %35 = vector.load %arg4[%c80, %c0_18] : memref<576x128xf32, #tpu.memory_space<vmem>>, vector<8x1xf32>
    %36 = vector.broadcast %35 : vector<8x1xf32> to vector<8x32xf32>
    %37 = arith.addf %34, %36 : vector<8x32xf32>
    %38 = arith.truncf %37 : vector<8x32xf32> to vector<8x32xbf16>
    %c144 = arith.constant 144 : index
    %c0_19 = arith.constant 0 : index
    %39 = vector.load %arg3[%c144, %c0_19] : memref<1344x128xbf16, #tpu.memory_space<vmem>>, vector<32x32xbf16>
    %cst_20 = arith.constant dense<0.000000e+00> : vector<8x32xf32>
    %40 = tpu.matmul %38, %39, %cst_20 {dimension_numbers = #tpu.dot_dimension_numbers<[1], [0], [0], [1], [0, 0, 1, 1], [], []>} : vector<8x32xbf16>, vector<32x32xbf16>, vector<8x32xf32> -> vector<8x32xf32>
    %c88 = arith.constant 88 : index
    %c0_21 = arith.constant 0 : index
    %41 = vector.load %arg4[%c88, %c0_21] : memref<576x128xf32, #tpu.memory_space<vmem>>, vector<1x32xf32>
    %42 = vector.broadcast %41 : vector<1x32xf32> to vector<8x32xf32>
    %43 = arith.addf %40, %42 : vector<8x32xf32>
    %c176 = arith.constant 176 : index
    %c0_22 = arith.constant 0 : index
    %44 = vector.load %arg3[%c176, %c0_22] : memref<1344x128xbf16, #tpu.memory_space<vmem>>, vector<32x64xbf16>
    %cst_23 = arith.constant dense<0.000000e+00> : vector<16x64xf32>
    %45 = tpu.matmul %13, %44, %cst_23 {dimension_numbers = #tpu.dot_dimension_numbers<[1], [0], [0], [1], [0, 0, 1, 1], [], []>} : vector<16x32xbf16>, vector<32x64xbf16>, vector<16x64xf32> -> vector<16x64xf32>
    %c96 = arith.constant 96 : index
    %c0_24 = arith.constant 0 : index
    %46 = vector.load %arg4[%c96, %c0_24] : memref<576x128xf32, #tpu.memory_space<vmem>>, vector<1x64xf32>
    %47 = vector.broadcast %46 : vector<1x64xf32> to vector<16x64xf32>
    %48 = arith.addf %45, %47 : vector<16x64xf32>
    %49 = vector.extract_strided_slice %48 {offsets = [0, 0], sizes = [16, 32], strides = [1, 1]} : vector<16x64xf32> to vector<16x32xf32>
    %50 = vector.extract_strided_slice %48 {offsets = [0, 32], sizes = [16, 32], strides = [1, 1]} : vector<16x64xf32> to vector<16x32xf32>
    %c208 = arith.constant 208 : index
    %c0_25 = arith.constant 0 : index
    %51 = vector.load %arg3[%c208, %c0_25] : memref<1344x128xbf16, #tpu.memory_space<vmem>>, vector<32x32xbf16>
    %c104 = arith.constant 104 : index
    %c0_26 = arith.constant 0 : index
    %52 = vector.load %arg4[%c104, %c0_26] : memref<576x128xf32, #tpu.memory_space<vmem>>, vector<1x32xf32>
    %53 = arith.truncf %43 : vector<8x32xf32> to vector<8x32xbf16>
    %54 = arith.truncf %49 : vector<16x32xf32> to vector<16x32xbf16>
    %55 = arith.truncf %50 : vector<16x32xf32> to vector<16x32xbf16>
    %56 = vector.extract_strided_slice %53 {offsets = [0, 0], sizes = [8, 8], strides = [1, 1]} : vector<8x32xbf16> to vector<8x8xbf16>
    %57 = vector.extract_strided_slice %54 {offsets = [0, 0], sizes = [16, 8], strides = [1, 1]} : vector<16x32xbf16> to vector<16x8xbf16>
    %cst_27 = arith.constant dense<0.000000e+00> : vector<8x16xf32>
    %58 = tpu.matmul %56, %57, %cst_27 {dimension_numbers = #tpu.dot_dimension_numbers<[1], [1], [0], [0], [0, 0, 1, 0], [], []>} : vector<8x8xbf16>, vector<16x8xbf16>, vector<8x16xf32> -> vector<8x16xf32>
    %cst_28 = arith.constant 0.353553385 : f32
    %59 = vector.broadcast %cst_28 : f32 to vector<8x16xf32>
    %60 = arith.mulf %58, %59 : vector<8x16xf32>
    %cst_29 = arith.constant dense<0xFF800000> : vector<8xf32>
    %61 = vector.multi_reduction <maximumf>, %60, %cst_29 [1] : vector<8x16xf32> to vector<8xf32>
    %62 = vector.shape_cast %61 : vector<8xf32> to vector<8x1xf32>
    %63 = vector.broadcast %62 : vector<8x1xf32> to vector<8x16xf32>
    %64 = arith.subf %60, %63 : vector<8x16xf32>
    %65 = math.exp %64 : vector<8x16xf32>
    %cst_30 = arith.constant dense<0.000000e+00> : vector<8xf32>
    %66 = vector.multi_reduction <add>, %65, %cst_30 [1] : vector<8x16xf32> to vector<8xf32>
    %67 = vector.shape_cast %66 : vector<8xf32> to vector<8x1xf32>
    %68 = vector.broadcast %67 : vector<8x1xf32> to vector<8x16xf32>
    %69 = arith.divf %65, %68 : vector<8x16xf32>
    %70 = arith.truncf %69 : vector<8x16xf32> to vector<8x16xbf16>
    %71 = vector.extract_strided_slice %55 {offsets = [0, 0], sizes = [16, 8], strides = [1, 1]} : vector<16x32xbf16> to vector<16x8xbf16>
    %cst_31 = arith.constant dense<0.000000e+00> : vector<8x8xf32>
    %72 = tpu.matmul %70, %71, %cst_31 {dimension_numbers = #tpu.dot_dimension_numbers<[1], [0], [0], [1], [0, 0, 1, 1], [], []>} : vector<8x16xbf16>, vector<16x8xbf16>, vector<8x8xf32> -> vector<8x8xf32>
    %73 = vector.extract_strided_slice %53 {offsets = [0, 8], sizes = [8, 8], strides = [1, 1]} : vector<8x32xbf16> to vector<8x8xbf16>
    %74 = vector.extract_strided_slice %54 {offsets = [0, 8], sizes = [16, 8], strides = [1, 1]} : vector<16x32xbf16> to vector<16x8xbf16>
    %cst_32 = arith.constant dense<0.000000e+00> : vector<8x16xf32>
    %75 = tpu.matmul %73, %74, %cst_32 {dimension_numbers = #tpu.dot_dimension_numbers<[1], [1], [0], [0], [0, 0, 1, 0], [], []>} : vector<8x8xbf16>, vector<16x8xbf16>, vector<8x16xf32> -> vector<8x16xf32>
    %cst_33 = arith.constant 0.353553385 : f32
    %76 = vector.broadcast %cst_33 : f32 to vector<8x16xf32>
    %77 = arith.mulf %75, %76 : vector<8x16xf32>
    %cst_34 = arith.constant dense<0xFF800000> : vector<8xf32>
    %78 = vector.multi_reduction <maximumf>, %77, %cst_34 [1] : vector<8x16xf32> to vector<8xf32>
    %79 = vector.shape_cast %78 : vector<8xf32> to vector<8x1xf32>
    %80 = vector.broadcast %79 : vector<8x1xf32> to vector<8x16xf32>
    %81 = arith.subf %77, %80 : vector<8x16xf32>
    %82 = math.exp %81 : vector<8x16xf32>
    %cst_35 = arith.constant dense<0.000000e+00> : vector<8xf32>
    %83 = vector.multi_reduction <add>, %82, %cst_35 [1] : vector<8x16xf32> to vector<8xf32>
    %84 = vector.shape_cast %83 : vector<8xf32> to vector<8x1xf32>
    %85 = vector.broadcast %84 : vector<8x1xf32> to vector<8x16xf32>
    %86 = arith.divf %82, %85 : vector<8x16xf32>
    %87 = arith.truncf %86 : vector<8x16xf32> to vector<8x16xbf16>
    %88 = vector.extract_strided_slice %55 {offsets = [0, 8], sizes = [16, 8], strides = [1, 1]} : vector<16x32xbf16> to vector<16x8xbf16>
    %cst_36 = arith.constant dense<0.000000e+00> : vector<8x8xf32>
    %89 = tpu.matmul %87, %88, %cst_36 {dimension_numbers = #tpu.dot_dimension_numbers<[1], [0], [0], [1], [0, 0, 1, 1], [], []>} : vector<8x16xbf16>, vector<16x8xbf16>, vector<8x8xf32> -> vector<8x8xf32>
    %90 = vector.extract_strided_slice %53 {offsets = [0, 16], sizes = [8, 8], strides = [1, 1]} : vector<8x32xbf16> to vector<8x8xbf16>
    %91 = vector.extract_strided_slice %54 {offsets = [0, 16], sizes = [16, 8], strides = [1, 1]} : vector<16x32xbf16> to vector<16x8xbf16>
    %cst_37 = arith.constant dense<0.000000e+00> : vector<8x16xf32>
    %92 = tpu.matmul %90, %91, %cst_37 {dimension_numbers = #tpu.dot_dimension_numbers<[1], [1], [0], [0], [0, 0, 1, 0], [], []>} : vector<8x8xbf16>, vector<16x8xbf16>, vector<8x16xf32> -> vector<8x16xf32>
    %cst_38 = arith.constant 0.353553385 : f32
    %93 = vector.broadcast %cst_38 : f32 to vector<8x16xf32>
    %94 = arith.mulf %92, %93 : vector<8x16xf32>
    %cst_39 = arith.constant dense<0xFF800000> : vector<8xf32>
    %95 = vector.multi_reduction <maximumf>, %94, %cst_39 [1] : vector<8x16xf32> to vector<8xf32>
    %96 = vector.shape_cast %95 : vector<8xf32> to vector<8x1xf32>
    %97 = vector.broadcast %96 : vector<8x1xf32> to vector<8x16xf32>
    %98 = arith.subf %94, %97 : vector<8x16xf32>
    %99 = math.exp %98 : vector<8x16xf32>
    %cst_40 = arith.constant dense<0.000000e+00> : vector<8xf32>
    %100 = vector.multi_reduction <add>, %99, %cst_40 [1] : vector<8x16xf32> to vector<8xf32>
    %101 = vector.shape_cast %100 : vector<8xf32> to vector<8x1xf32>
    %102 = vector.broadcast %101 : vector<8x1xf32> to vector<8x16xf32>
    %103 = arith.divf %99, %102 : vector<8x16xf32>
    %104 = arith.truncf %103 : vector<8x16xf32> to vector<8x16xbf16>
    %105 = vector.extract_strided_slice %55 {offsets = [0, 16], sizes = [16, 8], strides = [1, 1]} : vector<16x32xbf16> to vector<16x8xbf16>
    %cst_41 = arith.constant dense<0.000000e+00> : vector<8x8xf32>
    %106 = tpu.matmul %104, %105, %cst_41 {dimension_numbers = #tpu.dot_dimension_numbers<[1], [0], [0], [1], [0, 0, 1, 1], [], []>} : vector<8x16xbf16>, vector<16x8xbf16>, vector<8x8xf32> -> vector<8x8xf32>
    %107 = vector.extract_strided_slice %53 {offsets = [0, 24], sizes = [8, 8], strides = [1, 1]} : vector<8x32xbf16> to vector<8x8xbf16>
    %108 = vector.extract_strided_slice %54 {offsets = [0, 24], sizes = [16, 8], strides = [1, 1]} : vector<16x32xbf16> to vector<16x8xbf16>
    %cst_42 = arith.constant dense<0.000000e+00> : vector<8x16xf32>
    %109 = tpu.matmul %107, %108, %cst_42 {dimension_numbers = #tpu.dot_dimension_numbers<[1], [1], [0], [0], [0, 0, 1, 0], [], []>} : vector<8x8xbf16>, vector<16x8xbf16>, vector<8x16xf32> -> vector<8x16xf32>
    %cst_43 = arith.constant 0.353553385 : f32
    %110 = vector.broadcast %cst_43 : f32 to vector<8x16xf32>
    %111 = arith.mulf %109, %110 : vector<8x16xf32>
    %cst_44 = arith.constant dense<0xFF800000> : vector<8xf32>
    %112 = vector.multi_reduction <maximumf>, %111, %cst_44 [1] : vector<8x16xf32> to vector<8xf32>
    %113 = vector.shape_cast %112 : vector<8xf32> to vector<8x1xf32>
    %114 = vector.broadcast %113 : vector<8x1xf32> to vector<8x16xf32>
    %115 = arith.subf %111, %114 : vector<8x16xf32>
    %116 = math.exp %115 : vector<8x16xf32>
    %cst_45 = arith.constant dense<0.000000e+00> : vector<8xf32>
    %117 = vector.multi_reduction <add>, %116, %cst_45 [1] : vector<8x16xf32> to vector<8xf32>
    %118 = vector.shape_cast %117 : vector<8xf32> to vector<8x1xf32>
    %119 = vector.broadcast %118 : vector<8x1xf32> to vector<8x16xf32>
    %120 = arith.divf %116, %119 : vector<8x16xf32>
    %121 = arith.truncf %120 : vector<8x16xf32> to vector<8x16xbf16>
    %122 = vector.extract_strided_slice %55 {offsets = [0, 24], sizes = [16, 8], strides = [1, 1]} : vector<16x32xbf16> to vector<16x8xbf16>
    %cst_46 = arith.constant dense<0.000000e+00> : vector<8x8xf32>
    %123 = tpu.matmul %121, %122, %cst_46 {dimension_numbers = #tpu.dot_dimension_numbers<[1], [0], [0], [1], [0, 0, 1, 1], [], []>} : vector<8x16xbf16>, vector<16x8xbf16>, vector<8x8xf32> -> vector<8x8xf32>
    %124 = tpu.concatenate %72, %89, %106, %123 in 1 : vector<8x8xf32>, vector<8x8xf32>, vector<8x8xf32>, vector<8x8xf32> -> vector<8x32xf32>
    %125 = arith.truncf %124 : vector<8x32xf32> to vector<8x32xbf16>
    %cst_47 = arith.constant dense<0.000000e+00> : vector<8x32xf32>
    %126 = tpu.matmul %125, %51, %cst_47 {dimension_numbers = #tpu.dot_dimension_numbers<[1], [0], [0], [1], [0, 0, 1, 1], [], []>} : vector<8x32xbf16>, vector<32x32xbf16>, vector<8x32xf32> -> vector<8x32xf32>
    %127 = vector.broadcast %52 : vector<1x32xf32> to vector<8x32xf32>
    %128 = arith.addf %126, %127 : vector<8x32xf32>
    %c160 = arith.constant 160 : index
    %c0_48 = arith.constant 0 : index
    %129 = vector.load %arg4[%c160, %c0_48] : memref<576x128xf32, #tpu.memory_space<vmem>>, vector<8x1xf32>
    %130 = vector.broadcast %129 : vector<8x1xf32> to vector<8x32xf32>
    %131 = arith.mulf %128, %130 : vector<8x32xf32>
    %c168 = arith.constant 168 : index
    %c0_49 = arith.constant 0 : index
    %132 = vector.load %arg4[%c168, %c0_49] : memref<576x128xf32, #tpu.memory_space<vmem>>, vector<8x1xf32>
    %133 = vector.broadcast %132 : vector<8x1xf32> to vector<8x32xf32>
    %134 = arith.addf %131, %133 : vector<8x32xf32>
    %135 = arith.truncf %134 : vector<8x32xf32> to vector<8x32xbf16>
    %c240 = arith.constant 240 : index
    %c0_50 = arith.constant 0 : index
    %136 = vector.load %arg3[%c240, %c0_50] : memref<1344x128xbf16, #tpu.memory_space<vmem>>, vector<32x64xbf16>
    %cst_51 = arith.constant dense<0.000000e+00> : vector<8x64xf32>
    %137 = tpu.matmul %135, %136, %cst_51 {dimension_numbers = #tpu.dot_dimension_numbers<[1], [0], [0], [1], [0, 0, 1, 1], [], []>} : vector<8x32xbf16>, vector<32x64xbf16>, vector<8x64xf32> -> vector<8x64xf32>
    %c112 = arith.constant 112 : index
    %c0_52 = arith.constant 0 : index
    %138 = vector.load %arg4[%c112, %c0_52] : memref<576x128xf32, #tpu.memory_space<vmem>>, vector<1x64xf32>
    %139 = vector.broadcast %138 : vector<1x64xf32> to vector<8x64xf32>
    %140 = arith.addf %137, %139 : vector<8x64xf32>
    %cst_53 = arith.constant 5.000000e-01 : f32
    %141 = vector.broadcast %cst_53 : f32 to vector<8x64xf32>
    %142 = arith.mulf %141, %140 : vector<8x64xf32>
    %cst_54 = arith.constant 4.471500e-02 : f32
    %143 = vector.broadcast %cst_54 : f32 to vector<8x64xf32>
    %144 = arith.mulf %143, %140 : vector<8x64xf32>
    %145 = arith.mulf %144, %140 : vector<8x64xf32>
    %146 = arith.mulf %145, %140 : vector<8x64xf32>
    %147 = arith.addf %140, %146 : vector<8x64xf32>
    %cst_55 = arith.constant 0.797884583 : f32
    %148 = vector.broadcast %cst_55 : f32 to vector<8x64xf32>
    %149 = arith.mulf %148, %147 : vector<8x64xf32>
    %150 = math.tanh %149 : vector<8x64xf32>
    %cst_56 = arith.constant 1.000000e+00 : f32
    %151 = vector.broadcast %cst_56 : f32 to vector<8x64xf32>
    %152 = arith.addf %151, %150 : vector<8x64xf32>
    %153 = arith.mulf %142, %152 : vector<8x64xf32>
    %154 = arith.truncf %153 : vector<8x64xf32> to vector<8x64xbf16>
    %c272 = arith.constant 272 : index
    %c0_57 = arith.constant 0 : index
    %155 = vector.load %arg3[%c272, %c0_57] : memref<1344x128xbf16, #tpu.memory_space<vmem>>, vector<64x32xbf16>
    %cst_58 = arith.constant dense<0.000000e+00> : vector<8x32xf32>
    %156 = tpu.matmul %154, %155, %cst_58 {dimension_numbers = #tpu.dot_dimension_numbers<[1], [0], [0], [1], [0, 0, 1, 1], [], []>} : vector<8x64xbf16>, vector<64x32xbf16>, vector<8x32xf32> -> vector<8x32xf32>
    %c120 = arith.constant 120 : index
    %c0_59 = arith.constant 0 : index
    %157 = vector.load %arg4[%c120, %c0_59] : memref<576x128xf32, #tpu.memory_space<vmem>>, vector<1x32xf32>
    %158 = vector.broadcast %157 : vector<1x32xf32> to vector<8x32xf32>
    %159 = arith.addf %156, %158 : vector<8x32xf32>
    %160 = arith.addf %159, %134 : vector<8x32xf32>
    %c176_60 = arith.constant 176 : index
    %c0_61 = arith.constant 0 : index
    %161 = vector.load %arg4[%c176_60, %c0_61] : memref<576x128xf32, #tpu.memory_space<vmem>>, vector<8x1xf32>
    %162 = vector.broadcast %161 : vector<8x1xf32> to vector<8x32xf32>
    %163 = arith.mulf %160, %162 : vector<8x32xf32>
    %c184 = arith.constant 184 : index
    %c0_62 = arith.constant 0 : index
    %164 = vector.load %arg4[%c184, %c0_62] : memref<576x128xf32, #tpu.memory_space<vmem>>, vector<8x1xf32>
    %165 = vector.broadcast %164 : vector<8x1xf32> to vector<8x32xf32>
    %166 = arith.addf %163, %165 : vector<8x32xf32>
    %167 = arith.truncf %166 : vector<8x32xf32> to vector<8x32xbf16>
    %c336 = arith.constant 336 : index
    %c0_63 = arith.constant 0 : index
    %168 = vector.load %arg3[%c336, %c0_63] : memref<1344x128xbf16, #tpu.memory_space<vmem>>, vector<32x96xbf16>
    %cst_64 = arith.constant dense<0.000000e+00> : vector<8x96xf32>
    %169 = tpu.matmul %167, %168, %cst_64 {dimension_numbers = #tpu.dot_dimension_numbers<[1], [0], [0], [1], [0, 0, 1, 1], [], []>} : vector<8x32xbf16>, vector<32x96xbf16>, vector<8x96xf32> -> vector<8x96xf32>
    %c128_65 = arith.constant 128 : index
    %c0_66 = arith.constant 0 : index
    %170 = vector.load %arg4[%c128_65, %c0_66] : memref<576x128xf32, #tpu.memory_space<vmem>>, vector<1x96xf32>
    %171 = vector.broadcast %170 : vector<1x96xf32> to vector<8x96xf32>
    %172 = arith.addf %169, %171 : vector<8x96xf32>
    %173 = vector.extract_strided_slice %172 {offsets = [0, 0], sizes = [8, 32], strides = [1, 1]} : vector<8x96xf32> to vector<8x32xf32>
    %174 = vector.extract_strided_slice %172 {offsets = [0, 32], sizes = [8, 32], strides = [1, 1]} : vector<8x96xf32> to vector<8x32xf32>
    %175 = vector.extract_strided_slice %172 {offsets = [0, 64], sizes = [8, 32], strides = [1, 1]} : vector<8x96xf32> to vector<8x32xf32>
    %c368 = arith.constant 368 : index
    %c0_67 = arith.constant 0 : index
    %176 = vector.load %arg3[%c368, %c0_67] : memref<1344x128xbf16, #tpu.memory_space<vmem>>, vector<32x32xbf16>
    %c136 = arith.constant 136 : index
    %c0_68 = arith.constant 0 : index
    %177 = vector.load %arg4[%c136, %c0_68] : memref<576x128xf32, #tpu.memory_space<vmem>>, vector<1x32xf32>
    %178 = arith.truncf %173 : vector<8x32xf32> to vector<8x32xbf16>
    %179 = arith.truncf %174 : vector<8x32xf32> to vector<8x32xbf16>
    %180 = arith.truncf %175 : vector<8x32xf32> to vector<8x32xbf16>
    %181 = vector.extract_strided_slice %178 {offsets = [0, 0], sizes = [8, 8], strides = [1, 1]} : vector<8x32xbf16> to vector<8x8xbf16>
    %182 = vector.extract_strided_slice %179 {offsets = [0, 0], sizes = [8, 8], strides = [1, 1]} : vector<8x32xbf16> to vector<8x8xbf16>
    %cst_69 = arith.constant dense<0.000000e+00> : vector<8x8xf32>
    %183 = tpu.matmul %181, %182, %cst_69 {dimension_numbers = #tpu.dot_dimension_numbers<[1], [1], [0], [0], [0, 0, 1, 0], [], []>} : vector<8x8xbf16>, vector<8x8xbf16>, vector<8x8xf32> -> vector<8x8xf32>
    %cst_70 = arith.constant 0.353553385 : f32
    %184 = vector.broadcast %cst_70 : f32 to vector<8x8xf32>
    %185 = arith.mulf %183, %184 : vector<8x8xf32>
    %cst_71 = arith.constant dense<0xFF800000> : vector<8xf32>
    %186 = vector.multi_reduction <maximumf>, %185, %cst_71 [1] : vector<8x8xf32> to vector<8xf32>
    %187 = vector.shape_cast %186 : vector<8xf32> to vector<8x1xf32>
    %188 = vector.broadcast %187 : vector<8x1xf32> to vector<8x8xf32>
    %189 = arith.subf %185, %188 : vector<8x8xf32>
    %190 = math.exp %189 : vector<8x8xf32>
    %cst_72 = arith.constant dense<0.000000e+00> : vector<8xf32>
    %191 = vector.multi_reduction <add>, %190, %cst_72 [1] : vector<8x8xf32> to vector<8xf32>
    %192 = vector.shape_cast %191 : vector<8xf32> to vector<8x1xf32>
    %193 = vector.broadcast %192 : vector<8x1xf32> to vector<8x8xf32>
    %194 = arith.divf %190, %193 : vector<8x8xf32>
    %195 = arith.truncf %194 : vector<8x8xf32> to vector<8x8xbf16>
    %196 = vector.extract_strided_slice %180 {offsets = [0, 0], sizes = [8, 8], strides = [1, 1]} : vector<8x32xbf16> to vector<8x8xbf16>
    %cst_73 = arith.constant dense<0.000000e+00> : vector<8x8xf32>
    %197 = tpu.matmul %195, %196, %cst_73 {dimension_numbers = #tpu.dot_dimension_numbers<[1], [0], [0], [1], [0, 0, 1, 1], [], []>} : vector<8x8xbf16>, vector<8x8xbf16>, vector<8x8xf32> -> vector<8x8xf32>
    %198 = vector.extract_strided_slice %178 {offsets = [0, 8], sizes = [8, 8], strides = [1, 1]} : vector<8x32xbf16> to vector<8x8xbf16>
    %199 = vector.extract_strided_slice %179 {offsets = [0, 8], sizes = [8, 8], strides = [1, 1]} : vector<8x32xbf16> to vector<8x8xbf16>
    %cst_74 = arith.constant dense<0.000000e+00> : vector<8x8xf32>
    %200 = tpu.matmul %198, %199, %cst_74 {dimension_numbers = #tpu.dot_dimension_numbers<[1], [1], [0], [0], [0, 0, 1, 0], [], []>} : vector<8x8xbf16>, vector<8x8xbf16>, vector<8x8xf32> -> vector<8x8xf32>
    %cst_75 = arith.constant 0.353553385 : f32
    %201 = vector.broadcast %cst_75 : f32 to vector<8x8xf32>
    %202 = arith.mulf %200, %201 : vector<8x8xf32>
    %cst_76 = arith.constant dense<0xFF800000> : vector<8xf32>
    %203 = vector.multi_reduction <maximumf>, %202, %cst_76 [1] : vector<8x8xf32> to vector<8xf32>
    %204 = vector.shape_cast %203 : vector<8xf32> to vector<8x1xf32>
    %205 = vector.broadcast %204 : vector<8x1xf32> to vector<8x8xf32>
    %206 = arith.subf %202, %205 : vector<8x8xf32>
    %207 = math.exp %206 : vector<8x8xf32>
    %cst_77 = arith.constant dense<0.000000e+00> : vector<8xf32>
    %208 = vector.multi_reduction <add>, %207, %cst_77 [1] : vector<8x8xf32> to vector<8xf32>
    %209 = vector.shape_cast %208 : vector<8xf32> to vector<8x1xf32>
    %210 = vector.broadcast %209 : vector<8x1xf32> to vector<8x8xf32>
    %211 = arith.divf %207, %210 : vector<8x8xf32>
    %212 = arith.truncf %211 : vector<8x8xf32> to vector<8x8xbf16>
    %213 = vector.extract_strided_slice %180 {offsets = [0, 8], sizes = [8, 8], strides = [1, 1]} : vector<8x32xbf16> to vector<8x8xbf16>
    %cst_78 = arith.constant dense<0.000000e+00> : vector<8x8xf32>
    %214 = tpu.matmul %212, %213, %cst_78 {dimension_numbers = #tpu.dot_dimension_numbers<[1], [0], [0], [1], [0, 0, 1, 1], [], []>} : vector<8x8xbf16>, vector<8x8xbf16>, vector<8x8xf32> -> vector<8x8xf32>
    %215 = vector.extract_strided_slice %178 {offsets = [0, 16], sizes = [8, 8], strides = [1, 1]} : vector<8x32xbf16> to vector<8x8xbf16>
    %216 = vector.extract_strided_slice %179 {offsets = [0, 16], sizes = [8, 8], strides = [1, 1]} : vector<8x32xbf16> to vector<8x8xbf16>
    %cst_79 = arith.constant dense<0.000000e+00> : vector<8x8xf32>
    %217 = tpu.matmul %215, %216, %cst_79 {dimension_numbers = #tpu.dot_dimension_numbers<[1], [1], [0], [0], [0, 0, 1, 0], [], []>} : vector<8x8xbf16>, vector<8x8xbf16>, vector<8x8xf32> -> vector<8x8xf32>
    %cst_80 = arith.constant 0.353553385 : f32
    %218 = vector.broadcast %cst_80 : f32 to vector<8x8xf32>
    %219 = arith.mulf %217, %218 : vector<8x8xf32>
    %cst_81 = arith.constant dense<0xFF800000> : vector<8xf32>
    %220 = vector.multi_reduction <maximumf>, %219, %cst_81 [1] : vector<8x8xf32> to vector<8xf32>
    %221 = vector.shape_cast %220 : vector<8xf32> to vector<8x1xf32>
    %222 = vector.broadcast %221 : vector<8x1xf32> to vector<8x8xf32>
    %223 = arith.subf %219, %222 : vector<8x8xf32>
    %224 = math.exp %223 : vector<8x8xf32>
    %cst_82 = arith.constant dense<0.000000e+00> : vector<8xf32>
    %225 = vector.multi_reduction <add>, %224, %cst_82 [1] : vector<8x8xf32> to vector<8xf32>
    %226 = vector.shape_cast %225 : vector<8xf32> to vector<8x1xf32>
    %227 = vector.broadcast %226 : vector<8x1xf32> to vector<8x8xf32>
    %228 = arith.divf %224, %227 : vector<8x8xf32>
    %229 = arith.truncf %228 : vector<8x8xf32> to vector<8x8xbf16>
    %230 = vector.extract_strided_slice %180 {offsets = [0, 16], sizes = [8, 8], strides = [1, 1]} : vector<8x32xbf16> to vector<8x8xbf16>
    %cst_83 = arith.constant dense<0.000000e+00> : vector<8x8xf32>
    %231 = tpu.matmul %229, %230, %cst_83 {dimension_numbers = #tpu.dot_dimension_numbers<[1], [0], [0], [1], [0, 0, 1, 1], [], []>} : vector<8x8xbf16>, vector<8x8xbf16>, vector<8x8xf32> -> vector<8x8xf32>
    %232 = vector.extract_strided_slice %178 {offsets = [0, 24], sizes = [8, 8], strides = [1, 1]} : vector<8x32xbf16> to vector<8x8xbf16>
    %233 = vector.extract_strided_slice %179 {offsets = [0, 24], sizes = [8, 8], strides = [1, 1]} : vector<8x32xbf16> to vector<8x8xbf16>
    %cst_84 = arith.constant dense<0.000000e+00> : vector<8x8xf32>
    %234 = tpu.matmul %232, %233, %cst_84 {dimension_numbers = #tpu.dot_dimension_numbers<[1], [1], [0], [0], [0, 0, 1, 0], [], []>} : vector<8x8xbf16>, vector<8x8xbf16>, vector<8x8xf32> -> vector<8x8xf32>
    %cst_85 = arith.constant 0.353553385 : f32
    %235 = vector.broadcast %cst_85 : f32 to vector<8x8xf32>
    %236 = arith.mulf %234, %235 : vector<8x8xf32>
    %cst_86 = arith.constant dense<0xFF800000> : vector<8xf32>
    %237 = vector.multi_reduction <maximumf>, %236, %cst_86 [1] : vector<8x8xf32> to vector<8xf32>
    %238 = vector.shape_cast %237 : vector<8xf32> to vector<8x1xf32>
    %239 = vector.broadcast %238 : vector<8x1xf32> to vector<8x8xf32>
    %240 = arith.subf %236, %239 : vector<8x8xf32>
    %241 = math.exp %240 : vector<8x8xf32>
    %cst_87 = arith.constant dense<0.000000e+00> : vector<8xf32>
    %242 = vector.multi_reduction <add>, %241, %cst_87 [1] : vector<8x8xf32> to vector<8xf32>
    %243 = vector.shape_cast %242 : vector<8xf32> to vector<8x1xf32>
    %244 = vector.broadcast %243 : vector<8x1xf32> to vector<8x8xf32>
    %245 = arith.divf %241, %244 : vector<8x8xf32>
    %246 = arith.truncf %245 : vector<8x8xf32> to vector<8x8xbf16>
    %247 = vector.extract_strided_slice %180 {offsets = [0, 24], sizes = [8, 8], strides = [1, 1]} : vector<8x32xbf16> to vector<8x8xbf16>
    %cst_88 = arith.constant dense<0.000000e+00> : vector<8x8xf32>
    %248 = tpu.matmul %246, %247, %cst_88 {dimension_numbers = #tpu.dot_dimension_numbers<[1], [0], [0], [1], [0, 0, 1, 1], [], []>} : vector<8x8xbf16>, vector<8x8xbf16>, vector<8x8xf32> -> vector<8x8xf32>
    %249 = tpu.concatenate %197, %214, %231, %248 in 1 : vector<8x8xf32>, vector<8x8xf32>, vector<8x8xf32>, vector<8x8xf32> -> vector<8x32xf32>
    %250 = arith.truncf %249 : vector<8x32xf32> to vector<8x32xbf16>
    %cst_89 = arith.constant dense<0.000000e+00> : vector<8x32xf32>
    %251 = tpu.matmul %250, %176, %cst_89 {dimension_numbers = #tpu.dot_dimension_numbers<[1], [0], [0], [1], [0, 0, 1, 1], [], []>} : vector<8x32xbf16>, vector<32x32xbf16>, vector<8x32xf32> -> vector<8x32xf32>
    %252 = vector.broadcast %177 : vector<1x32xf32> to vector<8x32xf32>
    %253 = arith.addf %251, %252 : vector<8x32xf32>
    %c192 = arith.constant 192 : index
    %c0_90 = arith.constant 0 : index
    %254 = vector.load %arg4[%c192, %c0_90] : memref<576x128xf32, #tpu.memory_space<vmem>>, vector<8x1xf32>
    %255 = vector.broadcast %254 : vector<8x1xf32> to vector<8x32xf32>
    %256 = arith.mulf %253, %255 : vector<8x32xf32>
    %c200 = arith.constant 200 : index
    %c0_91 = arith.constant 0 : index
    %257 = vector.load %arg4[%c200, %c0_91] : memref<576x128xf32, #tpu.memory_space<vmem>>, vector<8x1xf32>
    %258 = vector.broadcast %257 : vector<8x1xf32> to vector<8x32xf32>
    %259 = arith.addf %256, %258 : vector<8x32xf32>
    %260 = arith.truncf %259 : vector<8x32xf32> to vector<8x32xbf16>
    %c400 = arith.constant 400 : index
    %c0_92 = arith.constant 0 : index
    %261 = vector.load %arg3[%c400, %c0_92] : memref<1344x128xbf16, #tpu.memory_space<vmem>>, vector<32x64xbf16>
    %cst_93 = arith.constant dense<0.000000e+00> : vector<8x64xf32>
    %262 = tpu.matmul %260, %261, %cst_93 {dimension_numbers = #tpu.dot_dimension_numbers<[1], [0], [0], [1], [0, 0, 1, 1], [], []>} : vector<8x32xbf16>, vector<32x64xbf16>, vector<8x64xf32> -> vector<8x64xf32>
    %c144_94 = arith.constant 144 : index
    %c0_95 = arith.constant 0 : index
    %263 = vector.load %arg4[%c144_94, %c0_95] : memref<576x128xf32, #tpu.memory_space<vmem>>, vector<1x64xf32>
    %264 = vector.broadcast %263 : vector<1x64xf32> to vector<8x64xf32>
    %265 = arith.addf %262, %264 : vector<8x64xf32>
    %cst_96 = arith.constant 5.000000e-01 : f32
    %266 = vector.broadcast %cst_96 : f32 to vector<8x64xf32>
    %267 = arith.mulf %266, %265 : vector<8x64xf32>
    %cst_97 = arith.constant 4.471500e-02 : f32
    %268 = vector.broadcast %cst_97 : f32 to vector<8x64xf32>
    %269 = arith.mulf %268, %265 : vector<8x64xf32>
    %270 = arith.mulf %269, %265 : vector<8x64xf32>
    %271 = arith.mulf %270, %265 : vector<8x64xf32>
    %272 = arith.addf %265, %271 : vector<8x64xf32>
    %cst_98 = arith.constant 0.797884583 : f32
    %273 = vector.broadcast %cst_98 : f32 to vector<8x64xf32>
    %274 = arith.mulf %273, %272 : vector<8x64xf32>
    %275 = math.tanh %274 : vector<8x64xf32>
    %cst_99 = arith.constant 1.000000e+00 : f32
    %276 = vector.broadcast %cst_99 : f32 to vector<8x64xf32>
    %277 = arith.addf %276, %275 : vector<8x64xf32>
    %278 = arith.mulf %267, %277 : vector<8x64xf32>
    %279 = arith.truncf %278 : vector<8x64xf32> to vector<8x64xbf16>
    %c432 = arith.constant 432 : index
    %c0_100 = arith.constant 0 : index
    %280 = vector.load %arg3[%c432, %c0_100] : memref<1344x128xbf16, #tpu.memory_space<vmem>>, vector<64x32xbf16>
    %cst_101 = arith.constant dense<0.000000e+00> : vector<8x32xf32>
    %281 = tpu.matmul %279, %280, %cst_101 {dimension_numbers = #tpu.dot_dimension_numbers<[1], [0], [0], [1], [0, 0, 1, 1], [], []>} : vector<8x64xbf16>, vector<64x32xbf16>, vector<8x32xf32> -> vector<8x32xf32>
    %c152 = arith.constant 152 : index
    %c0_102 = arith.constant 0 : index
    %282 = vector.load %arg4[%c152, %c0_102] : memref<576x128xf32, #tpu.memory_space<vmem>>, vector<1x32xf32>
    %283 = vector.broadcast %282 : vector<1x32xf32> to vector<8x32xf32>
    %284 = arith.addf %281, %283 : vector<8x32xf32>
    %285 = arith.addf %284, %259 : vector<8x32xf32>
    %c208_103 = arith.constant 208 : index
    %c0_104 = arith.constant 0 : index
    %286 = vector.load %arg4[%c208_103, %c0_104] : memref<576x128xf32, #tpu.memory_space<vmem>>, vector<8x1xf32>
    %287 = vector.broadcast %286 : vector<8x1xf32> to vector<8x32xf32>
    %288 = arith.mulf %285, %287 : vector<8x32xf32>
    %c216 = arith.constant 216 : index
    %c0_105 = arith.constant 0 : index
    %289 = vector.load %arg4[%c216, %c0_105] : memref<576x128xf32, #tpu.memory_space<vmem>>, vector<8x1xf32>
    %290 = vector.broadcast %289 : vector<8x1xf32> to vector<8x32xf32>
    %291 = arith.addf %288, %290 : vector<8x32xf32>
    %292 = arith.truncf %291 : vector<8x32xf32> to vector<8x32xbf16>
    %cst_106 = arith.constant dense<0.000000e+00> : vector<32x8xf32>
    %293 = tpu.matmul %0, %292, %cst_106 {dimension_numbers = #tpu.dot_dimension_numbers<[1], [1], [0], [0], [0, 0, 1, 0], [], []>} : vector<32x32xbf16>, vector<8x32xbf16>, vector<32x8xf32> -> vector<32x8xf32>
    %294 = arith.truncf %293 : vector<32x8xf32> to vector<32x8xbf16>
    %c496 = arith.constant 496 : index
    %c0_107 = arith.constant 0 : index
    %295 = vector.load %arg3[%c496, %c0_107] : memref<1344x128xbf16, #tpu.memory_space<vmem>>, vector<32x32xbf16>
    %c224 = arith.constant 224 : index
    %c0_108 = arith.constant 0 : index
    %296 = vector.load %arg4[%c224, %c0_108] : memref<576x128xf32, #tpu.memory_space<vmem>>, vector<1x32xf32>
    %297 = vector.extract_strided_slice %2 {offsets = [16, 0], sizes = [8, 32], strides = [1, 1]} : vector<28x32xf32> to vector<8x32xf32>
    %298 = vector.broadcast %296 : vector<1x32xf32> to vector<8x32xf32>
    %299 = arith.addf %298, %297 : vector<8x32xf32>
    %300 = vector.extract_strided_slice %294 {offsets = [0, 0], sizes = [8, 8], strides = [1, 1]} : vector<32x8xbf16> to vector<8x8xbf16>
    %301 = vector.extract_strided_slice %295 {offsets = [0, 0], sizes = [8, 32], strides = [1, 1]} : vector<32x32xbf16> to vector<8x32xbf16>
    %cst_109 = arith.constant dense<0.000000e+00> : vector<8x32xf32>
    %302 = tpu.matmul %300, %301, %cst_109 {dimension_numbers = #tpu.dot_dimension_numbers<[1], [0], [0], [1], [0, 0, 1, 1], [], []>} : vector<8x8xbf16>, vector<8x32xbf16>, vector<8x32xf32> -> vector<8x32xf32>
    %303 = arith.addf %299, %302 : vector<8x32xf32>
    %304 = vector.extract_strided_slice %294 {offsets = [8, 0], sizes = [8, 8], strides = [1, 1]} : vector<32x8xbf16> to vector<8x8xbf16>
    %305 = vector.extract_strided_slice %295 {offsets = [8, 0], sizes = [8, 32], strides = [1, 1]} : vector<32x32xbf16> to vector<8x32xbf16>
    %cst_110 = arith.constant dense<0.000000e+00> : vector<8x32xf32>
    %306 = tpu.matmul %304, %305, %cst_110 {dimension_numbers = #tpu.dot_dimension_numbers<[1], [0], [0], [1], [0, 0, 1, 1], [], []>} : vector<8x8xbf16>, vector<8x32xbf16>, vector<8x32xf32> -> vector<8x32xf32>
    %307 = arith.addf %303, %306 : vector<8x32xf32>
    %308 = vector.extract_strided_slice %294 {offsets = [16, 0], sizes = [8, 8], strides = [1, 1]} : vector<32x8xbf16> to vector<8x8xbf16>
    %309 = vector.extract_strided_slice %295 {offsets = [16, 0], sizes = [8, 32], strides = [1, 1]} : vector<32x32xbf16> to vector<8x32xbf16>
    %cst_111 = arith.constant dense<0.000000e+00> : vector<8x32xf32>
    %310 = tpu.matmul %308, %309, %cst_111 {dimension_numbers = #tpu.dot_dimension_numbers<[1], [0], [0], [1], [0, 0, 1, 1], [], []>} : vector<8x8xbf16>, vector<8x32xbf16>, vector<8x32xf32> -> vector<8x32xf32>
    %311 = arith.addf %307, %310 : vector<8x32xf32>
    %312 = vector.extract_strided_slice %294 {offsets = [24, 0], sizes = [8, 8], strides = [1, 1]} : vector<32x8xbf16> to vector<8x8xbf16>
    %313 = vector.extract_strided_slice %295 {offsets = [24, 0], sizes = [8, 32], strides = [1, 1]} : vector<32x32xbf16> to vector<8x32xbf16>
    %cst_112 = arith.constant dense<0.000000e+00> : vector<8x32xf32>
    %314 = tpu.matmul %312, %313, %cst_112 {dimension_numbers = #tpu.dot_dimension_numbers<[1], [0], [0], [1], [0, 0, 1, 1], [], []>} : vector<8x8xbf16>, vector<8x32xbf16>, vector<8x32xf32> -> vector<8x32xf32>
    %315 = arith.addf %311, %314 : vector<8x32xf32>
    %316 = arith.truncf %315 : vector<8x32xf32> to vector<8x32xbf16>
    %c528 = arith.constant 528 : index
    %c0_113 = arith.constant 0 : index
    %317 = vector.load %arg3[%c528, %c0_113] : memref<1344x128xbf16, #tpu.memory_space<vmem>>, vector<32x8xbf16>
    %cst_114 = arith.constant dense<0.000000e+00> : vector<32x32xf32>
    %318 = tpu.matmul %317, %316, %cst_114 {dimension_numbers = #tpu.dot_dimension_numbers<[1], [0], [0], [1], [0, 0, 1, 1], [], []>} : vector<32x8xbf16>, vector<8x32xbf16>, vector<32x32xf32> -> vector<32x32xf32>
    %c232 = arith.constant 232 : index
    %c0_115 = arith.constant 0 : index
    %319 = vector.load %arg4[%c232, %c0_115] : memref<576x128xf32, #tpu.memory_space<vmem>>, vector<32x1xf32>
    %320 = vector.broadcast %319 : vector<32x1xf32> to vector<32x32xf32>
    %321 = arith.addf %318, %320 : vector<32x32xf32>
    %cst_116 = arith.constant 5.000000e-01 : f32
    %322 = vector.broadcast %cst_116 : f32 to vector<32x32xf32>
    %323 = arith.mulf %322, %321 : vector<32x32xf32>
    %cst_117 = arith.constant 4.471500e-02 : f32
    %324 = vector.broadcast %cst_117 : f32 to vector<32x32xf32>
    %325 = arith.mulf %324, %321 : vector<32x32xf32>
    %326 = arith.mulf %325, %321 : vector<32x32xf32>
    %327 = arith.mulf %326, %321 : vector<32x32xf32>
    %328 = arith.addf %321, %327 : vector<32x32xf32>
    %cst_118 = arith.constant 0.797884583 : f32
    %329 = vector.broadcast %cst_118 : f32 to vector<32x32xf32>
    %330 = arith.mulf %329, %328 : vector<32x32xf32>
    %331 = math.tanh %330 : vector<32x32xf32>
    %cst_119 = arith.constant 1.000000e+00 : f32
    %332 = vector.broadcast %cst_119 : f32 to vector<32x32xf32>
    %333 = arith.addf %332, %331 : vector<32x32xf32>
    %334 = arith.mulf %323, %333 : vector<32x32xf32>
    %c560 = arith.constant 560 : index
    %c0_120 = arith.constant 0 : index
    %335 = vector.load %arg3[%c560, %c0_120] : memref<1344x128xbf16, #tpu.memory_space<vmem>>, vector<4x32xbf16>
    %336 = arith.truncf %334 : vector<32x32xf32> to vector<32x32xbf16>
    %cst_121 = arith.constant dense<0.000000e+00> : vector<4x32xf32>
    %337 = tpu.matmul %335, %336, %cst_121 {dimension_numbers = #tpu.dot_dimension_numbers<[1], [0], [0], [1], [0, 0, 1, 1], [], []>} : vector<4x32xbf16>, vector<32x32xbf16>, vector<4x32xf32> -> vector<4x32xf32>
    %c264 = arith.constant 264 : index
    %c0_122 = arith.constant 0 : index
    %338 = vector.load %arg4[%c264, %c0_122] : memref<576x128xf32, #tpu.memory_space<vmem>>, vector<4x1xf32>
    %339 = vector.broadcast %338 : vector<4x1xf32> to vector<4x32xf32>
    %340 = arith.addf %337, %339 : vector<4x32xf32>
    %341 = arith.truncf %340 : vector<4x32xf32> to vector<4x32xbf16>
    %c576 = arith.constant 576 : index
    %c0_123 = arith.constant 0 : index
    %342 = vector.load %arg3[%c576, %c0_123] : memref<1344x128xbf16, #tpu.memory_space<vmem>>, vector<32x32xbf16>
    %cst_124 = arith.constant dense<0.000000e+00> : vector<4x32xf32>
    %343 = tpu.matmul %341, %342, %cst_124 {dimension_numbers = #tpu.dot_dimension_numbers<[1], [0], [0], [1], [0, 0, 1, 1], [], []>} : vector<4x32xbf16>, vector<32x32xbf16>, vector<4x32xf32> -> vector<4x32xf32>
    %c272_125 = arith.constant 272 : index
    %c0_126 = arith.constant 0 : index
    %344 = vector.load %arg4[%c272_125, %c0_126] : memref<576x128xf32, #tpu.memory_space<vmem>>, vector<1x32xf32>
    %345 = vector.broadcast %344 : vector<1x32xf32> to vector<4x32xf32>
    %346 = arith.addf %343, %345 : vector<4x32xf32>
    %c608 = arith.constant 608 : index
    %c0_127 = arith.constant 0 : index
    %347 = vector.load %arg3[%c608, %c0_127] : memref<1344x128xbf16, #tpu.memory_space<vmem>>, vector<32x64xbf16>
    %cst_128 = arith.constant dense<0.000000e+00> : vector<8x64xf32>
    %348 = tpu.matmul %316, %347, %cst_128 {dimension_numbers = #tpu.dot_dimension_numbers<[1], [0], [0], [1], [0, 0, 1, 1], [], []>} : vector<8x32xbf16>, vector<32x64xbf16>, vector<8x64xf32> -> vector<8x64xf32>
    %c280 = arith.constant 280 : index
    %c0_129 = arith.constant 0 : index
    %349 = vector.load %arg4[%c280, %c0_129] : memref<576x128xf32, #tpu.memory_space<vmem>>, vector<1x64xf32>
    %350 = vector.broadcast %349 : vector<1x64xf32> to vector<8x64xf32>
    %351 = arith.addf %348, %350 : vector<8x64xf32>
    %352 = vector.extract_strided_slice %351 {offsets = [0, 0], sizes = [8, 32], strides = [1, 1]} : vector<8x64xf32> to vector<8x32xf32>
    %353 = vector.extract_strided_slice %351 {offsets = [0, 32], sizes = [8, 32], strides = [1, 1]} : vector<8x64xf32> to vector<8x32xf32>
    %c640 = arith.constant 640 : index
    %c0_130 = arith.constant 0 : index
    %354 = vector.load %arg3[%c640, %c0_130] : memref<1344x128xbf16, #tpu.memory_space<vmem>>, vector<32x32xbf16>
    %c288 = arith.constant 288 : index
    %c0_131 = arith.constant 0 : index
    %355 = vector.load %arg4[%c288, %c0_131] : memref<576x128xf32, #tpu.memory_space<vmem>>, vector<1x32xf32>
    %356 = arith.truncf %346 : vector<4x32xf32> to vector<4x32xbf16>
    %357 = arith.truncf %352 : vector<8x32xf32> to vector<8x32xbf16>
    %358 = arith.truncf %353 : vector<8x32xf32> to vector<8x32xbf16>
    %359 = vector.extract_strided_slice %356 {offsets = [0, 0], sizes = [4, 8], strides = [1, 1]} : vector<4x32xbf16> to vector<4x8xbf16>
    %360 = vector.extract_strided_slice %357 {offsets = [0, 0], sizes = [8, 8], strides = [1, 1]} : vector<8x32xbf16> to vector<8x8xbf16>
    %cst_132 = arith.constant dense<0.000000e+00> : vector<4x8xf32>
    %361 = tpu.matmul %359, %360, %cst_132 {dimension_numbers = #tpu.dot_dimension_numbers<[1], [1], [0], [0], [0, 0, 1, 0], [], []>} : vector<4x8xbf16>, vector<8x8xbf16>, vector<4x8xf32> -> vector<4x8xf32>
    %cst_133 = arith.constant 0.353553385 : f32
    %362 = vector.broadcast %cst_133 : f32 to vector<4x8xf32>
    %363 = arith.mulf %361, %362 : vector<4x8xf32>
    %cst_134 = arith.constant dense<0xFF800000> : vector<4xf32>
    %364 = vector.multi_reduction <maximumf>, %363, %cst_134 [1] : vector<4x8xf32> to vector<4xf32>
    %365 = vector.shape_cast %364 : vector<4xf32> to vector<4x1xf32>
    %366 = vector.broadcast %365 : vector<4x1xf32> to vector<4x8xf32>
    %367 = arith.subf %363, %366 : vector<4x8xf32>
    %368 = math.exp %367 : vector<4x8xf32>
    %cst_135 = arith.constant dense<0.000000e+00> : vector<4xf32>
    %369 = vector.multi_reduction <add>, %368, %cst_135 [1] : vector<4x8xf32> to vector<4xf32>
    %370 = vector.shape_cast %369 : vector<4xf32> to vector<4x1xf32>
    %371 = vector.broadcast %370 : vector<4x1xf32> to vector<4x8xf32>
    %372 = arith.divf %368, %371 : vector<4x8xf32>
    %373 = arith.truncf %372 : vector<4x8xf32> to vector<4x8xbf16>
    %374 = vector.extract_strided_slice %358 {offsets = [0, 0], sizes = [8, 8], strides = [1, 1]} : vector<8x32xbf16> to vector<8x8xbf16>
    %cst_136 = arith.constant dense<0.000000e+00> : vector<4x8xf32>
    %375 = tpu.matmul %373, %374, %cst_136 {dimension_numbers = #tpu.dot_dimension_numbers<[1], [0], [0], [1], [0, 0, 1, 1], [], []>} : vector<4x8xbf16>, vector<8x8xbf16>, vector<4x8xf32> -> vector<4x8xf32>
    %376 = vector.extract_strided_slice %356 {offsets = [0, 8], sizes = [4, 8], strides = [1, 1]} : vector<4x32xbf16> to vector<4x8xbf16>
    %377 = vector.extract_strided_slice %357 {offsets = [0, 8], sizes = [8, 8], strides = [1, 1]} : vector<8x32xbf16> to vector<8x8xbf16>
    %cst_137 = arith.constant dense<0.000000e+00> : vector<4x8xf32>
    %378 = tpu.matmul %376, %377, %cst_137 {dimension_numbers = #tpu.dot_dimension_numbers<[1], [1], [0], [0], [0, 0, 1, 0], [], []>} : vector<4x8xbf16>, vector<8x8xbf16>, vector<4x8xf32> -> vector<4x8xf32>
    %cst_138 = arith.constant 0.353553385 : f32
    %379 = vector.broadcast %cst_138 : f32 to vector<4x8xf32>
    %380 = arith.mulf %378, %379 : vector<4x8xf32>
    %cst_139 = arith.constant dense<0xFF800000> : vector<4xf32>
    %381 = vector.multi_reduction <maximumf>, %380, %cst_139 [1] : vector<4x8xf32> to vector<4xf32>
    %382 = vector.shape_cast %381 : vector<4xf32> to vector<4x1xf32>
    %383 = vector.broadcast %382 : vector<4x1xf32> to vector<4x8xf32>
    %384 = arith.subf %380, %383 : vector<4x8xf32>
    %385 = math.exp %384 : vector<4x8xf32>
    %cst_140 = arith.constant dense<0.000000e+00> : vector<4xf32>
    %386 = vector.multi_reduction <add>, %385, %cst_140 [1] : vector<4x8xf32> to vector<4xf32>
    %387 = vector.shape_cast %386 : vector<4xf32> to vector<4x1xf32>
    %388 = vector.broadcast %387 : vector<4x1xf32> to vector<4x8xf32>
    %389 = arith.divf %385, %388 : vector<4x8xf32>
    %390 = arith.truncf %389 : vector<4x8xf32> to vector<4x8xbf16>
    %391 = vector.extract_strided_slice %358 {offsets = [0, 8], sizes = [8, 8], strides = [1, 1]} : vector<8x32xbf16> to vector<8x8xbf16>
    %cst_141 = arith.constant dense<0.000000e+00> : vector<4x8xf32>
    %392 = tpu.matmul %390, %391, %cst_141 {dimension_numbers = #tpu.dot_dimension_numbers<[1], [0], [0], [1], [0, 0, 1, 1], [], []>} : vector<4x8xbf16>, vector<8x8xbf16>, vector<4x8xf32> -> vector<4x8xf32>
    %393 = vector.extract_strided_slice %356 {offsets = [0, 16], sizes = [4, 8], strides = [1, 1]} : vector<4x32xbf16> to vector<4x8xbf16>
    %394 = vector.extract_strided_slice %357 {offsets = [0, 16], sizes = [8, 8], strides = [1, 1]} : vector<8x32xbf16> to vector<8x8xbf16>
    %cst_142 = arith.constant dense<0.000000e+00> : vector<4x8xf32>
    %395 = tpu.matmul %393, %394, %cst_142 {dimension_numbers = #tpu.dot_dimension_numbers<[1], [1], [0], [0], [0, 0, 1, 0], [], []>} : vector<4x8xbf16>, vector<8x8xbf16>, vector<4x8xf32> -> vector<4x8xf32>
    %cst_143 = arith.constant 0.353553385 : f32
    %396 = vector.broadcast %cst_143 : f32 to vector<4x8xf32>
    %397 = arith.mulf %395, %396 : vector<4x8xf32>
    %cst_144 = arith.constant dense<0xFF800000> : vector<4xf32>
    %398 = vector.multi_reduction <maximumf>, %397, %cst_144 [1] : vector<4x8xf32> to vector<4xf32>
    %399 = vector.shape_cast %398 : vector<4xf32> to vector<4x1xf32>
    %400 = vector.broadcast %399 : vector<4x1xf32> to vector<4x8xf32>
    %401 = arith.subf %397, %400 : vector<4x8xf32>
    %402 = math.exp %401 : vector<4x8xf32>
    %cst_145 = arith.constant dense<0.000000e+00> : vector<4xf32>
    %403 = vector.multi_reduction <add>, %402, %cst_145 [1] : vector<4x8xf32> to vector<4xf32>
    %404 = vector.shape_cast %403 : vector<4xf32> to vector<4x1xf32>
    %405 = vector.broadcast %404 : vector<4x1xf32> to vector<4x8xf32>
    %406 = arith.divf %402, %405 : vector<4x8xf32>
    %407 = arith.truncf %406 : vector<4x8xf32> to vector<4x8xbf16>
    %408 = vector.extract_strided_slice %358 {offsets = [0, 16], sizes = [8, 8], strides = [1, 1]} : vector<8x32xbf16> to vector<8x8xbf16>
    %cst_146 = arith.constant dense<0.000000e+00> : vector<4x8xf32>
    %409 = tpu.matmul %407, %408, %cst_146 {dimension_numbers = #tpu.dot_dimension_numbers<[1], [0], [0], [1], [0, 0, 1, 1], [], []>} : vector<4x8xbf16>, vector<8x8xbf16>, vector<4x8xf32> -> vector<4x8xf32>
    %410 = vector.extract_strided_slice %356 {offsets = [0, 24], sizes = [4, 8], strides = [1, 1]} : vector<4x32xbf16> to vector<4x8xbf16>
    %411 = vector.extract_strided_slice %357 {offsets = [0, 24], sizes = [8, 8], strides = [1, 1]} : vector<8x32xbf16> to vector<8x8xbf16>
    %cst_147 = arith.constant dense<0.000000e+00> : vector<4x8xf32>
    %412 = tpu.matmul %410, %411, %cst_147 {dimension_numbers = #tpu.dot_dimension_numbers<[1], [1], [0], [0], [0, 0, 1, 0], [], []>} : vector<4x8xbf16>, vector<8x8xbf16>, vector<4x8xf32> -> vector<4x8xf32>
    %cst_148 = arith.constant 0.353553385 : f32
    %413 = vector.broadcast %cst_148 : f32 to vector<4x8xf32>
    %414 = arith.mulf %412, %413 : vector<4x8xf32>
    %cst_149 = arith.constant dense<0xFF800000> : vector<4xf32>
    %415 = vector.multi_reduction <maximumf>, %414, %cst_149 [1] : vector<4x8xf32> to vector<4xf32>
    %416 = vector.shape_cast %415 : vector<4xf32> to vector<4x1xf32>
    %417 = vector.broadcast %416 : vector<4x1xf32> to vector<4x8xf32>
    %418 = arith.subf %414, %417 : vector<4x8xf32>
    %419 = math.exp %418 : vector<4x8xf32>
    %cst_150 = arith.constant dense<0.000000e+00> : vector<4xf32>
    %420 = vector.multi_reduction <add>, %419, %cst_150 [1] : vector<4x8xf32> to vector<4xf32>
    %421 = vector.shape_cast %420 : vector<4xf32> to vector<4x1xf32>
    %422 = vector.broadcast %421 : vector<4x1xf32> to vector<4x8xf32>
    %423 = arith.divf %419, %422 : vector<4x8xf32>
    %424 = arith.truncf %423 : vector<4x8xf32> to vector<4x8xbf16>
    %425 = vector.extract_strided_slice %358 {offsets = [0, 24], sizes = [8, 8], strides = [1, 1]} : vector<8x32xbf16> to vector<8x8xbf16>
    %cst_151 = arith.constant dense<0.000000e+00> : vector<4x8xf32>
    %426 = tpu.matmul %424, %425, %cst_151 {dimension_numbers = #tpu.dot_dimension_numbers<[1], [0], [0], [1], [0, 0, 1, 1], [], []>} : vector<4x8xbf16>, vector<8x8xbf16>, vector<4x8xf32> -> vector<4x8xf32>
    %427 = tpu.concatenate %375, %392, %409, %426 in 1 : vector<4x8xf32>, vector<4x8xf32>, vector<4x8xf32>, vector<4x8xf32> -> vector<4x32xf32>
    %428 = arith.truncf %427 : vector<4x32xf32> to vector<4x32xbf16>
    %cst_152 = arith.constant dense<0.000000e+00> : vector<4x32xf32>
    %429 = tpu.matmul %428, %354, %cst_152 {dimension_numbers = #tpu.dot_dimension_numbers<[1], [0], [0], [1], [0, 0, 1, 1], [], []>} : vector<4x32xbf16>, vector<32x32xbf16>, vector<4x32xf32> -> vector<4x32xf32>
    %430 = vector.broadcast %355 : vector<1x32xf32> to vector<4x32xf32>
    %431 = arith.addf %429, %430 : vector<4x32xf32>
    %c344 = arith.constant 344 : index
    %c0_153 = arith.constant 0 : index
    %432 = vector.load %arg4[%c344, %c0_153] : memref<576x128xf32, #tpu.memory_space<vmem>>, vector<4x1xf32>
    %433 = vector.broadcast %432 : vector<4x1xf32> to vector<4x32xf32>
    %434 = arith.mulf %431, %433 : vector<4x32xf32>
    %c352 = arith.constant 352 : index
    %c0_154 = arith.constant 0 : index
    %435 = vector.load %arg4[%c352, %c0_154] : memref<576x128xf32, #tpu.memory_space<vmem>>, vector<4x1xf32>
    %436 = vector.broadcast %435 : vector<4x1xf32> to vector<4x32xf32>
    %437 = arith.addf %434, %436 : vector<4x32xf32>
    %438 = arith.truncf %437 : vector<4x32xf32> to vector<4x32xbf16>
    %c672 = arith.constant 672 : index
    %c0_155 = arith.constant 0 : index
    %439 = vector.load %arg3[%c672, %c0_155] : memref<1344x128xbf16, #tpu.memory_space<vmem>>, vector<32x64xbf16>
    %cst_156 = arith.constant dense<0.000000e+00> : vector<4x64xf32>
    %440 = tpu.matmul %438, %439, %cst_156 {dimension_numbers = #tpu.dot_dimension_numbers<[1], [0], [0], [1], [0, 0, 1, 1], [], []>} : vector<4x32xbf16>, vector<32x64xbf16>, vector<4x64xf32> -> vector<4x64xf32>
    %c296 = arith.constant 296 : index
    %c0_157 = arith.constant 0 : index
    %441 = vector.load %arg4[%c296, %c0_157] : memref<576x128xf32, #tpu.memory_space<vmem>>, vector<1x64xf32>
    %442 = vector.broadcast %441 : vector<1x64xf32> to vector<4x64xf32>
    %443 = arith.addf %440, %442 : vector<4x64xf32>
    %cst_158 = arith.constant 5.000000e-01 : f32
    %444 = vector.broadcast %cst_158 : f32 to vector<4x64xf32>
    %445 = arith.mulf %444, %443 : vector<4x64xf32>
    %cst_159 = arith.constant 4.471500e-02 : f32
    %446 = vector.broadcast %cst_159 : f32 to vector<4x64xf32>
    %447 = arith.mulf %446, %443 : vector<4x64xf32>
    %448 = arith.mulf %447, %443 : vector<4x64xf32>
    %449 = arith.mulf %448, %443 : vector<4x64xf32>
    %450 = arith.addf %443, %449 : vector<4x64xf32>
    %cst_160 = arith.constant 0.797884583 : f32
    %451 = vector.broadcast %cst_160 : f32 to vector<4x64xf32>
    %452 = arith.mulf %451, %450 : vector<4x64xf32>
    %453 = math.tanh %452 : vector<4x64xf32>
    %cst_161 = arith.constant 1.000000e+00 : f32
    %454 = vector.broadcast %cst_161 : f32 to vector<4x64xf32>
    %455 = arith.addf %454, %453 : vector<4x64xf32>
    %456 = arith.mulf %445, %455 : vector<4x64xf32>
    %457 = arith.truncf %456 : vector<4x64xf32> to vector<4x64xbf16>
    %c704 = arith.constant 704 : index
    %c0_162 = arith.constant 0 : index
    %458 = vector.load %arg3[%c704, %c0_162] : memref<1344x128xbf16, #tpu.memory_space<vmem>>, vector<64x32xbf16>
    %cst_163 = arith.constant dense<0.000000e+00> : vector<4x32xf32>
    %459 = tpu.matmul %457, %458, %cst_163 {dimension_numbers = #tpu.dot_dimension_numbers<[1], [0], [0], [1], [0, 0, 1, 1], [], []>} : vector<4x64xbf16>, vector<64x32xbf16>, vector<4x32xf32> -> vector<4x32xf32>
    %c304 = arith.constant 304 : index
    %c0_164 = arith.constant 0 : index
    %460 = vector.load %arg4[%c304, %c0_164] : memref<576x128xf32, #tpu.memory_space<vmem>>, vector<1x32xf32>
    %461 = vector.broadcast %460 : vector<1x32xf32> to vector<4x32xf32>
    %462 = arith.addf %459, %461 : vector<4x32xf32>
    %463 = arith.addf %462, %437 : vector<4x32xf32>
    %c360 = arith.constant 360 : index
    %c0_165 = arith.constant 0 : index
    %464 = vector.load %arg4[%c360, %c0_165] : memref<576x128xf32, #tpu.memory_space<vmem>>, vector<4x1xf32>
    %465 = vector.broadcast %464 : vector<4x1xf32> to vector<4x32xf32>
    %466 = arith.mulf %463, %465 : vector<4x32xf32>
    %c368_166 = arith.constant 368 : index
    %c0_167 = arith.constant 0 : index
    %467 = vector.load %arg4[%c368_166, %c0_167] : memref<576x128xf32, #tpu.memory_space<vmem>>, vector<4x1xf32>
    %468 = vector.broadcast %467 : vector<4x1xf32> to vector<4x32xf32>
    %469 = arith.addf %466, %468 : vector<4x32xf32>
    %470 = arith.truncf %469 : vector<4x32xf32> to vector<4x32xbf16>
    %c768 = arith.constant 768 : index
    %c0_168 = arith.constant 0 : index
    %471 = vector.load %arg3[%c768, %c0_168] : memref<1344x128xbf16, #tpu.memory_space<vmem>>, vector<32x96xbf16>
    %cst_169 = arith.constant dense<0.000000e+00> : vector<4x96xf32>
    %472 = tpu.matmul %470, %471, %cst_169 {dimension_numbers = #tpu.dot_dimension_numbers<[1], [0], [0], [1], [0, 0, 1, 1], [], []>} : vector<4x32xbf16>, vector<32x96xbf16>, vector<4x96xf32> -> vector<4x96xf32>
    %c312 = arith.constant 312 : index
    %c0_170 = arith.constant 0 : index
    %473 = vector.load %arg4[%c312, %c0_170] : memref<576x128xf32, #tpu.memory_space<vmem>>, vector<1x96xf32>
    %474 = vector.broadcast %473 : vector<1x96xf32> to vector<4x96xf32>
    %475 = arith.addf %472, %474 : vector<4x96xf32>
    %476 = vector.extract_strided_slice %475 {offsets = [0, 0], sizes = [4, 32], strides = [1, 1]} : vector<4x96xf32> to vector<4x32xf32>
    %477 = vector.extract_strided_slice %475 {offsets = [0, 32], sizes = [4, 32], strides = [1, 1]} : vector<4x96xf32> to vector<4x32xf32>
    %478 = vector.extract_strided_slice %475 {offsets = [0, 64], sizes = [4, 32], strides = [1, 1]} : vector<4x96xf32> to vector<4x32xf32>
    %c800 = arith.constant 800 : index
    %c0_171 = arith.constant 0 : index
    %479 = vector.load %arg3[%c800, %c0_171] : memref<1344x128xbf16, #tpu.memory_space<vmem>>, vector<32x32xbf16>
    %c320 = arith.constant 320 : index
    %c0_172 = arith.constant 0 : index
    %480 = vector.load %arg4[%c320, %c0_172] : memref<576x128xf32, #tpu.memory_space<vmem>>, vector<1x32xf32>
    %481 = arith.truncf %476 : vector<4x32xf32> to vector<4x32xbf16>
    %482 = arith.truncf %477 : vector<4x32xf32> to vector<4x32xbf16>
    %483 = arith.truncf %478 : vector<4x32xf32> to vector<4x32xbf16>
    %484 = vector.extract_strided_slice %481 {offsets = [0, 0], sizes = [4, 8], strides = [1, 1]} : vector<4x32xbf16> to vector<4x8xbf16>
    %485 = vector.extract_strided_slice %482 {offsets = [0, 0], sizes = [4, 8], strides = [1, 1]} : vector<4x32xbf16> to vector<4x8xbf16>
    %cst_173 = arith.constant dense<0.000000e+00> : vector<4x4xf32>
    %486 = tpu.matmul %484, %485, %cst_173 {dimension_numbers = #tpu.dot_dimension_numbers<[1], [1], [0], [0], [0, 0, 1, 0], [], []>} : vector<4x8xbf16>, vector<4x8xbf16>, vector<4x4xf32> -> vector<4x4xf32>
    %cst_174 = arith.constant 0.353553385 : f32
    %487 = vector.broadcast %cst_174 : f32 to vector<4x4xf32>
    %488 = arith.mulf %486, %487 : vector<4x4xf32>
    %cst_175 = arith.constant dense<0xFF800000> : vector<4xf32>
    %489 = vector.multi_reduction <maximumf>, %488, %cst_175 [1] : vector<4x4xf32> to vector<4xf32>
    %490 = vector.shape_cast %489 : vector<4xf32> to vector<4x1xf32>
    %491 = vector.broadcast %490 : vector<4x1xf32> to vector<4x4xf32>
    %492 = arith.subf %488, %491 : vector<4x4xf32>
    %493 = math.exp %492 : vector<4x4xf32>
    %cst_176 = arith.constant dense<0.000000e+00> : vector<4xf32>
    %494 = vector.multi_reduction <add>, %493, %cst_176 [1] : vector<4x4xf32> to vector<4xf32>
    %495 = vector.shape_cast %494 : vector<4xf32> to vector<4x1xf32>
    %496 = vector.broadcast %495 : vector<4x1xf32> to vector<4x4xf32>
    %497 = arith.divf %493, %496 : vector<4x4xf32>
    %498 = arith.truncf %497 : vector<4x4xf32> to vector<4x4xbf16>
    %499 = vector.extract_strided_slice %483 {offsets = [0, 0], sizes = [4, 8], strides = [1, 1]} : vector<4x32xbf16> to vector<4x8xbf16>
    %cst_177 = arith.constant dense<0.000000e+00> : vector<4x8xf32>
    %500 = tpu.matmul %498, %499, %cst_177 {dimension_numbers = #tpu.dot_dimension_numbers<[1], [0], [0], [1], [0, 0, 1, 1], [], []>} : vector<4x4xbf16>, vector<4x8xbf16>, vector<4x8xf32> -> vector<4x8xf32>
    %501 = vector.extract_strided_slice %481 {offsets = [0, 8], sizes = [4, 8], strides = [1, 1]} : vector<4x32xbf16> to vector<4x8xbf16>
    %502 = vector.extract_strided_slice %482 {offsets = [0, 8], sizes = [4, 8], strides = [1, 1]} : vector<4x32xbf16> to vector<4x8xbf16>
    %cst_178 = arith.constant dense<0.000000e+00> : vector<4x4xf32>
    %503 = tpu.matmul %501, %502, %cst_178 {dimension_numbers = #tpu.dot_dimension_numbers<[1], [1], [0], [0], [0, 0, 1, 0], [], []>} : vector<4x8xbf16>, vector<4x8xbf16>, vector<4x4xf32> -> vector<4x4xf32>
    %cst_179 = arith.constant 0.353553385 : f32
    %504 = vector.broadcast %cst_179 : f32 to vector<4x4xf32>
    %505 = arith.mulf %503, %504 : vector<4x4xf32>
    %cst_180 = arith.constant dense<0xFF800000> : vector<4xf32>
    %506 = vector.multi_reduction <maximumf>, %505, %cst_180 [1] : vector<4x4xf32> to vector<4xf32>
    %507 = vector.shape_cast %506 : vector<4xf32> to vector<4x1xf32>
    %508 = vector.broadcast %507 : vector<4x1xf32> to vector<4x4xf32>
    %509 = arith.subf %505, %508 : vector<4x4xf32>
    %510 = math.exp %509 : vector<4x4xf32>
    %cst_181 = arith.constant dense<0.000000e+00> : vector<4xf32>
    %511 = vector.multi_reduction <add>, %510, %cst_181 [1] : vector<4x4xf32> to vector<4xf32>
    %512 = vector.shape_cast %511 : vector<4xf32> to vector<4x1xf32>
    %513 = vector.broadcast %512 : vector<4x1xf32> to vector<4x4xf32>
    %514 = arith.divf %510, %513 : vector<4x4xf32>
    %515 = arith.truncf %514 : vector<4x4xf32> to vector<4x4xbf16>
    %516 = vector.extract_strided_slice %483 {offsets = [0, 8], sizes = [4, 8], strides = [1, 1]} : vector<4x32xbf16> to vector<4x8xbf16>
    %cst_182 = arith.constant dense<0.000000e+00> : vector<4x8xf32>
    %517 = tpu.matmul %515, %516, %cst_182 {dimension_numbers = #tpu.dot_dimension_numbers<[1], [0], [0], [1], [0, 0, 1, 1], [], []>} : vector<4x4xbf16>, vector<4x8xbf16>, vector<4x8xf32> -> vector<4x8xf32>
    %518 = vector.extract_strided_slice %481 {offsets = [0, 16], sizes = [4, 8], strides = [1, 1]} : vector<4x32xbf16> to vector<4x8xbf16>
    %519 = vector.extract_strided_slice %482 {offsets = [0, 16], sizes = [4, 8], strides = [1, 1]} : vector<4x32xbf16> to vector<4x8xbf16>
    %cst_183 = arith.constant dense<0.000000e+00> : vector<4x4xf32>
    %520 = tpu.matmul %518, %519, %cst_183 {dimension_numbers = #tpu.dot_dimension_numbers<[1], [1], [0], [0], [0, 0, 1, 0], [], []>} : vector<4x8xbf16>, vector<4x8xbf16>, vector<4x4xf32> -> vector<4x4xf32>
    %cst_184 = arith.constant 0.353553385 : f32
    %521 = vector.broadcast %cst_184 : f32 to vector<4x4xf32>
    %522 = arith.mulf %520, %521 : vector<4x4xf32>
    %cst_185 = arith.constant dense<0xFF800000> : vector<4xf32>
    %523 = vector.multi_reduction <maximumf>, %522, %cst_185 [1] : vector<4x4xf32> to vector<4xf32>
    %524 = vector.shape_cast %523 : vector<4xf32> to vector<4x1xf32>
    %525 = vector.broadcast %524 : vector<4x1xf32> to vector<4x4xf32>
    %526 = arith.subf %522, %525 : vector<4x4xf32>
    %527 = math.exp %526 : vector<4x4xf32>
    %cst_186 = arith.constant dense<0.000000e+00> : vector<4xf32>
    %528 = vector.multi_reduction <add>, %527, %cst_186 [1] : vector<4x4xf32> to vector<4xf32>
    %529 = vector.shape_cast %528 : vector<4xf32> to vector<4x1xf32>
    %530 = vector.broadcast %529 : vector<4x1xf32> to vector<4x4xf32>
    %531 = arith.divf %527, %530 : vector<4x4xf32>
    %532 = arith.truncf %531 : vector<4x4xf32> to vector<4x4xbf16>
    %533 = vector.extract_strided_slice %483 {offsets = [0, 16], sizes = [4, 8], strides = [1, 1]} : vector<4x32xbf16> to vector<4x8xbf16>
    %cst_187 = arith.constant dense<0.000000e+00> : vector<4x8xf32>
    %534 = tpu.matmul %532, %533, %cst_187 {dimension_numbers = #tpu.dot_dimension_numbers<[1], [0], [0], [1], [0, 0, 1, 1], [], []>} : vector<4x4xbf16>, vector<4x8xbf16>, vector<4x8xf32> -> vector<4x8xf32>
    %535 = vector.extract_strided_slice %481 {offsets = [0, 24], sizes = [4, 8], strides = [1, 1]} : vector<4x32xbf16> to vector<4x8xbf16>
    %536 = vector.extract_strided_slice %482 {offsets = [0, 24], sizes = [4, 8], strides = [1, 1]} : vector<4x32xbf16> to vector<4x8xbf16>
    %cst_188 = arith.constant dense<0.000000e+00> : vector<4x4xf32>
    %537 = tpu.matmul %535, %536, %cst_188 {dimension_numbers = #tpu.dot_dimension_numbers<[1], [1], [0], [0], [0, 0, 1, 0], [], []>} : vector<4x8xbf16>, vector<4x8xbf16>, vector<4x4xf32> -> vector<4x4xf32>
    %cst_189 = arith.constant 0.353553385 : f32
    %538 = vector.broadcast %cst_189 : f32 to vector<4x4xf32>
    %539 = arith.mulf %537, %538 : vector<4x4xf32>
    %cst_190 = arith.constant dense<0xFF800000> : vector<4xf32>
    %540 = vector.multi_reduction <maximumf>, %539, %cst_190 [1] : vector<4x4xf32> to vector<4xf32>
    %541 = vector.shape_cast %540 : vector<4xf32> to vector<4x1xf32>
    %542 = vector.broadcast %541 : vector<4x1xf32> to vector<4x4xf32>
    %543 = arith.subf %539, %542 : vector<4x4xf32>
    %544 = math.exp %543 : vector<4x4xf32>
    %cst_191 = arith.constant dense<0.000000e+00> : vector<4xf32>
    %545 = vector.multi_reduction <add>, %544, %cst_191 [1] : vector<4x4xf32> to vector<4xf32>
    %546 = vector.shape_cast %545 : vector<4xf32> to vector<4x1xf32>
    %547 = vector.broadcast %546 : vector<4x1xf32> to vector<4x4xf32>
    %548 = arith.divf %544, %547 : vector<4x4xf32>
    %549 = arith.truncf %548 : vector<4x4xf32> to vector<4x4xbf16>
    %550 = vector.extract_strided_slice %483 {offsets = [0, 24], sizes = [4, 8], strides = [1, 1]} : vector<4x32xbf16> to vector<4x8xbf16>
    %cst_192 = arith.constant dense<0.000000e+00> : vector<4x8xf32>
    %551 = tpu.matmul %549, %550, %cst_192 {dimension_numbers = #tpu.dot_dimension_numbers<[1], [0], [0], [1], [0, 0, 1, 1], [], []>} : vector<4x4xbf16>, vector<4x8xbf16>, vector<4x8xf32> -> vector<4x8xf32>
    %552 = tpu.concatenate %500, %517, %534, %551 in 1 : vector<4x8xf32>, vector<4x8xf32>, vector<4x8xf32>, vector<4x8xf32> -> vector<4x32xf32>
    %553 = arith.truncf %552 : vector<4x32xf32> to vector<4x32xbf16>
    %cst_193 = arith.constant dense<0.000000e+00> : vector<4x32xf32>
    %554 = tpu.matmul %553, %479, %cst_193 {dimension_numbers = #tpu.dot_dimension_numbers<[1], [0], [0], [1], [0, 0, 1, 1], [], []>} : vector<4x32xbf16>, vector<32x32xbf16>, vector<4x32xf32> -> vector<4x32xf32>
    %555 = vector.broadcast %480 : vector<1x32xf32> to vector<4x32xf32>
    %556 = arith.addf %554, %555 : vector<4x32xf32>
    %c376 = arith.constant 376 : index
    %c0_194 = arith.constant 0 : index
    %557 = vector.load %arg4[%c376, %c0_194] : memref<576x128xf32, #tpu.memory_space<vmem>>, vector<4x1xf32>
    %558 = vector.broadcast %557 : vector<4x1xf32> to vector<4x32xf32>
    %559 = arith.mulf %556, %558 : vector<4x32xf32>
    %c384 = arith.constant 384 : index
    %c0_195 = arith.constant 0 : index
    %560 = vector.load %arg4[%c384, %c0_195] : memref<576x128xf32, #tpu.memory_space<vmem>>, vector<4x1xf32>
    %561 = vector.broadcast %560 : vector<4x1xf32> to vector<4x32xf32>
    %562 = arith.addf %559, %561 : vector<4x32xf32>
    %563 = arith.truncf %562 : vector<4x32xf32> to vector<4x32xbf16>
    %c832 = arith.constant 832 : index
    %c0_196 = arith.constant 0 : index
    %564 = vector.load %arg3[%c832, %c0_196] : memref<1344x128xbf16, #tpu.memory_space<vmem>>, vector<32x64xbf16>
    %cst_197 = arith.constant dense<0.000000e+00> : vector<4x64xf32>
    %565 = tpu.matmul %563, %564, %cst_197 {dimension_numbers = #tpu.dot_dimension_numbers<[1], [0], [0], [1], [0, 0, 1, 1], [], []>} : vector<4x32xbf16>, vector<32x64xbf16>, vector<4x64xf32> -> vector<4x64xf32>
    %c328 = arith.constant 328 : index
    %c0_198 = arith.constant 0 : index
    %566 = vector.load %arg4[%c328, %c0_198] : memref<576x128xf32, #tpu.memory_space<vmem>>, vector<1x64xf32>
    %567 = vector.broadcast %566 : vector<1x64xf32> to vector<4x64xf32>
    %568 = arith.addf %565, %567 : vector<4x64xf32>
    %cst_199 = arith.constant 5.000000e-01 : f32
    %569 = vector.broadcast %cst_199 : f32 to vector<4x64xf32>
    %570 = arith.mulf %569, %568 : vector<4x64xf32>
    %cst_200 = arith.constant 4.471500e-02 : f32
    %571 = vector.broadcast %cst_200 : f32 to vector<4x64xf32>
    %572 = arith.mulf %571, %568 : vector<4x64xf32>
    %573 = arith.mulf %572, %568 : vector<4x64xf32>
    %574 = arith.mulf %573, %568 : vector<4x64xf32>
    %575 = arith.addf %568, %574 : vector<4x64xf32>
    %cst_201 = arith.constant 0.797884583 : f32
    %576 = vector.broadcast %cst_201 : f32 to vector<4x64xf32>
    %577 = arith.mulf %576, %575 : vector<4x64xf32>
    %578 = math.tanh %577 : vector<4x64xf32>
    %cst_202 = arith.constant 1.000000e+00 : f32
    %579 = vector.broadcast %cst_202 : f32 to vector<4x64xf32>
    %580 = arith.addf %579, %578 : vector<4x64xf32>
    %581 = arith.mulf %570, %580 : vector<4x64xf32>
    %582 = arith.truncf %581 : vector<4x64xf32> to vector<4x64xbf16>
    %c864 = arith.constant 864 : index
    %c0_203 = arith.constant 0 : index
    %583 = vector.load %arg3[%c864, %c0_203] : memref<1344x128xbf16, #tpu.memory_space<vmem>>, vector<64x32xbf16>
    %cst_204 = arith.constant dense<0.000000e+00> : vector<4x32xf32>
    %584 = tpu.matmul %582, %583, %cst_204 {dimension_numbers = #tpu.dot_dimension_numbers<[1], [0], [0], [1], [0, 0, 1, 1], [], []>} : vector<4x64xbf16>, vector<64x32xbf16>, vector<4x32xf32> -> vector<4x32xf32>
    %c336_205 = arith.constant 336 : index
    %c0_206 = arith.constant 0 : index
    %585 = vector.load %arg4[%c336_205, %c0_206] : memref<576x128xf32, #tpu.memory_space<vmem>>, vector<1x32xf32>
    %586 = vector.broadcast %585 : vector<1x32xf32> to vector<4x32xf32>
    %587 = arith.addf %584, %586 : vector<4x32xf32>
    %588 = arith.addf %587, %562 : vector<4x32xf32>
    %c392 = arith.constant 392 : index
    %c0_207 = arith.constant 0 : index
    %589 = vector.load %arg4[%c392, %c0_207] : memref<576x128xf32, #tpu.memory_space<vmem>>, vector<4x1xf32>
    %590 = vector.broadcast %589 : vector<4x1xf32> to vector<4x32xf32>
    %591 = arith.mulf %588, %590 : vector<4x32xf32>
    %c400_208 = arith.constant 400 : index
    %c0_209 = arith.constant 0 : index
    %592 = vector.load %arg4[%c400_208, %c0_209] : memref<576x128xf32, #tpu.memory_space<vmem>>, vector<4x1xf32>
    %593 = vector.broadcast %592 : vector<4x1xf32> to vector<4x32xf32>
    %594 = arith.addf %591, %593 : vector<4x32xf32>
    %595 = arith.truncf %594 : vector<4x32xf32> to vector<4x32xbf16>
    %cst_210 = arith.constant dense<0.000000e+00> : vector<32x4xf32>
    %596 = tpu.matmul %0, %595, %cst_210 {dimension_numbers = #tpu.dot_dimension_numbers<[1], [1], [0], [0], [0, 0, 1, 0], [], []>} : vector<32x32xbf16>, vector<4x32xbf16>, vector<32x4xf32> -> vector<32x4xf32>
    %597 = arith.truncf %596 : vector<32x4xf32> to vector<32x4xbf16>
    %c928 = arith.constant 928 : index
    %c0_211 = arith.constant 0 : index
    %598 = vector.load %arg3[%c928, %c0_211] : memref<1344x128xbf16, #tpu.memory_space<vmem>>, vector<32x32xbf16>
    %c408 = arith.constant 408 : index
    %c0_212 = arith.constant 0 : index
    %599 = vector.load %arg4[%c408, %c0_212] : memref<576x128xf32, #tpu.memory_space<vmem>>, vector<1x32xf32>
    %600 = vector.extract_strided_slice %2 {offsets = [24, 0], sizes = [4, 32], strides = [1, 1]} : vector<28x32xf32> to vector<4x32xf32>
    %601 = vector.broadcast %599 : vector<1x32xf32> to vector<4x32xf32>
    %602 = arith.addf %601, %600 : vector<4x32xf32>
    %603 = vector.extract_strided_slice %597 {offsets = [0, 0], sizes = [4, 4], strides = [1, 1]} : vector<32x4xbf16> to vector<4x4xbf16>
    %604 = vector.extract_strided_slice %598 {offsets = [0, 0], sizes = [4, 32], strides = [1, 1]} : vector<32x32xbf16> to vector<4x32xbf16>
    %cst_213 = arith.constant dense<0.000000e+00> : vector<4x32xf32>
    %605 = tpu.matmul %603, %604, %cst_213 {dimension_numbers = #tpu.dot_dimension_numbers<[1], [0], [0], [1], [0, 0, 1, 1], [], []>} : vector<4x4xbf16>, vector<4x32xbf16>, vector<4x32xf32> -> vector<4x32xf32>
    %606 = arith.addf %602, %605 : vector<4x32xf32>
    %607 = vector.extract_strided_slice %597 {offsets = [4, 0], sizes = [4, 4], strides = [1, 1]} : vector<32x4xbf16> to vector<4x4xbf16>
    %608 = vector.extract_strided_slice %598 {offsets = [4, 0], sizes = [4, 32], strides = [1, 1]} : vector<32x32xbf16> to vector<4x32xbf16>
    %cst_214 = arith.constant dense<0.000000e+00> : vector<4x32xf32>
    %609 = tpu.matmul %607, %608, %cst_214 {dimension_numbers = #tpu.dot_dimension_numbers<[1], [0], [0], [1], [0, 0, 1, 1], [], []>} : vector<4x4xbf16>, vector<4x32xbf16>, vector<4x32xf32> -> vector<4x32xf32>
    %610 = arith.addf %606, %609 : vector<4x32xf32>
    %611 = vector.extract_strided_slice %597 {offsets = [8, 0], sizes = [4, 4], strides = [1, 1]} : vector<32x4xbf16> to vector<4x4xbf16>
    %612 = vector.extract_strided_slice %598 {offsets = [8, 0], sizes = [4, 32], strides = [1, 1]} : vector<32x32xbf16> to vector<4x32xbf16>
    %cst_215 = arith.constant dense<0.000000e+00> : vector<4x32xf32>
    %613 = tpu.matmul %611, %612, %cst_215 {dimension_numbers = #tpu.dot_dimension_numbers<[1], [0], [0], [1], [0, 0, 1, 1], [], []>} : vector<4x4xbf16>, vector<4x32xbf16>, vector<4x32xf32> -> vector<4x32xf32>
    %614 = arith.addf %610, %613 : vector<4x32xf32>
    %615 = vector.extract_strided_slice %597 {offsets = [12, 0], sizes = [4, 4], strides = [1, 1]} : vector<32x4xbf16> to vector<4x4xbf16>
    %616 = vector.extract_strided_slice %598 {offsets = [12, 0], sizes = [4, 32], strides = [1, 1]} : vector<32x32xbf16> to vector<4x32xbf16>
    %cst_216 = arith.constant dense<0.000000e+00> : vector<4x32xf32>
    %617 = tpu.matmul %615, %616, %cst_216 {dimension_numbers = #tpu.dot_dimension_numbers<[1], [0], [0], [1], [0, 0, 1, 1], [], []>} : vector<4x4xbf16>, vector<4x32xbf16>, vector<4x32xf32> -> vector<4x32xf32>
    %618 = arith.addf %614, %617 : vector<4x32xf32>
    %619 = vector.extract_strided_slice %597 {offsets = [16, 0], sizes = [4, 4], strides = [1, 1]} : vector<32x4xbf16> to vector<4x4xbf16>
    %620 = vector.extract_strided_slice %598 {offsets = [16, 0], sizes = [4, 32], strides = [1, 1]} : vector<32x32xbf16> to vector<4x32xbf16>
    %cst_217 = arith.constant dense<0.000000e+00> : vector<4x32xf32>
    %621 = tpu.matmul %619, %620, %cst_217 {dimension_numbers = #tpu.dot_dimension_numbers<[1], [0], [0], [1], [0, 0, 1, 1], [], []>} : vector<4x4xbf16>, vector<4x32xbf16>, vector<4x32xf32> -> vector<4x32xf32>
    %622 = arith.addf %618, %621 : vector<4x32xf32>
    %623 = vector.extract_strided_slice %597 {offsets = [20, 0], sizes = [4, 4], strides = [1, 1]} : vector<32x4xbf16> to vector<4x4xbf16>
    %624 = vector.extract_strided_slice %598 {offsets = [20, 0], sizes = [4, 32], strides = [1, 1]} : vector<32x32xbf16> to vector<4x32xbf16>
    %cst_218 = arith.constant dense<0.000000e+00> : vector<4x32xf32>
    %625 = tpu.matmul %623, %624, %cst_218 {dimension_numbers = #tpu.dot_dimension_numbers<[1], [0], [0], [1], [0, 0, 1, 1], [], []>} : vector<4x4xbf16>, vector<4x32xbf16>, vector<4x32xf32> -> vector<4x32xf32>
    %626 = arith.addf %622, %625 : vector<4x32xf32>
    %627 = vector.extract_strided_slice %597 {offsets = [24, 0], sizes = [4, 4], strides = [1, 1]} : vector<32x4xbf16> to vector<4x4xbf16>
    %628 = vector.extract_strided_slice %598 {offsets = [24, 0], sizes = [4, 32], strides = [1, 1]} : vector<32x32xbf16> to vector<4x32xbf16>
    %cst_219 = arith.constant dense<0.000000e+00> : vector<4x32xf32>
    %629 = tpu.matmul %627, %628, %cst_219 {dimension_numbers = #tpu.dot_dimension_numbers<[1], [0], [0], [1], [0, 0, 1, 1], [], []>} : vector<4x4xbf16>, vector<4x32xbf16>, vector<4x32xf32> -> vector<4x32xf32>
    %630 = arith.addf %626, %629 : vector<4x32xf32>
    %631 = vector.extract_strided_slice %597 {offsets = [28, 0], sizes = [4, 4], strides = [1, 1]} : vector<32x4xbf16> to vector<4x4xbf16>
    %632 = vector.extract_strided_slice %598 {offsets = [28, 0], sizes = [4, 32], strides = [1, 1]} : vector<32x32xbf16> to vector<4x32xbf16>
    %cst_220 = arith.constant dense<0.000000e+00> : vector<4x32xf32>
    %633 = tpu.matmul %631, %632, %cst_220 {dimension_numbers = #tpu.dot_dimension_numbers<[1], [0], [0], [1], [0, 0, 1, 1], [], []>} : vector<4x4xbf16>, vector<4x32xbf16>, vector<4x32xf32> -> vector<4x32xf32>
    %634 = arith.addf %630, %633 : vector<4x32xf32>
    %635 = arith.truncf %634 : vector<4x32xf32> to vector<4x32xbf16>
    %c960 = arith.constant 960 : index
    %c0_221 = arith.constant 0 : index
    %636 = vector.load %arg3[%c960, %c0_221] : memref<1344x128xbf16, #tpu.memory_space<vmem>>, vector<16x4xbf16>
    %cst_222 = arith.constant dense<0.000000e+00> : vector<16x32xf32>
    %637 = tpu.matmul %636, %635, %cst_222 {dimension_numbers = #tpu.dot_dimension_numbers<[1], [0], [0], [1], [0, 0, 1, 1], [], []>} : vector<16x4xbf16>, vector<4x32xbf16>, vector<16x32xf32> -> vector<16x32xf32>
    %c416 = arith.constant 416 : index
    %c0_223 = arith.constant 0 : index
    %638 = vector.load %arg4[%c416, %c0_223] : memref<576x128xf32, #tpu.memory_space<vmem>>, vector<16x1xf32>
    %639 = vector.broadcast %638 : vector<16x1xf32> to vector<16x32xf32>
    %640 = arith.addf %637, %639 : vector<16x32xf32>
    %cst_224 = arith.constant 5.000000e-01 : f32
    %641 = vector.broadcast %cst_224 : f32 to vector<16x32xf32>
    %642 = arith.mulf %641, %640 : vector<16x32xf32>
    %cst_225 = arith.constant 4.471500e-02 : f32
    %643 = vector.broadcast %cst_225 : f32 to vector<16x32xf32>
    %644 = arith.mulf %643, %640 : vector<16x32xf32>
    %645 = arith.mulf %644, %640 : vector<16x32xf32>
    %646 = arith.mulf %645, %640 : vector<16x32xf32>
    %647 = arith.addf %640, %646 : vector<16x32xf32>
    %cst_226 = arith.constant 0.797884583 : f32
    %648 = vector.broadcast %cst_226 : f32 to vector<16x32xf32>
    %649 = arith.mulf %648, %647 : vector<16x32xf32>
    %650 = math.tanh %649 : vector<16x32xf32>
    %cst_227 = arith.constant 1.000000e+00 : f32
    %651 = vector.broadcast %cst_227 : f32 to vector<16x32xf32>
    %652 = arith.addf %651, %650 : vector<16x32xf32>
    %653 = arith.mulf %642, %652 : vector<16x32xf32>
    %c976 = arith.constant 976 : index
    %c0_228 = arith.constant 0 : index
    %654 = vector.load %arg3[%c976, %c0_228] : memref<1344x128xbf16, #tpu.memory_space<vmem>>, vector<2x16xbf16>
    %655 = arith.truncf %653 : vector<16x32xf32> to vector<16x32xbf16>
    %cst_229 = arith.constant dense<0.000000e+00> : vector<2x32xf32>
    %656 = tpu.matmul %654, %655, %cst_229 {dimension_numbers = #tpu.dot_dimension_numbers<[1], [0], [0], [1], [0, 0, 1, 1], [], []>} : vector<2x16xbf16>, vector<16x32xbf16>, vector<2x32xf32> -> vector<2x32xf32>
    %c432_230 = arith.constant 432 : index
    %c0_231 = arith.constant 0 : index
    %657 = vector.load %arg4[%c432_230, %c0_231] : memref<576x128xf32, #tpu.memory_space<vmem>>, vector<2x1xf32>
    %658 = vector.broadcast %657 : vector<2x1xf32> to vector<2x32xf32>
    %659 = arith.addf %656, %658 : vector<2x32xf32>
    %660 = arith.truncf %659 : vector<2x32xf32> to vector<2x32xbf16>
    %c992 = arith.constant 992 : index
    %c0_232 = arith.constant 0 : index
    %661 = vector.load %arg3[%c992, %c0_232] : memref<1344x128xbf16, #tpu.memory_space<vmem>>, vector<32x32xbf16>
    %cst_233 = arith.constant dense<0.000000e+00> : vector<2x32xf32>
    %662 = tpu.matmul %660, %661, %cst_233 {dimension_numbers = #tpu.dot_dimension_numbers<[1], [0], [0], [1], [0, 0, 1, 1], [], []>} : vector<2x32xbf16>, vector<32x32xbf16>, vector<2x32xf32> -> vector<2x32xf32>
    %c440 = arith.constant 440 : index
    %c0_234 = arith.constant 0 : index
    %663 = vector.load %arg4[%c440, %c0_234] : memref<576x128xf32, #tpu.memory_space<vmem>>, vector<1x32xf32>
    %664 = vector.broadcast %663 : vector<1x32xf32> to vector<2x32xf32>
    %665 = arith.addf %662, %664 : vector<2x32xf32>
    %c1024 = arith.constant 1024 : index
    %c0_235 = arith.constant 0 : index
    %666 = vector.load %arg3[%c1024, %c0_235] : memref<1344x128xbf16, #tpu.memory_space<vmem>>, vector<32x64xbf16>
    %cst_236 = arith.constant dense<0.000000e+00> : vector<4x64xf32>
    %667 = tpu.matmul %635, %666, %cst_236 {dimension_numbers = #tpu.dot_dimension_numbers<[1], [0], [0], [1], [0, 0, 1, 1], [], []>} : vector<4x32xbf16>, vector<32x64xbf16>, vector<4x64xf32> -> vector<4x64xf32>
    %c448 = arith.constant 448 : index
    %c0_237 = arith.constant 0 : index
    %668 = vector.load %arg4[%c448, %c0_237] : memref<576x128xf32, #tpu.memory_space<vmem>>, vector<1x64xf32>
    %669 = vector.broadcast %668 : vector<1x64xf32> to vector<4x64xf32>
    %670 = arith.addf %667, %669 : vector<4x64xf32>
    %671 = vector.extract_strided_slice %670 {offsets = [0, 0], sizes = [4, 32], strides = [1, 1]} : vector<4x64xf32> to vector<4x32xf32>
    %672 = vector.extract_strided_slice %670 {offsets = [0, 32], sizes = [4, 32], strides = [1, 1]} : vector<4x64xf32> to vector<4x32xf32>
    %c1056 = arith.constant 1056 : index
    %c0_238 = arith.constant 0 : index
    %673 = vector.load %arg3[%c1056, %c0_238] : memref<1344x128xbf16, #tpu.memory_space<vmem>>, vector<32x32xbf16>
    %c456 = arith.constant 456 : index
    %c0_239 = arith.constant 0 : index
    %674 = vector.load %arg4[%c456, %c0_239] : memref<576x128xf32, #tpu.memory_space<vmem>>, vector<1x32xf32>
    %675 = arith.truncf %665 : vector<2x32xf32> to vector<2x32xbf16>
    %676 = arith.truncf %671 : vector<4x32xf32> to vector<4x32xbf16>
    %677 = arith.truncf %672 : vector<4x32xf32> to vector<4x32xbf16>
    %678 = vector.extract_strided_slice %675 {offsets = [0, 0], sizes = [2, 8], strides = [1, 1]} : vector<2x32xbf16> to vector<2x8xbf16>
    %679 = vector.extract_strided_slice %676 {offsets = [0, 0], sizes = [4, 8], strides = [1, 1]} : vector<4x32xbf16> to vector<4x8xbf16>
    %cst_240 = arith.constant dense<0.000000e+00> : vector<2x4xf32>
    %680 = tpu.matmul %678, %679, %cst_240 {dimension_numbers = #tpu.dot_dimension_numbers<[1], [1], [0], [0], [0, 0, 1, 0], [], []>} : vector<2x8xbf16>, vector<4x8xbf16>, vector<2x4xf32> -> vector<2x4xf32>
    %cst_241 = arith.constant 0.353553385 : f32
    %681 = vector.broadcast %cst_241 : f32 to vector<2x4xf32>
    %682 = arith.mulf %680, %681 : vector<2x4xf32>
    %cst_242 = arith.constant dense<0xFF800000> : vector<2xf32>
    %683 = vector.multi_reduction <maximumf>, %682, %cst_242 [1] : vector<2x4xf32> to vector<2xf32>
    %684 = vector.shape_cast %683 : vector<2xf32> to vector<2x1xf32>
    %685 = vector.broadcast %684 : vector<2x1xf32> to vector<2x4xf32>
    %686 = arith.subf %682, %685 : vector<2x4xf32>
    %687 = math.exp %686 : vector<2x4xf32>
    %cst_243 = arith.constant dense<0.000000e+00> : vector<2xf32>
    %688 = vector.multi_reduction <add>, %687, %cst_243 [1] : vector<2x4xf32> to vector<2xf32>
    %689 = vector.shape_cast %688 : vector<2xf32> to vector<2x1xf32>
    %690 = vector.broadcast %689 : vector<2x1xf32> to vector<2x4xf32>
    %691 = arith.divf %687, %690 : vector<2x4xf32>
    %692 = arith.truncf %691 : vector<2x4xf32> to vector<2x4xbf16>
    %693 = vector.extract_strided_slice %677 {offsets = [0, 0], sizes = [4, 8], strides = [1, 1]} : vector<4x32xbf16> to vector<4x8xbf16>
    %cst_244 = arith.constant dense<0.000000e+00> : vector<2x8xf32>
    %694 = tpu.matmul %692, %693, %cst_244 {dimension_numbers = #tpu.dot_dimension_numbers<[1], [0], [0], [1], [0, 0, 1, 1], [], []>} : vector<2x4xbf16>, vector<4x8xbf16>, vector<2x8xf32> -> vector<2x8xf32>
    %695 = vector.extract_strided_slice %675 {offsets = [0, 8], sizes = [2, 8], strides = [1, 1]} : vector<2x32xbf16> to vector<2x8xbf16>
    %696 = vector.extract_strided_slice %676 {offsets = [0, 8], sizes = [4, 8], strides = [1, 1]} : vector<4x32xbf16> to vector<4x8xbf16>
    %cst_245 = arith.constant dense<0.000000e+00> : vector<2x4xf32>
    %697 = tpu.matmul %695, %696, %cst_245 {dimension_numbers = #tpu.dot_dimension_numbers<[1], [1], [0], [0], [0, 0, 1, 0], [], []>} : vector<2x8xbf16>, vector<4x8xbf16>, vector<2x4xf32> -> vector<2x4xf32>
    %cst_246 = arith.constant 0.353553385 : f32
    %698 = vector.broadcast %cst_246 : f32 to vector<2x4xf32>
    %699 = arith.mulf %697, %698 : vector<2x4xf32>
    %cst_247 = arith.constant dense<0xFF800000> : vector<2xf32>
    %700 = vector.multi_reduction <maximumf>, %699, %cst_247 [1] : vector<2x4xf32> to vector<2xf32>
    %701 = vector.shape_cast %700 : vector<2xf32> to vector<2x1xf32>
    %702 = vector.broadcast %701 : vector<2x1xf32> to vector<2x4xf32>
    %703 = arith.subf %699, %702 : vector<2x4xf32>
    %704 = math.exp %703 : vector<2x4xf32>
    %cst_248 = arith.constant dense<0.000000e+00> : vector<2xf32>
    %705 = vector.multi_reduction <add>, %704, %cst_248 [1] : vector<2x4xf32> to vector<2xf32>
    %706 = vector.shape_cast %705 : vector<2xf32> to vector<2x1xf32>
    %707 = vector.broadcast %706 : vector<2x1xf32> to vector<2x4xf32>
    %708 = arith.divf %704, %707 : vector<2x4xf32>
    %709 = arith.truncf %708 : vector<2x4xf32> to vector<2x4xbf16>
    %710 = vector.extract_strided_slice %677 {offsets = [0, 8], sizes = [4, 8], strides = [1, 1]} : vector<4x32xbf16> to vector<4x8xbf16>
    %cst_249 = arith.constant dense<0.000000e+00> : vector<2x8xf32>
    %711 = tpu.matmul %709, %710, %cst_249 {dimension_numbers = #tpu.dot_dimension_numbers<[1], [0], [0], [1], [0, 0, 1, 1], [], []>} : vector<2x4xbf16>, vector<4x8xbf16>, vector<2x8xf32> -> vector<2x8xf32>
    %712 = vector.extract_strided_slice %675 {offsets = [0, 16], sizes = [2, 8], strides = [1, 1]} : vector<2x32xbf16> to vector<2x8xbf16>
    %713 = vector.extract_strided_slice %676 {offsets = [0, 16], sizes = [4, 8], strides = [1, 1]} : vector<4x32xbf16> to vector<4x8xbf16>
    %cst_250 = arith.constant dense<0.000000e+00> : vector<2x4xf32>
    %714 = tpu.matmul %712, %713, %cst_250 {dimension_numbers = #tpu.dot_dimension_numbers<[1], [1], [0], [0], [0, 0, 1, 0], [], []>} : vector<2x8xbf16>, vector<4x8xbf16>, vector<2x4xf32> -> vector<2x4xf32>
    %cst_251 = arith.constant 0.353553385 : f32
    %715 = vector.broadcast %cst_251 : f32 to vector<2x4xf32>
    %716 = arith.mulf %714, %715 : vector<2x4xf32>
    %cst_252 = arith.constant dense<0xFF800000> : vector<2xf32>
    %717 = vector.multi_reduction <maximumf>, %716, %cst_252 [1] : vector<2x4xf32> to vector<2xf32>
    %718 = vector.shape_cast %717 : vector<2xf32> to vector<2x1xf32>
    %719 = vector.broadcast %718 : vector<2x1xf32> to vector<2x4xf32>
    %720 = arith.subf %716, %719 : vector<2x4xf32>
    %721 = math.exp %720 : vector<2x4xf32>
    %cst_253 = arith.constant dense<0.000000e+00> : vector<2xf32>
    %722 = vector.multi_reduction <add>, %721, %cst_253 [1] : vector<2x4xf32> to vector<2xf32>
    %723 = vector.shape_cast %722 : vector<2xf32> to vector<2x1xf32>
    %724 = vector.broadcast %723 : vector<2x1xf32> to vector<2x4xf32>
    %725 = arith.divf %721, %724 : vector<2x4xf32>
    %726 = arith.truncf %725 : vector<2x4xf32> to vector<2x4xbf16>
    %727 = vector.extract_strided_slice %677 {offsets = [0, 16], sizes = [4, 8], strides = [1, 1]} : vector<4x32xbf16> to vector<4x8xbf16>
    %cst_254 = arith.constant dense<0.000000e+00> : vector<2x8xf32>
    %728 = tpu.matmul %726, %727, %cst_254 {dimension_numbers = #tpu.dot_dimension_numbers<[1], [0], [0], [1], [0, 0, 1, 1], [], []>} : vector<2x4xbf16>, vector<4x8xbf16>, vector<2x8xf32> -> vector<2x8xf32>
    %729 = vector.extract_strided_slice %675 {offsets = [0, 24], sizes = [2, 8], strides = [1, 1]} : vector<2x32xbf16> to vector<2x8xbf16>
    %730 = vector.extract_strided_slice %676 {offsets = [0, 24], sizes = [4, 8], strides = [1, 1]} : vector<4x32xbf16> to vector<4x8xbf16>
    %cst_255 = arith.constant dense<0.000000e+00> : vector<2x4xf32>
    %731 = tpu.matmul %729, %730, %cst_255 {dimension_numbers = #tpu.dot_dimension_numbers<[1], [1], [0], [0], [0, 0, 1, 0], [], []>} : vector<2x8xbf16>, vector<4x8xbf16>, vector<2x4xf32> -> vector<2x4xf32>
    %cst_256 = arith.constant 0.353553385 : f32
    %732 = vector.broadcast %cst_256 : f32 to vector<2x4xf32>
    %733 = arith.mulf %731, %732 : vector<2x4xf32>
    %cst_257 = arith.constant dense<0xFF800000> : vector<2xf32>
    %734 = vector.multi_reduction <maximumf>, %733, %cst_257 [1] : vector<2x4xf32> to vector<2xf32>
    %735 = vector.shape_cast %734 : vector<2xf32> to vector<2x1xf32>
    %736 = vector.broadcast %735 : vector<2x1xf32> to vector<2x4xf32>
    %737 = arith.subf %733, %736 : vector<2x4xf32>
    %738 = math.exp %737 : vector<2x4xf32>
    %cst_258 = arith.constant dense<0.000000e+00> : vector<2xf32>
    %739 = vector.multi_reduction <add>, %738, %cst_258 [1] : vector<2x4xf32> to vector<2xf32>
    %740 = vector.shape_cast %739 : vector<2xf32> to vector<2x1xf32>
    %741 = vector.broadcast %740 : vector<2x1xf32> to vector<2x4xf32>
    %742 = arith.divf %738, %741 : vector<2x4xf32>
    %743 = arith.truncf %742 : vector<2x4xf32> to vector<2x4xbf16>
    %744 = vector.extract_strided_slice %677 {offsets = [0, 24], sizes = [4, 8], strides = [1, 1]} : vector<4x32xbf16> to vector<4x8xbf16>
    %cst_259 = arith.constant dense<0.000000e+00> : vector<2x8xf32>
    %745 = tpu.matmul %743, %744, %cst_259 {dimension_numbers = #tpu.dot_dimension_numbers<[1], [0], [0], [1], [0, 0, 1, 1], [], []>} : vector<2x4xbf16>, vector<4x8xbf16>, vector<2x8xf32> -> vector<2x8xf32>
    %746 = tpu.concatenate %694, %711, %728, %745 in 1 : vector<2x8xf32>, vector<2x8xf32>, vector<2x8xf32>, vector<2x8xf32> -> vector<2x32xf32>
    %747 = arith.truncf %746 : vector<2x32xf32> to vector<2x32xbf16>
    %cst_260 = arith.constant dense<0.000000e+00> : vector<2x32xf32>
    %748 = tpu.matmul %747, %673, %cst_260 {dimension_numbers = #tpu.dot_dimension_numbers<[1], [0], [0], [1], [0, 0, 1, 1], [], []>} : vector<2x32xbf16>, vector<32x32xbf16>, vector<2x32xf32> -> vector<2x32xf32>
    %749 = vector.broadcast %674 : vector<1x32xf32> to vector<2x32xf32>
    %750 = arith.addf %748, %749 : vector<2x32xf32>
    %c512 = arith.constant 512 : index
    %c0_261 = arith.constant 0 : index
    %751 = vector.load %arg4[%c512, %c0_261] : memref<576x128xf32, #tpu.memory_space<vmem>>, vector<2x1xf32>
    %752 = vector.broadcast %751 : vector<2x1xf32> to vector<2x32xf32>
    %753 = arith.mulf %750, %752 : vector<2x32xf32>
    %c520 = arith.constant 520 : index
    %c0_262 = arith.constant 0 : index
    %754 = vector.load %arg4[%c520, %c0_262] : memref<576x128xf32, #tpu.memory_space<vmem>>, vector<2x1xf32>
    %755 = vector.broadcast %754 : vector<2x1xf32> to vector<2x32xf32>
    %756 = arith.addf %753, %755 : vector<2x32xf32>
    %757 = arith.truncf %756 : vector<2x32xf32> to vector<2x32xbf16>
    %c1088 = arith.constant 1088 : index
    %c0_263 = arith.constant 0 : index
    %758 = vector.load %arg3[%c1088, %c0_263] : memref<1344x128xbf16, #tpu.memory_space<vmem>>, vector<32x64xbf16>
    %cst_264 = arith.constant dense<0.000000e+00> : vector<2x64xf32>
    %759 = tpu.matmul %757, %758, %cst_264 {dimension_numbers = #tpu.dot_dimension_numbers<[1], [0], [0], [1], [0, 0, 1, 1], [], []>} : vector<2x32xbf16>, vector<32x64xbf16>, vector<2x64xf32> -> vector<2x64xf32>
    %c464 = arith.constant 464 : index
    %c0_265 = arith.constant 0 : index
    %760 = vector.load %arg4[%c464, %c0_265] : memref<576x128xf32, #tpu.memory_space<vmem>>, vector<1x64xf32>
    %761 = vector.broadcast %760 : vector<1x64xf32> to vector<2x64xf32>
    %762 = arith.addf %759, %761 : vector<2x64xf32>
    %cst_266 = arith.constant 5.000000e-01 : f32
    %763 = vector.broadcast %cst_266 : f32 to vector<2x64xf32>
    %764 = arith.mulf %763, %762 : vector<2x64xf32>
    %cst_267 = arith.constant 4.471500e-02 : f32
    %765 = vector.broadcast %cst_267 : f32 to vector<2x64xf32>
    %766 = arith.mulf %765, %762 : vector<2x64xf32>
    %767 = arith.mulf %766, %762 : vector<2x64xf32>
    %768 = arith.mulf %767, %762 : vector<2x64xf32>
    %769 = arith.addf %762, %768 : vector<2x64xf32>
    %cst_268 = arith.constant 0.797884583 : f32
    %770 = vector.broadcast %cst_268 : f32 to vector<2x64xf32>
    %771 = arith.mulf %770, %769 : vector<2x64xf32>
    %772 = math.tanh %771 : vector<2x64xf32>
    %cst_269 = arith.constant 1.000000e+00 : f32
    %773 = vector.broadcast %cst_269 : f32 to vector<2x64xf32>
    %774 = arith.addf %773, %772 : vector<2x64xf32>
    %775 = arith.mulf %764, %774 : vector<2x64xf32>
    %776 = arith.truncf %775 : vector<2x64xf32> to vector<2x64xbf16>
    %c1120 = arith.constant 1120 : index
    %c0_270 = arith.constant 0 : index
    %777 = vector.load %arg3[%c1120, %c0_270] : memref<1344x128xbf16, #tpu.memory_space<vmem>>, vector<64x32xbf16>
    %cst_271 = arith.constant dense<0.000000e+00> : vector<2x32xf32>
    %778 = tpu.matmul %776, %777, %cst_271 {dimension_numbers = #tpu.dot_dimension_numbers<[1], [0], [0], [1], [0, 0, 1, 1], [], []>} : vector<2x64xbf16>, vector<64x32xbf16>, vector<2x32xf32> -> vector<2x32xf32>
    %c472 = arith.constant 472 : index
    %c0_272 = arith.constant 0 : index
    %779 = vector.load %arg4[%c472, %c0_272] : memref<576x128xf32, #tpu.memory_space<vmem>>, vector<1x32xf32>
    %780 = vector.broadcast %779 : vector<1x32xf32> to vector<2x32xf32>
    %781 = arith.addf %778, %780 : vector<2x32xf32>
    %782 = arith.addf %781, %756 : vector<2x32xf32>
    %c528_273 = arith.constant 528 : index
    %c0_274 = arith.constant 0 : index
    %783 = vector.load %arg4[%c528_273, %c0_274] : memref<576x128xf32, #tpu.memory_space<vmem>>, vector<2x1xf32>
    %784 = vector.broadcast %783 : vector<2x1xf32> to vector<2x32xf32>
    %785 = arith.mulf %782, %784 : vector<2x32xf32>
    %c536 = arith.constant 536 : index
    %c0_275 = arith.constant 0 : index
    %786 = vector.load %arg4[%c536, %c0_275] : memref<576x128xf32, #tpu.memory_space<vmem>>, vector<2x1xf32>
    %787 = vector.broadcast %786 : vector<2x1xf32> to vector<2x32xf32>
    %788 = arith.addf %785, %787 : vector<2x32xf32>
    %789 = arith.truncf %788 : vector<2x32xf32> to vector<2x32xbf16>
    %c1184 = arith.constant 1184 : index
    %c0_276 = arith.constant 0 : index
    %790 = vector.load %arg3[%c1184, %c0_276] : memref<1344x128xbf16, #tpu.memory_space<vmem>>, vector<32x96xbf16>
    %cst_277 = arith.constant dense<0.000000e+00> : vector<2x96xf32>
    %791 = tpu.matmul %789, %790, %cst_277 {dimension_numbers = #tpu.dot_dimension_numbers<[1], [0], [0], [1], [0, 0, 1, 1], [], []>} : vector<2x32xbf16>, vector<32x96xbf16>, vector<2x96xf32> -> vector<2x96xf32>
    %c480 = arith.constant 480 : index
    %c0_278 = arith.constant 0 : index
    %792 = vector.load %arg4[%c480, %c0_278] : memref<576x128xf32, #tpu.memory_space<vmem>>, vector<1x96xf32>
    %793 = vector.broadcast %792 : vector<1x96xf32> to vector<2x96xf32>
    %794 = arith.addf %791, %793 : vector<2x96xf32>
    %795 = vector.extract_strided_slice %794 {offsets = [0, 0], sizes = [2, 32], strides = [1, 1]} : vector<2x96xf32> to vector<2x32xf32>
    %796 = vector.extract_strided_slice %794 {offsets = [0, 32], sizes = [2, 32], strides = [1, 1]} : vector<2x96xf32> to vector<2x32xf32>
    %797 = vector.extract_strided_slice %794 {offsets = [0, 64], sizes = [2, 32], strides = [1, 1]} : vector<2x96xf32> to vector<2x32xf32>
    %c1216 = arith.constant 1216 : index
    %c0_279 = arith.constant 0 : index
    %798 = vector.load %arg3[%c1216, %c0_279] : memref<1344x128xbf16, #tpu.memory_space<vmem>>, vector<32x32xbf16>
    %c488 = arith.constant 488 : index
    %c0_280 = arith.constant 0 : index
    %799 = vector.load %arg4[%c488, %c0_280] : memref<576x128xf32, #tpu.memory_space<vmem>>, vector<1x32xf32>
    %800 = arith.truncf %795 : vector<2x32xf32> to vector<2x32xbf16>
    %801 = arith.truncf %796 : vector<2x32xf32> to vector<2x32xbf16>
    %802 = arith.truncf %797 : vector<2x32xf32> to vector<2x32xbf16>
    %803 = vector.extract_strided_slice %800 {offsets = [0, 0], sizes = [2, 8], strides = [1, 1]} : vector<2x32xbf16> to vector<2x8xbf16>
    %804 = vector.extract_strided_slice %801 {offsets = [0, 0], sizes = [2, 8], strides = [1, 1]} : vector<2x32xbf16> to vector<2x8xbf16>
    %cst_281 = arith.constant dense<0.000000e+00> : vector<2x2xf32>
    %805 = tpu.matmul %803, %804, %cst_281 {dimension_numbers = #tpu.dot_dimension_numbers<[1], [1], [0], [0], [0, 0, 1, 0], [], []>} : vector<2x8xbf16>, vector<2x8xbf16>, vector<2x2xf32> -> vector<2x2xf32>
    %cst_282 = arith.constant 0.353553385 : f32
    %806 = vector.broadcast %cst_282 : f32 to vector<2x2xf32>
    %807 = arith.mulf %805, %806 : vector<2x2xf32>
    %cst_283 = arith.constant dense<0xFF800000> : vector<2xf32>
    %808 = vector.multi_reduction <maximumf>, %807, %cst_283 [1] : vector<2x2xf32> to vector<2xf32>
    %809 = vector.shape_cast %808 : vector<2xf32> to vector<2x1xf32>
    %810 = vector.broadcast %809 : vector<2x1xf32> to vector<2x2xf32>
    %811 = arith.subf %807, %810 : vector<2x2xf32>
    %812 = math.exp %811 : vector<2x2xf32>
    %cst_284 = arith.constant dense<0.000000e+00> : vector<2xf32>
    %813 = vector.multi_reduction <add>, %812, %cst_284 [1] : vector<2x2xf32> to vector<2xf32>
    %814 = vector.shape_cast %813 : vector<2xf32> to vector<2x1xf32>
    %815 = vector.broadcast %814 : vector<2x1xf32> to vector<2x2xf32>
    %816 = arith.divf %812, %815 : vector<2x2xf32>
    %817 = arith.truncf %816 : vector<2x2xf32> to vector<2x2xbf16>
    %818 = vector.extract_strided_slice %802 {offsets = [0, 0], sizes = [2, 8], strides = [1, 1]} : vector<2x32xbf16> to vector<2x8xbf16>
    %cst_285 = arith.constant dense<0.000000e+00> : vector<2x8xf32>
    %819 = tpu.matmul %817, %818, %cst_285 {dimension_numbers = #tpu.dot_dimension_numbers<[1], [0], [0], [1], [0, 0, 1, 1], [], []>} : vector<2x2xbf16>, vector<2x8xbf16>, vector<2x8xf32> -> vector<2x8xf32>
    %820 = vector.extract_strided_slice %800 {offsets = [0, 8], sizes = [2, 8], strides = [1, 1]} : vector<2x32xbf16> to vector<2x8xbf16>
    %821 = vector.extract_strided_slice %801 {offsets = [0, 8], sizes = [2, 8], strides = [1, 1]} : vector<2x32xbf16> to vector<2x8xbf16>
    %cst_286 = arith.constant dense<0.000000e+00> : vector<2x2xf32>
    %822 = tpu.matmul %820, %821, %cst_286 {dimension_numbers = #tpu.dot_dimension_numbers<[1], [1], [0], [0], [0, 0, 1, 0], [], []>} : vector<2x8xbf16>, vector<2x8xbf16>, vector<2x2xf32> -> vector<2x2xf32>
    %cst_287 = arith.constant 0.353553385 : f32
    %823 = vector.broadcast %cst_287 : f32 to vector<2x2xf32>
    %824 = arith.mulf %822, %823 : vector<2x2xf32>
    %cst_288 = arith.constant dense<0xFF800000> : vector<2xf32>
    %825 = vector.multi_reduction <maximumf>, %824, %cst_288 [1] : vector<2x2xf32> to vector<2xf32>
    %826 = vector.shape_cast %825 : vector<2xf32> to vector<2x1xf32>
    %827 = vector.broadcast %826 : vector<2x1xf32> to vector<2x2xf32>
    %828 = arith.subf %824, %827 : vector<2x2xf32>
    %829 = math.exp %828 : vector<2x2xf32>
    %cst_289 = arith.constant dense<0.000000e+00> : vector<2xf32>
    %830 = vector.multi_reduction <add>, %829, %cst_289 [1] : vector<2x2xf32> to vector<2xf32>
    %831 = vector.shape_cast %830 : vector<2xf32> to vector<2x1xf32>
    %832 = vector.broadcast %831 : vector<2x1xf32> to vector<2x2xf32>
    %833 = arith.divf %829, %832 : vector<2x2xf32>
    %834 = arith.truncf %833 : vector<2x2xf32> to vector<2x2xbf16>
    %835 = vector.extract_strided_slice %802 {offsets = [0, 8], sizes = [2, 8], strides = [1, 1]} : vector<2x32xbf16> to vector<2x8xbf16>
    %cst_290 = arith.constant dense<0.000000e+00> : vector<2x8xf32>
    %836 = tpu.matmul %834, %835, %cst_290 {dimension_numbers = #tpu.dot_dimension_numbers<[1], [0], [0], [1], [0, 0, 1, 1], [], []>} : vector<2x2xbf16>, vector<2x8xbf16>, vector<2x8xf32> -> vector<2x8xf32>
    %837 = vector.extract_strided_slice %800 {offsets = [0, 16], sizes = [2, 8], strides = [1, 1]} : vector<2x32xbf16> to vector<2x8xbf16>
    %838 = vector.extract_strided_slice %801 {offsets = [0, 16], sizes = [2, 8], strides = [1, 1]} : vector<2x32xbf16> to vector<2x8xbf16>
    %cst_291 = arith.constant dense<0.000000e+00> : vector<2x2xf32>
    %839 = tpu.matmul %837, %838, %cst_291 {dimension_numbers = #tpu.dot_dimension_numbers<[1], [1], [0], [0], [0, 0, 1, 0], [], []>} : vector<2x8xbf16>, vector<2x8xbf16>, vector<2x2xf32> -> vector<2x2xf32>
    %cst_292 = arith.constant 0.353553385 : f32
    %840 = vector.broadcast %cst_292 : f32 to vector<2x2xf32>
    %841 = arith.mulf %839, %840 : vector<2x2xf32>
    %cst_293 = arith.constant dense<0xFF800000> : vector<2xf32>
    %842 = vector.multi_reduction <maximumf>, %841, %cst_293 [1] : vector<2x2xf32> to vector<2xf32>
    %843 = vector.shape_cast %842 : vector<2xf32> to vector<2x1xf32>
    %844 = vector.broadcast %843 : vector<2x1xf32> to vector<2x2xf32>
    %845 = arith.subf %841, %844 : vector<2x2xf32>
    %846 = math.exp %845 : vector<2x2xf32>
    %cst_294 = arith.constant dense<0.000000e+00> : vector<2xf32>
    %847 = vector.multi_reduction <add>, %846, %cst_294 [1] : vector<2x2xf32> to vector<2xf32>
    %848 = vector.shape_cast %847 : vector<2xf32> to vector<2x1xf32>
    %849 = vector.broadcast %848 : vector<2x1xf32> to vector<2x2xf32>
    %850 = arith.divf %846, %849 : vector<2x2xf32>
    %851 = arith.truncf %850 : vector<2x2xf32> to vector<2x2xbf16>
    %852 = vector.extract_strided_slice %802 {offsets = [0, 16], sizes = [2, 8], strides = [1, 1]} : vector<2x32xbf16> to vector<2x8xbf16>
    %cst_295 = arith.constant dense<0.000000e+00> : vector<2x8xf32>
    %853 = tpu.matmul %851, %852, %cst_295 {dimension_numbers = #tpu.dot_dimension_numbers<[1], [0], [0], [1], [0, 0, 1, 1], [], []>} : vector<2x2xbf16>, vector<2x8xbf16>, vector<2x8xf32> -> vector<2x8xf32>
    %854 = vector.extract_strided_slice %800 {offsets = [0, 24], sizes = [2, 8], strides = [1, 1]} : vector<2x32xbf16> to vector<2x8xbf16>
    %855 = vector.extract_strided_slice %801 {offsets = [0, 24], sizes = [2, 8], strides = [1, 1]} : vector<2x32xbf16> to vector<2x8xbf16>
    %cst_296 = arith.constant dense<0.000000e+00> : vector<2x2xf32>
    %856 = tpu.matmul %854, %855, %cst_296 {dimension_numbers = #tpu.dot_dimension_numbers<[1], [1], [0], [0], [0, 0, 1, 0], [], []>} : vector<2x8xbf16>, vector<2x8xbf16>, vector<2x2xf32> -> vector<2x2xf32>
    %cst_297 = arith.constant 0.353553385 : f32
    %857 = vector.broadcast %cst_297 : f32 to vector<2x2xf32>
    %858 = arith.mulf %856, %857 : vector<2x2xf32>
    %cst_298 = arith.constant dense<0xFF800000> : vector<2xf32>
    %859 = vector.multi_reduction <maximumf>, %858, %cst_298 [1] : vector<2x2xf32> to vector<2xf32>
    %860 = vector.shape_cast %859 : vector<2xf32> to vector<2x1xf32>
    %861 = vector.broadcast %860 : vector<2x1xf32> to vector<2x2xf32>
    %862 = arith.subf %858, %861 : vector<2x2xf32>
    %863 = math.exp %862 : vector<2x2xf32>
    %cst_299 = arith.constant dense<0.000000e+00> : vector<2xf32>
    %864 = vector.multi_reduction <add>, %863, %cst_299 [1] : vector<2x2xf32> to vector<2xf32>
    %865 = vector.shape_cast %864 : vector<2xf32> to vector<2x1xf32>
    %866 = vector.broadcast %865 : vector<2x1xf32> to vector<2x2xf32>
    %867 = arith.divf %863, %866 : vector<2x2xf32>
    %868 = arith.truncf %867 : vector<2x2xf32> to vector<2x2xbf16>
    %869 = vector.extract_strided_slice %802 {offsets = [0, 24], sizes = [2, 8], strides = [1, 1]} : vector<2x32xbf16> to vector<2x8xbf16>
    %cst_300 = arith.constant dense<0.000000e+00> : vector<2x8xf32>
    %870 = tpu.matmul %868, %869, %cst_300 {dimension_numbers = #tpu.dot_dimension_numbers<[1], [0], [0], [1], [0, 0, 1, 1], [], []>} : vector<2x2xbf16>, vector<2x8xbf16>, vector<2x8xf32> -> vector<2x8xf32>
    %871 = tpu.concatenate %819, %836, %853, %870 in 1 : vector<2x8xf32>, vector<2x8xf32>, vector<2x8xf32>, vector<2x8xf32> -> vector<2x32xf32>
    %872 = arith.truncf %871 : vector<2x32xf32> to vector<2x32xbf16>
    %cst_301 = arith.constant dense<0.000000e+00> : vector<2x32xf32>
    %873 = tpu.matmul %872, %798, %cst_301 {dimension_numbers = #tpu.dot_dimension_numbers<[1], [0], [0], [1], [0, 0, 1, 1], [], []>} : vector<2x32xbf16>, vector<32x32xbf16>, vector<2x32xf32> -> vector<2x32xf32>
    %874 = vector.broadcast %799 : vector<1x32xf32> to vector<2x32xf32>
    %875 = arith.addf %873, %874 : vector<2x32xf32>
    %c544 = arith.constant 544 : index
    %c0_302 = arith.constant 0 : index
    %876 = vector.load %arg4[%c544, %c0_302] : memref<576x128xf32, #tpu.memory_space<vmem>>, vector<2x1xf32>
    %877 = vector.broadcast %876 : vector<2x1xf32> to vector<2x32xf32>
    %878 = arith.mulf %875, %877 : vector<2x32xf32>
    %c552 = arith.constant 552 : index
    %c0_303 = arith.constant 0 : index
    %879 = vector.load %arg4[%c552, %c0_303] : memref<576x128xf32, #tpu.memory_space<vmem>>, vector<2x1xf32>
    %880 = vector.broadcast %879 : vector<2x1xf32> to vector<2x32xf32>
    %881 = arith.addf %878, %880 : vector<2x32xf32>
    %882 = arith.truncf %881 : vector<2x32xf32> to vector<2x32xbf16>
    %c1248 = arith.constant 1248 : index
    %c0_304 = arith.constant 0 : index
    %883 = vector.load %arg3[%c1248, %c0_304] : memref<1344x128xbf16, #tpu.memory_space<vmem>>, vector<32x64xbf16>
    %cst_305 = arith.constant dense<0.000000e+00> : vector<2x64xf32>
    %884 = tpu.matmul %882, %883, %cst_305 {dimension_numbers = #tpu.dot_dimension_numbers<[1], [0], [0], [1], [0, 0, 1, 1], [], []>} : vector<2x32xbf16>, vector<32x64xbf16>, vector<2x64xf32> -> vector<2x64xf32>
    %c496_306 = arith.constant 496 : index
    %c0_307 = arith.constant 0 : index
    %885 = vector.load %arg4[%c496_306, %c0_307] : memref<576x128xf32, #tpu.memory_space<vmem>>, vector<1x64xf32>
    %886 = vector.broadcast %885 : vector<1x64xf32> to vector<2x64xf32>
    %887 = arith.addf %884, %886 : vector<2x64xf32>
    %cst_308 = arith.constant 5.000000e-01 : f32
    %888 = vector.broadcast %cst_308 : f32 to vector<2x64xf32>
    %889 = arith.mulf %888, %887 : vector<2x64xf32>
    %cst_309 = arith.constant 4.471500e-02 : f32
    %890 = vector.broadcast %cst_309 : f32 to vector<2x64xf32>
    %891 = arith.mulf %890, %887 : vector<2x64xf32>
    %892 = arith.mulf %891, %887 : vector<2x64xf32>
    %893 = arith.mulf %892, %887 : vector<2x64xf32>
    %894 = arith.addf %887, %893 : vector<2x64xf32>
    %cst_310 = arith.constant 0.797884583 : f32
    %895 = vector.broadcast %cst_310 : f32 to vector<2x64xf32>
    %896 = arith.mulf %895, %894 : vector<2x64xf32>
    %897 = math.tanh %896 : vector<2x64xf32>
    %cst_311 = arith.constant 1.000000e+00 : f32
    %898 = vector.broadcast %cst_311 : f32 to vector<2x64xf32>
    %899 = arith.addf %898, %897 : vector<2x64xf32>
    %900 = arith.mulf %889, %899 : vector<2x64xf32>
    %901 = arith.truncf %900 : vector<2x64xf32> to vector<2x64xbf16>
    %c1280 = arith.constant 1280 : index
    %c0_312 = arith.constant 0 : index
    %902 = vector.load %arg3[%c1280, %c0_312] : memref<1344x128xbf16, #tpu.memory_space<vmem>>, vector<64x32xbf16>
    %cst_313 = arith.constant dense<0.000000e+00> : vector<2x32xf32>
    %903 = tpu.matmul %901, %902, %cst_313 {dimension_numbers = #tpu.dot_dimension_numbers<[1], [0], [0], [1], [0, 0, 1, 1], [], []>} : vector<2x64xbf16>, vector<64x32xbf16>, vector<2x32xf32> -> vector<2x32xf32>
    %c504 = arith.constant 504 : index
    %c0_314 = arith.constant 0 : index
    %904 = vector.load %arg4[%c504, %c0_314] : memref<576x128xf32, #tpu.memory_space<vmem>>, vector<1x32xf32>
    %905 = vector.broadcast %904 : vector<1x32xf32> to vector<2x32xf32>
    %906 = arith.addf %903, %905 : vector<2x32xf32>
    %907 = arith.addf %906, %881 : vector<2x32xf32>
    %c560_315 = arith.constant 560 : index
    %c0_316 = arith.constant 0 : index
    %908 = vector.load %arg4[%c560_315, %c0_316] : memref<576x128xf32, #tpu.memory_space<vmem>>, vector<2x1xf32>
    %909 = vector.broadcast %908 : vector<2x1xf32> to vector<2x32xf32>
    %910 = arith.mulf %907, %909 : vector<2x32xf32>
    %c568 = arith.constant 568 : index
    %c0_317 = arith.constant 0 : index
    %911 = vector.load %arg4[%c568, %c0_317] : memref<576x128xf32, #tpu.memory_space<vmem>>, vector<2x1xf32>
    %912 = vector.broadcast %911 : vector<2x1xf32> to vector<2x32xf32>
    %913 = arith.addf %910, %912 : vector<2x32xf32>
    %c0_318 = arith.constant 0 : index
    %c0_319 = arith.constant 0 : index
    %914 = vector.load %arg4[%c0_318, %c0_319] : memref<576x128xf32, #tpu.memory_space<vmem>>, vector<8x8xf32>
    %915 = tpu.concatenate %291, %37 in 1 : vector<8x32xf32>, vector<8x32xf32> -> vector<8x64xf32>
    %916 = vector.extract_strided_slice %914 {offsets = [0, 0], sizes = [8, 4], strides = [1, 1]} : vector<8x8xf32> to vector<8x4xf32>
    %917 = tpu.concatenate %594, %340 in 1 : vector<4x32xf32>, vector<4x32xf32> -> vector<4x64xf32>
    %cst_320 = arith.constant dense<0.000000e+00> : vector<8x64xf32>
    %918 = tpu.matmul %916, %917, %cst_320 {dimension_numbers = #tpu.dot_dimension_numbers<[1], [0], [0], [1], [0, 0, 1, 1], [], []>} : vector<8x4xf32>, vector<4x64xf32>, vector<8x64xf32> -> vector<8x64xf32>
    %919 = vector.extract_strided_slice %914 {offsets = [0, 4], sizes = [8, 2], strides = [1, 1]} : vector<8x8xf32> to vector<8x2xf32>
    %920 = tpu.concatenate %913, %659 in 1 : vector<2x32xf32>, vector<2x32xf32> -> vector<2x64xf32>
    %cst_321 = arith.constant dense<0.000000e+00> : vector<8x64xf32>
    %921 = tpu.matmul %919, %920, %cst_321 {dimension_numbers = #tpu.dot_dimension_numbers<[1], [0], [0], [1], [0, 0, 1, 1], [], []>} : vector<8x2xf32>, vector<2x64xf32>, vector<8x64xf32> -> vector<8x64xf32>
    %922 = arith.addf %918, %921 : vector<8x64xf32>
    %923 = tpu.concatenate %915, %922 in 1 : vector<8x64xf32>, vector<8x64xf32> -> vector<8x128xf32>
    %c0_322 = arith.constant 0 : index
    %c0_323 = arith.constant 0 : index
    %c0_324 = arith.constant 0 : index
    %924 = vector.load %arg5[%c0_322, %c0_323, %c0_324] : memref<1x8x128xf32, #tpu.memory_space<vmem>>, vector<1x8x128xf32>
    %925 = vector.shape_cast %924 : vector<1x8x128xf32> to vector<8x128xf32>
    %926 = vector.shape_cast %923 : vector<8x128xf32> to vector<1x8x128xf32>
    tpu.vector_store %arg5[%c0_322, %c0_323, %c0_324], %926 {strides = array<i32>} : memref<1x8x128xf32, #tpu.memory_space<vmem>>, vector<1x8x128xf32>,
    return
  }
  func.func @transform_0(%arg0: i32) -> (i32, i32, i32) {
    %c0_i32 = arith.constant 0 : i32
    %c0_i32_0 = arith.constant 0 : i32
    %c0_i32_1 = arith.constant 0 : i32
    return %arg0, %c0_i32, %c0_i32_0 : i32, i32, i32
  }
  func.func @transform_1(%arg0: i32) -> (i32, i32, i32) {
    %c0_i32 = arith.constant 0 : i32
    %c0_i32_0 = arith.constant 0 : i32
    %c0_i32_1 = arith.constant 0 : i32
    return %arg0, %c0_i32, %c0_i32_0 : i32, i32, i32
  }
  func.func @transform_2(%arg0: i32) -> (i32, i32) {
    %c0_i32 = arith.constant 0 : i32
    %c0_i32_0 = arith.constant 0 : i32
    %c0_i32_1 = arith.constant 0 : i32
    return %c0_i32, %c0_i32_0 : i32, i32
  }
  func.func @transform_3(%arg0: i32) -> (i32, i32) {
    %c0_i32 = arith.constant 0 : i32
    %c0_i32_0 = arith.constant 0 : i32
    %c0_i32_1 = arith.constant 0 : i32
    return %c0_i32, %c0_i32_0 : i32, i32
  }
  func.func @transform_4(%arg0: i32) -> (i32, i32, i32) {
    %c0_i32 = arith.constant 0 : i32
    %c0_i32_0 = arith.constant 0 : i32
    %c0_i32_1 = arith.constant 0 : i32
    return %arg0, %c0_i32, %c0_i32_0 : i32, i32, i32
  }
}

</mosaic_0001>

<llo_original>
// kernel: cap_encoder_forward.1
$region0: #{cap_encoder_forward.1}
  #allocation0 [shape = 'u32[]', space=smem, size = 0x4, offset = 0x4, fixed_abs, tag = 'smem constant byte address 0x4 - core index']
  #allocation1 [shape = 'u32[144,128]{1,0:T(1,128)}', space=vmem, size = 0x12000, scoped, tag = 'internal scratch']
  %s0 = inlined_call_operand.vmem [shape: f32[2,16,32], index: 0, kind: input, shape index: {}]
  %s1 = inlined_call_operand.vmem [shape: f32[2,28,32], index: 1, kind: input, shape index: {}]
  %s2 = inlined_call_operand.hbm [shape: bf16[1344,128], index: 2, kind: input, shape index: {}]
  %s3 = inlined_call_operand.hbm [shape: f32[576,128], index: 3, kind: input, shape index: {}]
  %s4 = inlined_call_operand.vmem [shape: f32[2,8,128], index: 4, kind: output, shape index: {}]
  %s5 = sld [smem:[#allocation0]]
  $region57: #{cap_encoder_forward.1} parent=0
    _
  %s7 = ssub.s32 1, %s5
  %s8 = scalar_select 0, %s7, %s5
  $region1: #{cap_encoder_forward.1} parent=0
    #allocation2 [shape = 'u8[344064]{0}', space=vmem, size = 0x54000, scoped, tag = 'input window, operand 2, single buffered']
    #allocation3 [shape = 's32[2]{0}', space=sflag, size = 0x8, scoped, tag = 'scoped memory for cap_encoder_forward.1']
    #allocation4 [shape = 'u8[294912]{0}', space=vmem, size = 0x48000, scoped, tag = 'input window, operand 3, single buffered']
    #allocation5 [shape = 's32[1]{0}', space=sflag, size = 0x4, scoped, tag = 'scoped memory for cap_encoder_forward.1']
    %9 = vsyncpa [#allocation3], 0
    %10 = vsyncpa [#allocation5], 0
    loop: start=0, step=1, limit=4
    $region2: #{cap_encoder_forward.1} parent=1 // loop_pre_header
      _
    $region3: #{cap_encoder_forward.1} parent=1 // loop_header
      %s12 = sphi 0, %s16
      %p13 = scmp.ge.s32.totalorder %s12, 4
      %s22 = sphi 0, %s24
      %s25 = sphi 0, %s22
      %s26 = sphi 0, %s25
      %s42 = sphi 0, %s26
      %s48 = sphi 0, %s50
      %s51 = sphi 0, %s48
      %s52 = sphi 0, %s51
      %s68 = sphi 0, %s52
      %s72 = sphi 0, %s72
      %s74 = sphi 0, %s72
      %s75 = sphi 0, %s74
      %s89 = sphi 0, %s75
      %s93 = sphi 0, %s93
      %s95 = sphi 0, %s93
      %s96 = sphi 0, %s95
      %s110 = sphi 0, %s96
      %s116 = sphi 0, %s118
      %s119 = sphi 0, %s116
      %s120 = sphi 0, %s119
      %s136 = sphi 0, %s120
    $region4: #{cap_encoder_forward.1} parent=1 // loop_header_branch
      %15 = sbr.rel (%p13) target = $region8
    $region5: #{cap_encoder_forward.1} parent=1 // loop_body
      %s17 = ssub.s32 %s12, 1
      %s18 = ssub.s32 %s12, 2
      %s19 = sadd.s32 %s12, 1
      %s20 = ssub.s32 %s12, %s19
      %p21 = scmp.eq.s32.totalorder %s20, 0
      %s23 = sadd.s32 %s22, 1
      %s24 = scalar_select %p21, %s22, %s23
      %p27 = pneg %p21
      %p28 = scmp.eq.s32.totalorder %s12, 1
      %p29 = por %p27, %p28
      %p30 = scmp.ne.s32.totalorder %s22, %s25
      %p31 = scmp.eq.s32.totalorder %s12, 0
      %p32 = por %p30, %p31
      %p33 = scmp.ne.s32.totalorder %s22, %s25
      %p34 = scmp.eq.s32.totalorder %s17, 1
      %p35 = por %p33, %p34
      %p36 = scmp.ne.s32.totalorder %s25, %s26
      %p37 = scmp.eq.s32.totalorder %s17, 0
      %p38 = por %p36, %p37
      %p39 = scmp.ne.s32.totalorder %s25, %s26
      %p40 = scmp.eq.s32.totalorder %s18, 1
      %p41 = por %p39, %p40
      %p43 = scmp.ne.s32.totalorder %s26, %s42
      %p44 = scmp.eq.s32.totalorder %s18, 0
      %p45 = por %p43, %p44
      %s46 = ssub.s32 %s12, %s19
      %p47 = scmp.eq.s32.totalorder %s46, 0
      %s49 = sadd.s32 %s48, 1
      %s50 = scalar_select %p47, %s48, %s49
      %p53 = pneg %p47
      %p54 = scmp.eq.s32.totalorder %s12, 1
      %p55 = por %p53, %p54
      %p56 = scmp.ne.s32.totalorder %s48, %s51
      %p57 = scmp.eq.s32.totalorder %s12, 0
      %p58 = por %p56, %p57
      %p59 = scmp.ne.s32.totalorder %s48, %s51
      %p60 = scmp.eq.s32.totalorder %s17, 1
      %p61 = por %p59, %p60
      %p62 = scmp.ne.s32.totalorder %s51, %s52
      %p63 = scmp.eq.s32.totalorder %s17, 0
      %p64 = por %p62, %p63
      %p65 = scmp.ne.s32.totalorder %s51, %s52
      %p66 = scmp.eq.s32.totalorder %s18, 1
      %p67 = por %p65, %p66
      %p69 = scmp.ne.s32.totalorder %s52, %s68
      %p70 = scmp.eq.s32.totalorder %s18, 0
      %p71 = por %p69, %p70
      %s73 = sadd.s32 %s72, 1
      %p76 = scmp.eq.s32.totalorder %s12, 1
      %p77 = scmp.ne.s32.totalorder %s72, %s74
      %p78 = scmp.eq.s32.totalorder %s12, 0
      %p79 = por %p77, %p78
      %p80 = scmp.ne.s32.totalorder %s72, %s74
      %p81 = scmp.eq.s32.totalorder %s17, 1
      %p82 = por %p80, %p81
      %p83 = scmp.ne.s32.totalorder %s74, %s75
      %p84 = scmp.eq.s32.totalorder %s17, 0
      %p85 = por %p83, %p84
      %p86 = scmp.ne.s32.totalorder %s74, %s75
      %p87 = scmp.eq.s32.totalorder %s18, 1
      %p88 = por %p86, %p87
      %p90 = scmp.ne.s32.totalorder %s75, %s89
      %p91 = scmp.eq.s32.totalorder %s18, 0
      %p92 = por %p90, %p91
      %s94 = sadd.s32 %s93, 1
      %p97 = scmp.eq.s32.totalorder %s12, 1
      %p98 = scmp.ne.s32.totalorder %s93, %s95
      %p99 = scmp.eq.s32.totalorder %s12, 0
      %p100 = por %p98, %p99
      %p101 = scmp.ne.s32.totalorder %s93, %s95
      %p102 = scmp.eq.s32.totalorder %s17, 1
      %p103 = por %p101, %p102
      %p104 = scmp.ne.s32.totalorder %s95, %s96
      %p105 = scmp.eq.s32.totalorder %s17, 0
      %p106 = por %p104, %p105
      %p107 = scmp.ne.s32.totalorder %s95, %s96
      %p108 = scmp.eq.s32.totalorder %s18, 1
      %p109 = por %p107, %p108
      %p111 = scmp.ne.s32.totalorder %s96, %s110
      %p112 = scmp.eq.s32.totalorder %s18, 0
      %p113 = por %p111, %p112
      %s114 = ssub.s32 %s12, %s19
      %p115 = scmp.eq.s32.totalorder %s114, 0
      %s117 = sadd.s32 %s116, 1
      %s118 = scalar_select %p115, %s116, %s117
      %p121 = pneg %p115
      %p122 = scmp.eq.s32.totalorder %s12, 1
      %p123 = por %p121, %p122
      %p124 = scmp.ne.s32.totalorder %s116, %s119
      %p125 = scmp.eq.s32.totalorder %s12, 0
      %p126 = por %p124, %p125
      %p127 = scmp.ne.s32.totalorder %s116, %s119
      %p128 = scmp.eq.s32.totalorder %s17, 1
      %p129 = por %p127, %p128
      %p130 = scmp.ne.s32.totalorder %s119, %s120
      %p131 = scmp.eq.s32.totalorder %s17, 0
      %p132 = por %p130, %p131
      %p133 = scmp.ne.s32.totalorder %s119, %s120
      %p134 = scmp.eq.s32.totalorder %s18, 1
      %p135 = por %p133, %p134
      %p137 = scmp.ne.s32.totalorder %s120, %s136
      %p138 = scmp.eq.s32.totalorder %s18, 0
      %p139 = por %p137, %p138
      %p140 = scmp.le.s32.totalorder 1, %s12
      %p141 = scmp.lt.s32.totalorder %s12, 3
      %p142 = pnand %p140, %p141
      %p143 = pneg %p142
      // Predicated region
      $region9: #{cap_encoder_forward.1} parent=5 // pred_check
        _
      $region10: #{cap_encoder_forward.1} parent=5 // pred_check_branch
        %145 = sbr.rel (%p142) target = $region12
      $region11: #{cap_encoder_forward.1} parent=5 // pred_region
        %s146 = ssub.s32 %s12, 1
        // Predicated region
        $region13: #{cap_encoder_forward.1} parent=11 // pred_check
          %p147 = pneg %p85
        $region14: #{cap_encoder_forward.1} parent=11 // pred_check_branch
          %149 = sbr.rel (%p147) target = $region16
        $region15: #{cap_encoder_forward.1} parent=11 // pred_region
          %s151 = ssub.s32 10752, 10752
          %152 = vsyncadd [#allocation3], %s151
          %s153 = sshll.u32 [#allocation2], 4
          %s154 = int_to_ptr.vmem [resolvable:$true] %s153
          %159 = dma.hbm_to_vmem [thread:$0]  %s2, 10752, %s154, [#allocation3], 64, 64, 4
        $region16: #{cap_encoder_forward.1} parent=11 // pred_fallthru
          _
        // Predicated region
        $region17: #{cap_encoder_forward.1} parent=11 // pred_check
          %p160 = pneg %p106
        $region18: #{cap_encoder_forward.1} parent=11 // pred_check_branch
          %162 = sbr.rel (%p160) target = $region20
        $region19: #{cap_encoder_forward.1} parent=11 // pred_region
          %s164 = ssub.s32 9216, 9216
          %165 = vsyncadd [#allocation5], %s164
          %s166 = sshll.u32 [#allocation4], 4
          %s167 = int_to_ptr.vmem [resolvable:$true] %s166
          %172 = dma.hbm_to_vmem [thread:$0]  %s3, 9216, %s167, [#allocation5], 128, 128, 8
        $region20: #{cap_encoder_forward.1} parent=11 // pred_fallthru
          _
      $region12: #{cap_encoder_forward.1} parent=5 // pred_fallthru
        _
      %p173 = scmp.lt.s32.totalorder %s12, 2
      // Predicated region
      $region21: #{cap_encoder_forward.1} parent=5 // pred_check
        %p174 = pneg %p173
      $region22: #{cap_encoder_forward.1} parent=5 // pred_check_branch
        %176 = sbr.rel (%p174) target = $region24
      $region23: #{cap_encoder_forward.1} parent=5 // pred_region
        // Predicated region
        $region25: #{cap_encoder_forward.1} parent=23 // pred_check
          %p177 = pneg %p32
        $region26: #{cap_encoder_forward.1} parent=23 // pred_check_branch
          %179 = sbr.rel (%p177) target = $region28
        $region27: #{cap_encoder_forward.1} parent=23 // pred_region
          %p180 = scmp.lt.s32.totalorder %s12, 1
          %s181 = scalar_select %p180, %s12, 1
          %s182 = smul.addr %s181, 2
          %s183 = smul.addr %s182, 8
          %s184 = scalar_lea.vmem %s0, %s183
        $region28: #{cap_encoder_forward.1} parent=23 // pred_fallthru
          _
        // Predicated region
        $region29: #{cap_encoder_forward.1} parent=23 // pred_check
          %p185 = pneg %p58
        $region30: #{cap_encoder_forward.1} parent=23 // pred_check_branch
          %187 = sbr.rel (%p185) target = $region32
        $region31: #{cap_encoder_forward.1} parent=23 // pred_region
          %p188 = scmp.lt.s32.totalorder %s12, 1
          %s189 = scalar_select %p188, %s12, 1
          %s190 = smul.addr %s189, 4
          %s191 = smul.addr %s190, 8
          %s192 = scalar_lea.vmem %s1, %s191
        $region32: #{cap_encoder_forward.1} parent=23 // pred_fallthru
          _
      $region24: #{cap_encoder_forward.1} parent=5 // pred_fallthru
        _
      %p193 = scmp.le.s32.totalorder 1, %s12
      %p194 = scmp.lt.s32.totalorder %s12, 3
      %p195 = pnand %p193, %p194
      %p196 = pneg %p195
      // Predicated region
      $region33: #{cap_encoder_forward.1} parent=5 // pred_check
        _
      $region34: #{cap_encoder_forward.1} parent=5 // pred_check_branch
        %198 = sbr.rel (%p195) target = $region36
      $region35: #{cap_encoder_forward.1} parent=5 // pred_region
        %s199 = ssub.s32 %s12, 1
        // Predicated region
        $region37: #{cap_encoder_forward.1} parent=35 // pred_check
          %p200 = pneg %p85
        $region38: #{cap_encoder_forward.1} parent=35 // pred_check_branch
          %202 = sbr.rel (%p200) target = $region40
        $region39: #{cap_encoder_forward.1} parent=35 // pred_region
          %203 = dma.done [#allocation3], 10752
        $region40: #{cap_encoder_forward.1} parent=35 // pred_fallthru
          _
        // Predicated region
        $region41: #{cap_encoder_forward.1} parent=35 // pred_check
          %p204 = pneg %p106
        $region42: #{cap_encoder_forward.1} parent=35 // pred_check_branch
          %206 = sbr.rel (%p204) target = $region44
        $region43: #{cap_encoder_forward.1} parent=35 // pred_region
          %207 = dma.done [#allocation5], 9216
        $region44: #{cap_encoder_forward.1} parent=35 // pred_fallthru
          _
        %p208 = scmp.lt.s32.totalorder %s17, 1
        %s209 = scalar_select %p208, %s17, 1
        %s210 = smul.addr %s209, 2
        %s211 = smul.addr %s210, 8
        %s212 = scalar_lea.vmem %s0, %s211
        %p213 = pneg %p38
        %p214 = pneg %p35
        %p215 = scmp.lt.s32.totalorder %s17, 1
        %s216 = scalar_select %p215, %s17, 1
        %s217 = smul.addr %s216, 4
        %s218 = smul.addr %s217, 8
        %s219 = scalar_lea.vmem %s1, %s218
        %p220 = pneg %p64
        %p221 = pneg %p61
        %p222 = pneg %p85
        %p223 = pneg %p82
        %p224 = pneg %p106
        %p225 = pneg %p103
        %p226 = pneg %p132
        %p227 = pneg %p129
        %p228 = scmp.lt.s32.totalorder %s17, 1
        %s229 = scalar_select %p228, %s17, 1
        %s230 = smul.addr %s229, 8
        %s231 = scalar_lea.vmem %s4, %s230
        %p232 = scmp.lt.s32.totalorder %s17, 1
        %s233 = scalar_select %p232, %s17, 1
        %s234 = smul.addr %s233, 2
        %s235 = smul.addr %s234, 8
        %s236 = scalar_lea.vmem %s0, %s235
        %p237 = scmp.lt.s32.totalorder %s17, 1
        %s238 = scalar_select %p237, %s17, 1
        %s239 = smul.addr %s238, 4
        %s240 = smul.addr %s239, 8
        %s241 = scalar_lea.vmem %s1, %s240
        %p242 = scmp.lt.s32.totalorder %s17, 1
        %s243 = scalar_select %p242, %s17, 1
        %s244 = smul.addr %s243, 8
        %s245 = scalar_lea.vmem %s4, %s244
        %v247 = vld [vmem:[#allocation2] sm:$0xf]
        %v248 = vld [vmem:[#allocation2 + $0x4] sm:$0xf]
        %v249 = vld [vmem:[#allocation2 + $0x8] sm:$0xf]
        %v250 = vld [vmem:[#allocation2 + $0xc] sm:$0xf]
        %v251 = vld [vmem:[%s241] sm:$0xff]
        %v252 = vld [vmem:[%s241 + $0x8] sm:$0xff]
        %v253 = vld [vmem:[%s241 + $0x10] sm:$0xff]
        %v254 = vld [vmem:[%s241 + $0x18] sm:$0xf]
        %v255 = vld [vmem:[%s236] sm:$0xff]
        %v256 = vld [vmem:[%s236 + $0x8] sm:$0xff]
        %v257 = vpack.c.bf16 %v256, %v255
        %v258 = vld [vmem:[#allocation2 + $0x10] sm:$0xf]
        %v259 = vld [vmem:[#allocation2 + $0x14] sm:$0xf]
        %v260 = vld [vmem:[#allocation2 + $0x18] sm:$0xf]
        %v261 = vld [vmem:[#allocation2 + $0x1c] sm:$0xf]
        %v262 = vld [vmem:[#allocation4 + $0x8] sm:$0x1]
        %v263 = vlaneseq
        %v264 = vshrl.u32 %v263, 7
        %v265 = vsub.s32 0, %v264
        %v266 = vrot.slane %v262, %v265
        %v271 = vunpack.c.l.b16 %v258
        %v272 = vunpack.c.l.b16 %v259
        %v273 = vunpack.c.l.b16 %v260
        %v274 = vunpack.c.l.b16 %v261
        %v275 = vpack.c.b16 %v272, %v271
        %v276 = vpack.c.b16 %v274, %v273
        %vm279 = vcmask 261120
        %v281 = vsel %vm279, %v257, 0
        %283 = vmatprep.subr.bf16.mxu0 0
        %284 = vmatpush1.bf16.msra.mxu0 %v275
        %285 = vmatprep.subr.bf16.mxu0 0
        %286 = vmatpush1.bf16.msra.mxu0 %v276
        %287 = vmatprep.subr.bf16.mxu0 0
        %288 = vmatpush1.bf16.msra.mxu0 0
        %289 = vmatprep.subr.bf16.mxu0 0
        %290 = vmatpush1.bf16.msra.mxu0 0
        %291 = vmatprep.subr.bf16.mxu0 0
        %292 = vmatpush1.bf16.msra.mxu0 0
        %293 = vmatprep.subr.bf16.mxu0 0
        %294 = vmatpush1.bf16.msra.mxu0 0
        %295 = vmatprep.subr.bf16.mxu0 0
        %296 = vmatpush1.bf16.msra.mxu0 0
        %297 = vmatprep.subr.bf16.mxu0 0
        %298 = vmatpush1.bf16.msra.mxu0 0
        %299 = vmatprep.subr.bf16.mxu0 0
        %300 = vmatpush1.bf16.msra.mxu0 0
        %301 = vmatprep.subr.bf16.mxu0 0
        %302 = vmatpush1.bf16.msra.mxu0 0
        %303 = vmatprep.subr.bf16.mxu0 0
        %304 = vmatpush1.bf16.msra.mxu0 0
        %305 = vmatprep.subr.bf16.mxu0 0
        %306 = vmatpush1.bf16.msra.mxu0 0
        %307 = vmatprep.subr.bf16.mxu0 0
        %308 = vmatpush1.bf16.msra.mxu0 0
        %309 = vmatprep.subr.bf16.mxu0 0
        %310 = vmatpush1.bf16.msra.mxu0 0
        %311 = vmatprep.subr.bf16.mxu0 0
        %312 = vmatpush1.bf16.msra.mxu0 0
        %313 = vmatprep.subr.bf16.mxu0 0
        %314 = vmatpush1.bf16.msra.mxu0 0
        %315 = vmatprep.mubr.bf16.mxu0 0
        %316 = vmatmul.mubr.bf16.gmra.mrb[0].mxu0 %v281
        %v317 = vpop.f32.mrb[0].mxu0
        %v318 = vadd.f32 %v266, %v317
        %v319 = vpop.f32.mrb[0].mxu0
        %v320 = vpop.f32.mrb[0].mxu0
        %v321 = vadd.f32 %v266, %v320
        %v322 = vpop.f32.mrb[0].mxu0
        %323 = vdwg.mxu0
        %v324 = vadd.f32 %v318, %v251
        %v325 = vadd.f32 %v321, %v252
        %v326 = vpack.c.bf16 %v325, %v324
        %v327 = vld [vmem:[#allocation2 + $0x20] sm:$0xf]
        %v328 = vld [vmem:[#allocation2 + $0x24] sm:$0xf]
        %v329 = vld [vmem:[#allocation2 + $0x28] sm:$0xf]
        %v330 = vld [vmem:[#allocation2 + $0x2c] sm:$0xf]
        %v331 = vld [vmem:[#allocation2 + $0x30] sm:$0xf]
        %v332 = vld [vmem:[#allocation2 + $0x34] sm:$0xf]
        %v333 = vld [vmem:[#allocation2 + $0x38] sm:$0xf]
        %v334 = vld [vmem:[#allocation2 + $0x3c] sm:$0xf]
        %v335 = vld [vmem:[#allocation4 + $0x10] sm:$0xff]
        %v336 = vld [vmem:[#allocation4 + $0x18] sm:$0xff]
        %v337 = vld [vmem:[#allocation4 + $0x20] sm:$0xff]
        %v338 = vld [vmem:[#allocation4 + $0x28] sm:$0xff]
        %v339 = vld [vmem:[#allocation4 + $0x30] sm:$0xff]
        %v340 = vld [vmem:[#allocation4 + $0x38] sm:$0xff]
        %v341 = vld [vmem:[#allocation4 + $0x40] sm:$0xff]
        %v342 = vld [vmem:[#allocation4 + $0x48] sm:$0xff]
        %344 = vset.pattern.permute.xlu0 0
        %345 = vperm.xlu0 %344, %v335
        %v346 = vpop.permute.xlu0 %345
        %349 = vset.pattern.permute.xlu0 0
        %350 = vperm.xlu0 %349, %v336
        %v351 = vpop.permute.xlu0 %350
        %354 = vset.pattern.permute.xlu0 0
        %355 = vperm.xlu0 %354, %v337
        %v356 = vpop.permute.xlu0 %355
        %359 = vset.pattern.permute.xlu0 0
        %360 = vperm.xlu0 %359, %v338
        %v361 = vpop.permute.xlu0 %360
        %364 = vset.pattern.permute.xlu0 0
        %365 = vperm.xlu0 %364, %v339
        %v366 = vpop.permute.xlu0 %365
        %369 = vset.pattern.permute.xlu0 0
        %370 = vperm.xlu0 %369, %v340
        %v371 = vpop.permute.xlu0 %370
        %374 = vset.pattern.permute.xlu0 0
        %375 = vperm.xlu0 %374, %v341
        %v376 = vpop.permute.xlu0 %375
        %379 = vset.pattern.permute.xlu0 0
        %380 = vperm.xlu0 %379, %v342
        %v381 = vpop.permute.xlu0 %380
        %v391 = vunpack.c.l.b16 %v327
        %v392 = vunpack.c.l.b16 %v328
        %v393 = vunpack.c.l.b16 %v329
        %v394 = vunpack.c.l.b16 %v330
        %v395 = vunpack.c.l.b16 %v331
        %v396 = vunpack.c.l.b16 %v332
        %v397 = vunpack.c.l.b16 %v333
        %v398 = vunpack.c.l.b16 %v334
        %v399 = vpack.c.b16 %v392, %v391
        %v400 = vpack.c.b16 %v394, %v393
        %v401 = vpack.c.b16 %v396, %v395
        %v402 = vpack.c.b16 %v398, %v397
        %vm403 = vcmask 130048
        %v405 = vsel %vm403, %v399, 0
        %v408 = vsel %vm403, %v400, 0
        %v411 = vsel %vm403, %v401, 0
        %v414 = vsel %vm403, %v402, 0
        %416 = vmatprep.subr.bf16.mxu0 0
        %417 = vmatpush1.bf16.msra.mxu0 %v326
        %418 = vmatprep.subr.bf16.mxu0 0
        %419 = vmatpush1.bf16.msra.mxu0 0
        %420 = vmatprep.subr.bf16.mxu0 0
        %421 = vmatpush1.bf16.msra.mxu0 0
        %422 = vmatprep.subr.bf16.mxu0 0
        %423 = vmatpush1.bf16.msra.mxu0 0
        %424 = vmatprep.subr.bf16.mxu0 0
        %425 = vmatpush1.bf16.msra.mxu0 0
        %426 = vmatprep.subr.bf16.mxu0 0
        %427 = vmatpush1.bf16.msra.mxu0 0
        %428 = vmatprep.subr.bf16.mxu0 0
        %429 = vmatpush1.bf16.msra.mxu0 0
        %430 = vmatprep.subr.bf16.mxu0 0
        %431 = vmatpush1.bf16.msra.mxu0 0
        %432 = vmatprep.subr.bf16.mxu0 0
        %433 = vmatpush1.bf16.msra.mxu0 0
        %434 = vmatprep.subr.bf16.mxu0 0
        %435 = vmatpush1.bf16.msra.mxu0 0
        %436 = vmatprep.subr.bf16.mxu0 0
        %437 = vmatpush1.bf16.msra.mxu0 0
        %438 = vmatprep.subr.bf16.mxu0 0
        %439 = vmatpush1.bf16.msra.mxu0 0
        %440 = vmatprep.subr.bf16.mxu0 0
        %441 = vmatpush1.bf16.msra.mxu0 0
        %442 = vmatprep.subr.bf16.mxu0 0
        %443 = vmatpush1.bf16.msra.mxu0 0
        %444 = vmatprep.subr.bf16.mxu0 0
        %445 = vmatpush1.bf16.msra.mxu0 0
        %446 = vmatprep.subr.bf16.mxu0 0
        %447 = vmatpush1.bf16.msra.mxu0 0
        %448 = vmatprep.mubr.bf16.mxu0 0
        %449 = vmatmul.mubr.bf16.gmra.mrb[0].mxu0 %v405
        %v450 = vpop.f32.mrb[0].mxu0
        %v451 = vadd.f32 %v346, %v450
        %v452 = vpop.f32.mrb[0].mxu0
        %v453 = vpop.f32.mrb[0].mxu0
        %v454 = vadd.f32 %v351, %v453
        %v455 = vpop.f32.mrb[0].mxu0
        %456 = vmatprep.mubr.bf16.mxu0 0
        %457 = vmatmul.mubr.bf16.gmra.mrb[0].mxu0 %v408
        %v458 = vpop.f32.mrb[0].mxu0
        %v459 = vadd.f32 %v356, %v458
        %v460 = vpop.f32.mrb[0].mxu0
        %v461 = vpop.f32.mrb[0].mxu0
        %v462 = vadd.f32 %v361, %v461
        %v463 = vpop.f32.mrb[0].mxu0
        %464 = vmatprep.mubr.bf16.mxu0 0
        %465 = vmatmul.mubr.bf16.gmra.mrb[0].mxu0 %v411
        %v466 = vpop.f32.mrb[0].mxu0
        %v467 = vadd.f32 %v366, %v466
        %v468 = vpop.f32.mrb[0].mxu0
        %v469 = vpop.f32.mrb[0].mxu0
        %v470 = vadd.f32 %v371, %v469
        %v471 = vpop.f32.mrb[0].mxu0
        %472 = vmatprep.mubr.bf16.mxu0 0
        %473 = vmatmul.mubr.bf16.gmra.mrb[0].mxu0 %v414
        %v474 = vpop.f32.mrb[0].mxu0
        %v475 = vadd.f32 %v376, %v474
        %v476 = vpop.f32.mrb[0].mxu0
        %v477 = vpop.f32.mrb[0].mxu0
        %v478 = vadd.f32 %v381, %v477
        %v479 = vpop.f32.mrb[0].mxu0
        %480 = vdwg.mxu0
        %v481 = vmul.f32 %v451, 0.5
        %v482 = vmul.f32 %v454, 0.5
        %v483 = vmul.f32 %v459, 0.5
        %v484 = vmul.f32 %v462, 0.5
        %v485 = vmul.f32 %v467, 0.5
        %v486 = vmul.f32 %v470, 0.5
        %v487 = vmul.f32 %v475, 0.5
        %v488 = vmul.f32 %v478, 0.5
        %v489 = vmul.f32 %v451, 0.044715
        %v490 = vmul.f32 %v454, 0.044715
        %v491 = vmul.f32 %v459, 0.044715
        %v492 = vmul.f32 %v462, 0.044715
        %v493 = vmul.f32 %v467, 0.044715
        %v494 = vmul.f32 %v470, 0.044715
        %v495 = vmul.f32 %v475, 0.044715
        %v496 = vmul.f32 %v478, 0.044715
        %v497 = vmul.f32 %v489, %v451
        %v498 = vmul.f32 %v490, %v454
        %v499 = vmul.f32 %v491, %v459
        %v500 = vmul.f32 %v492, %v462
        %v501 = vmul.f32 %v493, %v467
        %v502 = vmul.f32 %v494, %v470
        %v503 = vmul.f32 %v495, %v475
        %v504 = vmul.f32 %v496, %v478
        %v505 = vmul.f32 %v497, %v451
        %v506 = vmul.f32 %v498, %v454
        %v507 = vmul.f32 %v499, %v459
        %v508 = vmul.f32 %v500, %v462
        %v509 = vmul.f32 %v501, %v467
        %v510 = vmul.f32 %v502, %v470
        %v511 = vmul.f32 %v503, %v475
        %v512 = vmul.f32 %v504, %v478
        %v513 = vadd.f32 %v451, %v505
        %v514 = vadd.f32 %v454, %v506
        %v515 = vadd.f32 %v459, %v507
        %v516 = vadd.f32 %v462, %v508
        %v517 = vadd.f32 %v467, %v509
        %v518 = vadd.f32 %v470, %v510
        %v519 = vadd.f32 %v475, %v511
        %v520 = vadd.f32 %v478, %v512
        %v521 = vmul.f32 %v513, 0.7978846
        %v522 = vmul.f32 %v514, 0.7978846
        %v523 = vmul.f32 %v515, 0.7978846
        %v524 = vmul.f32 %v516, 0.7978846
        %v525 = vmul.f32 %v517, 0.7978846
        %v526 = vmul.f32 %v518, 0.7978846
        %v527 = vmul.f32 %v519, 0.7978846
        %v528 = vmul.f32 %v520, 0.7978846
        %v529 = vtanh.pop %v521
        %v530 = vtanh.pop %v522
        %v531 = vtanh.pop %v523
        %v532 = vtanh.pop %v524
        %v533 = vtanh.pop %v525
        %v534 = vtanh.pop %v526
        %v535 = vtanh.pop %v527
        %v536 = vtanh.pop %v528
        %v537 = vadd.f32 %v529, 1.0
        %v538 = vadd.f32 %v530, 1.0
        %v539 = vadd.f32 %v531, 1.0
        %v540 = vadd.f32 %v532, 1.0
        %v541 = vadd.f32 %v533, 1.0
        %v542 = vadd.f32 %v534, 1.0
        %v543 = vadd.f32 %v535, 1.0
        %v544 = vadd.f32 %v536, 1.0
        %v545 = vmul.f32 %v481, %v537
        %v546 = vmul.f32 %v482, %v538
        %v547 = vmul.f32 %v483, %v539
        %v548 = vmul.f32 %v484, %v540
        %v549 = vmul.f32 %v485, %v541
        %v550 = vmul.f32 %v486, %v542
        %v551 = vmul.f32 %v487, %v543
        %v552 = vmul.f32 %v488, %v544
        %v553 = vld [vmem:[#allocation2 + $0x40] sm:$0xf]
        %v554 = vpack.c.bf16 %v546, %v545
        %v555 = vpack.c.bf16 %v548, %v547
        %v556 = vpack.c.bf16 %v550, %v549
        %v557 = vpack.c.bf16 %v552, %v551
        %v558 = vld [vmem:[#allocation4 + $0x50] sm:$0xff]
        %560 = vset.pattern.permute.xlu0 0
        %561 = vperm.xlu0 %560, %v558
        %v562 = vpop.permute.xlu0 %561
        %vm564 = vcmask 523264
        %v566 = vsel %vm564, %v553, 0
        %568 = vmatprep.subr.bf16.mxu0 0
        %569 = vmatpush1.bf16.msra.mxu0 %v554
        %570 = vmatprep.subr.bf16.mxu0 0
        %571 = vmatpush1.bf16.msra.mxu0 %v555
        %572 = vmatprep.subr.bf16.mxu0 0
        %573 = vmatpush1.bf16.msra.mxu0 %v556
        %574 = vmatprep.subr.bf16.mxu0 0
        %575 = vmatpush1.bf16.msra.mxu0 %v557
        %576 = vmatprep.subr.bf16.mxu0 0
        %577 = vmatpush1.bf16.msra.mxu0 0
        %578 = vmatprep.subr.bf16.mxu0 0
        %579 = vmatpush1.bf16.msra.mxu0 0
        %580 = vmatprep.subr.bf16.mxu0 0
        %581 = vmatpush1.bf16.msra.mxu0 0
        %582 = vmatprep.subr.bf16.mxu0 0
        %583 = vmatpush1.bf16.msra.mxu0 0
        %584 = vmatprep.subr.bf16.mxu0 0
        %585 = vmatpush1.bf16.msra.mxu0 0
        %586 = vmatprep.subr.bf16.mxu0 0
        %587 = vmatpush1.bf16.msra.mxu0 0
        %588 = vmatprep.subr.bf16.mxu0 0
        %589 = vmatpush1.bf16.msra.mxu0 0
        %590 = vmatprep.subr.bf16.mxu0 0
        %591 = vmatpush1.bf16.msra.mxu0 0
        %592 = vmatprep.subr.bf16.mxu0 0
        %593 = vmatpush1.bf16.msra.mxu0 0
        %594 = vmatprep.subr.bf16.mxu0 0
        %595 = vmatpush1.bf16.msra.mxu0 0
        %596 = vmatprep.subr.bf16.mxu0 0
        %597 = vmatpush1.bf16.msra.mxu0 0
        %598 = vmatprep.subr.bf16.mxu0 0
        %599 = vmatpush1.bf16.msra.mxu0 0
        %600 = vmatprep.mubr.bf16.mxu0 0
        %601 = vmatmul.mubr.bf16.gmra.mrb[0].mxu0 %v566
        %v602 = vpop.f32.mrb[0].mxu0
        %v603 = vadd.f32 %v562, %v602
        %v604 = vpop.f32.mrb[0].mxu0
        %v605 = vpop.f32.mrb[0].mxu0
        %v606 = vpop.f32.mrb[0].mxu0
        %607 = vdwg.mxu0
        %v608 = vpack.c.bf16 %v603, %v603
        %v609 = vld [vmem:[#allocation2 + $0x48] sm:$0xf]
        %v610 = vld [vmem:[#allocation2 + $0x4c] sm:$0xf]
        %v611 = vld [vmem:[#allocation2 + $0x50] sm:$0xf]
        %v612 = vld [vmem:[#allocation2 + $0x54] sm:$0xf]
        %v613 = vld [vmem:[#allocation4 + $0x58] sm:$0x1]
        %v614 = vlaneseq
        %v615 = vshrl.u32 %v614, 7
        %v616 = vsub.s32 0, %v615
        %v617 = vrot.slane %v613, %v616
        %v622 = vunpack.c.l.b16 %v609
        %v623 = vunpack.c.l.b16 %v610
        %v624 = vunpack.c.l.b16 %v611
        %v625 = vunpack.c.l.b16 %v612
        %v626 = vpack.c.b16 %v623, %v622
        %v627 = vpack.c.b16 %v625, %v624
        %v631 = vsel %vm279, %v608, 0
        %633 = vmatprep.subr.bf16.mxu0 0
        %634 = vmatpush1.bf16.msra.mxu0 %v626
        %635 = vmatprep.subr.bf16.mxu0 0
        %636 = vmatpush1.bf16.msra.mxu0 %v627
        %637 = vmatprep.subr.bf16.mxu0 0
        %638 = vmatpush1.bf16.msra.mxu0 0
        %639 = vmatprep.subr.bf16.mxu0 0
        %640 = vmatpush1.bf16.msra.mxu0 0
        %641 = vmatprep.subr.bf16.mxu0 0
        %642 = vmatpush1.bf16.msra.mxu0 0
        %643 = vmatprep.subr.bf16.mxu0 0
        %644 = vmatpush1.bf16.msra.mxu0 0
        %645 = vmatprep.subr.bf16.mxu0 0
        %646 = vmatpush1.bf16.msra.mxu0 0
        %647 = vmatprep.subr.bf16.mxu0 0
        %648 = vmatpush1.bf16.msra.mxu0 0
        %649 = vmatprep.subr.bf16.mxu0 0
        %650 = vmatpush1.bf16.msra.mxu0 0
        %651 = vmatprep.subr.bf16.mxu0 0
        %652 = vmatpush1.bf16.msra.mxu0 0
        %653 = vmatprep.subr.bf16.mxu0 0
        %654 = vmatpush1.bf16.msra.mxu0 0
        %655 = vmatprep.subr.bf16.mxu0 0
        %656 = vmatpush1.bf16.msra.mxu0 0
        %657 = vmatprep.subr.bf16.mxu0 0
        %658 = vmatpush1.bf16.msra.mxu0 0
        %659 = vmatprep.subr.bf16.mxu0 0
        %660 = vmatpush1.bf16.msra.mxu0 0
        %661 = vmatprep.subr.bf16.mxu0 0
        %662 = vmatpush1.bf16.msra.mxu0 0
        %663 = vmatprep.subr.bf16.mxu0 0
        %664 = vmatpush1.bf16.msra.mxu0 0
        %665 = vmatprep.mubr.bf16.mxu0 0
        %666 = vmatmul.mubr.bf16.gmra.mrb[0].mxu0 %v631
        %v667 = vpop.f32.mrb[0].mxu0
        %v668 = vadd.f32 %v617, %v667
        %v669 = vpop.f32.mrb[0].mxu0
        %v670 = vpop.f32.mrb[0].mxu0
        %v671 = vpop.f32.mrb[0].mxu0
        %672 = vdwg.mxu0
        %v673 = vld [vmem:[#allocation2 + $0x58] sm:$0xf]
        %v674 = vld [vmem:[#allocation2 + $0x5c] sm:$0xf]
        %v675 = vld [vmem:[#allocation2 + $0x60] sm:$0xf]
        %v676 = vld [vmem:[#allocation2 + $0x64] sm:$0xf]
        %v677 = vld [vmem:[#allocation4 + $0x60] sm:$0x1]
        %v678 = vlaneseq
        %v679 = vshrl.u32 %v678, 7
        %v680 = vsub.s32 0, %v679
        %v681 = vrot.slane %v677, %v680
        %v686 = vunpack.c.l.b16 %v673
        %v687 = vunpack.c.l.b16 %v674
        %v688 = vunpack.c.l.b16 %v675
        %v689 = vunpack.c.l.b16 %v676
        %v690 = vpack.c.b16 %v687, %v686
        %v691 = vpack.c.b16 %v689, %v688
        %v695 = vsel %vm279, %v326, 0
        %697 = vmatprep.subr.bf16.mxu0 0
        %698 = vmatpush1.bf16.msra.mxu0 %v690
        %699 = vmatprep.subr.bf16.mxu0 0
        %700 = vmatpush1.bf16.msra.mxu0 %v691
        %701 = vmatprep.subr.bf16.mxu0 0
        %702 = vmatpush1.bf16.msra.mxu0 0
        %703 = vmatprep.subr.bf16.mxu0 0
        %704 = vmatpush1.bf16.msra.mxu0 0
        %705 = vmatprep.subr.bf16.mxu0 0
        %706 = vmatpush1.bf16.msra.mxu0 0
        %707 = vmatprep.subr.bf16.mxu0 0
        %708 = vmatpush1.bf16.msra.mxu0 0
        %709 = vmatprep.subr.bf16.mxu0 0
        %710 = vmatpush1.bf16.msra.mxu0 0
        %711 = vmatprep.subr.bf16.mxu0 0
        %712 = vmatpush1.bf16.msra.mxu0 0
        %713 = vmatprep.subr.bf16.mxu0 0
        %714 = vmatpush1.bf16.msra.mxu0 0
        %715 = vmatprep.subr.bf16.mxu0 0
        %716 = vmatpush1.bf16.msra.mxu0 0
        %717 = vmatprep.subr.bf16.mxu0 0
        %718 = vmatpush1.bf16.msra.mxu0 0
        %719 = vmatprep.subr.bf16.mxu0 0
        %720 = vmatpush1.bf16.msra.mxu0 0
        %721 = vmatprep.subr.bf16.mxu0 0
        %722 = vmatpush1.bf16.msra.mxu0 0
        %723 = vmatprep.subr.bf16.mxu0 0
        %724 = vmatpush1.bf16.msra.mxu0 0
        %725 = vmatprep.subr.bf16.mxu0 0
        %726 = vmatpush1.bf16.msra.mxu0 0
        %727 = vmatprep.subr.bf16.mxu0 0
        %728 = vmatpush1.bf16.msra.mxu0 0
        %729 = vmatprep.mubr.bf16.mxu0 0
        %730 = vmatmul.mubr.bf16.gmra.mrb[0].mxu0 %v695
        %v731 = vpop.f32.mrb[0].mxu0
        %v732 = vadd.f32 %v681, %v731
        %v733 = vpop.f32.mrb[0].mxu0
        %v734 = vpop.f32.mrb[0].mxu0
        %v735 = vadd.f32 %v681, %v734
        %v736 = vpop.f32.mrb[0].mxu0
        %737 = vdwg.mxu0
        %v738 = vld [vmem:[#allocation2 + $0x68] sm:$0xf]
        %v739 = vld [vmem:[#allocation2 + $0x6c] sm:$0xf]
        %v740 = vld [vmem:[#allocation2 + $0x70] sm:$0xf]
        %v741 = vld [vmem:[#allocation2 + $0x74] sm:$0xf]
        %v742 = vld [vmem:[#allocation4 + $0x68] sm:$0x1]
        %v743 = vpack.c.bf16 %v668, %v668
        %v744 = vpack.c.bf16 %v735, %v732
        %vm745 = vcmask 64512
        %v747 = vsel %vm745, %v743, 0
        %v750 = vsel %vm745, %v744, 0
        %752 = vmatprep.subr.bf16.mxu0 0
        %753 = vmatpush1.bf16.xpose.msra.mxu0 %v750
        %754 = vmatprep.subr.bf16.mxu0 0
        %755 = vmatpush1.bf16.xpose.msra.mxu0 0
        %756 = vmatprep.subr.bf16.mxu0 0
        %757 = vmatpush1.bf16.xpose.msra.mxu0 0
        %758 = vmatprep.subr.bf16.mxu0 0
        %759 = vmatpush1.bf16.xpose.msra.mxu0 0
        %760 = vmatprep.subr.bf16.mxu0 0
        %761 = vmatpush1.bf16.xpose.msra.mxu0 0
        %762 = vmatprep.subr.bf16.mxu0 0
        %763 = vmatpush1.bf16.xpose.msra.mxu0 0
        %764 = vmatprep.subr.bf16.mxu0 0
        %765 = vmatpush1.bf16.xpose.msra.mxu0 0
        %766 = vmatprep.subr.bf16.mxu0 0
        %767 = vmatpush1.bf16.xpose.msra.mxu0 0
        %768 = vmatprep.subr.bf16.mxu0 0
        %769 = vmatpush1.bf16.xpose.msra.mxu0 0
        %770 = vmatprep.subr.bf16.mxu0 0
        %771 = vmatpush1.bf16.xpose.msra.mxu0 0
        %772 = vmatprep.subr.bf16.mxu0 0
        %773 = vmatpush1.bf16.xpose.msra.mxu0 0
        %774 = vmatprep.subr.bf16.mxu0 0
        %775 = vmatpush1.bf16.xpose.msra.mxu0 0
        %776 = vmatprep.subr.bf16.mxu0 0
        %777 = vmatpush1.bf16.xpose.msra.mxu0 0
        %778 = vmatprep.subr.bf16.mxu0 0
        %779 = vmatpush1.bf16.xpose.msra.mxu0 0
        %780 = vmatprep.subr.bf16.mxu0 0
        %781 = vmatpush1.bf16.xpose.msra.mxu0 0
        %782 = vmatprep.subr.bf16.mxu0 0
        %783 = vmatpush1.bf16.xpose.msra.mxu0 0
        %784 = vmatprep.mubr.bf16.mxu0 0
        %785 = vmatmul.mubr.bf16.gmra.mrb[0].mxu0 %v747
        %v786 = vpop.f32.mrb[0].mxu0
        %v787 = vadd.f32 0.0, %v786
        %v788 = vpop.f32.mrb[0].mxu0
        %v789 = vpop.f32.mrb[0].mxu0
        %v790 = vpop.f32.mrb[0].mxu0
        %791 = vdwg.mxu0
        %v792 = vmul.f32 %v787, 0.35355338
        %v793 = vsel %vm403, %v792, -inf
        %794 = vmax.xlane.f32.xlu0 %v793
        %v795 = vpop.xlane.xlu0 %794
        %v796 = vsub.f32 %v792, %v795
        %v797 = vmul.f32 %v796, 1.442695
        %v798 = vpow.pop %v797
        %v799 = vsel %vm403, %v798, 0.0
        %800 = vadd.xlane.f32.xlu0 %v799
        %v801 = vpop.xlane.xlu0 %800
        %v802 = vrcp.pop %v801
        %v803 = vmul.f32 %v798, %v802
        %v804 = vpack.c.bf16 %v803, %v803
        %806 = vrot.lane.b32.xlu0 %v744, 96
        %v807 = vpop.permute.xlu0 %806
        %v810 = vsel %vm403, %v804, 0
        %812 = vmatprep.subr.bf16.mxu0 0
        %813 = vmatpush1.bf16.msra.mxu0 %v807
        %814 = vmatprep.subr.bf16.mxu0 0
        %815 = vmatpush1.bf16.msra.mxu0 0
        %816 = vmatprep.subr.bf16.mxu0 0
        %817 = vmatpush1.bf16.msra.mxu0 0
        %818 = vmatprep.subr.bf16.mxu0 0
        %819 = vmatpush1.bf16.msra.mxu0 0
        %820 = vmatprep.subr.bf16.mxu0 0
        %821 = vmatpush1.bf16.msra.mxu0 0
        %822 = vmatprep.subr.bf16.mxu0 0
        %823 = vmatpush1.bf16.msra.mxu0 0
        %824 = vmatprep.subr.bf16.mxu0 0
        %825 = vmatpush1.bf16.msra.mxu0 0
        %826 = vmatprep.subr.bf16.mxu0 0
        %827 = vmatpush1.bf16.msra.mxu0 0
        %828 = vmatprep.subr.bf16.mxu0 0
        %829 = vmatpush1.bf16.msra.mxu0 0
        %830 = vmatprep.subr.bf16.mxu0 0
        %831 = vmatpush1.bf16.msra.mxu0 0
        %832 = vmatprep.subr.bf16.mxu0 0
        %833 = vmatpush1.bf16.msra.mxu0 0
        %834 = vmatprep.subr.bf16.mxu0 0
        %835 = vmatpush1.bf16.msra.mxu0 0
        %836 = vmatprep.subr.bf16.mxu0 0
        %837 = vmatpush1.bf16.msra.mxu0 0
        %838 = vmatprep.subr.bf16.mxu0 0
        %839 = vmatpush1.bf16.msra.mxu0 0
        %840 = vmatprep.subr.bf16.mxu0 0
        %841 = vmatpush1.bf16.msra.mxu0 0
        %842 = vmatprep.subr.bf16.mxu0 0
        %843 = vmatpush1.bf16.msra.mxu0 0
        %844 = vmatprep.mubr.bf16.mxu0 0
        %845 = vmatmul.mubr.bf16.gmra.mrb[0].mxu0 %v810
        %v846 = vpop.f32.mrb[0].mxu0
        %v847 = vadd.f32 0.0, %v846
        %v848 = vpop.f32.mrb[0].mxu0
        %v849 = vpop.f32.mrb[0].mxu0
        %v850 = vpop.f32.mrb[0].mxu0
        %851 = vdwg.mxu0
        %853 = vrot.lane.b32.xlu0 %v743, 120
        %v854 = vpop.permute.xlu0 %853
        %855 = vrot.lane.b32.xlu0 %v744, 120
        %v856 = vpop.permute.xlu0 %855
        %v858 = vsel %vm745, %v854, 0
        %v861 = vsel %vm745, %v856, 0
        %863 = vmatprep.subr.bf16.mxu0 0
        %864 = vmatpush1.bf16.xpose.msra.mxu0 %v861
        %865 = vmatprep.subr.bf16.mxu0 0
        %866 = vmatpush1.bf16.xpose.msra.mxu0 0
        %867 = vmatprep.subr.bf16.mxu0 0
        %868 = vmatpush1.bf16.xpose.msra.mxu0 0
        %869 = vmatprep.subr.bf16.mxu0 0
        %870 = vmatpush1.bf16.xpose.msra.mxu0 0
        %871 = vmatprep.subr.bf16.mxu0 0
        %872 = vmatpush1.bf16.xpose.msra.mxu0 0
        %873 = vmatprep.subr.bf16.mxu0 0
        %874 = vmatpush1.bf16.xpose.msra.mxu0 0
        %875 = vmatprep.subr.bf16.mxu0 0
        %876 = vmatpush1.bf16.xpose.msra.mxu0 0
        %877 = vmatprep.subr.bf16.mxu0 0
        %878 = vmatpush1.bf16.xpose.msra.mxu0 0
        %879 = vmatprep.subr.bf16.mxu0 0
        %880 = vmatpush1.bf16.xpose.msra.mxu0 0
        %881 = vmatprep.subr.bf16.mxu0 0
        %882 = vmatpush1.bf16.xpose.msra.mxu0 0
        %883 = vmatprep.subr.bf16.mxu0 0
        %884 = vmatpush1.bf16.xpose.msra.mxu0 0
        %885 = vmatprep.subr.bf16.mxu0 0
        %886 = vmatpush1.bf16.xpose.msra.mxu0 0
        %887 = vmatprep.subr.bf16.mxu0 0
        %888 = vmatpush1.bf16.xpose.msra.mxu0 0
        %889 = vmatprep.subr.bf16.mxu0 0
        %890 = vmatpush1.bf16.xpose.msra.mxu0 0
        %891 = vmatprep.subr.bf16.mxu0 0
        %892 = vmatpush1.bf16.xpose.msra.mxu0 0
        %893 = vmatprep.subr.bf16.mxu0 0
        %894 = vmatpush1.bf16.xpose.msra.mxu0 0
        %895 = vmatprep.mubr.bf16.mxu0 0
        %896 = vmatmul.mubr.bf16.gmra.mrb[0].mxu0 %v858
        %v897 = vpop.f32.mrb[0].mxu0
        %v898 = vadd.f32 0.0, %v897
        %v899 = vpop.f32.mrb[0].mxu0
        %v900 = vpop.f32.mrb[0].mxu0
        %v901 = vpop.f32.mrb[0].mxu0
        %902 = vdwg.mxu0
        %v903 = vmul.f32 %v898, 0.35355338
        %v904 = vsel %vm403, %v903, -inf
        %905 = vmax.xlane.f32.xlu0 %v904
        %v906 = vpop.xlane.xlu0 %905
        %v907 = vsub.f32 %v903, %v906
        %v908 = vmul.f32 %v907, 1.442695
        %v909 = vpow.pop %v908
        %v910 = vsel %vm403, %v909, 0.0
        %911 = vadd.xlane.f32.xlu0 %v910
        %v912 = vpop.xlane.xlu0 %911
        %v913 = vrcp.pop %v912
        %v914 = vmul.f32 %v909, %v913
        %v915 = vpack.c.bf16 %v914, %v914
        %916 = vrot.lane.b32.xlu0 %v744, 88
        %v917 = vpop.permute.xlu0 %916
        %v920 = vsel %vm403, %v915, 0
        %922 = vmatprep.subr.bf16.mxu0 0
        %923 = vmatpush1.bf16.msra.mxu0 %v917
        %924 = vmatprep.subr.bf16.mxu0 0
        %925 = vmatpush1.bf16.msra.mxu0 0
        %926 = vmatprep.subr.bf16.mxu0 0
        %927 = vmatpush1.bf16.msra.mxu0 0
        %928 = vmatprep.subr.bf16.mxu0 0
        %929 = vmatpush1.bf16.msra.mxu0 0
        %930 = vmatprep.subr.bf16.mxu0 0
        %931 = vmatpush1.bf16.msra.mxu0 0
        %932 = vmatprep.subr.bf16.mxu0 0
        %933 = vmatpush1.bf16.msra.mxu0 0
        %934 = vmatprep.subr.bf16.mxu0 0
        %935 = vmatpush1.bf16.msra.mxu0 0
        %936 = vmatprep.subr.bf16.mxu0 0
        %937 = vmatpush1.bf16.msra.mxu0 0
        %938 = vmatprep.subr.bf16.mxu0 0
        %939 = vmatpush1.bf16.msra.mxu0 0
        %940 = vmatprep.subr.bf16.mxu0 0
        %941 = vmatpush1.bf16.msra.mxu0 0
        %942 = vmatprep.subr.bf16.mxu0 0
        %943 = vmatpush1.bf16.msra.mxu0 0
        %944 = vmatprep.subr.bf16.mxu0 0
        %945 = vmatpush1.bf16.msra.mxu0 0
        %946 = vmatprep.subr.bf16.mxu0 0
        %947 = vmatpush1.bf16.msra.mxu0 0
        %948 = vmatprep.subr.bf16.mxu0 0
        %949 = vmatpush1.bf16.msra.mxu0 0
        %950 = vmatprep.subr.bf16.mxu0 0
        %951 = vmatpush1.bf16.msra.mxu0 0
        %952 = vmatprep.subr.bf16.mxu0 0
        %953 = vmatpush1.bf16.msra.mxu0 0
        %954 = vmatprep.mubr.bf16.mxu0 0
        %955 = vmatmul.mubr.bf16.gmra.mrb[0].mxu0 %v920
        %v956 = vpop.f32.mrb[0].mxu0
        %v957 = vadd.f32 0.0, %v956
        %v958 = vpop.f32.mrb[0].mxu0
        %v959 = vpop.f32.mrb[0].mxu0
        %v960 = vpop.f32.mrb[0].mxu0
        %961 = vdwg.mxu0
        %962 = vrot.lane.b32.xlu0 %v743, 112
        %v963 = vpop.permute.xlu0 %962
        %964 = vrot.lane.b32.xlu0 %v744, 112
        %v965 = vpop.permute.xlu0 %964
        %v967 = vsel %vm745, %v963, 0
        %v970 = vsel %vm745, %v965, 0
        %972 = vmatprep.subr.bf16.mxu0 0
        %973 = vmatpush1.bf16.xpose.msra.mxu0 %v970
        %974 = vmatprep.subr.bf16.mxu0 0
        %975 = vmatpush1.bf16.xpose.msra.mxu0 0
        %976 = vmatprep.subr.bf16.mxu0 0
        %977 = vmatpush1.bf16.xpose.msra.mxu0 0
        %978 = vmatprep.subr.bf16.mxu0 0
        %979 = vmatpush1.bf16.xpose.msra.mxu0 0
        %980 = vmatprep.subr.bf16.mxu0 0
        %981 = vmatpush1.bf16.xpose.msra.mxu0 0
        %982 = vmatprep.subr.bf16.mxu0 0
        %983 = vmatpush1.bf16.xpose.msra.mxu0 0
        %984 = vmatprep.subr.bf16.mxu0 0
        %985 = vmatpush1.bf16.xpose.msra.mxu0 0
        %986 = vmatprep.subr.bf16.mxu0 0
        %987 = vmatpush1.bf16.xpose.msra.mxu0 0
        %988 = vmatprep.subr.bf16.mxu0 0
        %989 = vmatpush1.bf16.xpose.msra.mxu0 0
        %990 = vmatprep.subr.bf16.mxu0 0
        %991 = vmatpush1.bf16.xpose.msra.mxu0 0
        %992 = vmatprep.subr.bf16.mxu0 0
        %993 = vmatpush1.bf16.xpose.msra.mxu0 0
        %994 = vmatprep.subr.bf16.mxu0 0
        %995 = vmatpush1.bf16.xpose.msra.mxu0 0
        %996 = vmatprep.subr.bf16.mxu0 0
        %997 = vmatpush1.bf16.xpose.msra.mxu0 0
        %998 = vmatprep.subr.bf16.mxu0 0
        %999 = vmatpush1.bf16.xpose.msra.mxu0 0
        %1000 = vmatprep.subr.bf16.mxu0 0
        %1001 = vmatpush1.bf16.xpose.msra.mxu0 0
        %1002 = vmatprep.subr.bf16.mxu0 0
        %1003 = vmatpush1.bf16.xpose.msra.mxu0 0
        %1004 = vmatprep.mubr.bf16.mxu0 0
        %1005 = vmatmul.mubr.bf16.gmra.mrb[0].mxu0 %v967
        %v1006 = vpop.f32.mrb[0].mxu0
        %v1007 = vadd.f32 0.0, %v1006
        %v1008 = vpop.f32.mrb[0].mxu0
        %v1009 = vpop.f32.mrb[0].mxu0
        %v1010 = vpop.f32.mrb[0].mxu0
        %1011 = vdwg.mxu0
        %v1012 = vmul.f32 %v1007, 0.35355338
        %v1013 = vsel %vm403, %v1012, -inf
        %1014 = vmax.xlane.f32.xlu0 %v1013
        %v1015 = vpop.xlane.xlu0 %1014
        %v1016 = vsub.f32 %v1012, %v1015
        %v1017 = vmul.f32 %v1016, 1.442695
        %v1018 = vpow.pop %v1017
        %v1019 = vsel %vm403, %v1018, 0.0
        %1020 = vadd.xlane.f32.xlu0 %v1019
        %v1021 = vpop.xlane.xlu0 %1020
        %v1022 = vrcp.pop %v1021
        %v1023 = vmul.f32 %v1018, %v1022
        %v1024 = vpack.c.bf16 %v1023, %v1023
        %1025 = vrot.lane.b32.xlu0 %v744, 80
        %v1026 = vpop.permute.xlu0 %1025
        %v1029 = vsel %vm403, %v1024, 0
        %1031 = vmatprep.subr.bf16.mxu0 0
        %1032 = vmatpush1.bf16.msra.mxu0 %v1026
        %1033 = vmatprep.subr.bf16.mxu0 0
        %1034 = vmatpush1.bf16.msra.mxu0 0
        %1035 = vmatprep.subr.bf16.mxu0 0
        %1036 = vmatpush1.bf16.msra.mxu0 0
        %1037 = vmatprep.subr.bf16.mxu0 0
        %1038 = vmatpush1.bf16.msra.mxu0 0
        %1039 = vmatprep.subr.bf16.mxu0 0
        %1040 = vmatpush1.bf16.msra.mxu0 0
        %1041 = vmatprep.subr.bf16.mxu0 0
        %1042 = vmatpush1.bf16.msra.mxu0 0
        %1043 = vmatprep.subr.bf16.mxu0 0
        %1044 = vmatpush1.bf16.msra.mxu0 0
        %1045 = vmatprep.subr.bf16.mxu0 0
        %1046 = vmatpush1.bf16.msra.mxu0 0
        %1047 = vmatprep.subr.bf16.mxu0 0
        %1048 = vmatpush1.bf16.msra.mxu0 0
        %1049 = vmatprep.subr.bf16.mxu0 0
        %1050 = vmatpush1.bf16.msra.mxu0 0
        %1051 = vmatprep.subr.bf16.mxu0 0
        %1052 = vmatpush1.bf16.msra.mxu0 0
        %1053 = vmatprep.subr.bf16.mxu0 0
        %1054 = vmatpush1.bf16.msra.mxu0 0
        %1055 = vmatprep.subr.bf16.mxu0 0
        %1056 = vmatpush1.bf16.msra.mxu0 0
        %1057 = vmatprep.subr.bf16.mxu0 0
        %1058 = vmatpush1.bf16.msra.mxu0 0
        %1059 = vmatprep.subr.bf16.mxu0 0
        %1060 = vmatpush1.bf16.msra.mxu0 0
        %1061 = vmatprep.subr.bf16.mxu0 0
        %1062 = vmatpush1.bf16.msra.mxu0 0
        %1063 = vmatprep.mubr.bf16.mxu0 0
        %1064 = vmatmul.mubr.bf16.gmra.mrb[0].mxu0 %v1029
        %v1065 = vpop.f32.mrb[0].mxu0
        %v1066 = vadd.f32 0.0, %v1065
        %v1067 = vpop.f32.mrb[0].mxu0
        %v1068 = vpop.f32.mrb[0].mxu0
        %v1069 = vpop.f32.mrb[0].mxu0
        %1070 = vdwg.mxu0
        %1071 = vrot.lane.b32.xlu0 %v743, 104
        %v1072 = vpop.permute.xlu0 %1071
        %1073 = vrot.lane.b32.xlu0 %v744, 104
        %v1074 = vpop.permute.xlu0 %1073
        %v1076 = vsel %vm745, %v1072, 0
        %v1079 = vsel %vm745, %v1074, 0
        %1081 = vmatprep.subr.bf16.mxu0 0
        %1082 = vmatpush1.bf16.xpose.msra.mxu0 %v1079
        %1083 = vmatprep.subr.bf16.mxu0 0
        %1084 = vmatpush1.bf16.xpose.msra.mxu0 0
        %1085 = vmatprep.subr.bf16.mxu0 0
        %1086 = vmatpush1.bf16.xpose.msra.mxu0 0
        %1087 = vmatprep.subr.bf16.mxu0 0
        %1088 = vmatpush1.bf16.xpose.msra.mxu0 0
        %1089 = vmatprep.subr.bf16.mxu0 0
        %1090 = vmatpush1.bf16.xpose.msra.mxu0 0
        %1091 = vmatprep.subr.bf16.mxu0 0
        %1092 = vmatpush1.bf16.xpose.msra.mxu0 0
        %1093 = vmatprep.subr.bf16.mxu0 0
        %1094 = vmatpush1.bf16.xpose.msra.mxu0 0
        %1095 = vmatprep.subr.bf16.mxu0 0
        %1096 = vmatpush1.bf16.xpose.msra.mxu0 0
        %1097 = vmatprep.subr.bf16.mxu0 0
        %1098 = vmatpush1.bf16.xpose.msra.mxu0 0
        %1099 = vmatprep.subr.bf16.mxu0 0
        %1100 = vmatpush1.bf16.xpose.msra.mxu0 0
        %1101 = vmatprep.subr.bf16.mxu0 0
        %1102 = vmatpush1.bf16.xpose.msra.mxu0 0
        %1103 = vmatprep.subr.bf16.mxu0 0
        %1104 = vmatpush1.bf16.xpose.msra.mxu0 0
        %1105 = vmatprep.subr.bf16.mxu0 0
        %1106 = vmatpush1.bf16.xpose.msra.mxu0 0
        %1107 = vmatprep.subr.bf16.mxu0 0
        %1108 = vmatpush1.bf16.xpose.msra.mxu0 0
        %1109 = vmatprep.subr.bf16.mxu0 0
        %1110 = vmatpush1.bf16.xpose.msra.mxu0 0
        %1111 = vmatprep.subr.bf16.mxu0 0
        %1112 = vmatpush1.bf16.xpose.msra.mxu0 0
        %1113 = vmatprep.mubr.bf16.mxu0 0
        %1114 = vmatmul.mubr.bf16.gmra.mrb[0].mxu0 %v1076
        %v1115 = vpop.f32.mrb[0].mxu0
        %v1116 = vadd.f32 0.0, %v1115
        %v1117 = vpop.f32.mrb[0].mxu0
        %v1118 = vpop.f32.mrb[0].mxu0
        %v1119 = vpop.f32.mrb[0].mxu0
        %1120 = vdwg.mxu0
        %v1121 = vmul.f32 %v1116, 0.35355338
        %v1122 = vsel %vm403, %v1121, -inf
        %1123 = vmax.xlane.f32.xlu0 %v1122
        %v1124 = vpop.xlane.xlu0 %1123
        %v1125 = vsub.f32 %v1121, %v1124
        %v1126 = vmul.f32 %v1125, 1.442695
        %v1127 = vpow.pop %v1126
        %v1128 = vsel %vm403, %v1127, 0.0
        %1129 = vadd.xlane.f32.xlu0 %v1128
        %v1130 = vpop.xlane.xlu0 %1129
        %v1131 = vrcp.pop %v1130
        %v1132 = vmul.f32 %v1127, %v1131
        %v1133 = vpack.c.bf16 %v1132, %v1132
        %1134 = vrot.lane.b32.xlu0 %v744, 72
        %v1135 = vpop.permute.xlu0 %1134
        %v1138 = vsel %vm403, %v1133, 0
        %1140 = vmatprep.subr.bf16.mxu0 0
        %1141 = vmatpush1.bf16.msra.mxu0 %v1135
        %1142 = vmatprep.subr.bf16.mxu0 0
        %1143 = vmatpush1.bf16.msra.mxu0 0
        %1144 = vmatprep.subr.bf16.mxu0 0
        %1145 = vmatpush1.bf16.msra.mxu0 0
        %1146 = vmatprep.subr.bf16.mxu0 0
        %1147 = vmatpush1.bf16.msra.mxu0 0
        %1148 = vmatprep.subr.bf16.mxu0 0
        %1149 = vmatpush1.bf16.msra.mxu0 0
        %1150 = vmatprep.subr.bf16.mxu0 0
        %1151 = vmatpush1.bf16.msra.mxu0 0
        %1152 = vmatprep.subr.bf16.mxu0 0
        %1153 = vmatpush1.bf16.msra.mxu0 0
        %1154 = vmatprep.subr.bf16.mxu0 0
        %1155 = vmatpush1.bf16.msra.mxu0 0
        %1156 = vmatprep.subr.bf16.mxu0 0
        %1157 = vmatpush1.bf16.msra.mxu0 0
        %1158 = vmatprep.subr.bf16.mxu0 0
        %1159 = vmatpush1.bf16.msra.mxu0 0
        %1160 = vmatprep.subr.bf16.mxu0 0
        %1161 = vmatpush1.bf16.msra.mxu0 0
        %1162 = vmatprep.subr.bf16.mxu0 0
        %1163 = vmatpush1.bf16.msra.mxu0 0
        %1164 = vmatprep.subr.bf16.mxu0 0
        %1165 = vmatpush1.bf16.msra.mxu0 0
        %1166 = vmatprep.subr.bf16.mxu0 0
        %1167 = vmatpush1.bf16.msra.mxu0 0
        %1168 = vmatprep.subr.bf16.mxu0 0
        %1169 = vmatpush1.bf16.msra.mxu0 0
        %1170 = vmatprep.subr.bf16.mxu0 0
        %1171 = vmatpush1.bf16.msra.mxu0 0
        %1172 = vmatprep.mubr.bf16.mxu0 0
        %1173 = vmatmul.mubr.bf16.gmra.mrb[0].mxu0 %v1138
        %v1174 = vpop.f32.mrb[0].mxu0
        %v1175 = vadd.f32 0.0, %v1174
        %v1176 = vpop.f32.mrb[0].mxu0
        %v1177 = vpop.f32.mrb[0].mxu0
        %v1178 = vpop.f32.mrb[0].mxu0
        %1179 = vdwg.mxu0
        %1181 = vrot.lane.b32.xlu0 %v957, 8
        %v1182 = vpop.permute.xlu0 %1181
        %1185 = vrot.lane.b32.xlu0 %v1066, 16
        %v1186 = vpop.permute.xlu0 %1185
        %1189 = vrot.lane.b32.xlu0 %v1175, 24
        %v1190 = vpop.permute.xlu0 %1189
        %v1192 = vsel %vm745, %v847, %v1182
        %v1193 = vsel %vm403, %v1192, %v1186
        %vm1194 = vcmask 195584
        %v1195 = vsel %vm1194, %v1193, %v1190
        %v1196 = vpack.c.bf16 %v1195, %v1195
        %v1197 = vlaneseq
        %v1198 = vshrl.u32 %v1197, 7
        %v1199 = vsub.s32 0, %v1198
        %v1200 = vrot.slane %v742, %v1199
        %v1205 = vunpack.c.l.b16 %v738
        %v1206 = vunpack.c.l.b16 %v739
        %v1207 = vunpack.c.l.b16 %v740
        %v1208 = vunpack.c.l.b16 %v741
        %v1209 = vpack.c.b16 %v1206, %v1205
        %v1210 = vpack.c.b16 %v1208, %v1207
        %v1214 = vsel %vm279, %v1196, 0
        %1216 = vmatprep.subr.bf16.mxu0 0
        %1217 = vmatpush1.bf16.msra.mxu0 %v1209
        %1218 = vmatprep.subr.bf16.mxu0 0
        %1219 = vmatpush1.bf16.msra.mxu0 %v1210
        %1220 = vmatprep.subr.bf16.mxu0 0
        %1221 = vmatpush1.bf16.msra.mxu0 0
        %1222 = vmatprep.subr.bf16.mxu0 0
        %1223 = vmatpush1.bf16.msra.mxu0 0
        %1224 = vmatprep.subr.bf16.mxu0 0
        %1225 = vmatpush1.bf16.msra.mxu0 0
        %1226 = vmatprep.subr.bf16.mxu0 0
        %1227 = vmatpush1.bf16.msra.mxu0 0
        %1228 = vmatprep.subr.bf16.mxu0 0
        %1229 = vmatpush1.bf16.msra.mxu0 0
        %1230 = vmatprep.subr.bf16.mxu0 0
        %1231 = vmatpush1.bf16.msra.mxu0 0
        %1232 = vmatprep.subr.bf16.mxu0 0
        %1233 = vmatpush1.bf16.msra.mxu0 0
        %1234 = vmatprep.subr.bf16.mxu0 0
        %1235 = vmatpush1.bf16.msra.mxu0 0
        %1236 = vmatprep.subr.bf16.mxu0 0
        %1237 = vmatpush1.bf16.msra.mxu0 0
        %1238 = vmatprep.subr.bf16.mxu0 0
        %1239 = vmatpush1.bf16.msra.mxu0 0
        %1240 = vmatprep.subr.bf16.mxu0 0
        %1241 = vmatpush1.bf16.msra.mxu0 0
        %1242 = vmatprep.subr.bf16.mxu0 0
        %1243 = vmatpush1.bf16.msra.mxu0 0
        %1244 = vmatprep.subr.bf16.mxu0 0
        %1245 = vmatpush1.bf16.msra.mxu0 0
        %1246 = vmatprep.subr.bf16.mxu0 0
        %1247 = vmatpush1.bf16.msra.mxu0 0
        %1248 = vmatprep.mubr.bf16.mxu0 0
        %1249 = vmatmul.mubr.bf16.gmra.mrb[0].mxu0 %v1214
        %v1250 = vpop.f32.mrb[0].mxu0
        %v1251 = vadd.f32 %v1200, %v1250
        %v1252 = vpop.f32.mrb[0].mxu0
        %v1253 = vpop.f32.mrb[0].mxu0
        %v1254 = vpop.f32.mrb[0].mxu0
        %1255 = vdwg.mxu0
        %v1256 = vld [vmem:[#allocation4 + $0xa0] sm:$0xff]
        %1258 = vset.pattern.permute.xlu0 0
        %1259 = vperm.xlu0 %1258, %v1256
        %v1260 = vpop.permute.xlu0 %1259
        %v1262 = vmul.f32 %v1251, %v1260
        %v1263 = vld [vmem:[#allocation4 + $0xa8] sm:$0xff]
        %1265 = vset.pattern.permute.xlu0 0
        %1266 = vperm.xlu0 %1265, %v1263
        %v1267 = vpop.permute.xlu0 %1266
        %v1269 = vadd.f32 %v1262, %v1267
        %v1270 = vpack.c.bf16 %v1269, %v1269
        %v1271 = vld [vmem:[#allocation2 + $0x78] sm:$0xf]
        %v1272 = vld [vmem:[#allocation2 + $0x7c] sm:$0xf]
        %v1273 = vld [vmem:[#allocation2 + $0x80] sm:$0xf]
        %v1274 = vld [vmem:[#allocation2 + $0x84] sm:$0xf]
        %v1275 = vld [vmem:[#allocation4 + $0x70] sm:$0x1]
        %v1276 = vlaneseq
        %v1277 = vshrl.u32 %v1276, 7
        %v1278 = vsub.s32 0, %v1277
        %v1279 = vrot.slane %v1275, %v1278
        %v1284 = vunpack.c.l.b16 %v1271
        %v1285 = vunpack.c.l.b16 %v1272
        %v1286 = vunpack.c.l.b16 %v1273
        %v1287 = vunpack.c.l.b16 %v1274
        %v1288 = vpack.c.b16 %v1285, %v1284
        %v1289 = vpack.c.b16 %v1287, %v1286
        %v1293 = vsel %vm279, %v1270, 0
        %1295 = vmatprep.subr.bf16.mxu0 0
        %1296 = vmatpush1.bf16.msra.mxu0 %v1288
        %1297 = vmatprep.subr.bf16.mxu0 0
        %1298 = vmatpush1.bf16.msra.mxu0 %v1289
        %1299 = vmatprep.subr.bf16.mxu0 0
        %1300 = vmatpush1.bf16.msra.mxu0 0
        %1301 = vmatprep.subr.bf16.mxu0 0
        %1302 = vmatpush1.bf16.msra.mxu0 0
        %1303 = vmatprep.subr.bf16.mxu0 0
        %1304 = vmatpush1.bf16.msra.mxu0 0
        %1305 = vmatprep.subr.bf16.mxu0 0
        %1306 = vmatpush1.bf16.msra.mxu0 0
        %1307 = vmatprep.subr.bf16.mxu0 0
        %1308 = vmatpush1.bf16.msra.mxu0 0
        %1309 = vmatprep.subr.bf16.mxu0 0
        %1310 = vmatpush1.bf16.msra.mxu0 0
        %1311 = vmatprep.subr.bf16.mxu0 0
        %1312 = vmatpush1.bf16.msra.mxu0 0
        %1313 = vmatprep.subr.bf16.mxu0 0
        %1314 = vmatpush1.bf16.msra.mxu0 0
        %1315 = vmatprep.subr.bf16.mxu0 0
        %1316 = vmatpush1.bf16.msra.mxu0 0
        %1317 = vmatprep.subr.bf16.mxu0 0
        %1318 = vmatpush1.bf16.msra.mxu0 0
        %1319 = vmatprep.subr.bf16.mxu0 0
        %1320 = vmatpush1.bf16.msra.mxu0 0
        %1321 = vmatprep.subr.bf16.mxu0 0
        %1322 = vmatpush1.bf16.msra.mxu0 0
        %1323 = vmatprep.subr.bf16.mxu0 0
        %1324 = vmatpush1.bf16.msra.mxu0 0
        %1325 = vmatprep.subr.bf16.mxu0 0
        %1326 = vmatpush1.bf16.msra.mxu0 0
        %1327 = vmatprep.mubr.bf16.mxu0 0
        %1328 = vmatmul.mubr.bf16.gmra.mrb[0].mxu0 %v1293
        %v1329 = vpop.f32.mrb[0].mxu0
        %v1330 = vadd.f32 %v1279, %v1329
        %v1331 = vpop.f32.mrb[0].mxu0
        %v1332 = vpop.f32.mrb[0].mxu0
        %v1333 = vpop.f32.mrb[0].mxu0
        %1334 = vdwg.mxu0
        %v1335 = vmul.f32 %v1330, 0.5
        %v1336 = vmul.f32 %v1330, 0.044715
        %v1337 = vmul.f32 %v1336, %v1330
        %v1338 = vmul.f32 %v1337, %v1330
        %v1339 = vadd.f32 %v1330, %v1338
        %v1340 = vmul.f32 %v1339, 0.7978846
        %v1341 = vtanh.pop %v1340
        %v1342 = vadd.f32 %v1341, 1.0
        %v1343 = vmul.f32 %v1335, %v1342
        %v1344 = vpack.c.bf16 %v1343, %v1343
        %v1345 = vld [vmem:[#allocation2 + $0x88] sm:$0xf]
        %v1346 = vld [vmem:[#allocation2 + $0x8c] sm:$0xf]
        %v1347 = vld [vmem:[#allocation2 + $0x90] sm:$0xf]
        %v1348 = vld [vmem:[#allocation2 + $0x94] sm:$0xf]
        %v1349 = vld [vmem:[#allocation2 + $0x98] sm:$0xf]
        %v1350 = vld [vmem:[#allocation2 + $0x9c] sm:$0xf]
        %v1351 = vld [vmem:[#allocation2 + $0xa0] sm:$0xf]
        %v1352 = vld [vmem:[#allocation2 + $0xa4] sm:$0xf]
        %v1353 = vld [vmem:[#allocation4 + $0x78] sm:$0x1]
        %v1354 = vlaneseq
        %v1355 = vshrl.u32 %v1354, 7
        %v1356 = vsub.s32 0, %v1355
        %v1357 = vrot.slane %v1353, %v1356
        %v1366 = vunpack.c.l.b16 %v1345
        %v1367 = vunpack.c.l.b16 %v1346
        %v1368 = vunpack.c.l.b16 %v1347
        %v1369 = vunpack.c.l.b16 %v1348
        %v1370 = vunpack.c.l.b16 %v1349
        %v1371 = vunpack.c.l.b16 %v1350
        %v1372 = vunpack.c.l.b16 %v1351
        %v1373 = vunpack.c.l.b16 %v1352
        %v1374 = vpack.c.b16 %v1367, %v1366
        %v1375 = vpack.c.b16 %v1369, %v1368
        %v1376 = vpack.c.b16 %v1371, %v1370
        %v1377 = vpack.c.b16 %v1373, %v1372
        %v1383 = vsel %vm564, %v1344, 0
        %1385 = vmatprep.subr.bf16.mxu0 0
        %1386 = vmatpush1.bf16.msra.mxu0 %v1374
        %1387 = vmatprep.subr.bf16.mxu0 0
        %1388 = vmatpush1.bf16.msra.mxu0 %v1375
        %1389 = vmatprep.subr.bf16.mxu0 0
        %1390 = vmatpush1.bf16.msra.mxu0 %v1376
        %1391 = vmatprep.subr.bf16.mxu0 0
        %1392 = vmatpush1.bf16.msra.mxu0 %v1377
        %1393 = vmatprep.subr.bf16.mxu0 0
        %1394 = vmatpush1.bf16.msra.mxu0 0
        %1395 = vmatprep.subr.bf16.mxu0 0
        %1396 = vmatpush1.bf16.msra.mxu0 0
        %1397 = vmatprep.subr.bf16.mxu0 0
        %1398 = vmatpush1.bf16.msra.mxu0 0
        %1399 = vmatprep.subr.bf16.mxu0 0
        %1400 = vmatpush1.bf16.msra.mxu0 0
        %1401 = vmatprep.subr.bf16.mxu0 0
        %1402 = vmatpush1.bf16.msra.mxu0 0
        %1403 = vmatprep.subr.bf16.mxu0 0
        %1404 = vmatpush1.bf16.msra.mxu0 0
        %1405 = vmatprep.subr.bf16.mxu0 0
        %1406 = vmatpush1.bf16.msra.mxu0 0
        %1407 = vmatprep.subr.bf16.mxu0 0
        %1408 = vmatpush1.bf16.msra.mxu0 0
        %1409 = vmatprep.subr.bf16.mxu0 0
        %1410 = vmatpush1.bf16.msra.mxu0 0
        %1411 = vmatprep.subr.bf16.mxu0 0
        %1412 = vmatpush1.bf16.msra.mxu0 0
        %1413 = vmatprep.subr.bf16.mxu0 0
        %1414 = vmatpush1.bf16.msra.mxu0 0
        %1415 = vmatprep.subr.bf16.mxu0 0
        %1416 = vmatpush1.bf16.msra.mxu0 0
        %1417 = vmatprep.mubr.bf16.mxu0 0
        %1418 = vmatmul.mubr.bf16.gmra.mrb[0].mxu0 %v1383
        %v1419 = vpop.f32.mrb[0].mxu0
        %v1420 = vadd.f32 %v1357, %v1419
        %v1421 = vpop.f32.mrb[0].mxu0
        %v1422 = vpop.f32.mrb[0].mxu0
        %v1423 = vpop.f32.mrb[0].mxu0
        %1424 = vdwg.mxu0
        %v1425 = vadd.f32 %v1420, %v1269
        %v1426 = vld [vmem:[#allocation4 + $0xb0] sm:$0xff]
        %1428 = vset.pattern.permute.xlu0 0
        %1429 = vperm.xlu0 %1428, %v1426
        %v1430 = vpop.permute.xlu0 %1429
        %v1432 = vmul.f32 %v1425, %v1430
        %v1433 = vld [vmem:[#allocation4 + $0xb8] sm:$0xff]
        %1435 = vset.pattern.permute.xlu0 0
        %1436 = vperm.xlu0 %1435, %v1433
        %v1437 = vpop.permute.xlu0 %1436
        %v1439 = vadd.f32 %v1432, %v1437
        %v1440 = vpack.c.bf16 %v1439, %v1439
        %v1441 = vld [vmem:[#allocation2 + $0xa8] sm:$0xf]
        %v1442 = vld [vmem:[#allocation2 + $0xac] sm:$0xf]
        %v1443 = vld [vmem:[#allocation2 + $0xb0] sm:$0xf]
        %v1444 = vld [vmem:[#allocation2 + $0xb4] sm:$0xf]
        %v1445 = vld [vmem:[#allocation4 + $0x80] sm:$0x1]
        %v1446 = vlaneseq
        %v1447 = vshrl.u32 %v1446, 7
        %v1448 = vsub.s32 0, %v1447
        %v1449 = vrot.slane %v1445, %v1448
        %v1454 = vunpack.c.l.b16 %v1441
        %v1455 = vunpack.c.l.b16 %v1442
        %v1456 = vunpack.c.l.b16 %v1443
        %v1457 = vunpack.c.l.b16 %v1444
        %v1458 = vpack.c.b16 %v1455, %v1454
        %v1459 = vpack.c.b16 %v1457, %v1456
        %v1463 = vsel %vm279, %v1440, 0
        %1465 = vmatprep.subr.bf16.mxu0 0
        %1466 = vmatpush1.bf16.msra.mxu0 %v1458
        %1467 = vmatprep.subr.bf16.mxu0 0
        %1468 = vmatpush1.bf16.msra.mxu0 %v1459
        %1469 = vmatprep.subr.bf16.mxu0 0
        %1470 = vmatpush1.bf16.msra.mxu0 0
        %1471 = vmatprep.subr.bf16.mxu0 0
        %1472 = vmatpush1.bf16.msra.mxu0 0
        %1473 = vmatprep.subr.bf16.mxu0 0
        %1474 = vmatpush1.bf16.msra.mxu0 0
        %1475 = vmatprep.subr.bf16.mxu0 0
        %1476 = vmatpush1.bf16.msra.mxu0 0
        %1477 = vmatprep.subr.bf16.mxu0 0
        %1478 = vmatpush1.bf16.msra.mxu0 0
        %1479 = vmatprep.subr.bf16.mxu0 0
        %1480 = vmatpush1.bf16.msra.mxu0 0
        %1481 = vmatprep.subr.bf16.mxu0 0
        %1482 = vmatpush1.bf16.msra.mxu0 0
        %1483 = vmatprep.subr.bf16.mxu0 0
        %1484 = vmatpush1.bf16.msra.mxu0 0
        %1485 = vmatprep.subr.bf16.mxu0 0
        %1486 = vmatpush1.bf16.msra.mxu0 0
        %1487 = vmatprep.subr.bf16.mxu0 0
        %1488 = vmatpush1.bf16.msra.mxu0 0
        %1489 = vmatprep.subr.bf16.mxu0 0
        %1490 = vmatpush1.bf16.msra.mxu0 0
        %1491 = vmatprep.subr.bf16.mxu0 0
        %1492 = vmatpush1.bf16.msra.mxu0 0
        %1493 = vmatprep.subr.bf16.mxu0 0
        %1494 = vmatpush1.bf16.msra.mxu0 0
        %1495 = vmatprep.subr.bf16.mxu0 0
        %1496 = vmatpush1.bf16.msra.mxu0 0
        %1497 = vmatprep.mubr.bf16.mxu0 0
        %1498 = vmatmul.mubr.bf16.gmra.mrb[0].mxu0 %v1463
        %v1499 = vpop.f32.mrb[0].mxu0
        %v1500 = vadd.f32 %v1449, %v1499
        %v1501 = vpop.f32.mrb[0].mxu0
        %v1502 = vpop.f32.mrb[0].mxu0
        %v1503 = vpop.f32.mrb[0].mxu0
        %1504 = vdwg.mxu0
        %v1505 = vld [vmem:[#allocation2 + $0xb8] sm:$0xf]
        %v1506 = vld [vmem:[#allocation2 + $0xbc] sm:$0xf]
        %v1507 = vld [vmem:[#allocation2 + $0xc0] sm:$0xf]
        %v1508 = vld [vmem:[#allocation2 + $0xc4] sm:$0xf]
        %v1509 = vld [vmem:[#allocation4 + $0x88] sm:$0x1]
        %v1510 = vpack.c.bf16 %v1500, %v1500
        %1512 = vrot.lane.b32.xlu0 %v1510, 96
        %v1513 = vpop.permute.xlu0 %1512
        %v1515 = vsel %vm745, %v1510, 0
        %v1518 = vsel %vm745, %v1513, 0
        %1520 = vmatprep.subr.bf16.mxu0 0
        %1521 = vmatpush1.bf16.xpose.msra.mxu0 %v1518
        %1522 = vmatprep.subr.bf16.mxu0 0
        %1523 = vmatpush1.bf16.xpose.msra.mxu0 0
        %1524 = vmatprep.subr.bf16.mxu0 0
        %1525 = vmatpush1.bf16.xpose.msra.mxu0 0
        %1526 = vmatprep.subr.bf16.mxu0 0
        %1527 = vmatpush1.bf16.xpose.msra.mxu0 0
        %1528 = vmatprep.subr.bf16.mxu0 0
        %1529 = vmatpush1.bf16.xpose.msra.mxu0 0
        %1530 = vmatprep.subr.bf16.mxu0 0
        %1531 = vmatpush1.bf16.xpose.msra.mxu0 0
        %1532 = vmatprep.subr.bf16.mxu0 0
        %1533 = vmatpush1.bf16.xpose.msra.mxu0 0
        %1534 = vmatprep.subr.bf16.mxu0 0
        %1535 = vmatpush1.bf16.xpose.msra.mxu0 0
        %1536 = vmatprep.subr.bf16.mxu0 0
        %1537 = vmatpush1.bf16.xpose.msra.mxu0 0
        %1538 = vmatprep.subr.bf16.mxu0 0
        %1539 = vmatpush1.bf16.xpose.msra.mxu0 0
        %1540 = vmatprep.subr.bf16.mxu0 0
        %1541 = vmatpush1.bf16.xpose.msra.mxu0 0
        %1542 = vmatprep.subr.bf16.mxu0 0
        %1543 = vmatpush1.bf16.xpose.msra.mxu0 0
        %1544 = vmatprep.subr.bf16.mxu0 0
        %1545 = vmatpush1.bf16.xpose.msra.mxu0 0
        %1546 = vmatprep.subr.bf16.mxu0 0
        %1547 = vmatpush1.bf16.xpose.msra.mxu0 0
        %1548 = vmatprep.subr.bf16.mxu0 0
        %1549 = vmatpush1.bf16.xpose.msra.mxu0 0
        %1550 = vmatprep.subr.bf16.mxu0 0
        %1551 = vmatpush1.bf16.xpose.msra.mxu0 0
        %1552 = vmatprep.mubr.bf16.mxu0 0
        %1553 = vmatmul.mubr.bf16.gmra.mrb[0].mxu0 %v1515
        %v1554 = vpop.f32.mrb[0].mxu0
        %v1555 = vadd.f32 0.0, %v1554
        %v1556 = vpop.f32.mrb[0].mxu0
        %v1557 = vpop.f32.mrb[0].mxu0
        %v1558 = vpop.f32.mrb[0].mxu0
        %1559 = vdwg.mxu0
        %v1560 = vmul.f32 %v1555, 0.35355338
        %v1561 = vsel %vm745, %v1560, -inf
        %1562 = vmax.xlane.f32.xlu0 %v1561
        %v1563 = vpop.xlane.xlu0 %1562
        %v1564 = vsub.f32 %v1560, %v1563
        %v1565 = vmul.f32 %v1564, 1.442695
        %v1566 = vpow.pop %v1565
        %v1567 = vsel %vm745, %v1566, 0.0
        %1568 = vadd.xlane.f32.xlu0 %v1567
        %v1569 = vpop.xlane.xlu0 %1568
        %v1570 = vrcp.pop %v1569
        %v1571 = vmul.f32 %v1566, %v1570
        %v1572 = vpack.c.bf16 %v1571, %v1571
        %1573 = vrot.lane.b32.xlu0 %v1510, 64
        %v1574 = vpop.permute.xlu0 %1573
        %v1576 = vsel %vm745, %v1572, 0
        %vm1578 = vcmask 1043456
        %v1580 = vsel %vm1578, %v1574, 0
        %1582 = vmatprep.subr.bf16.mxu0 0
        %1583 = vmatpush1.bf16.msra.mxu0 %v1580
        %1584 = vmatprep.subr.bf16.mxu0 0
        %1585 = vmatpush1.bf16.msra.mxu0 0
        %1586 = vmatprep.subr.bf16.mxu0 0
        %1587 = vmatpush1.bf16.msra.mxu0 0
        %1588 = vmatprep.subr.bf16.mxu0 0
        %1589 = vmatpush1.bf16.msra.mxu0 0
        %1590 = vmatprep.subr.bf16.mxu0 0
        %1591 = vmatpush1.bf16.msra.mxu0 0
        %1592 = vmatprep.subr.bf16.mxu0 0
        %1593 = vmatpush1.bf16.msra.mxu0 0
        %1594 = vmatprep.subr.bf16.mxu0 0
        %1595 = vmatpush1.bf16.msra.mxu0 0
        %1596 = vmatprep.subr.bf16.mxu0 0
        %1597 = vmatpush1.bf16.msra.mxu0 0
        %1598 = vmatprep.subr.bf16.mxu0 0
        %1599 = vmatpush1.bf16.msra.mxu0 0
        %1600 = vmatprep.subr.bf16.mxu0 0
        %1601 = vmatpush1.bf16.msra.mxu0 0
        %1602 = vmatprep.subr.bf16.mxu0 0
        %1603 = vmatpush1.bf16.msra.mxu0 0
        %1604 = vmatprep.subr.bf16.mxu0 0
        %1605 = vmatpush1.bf16.msra.mxu0 0
        %1606 = vmatprep.subr.bf16.mxu0 0
        %1607 = vmatpush1.bf16.msra.mxu0 0
        %1608 = vmatprep.subr.bf16.mxu0 0
        %1609 = vmatpush1.bf16.msra.mxu0 0
        %1610 = vmatprep.subr.bf16.mxu0 0
        %1611 = vmatpush1.bf16.msra.mxu0 0
        %1612 = vmatprep.subr.bf16.mxu0 0
        %1613 = vmatpush1.bf16.msra.mxu0 0
        %1614 = vmatprep.mubr.bf16.mxu0 0
        %1615 = vmatmul.mubr.bf16.gmra.mrb[0].mxu0 %v1576
        %v1616 = vpop.f32.mrb[0].mxu0
        %v1617 = vadd.f32 0.0, %v1616
        %v1618 = vpop.f32.mrb[0].mxu0
        %v1619 = vpop.f32.mrb[0].mxu0
        %v1620 = vpop.f32.mrb[0].mxu0
        %1621 = vdwg.mxu0
        %1622 = vrot.lane.b32.xlu0 %v1510, 120
        %v1623 = vpop.permute.xlu0 %1622
        %1624 = vrot.lane.b32.xlu0 %v1510, 88
        %v1625 = vpop.permute.xlu0 %1624
        %v1627 = vsel %vm745, %v1623, 0
        %v1630 = vsel %vm745, %v1625, 0
        %1632 = vmatprep.subr.bf16.mxu0 0
        %1633 = vmatpush1.bf16.xpose.msra.mxu0 %v1630
        %1634 = vmatprep.subr.bf16.mxu0 0
        %1635 = vmatpush1.bf16.xpose.msra.mxu0 0
        %1636 = vmatprep.subr.bf16.mxu0 0
        %1637 = vmatpush1.bf16.xpose.msra.mxu0 0
        %1638 = vmatprep.subr.bf16.mxu0 0
        %1639 = vmatpush1.bf16.xpose.msra.mxu0 0
        %1640 = vmatprep.subr.bf16.mxu0 0
        %1641 = vmatpush1.bf16.xpose.msra.mxu0 0
        %1642 = vmatprep.subr.bf16.mxu0 0
        %1643 = vmatpush1.bf16.xpose.msra.mxu0 0
        %1644 = vmatprep.subr.bf16.mxu0 0
        %1645 = vmatpush1.bf16.xpose.msra.mxu0 0
        %1646 = vmatprep.subr.bf16.mxu0 0
        %1647 = vmatpush1.bf16.xpose.msra.mxu0 0
        %1648 = vmatprep.subr.bf16.mxu0 0
        %1649 = vmatpush1.bf16.xpose.msra.mxu0 0
        %1650 = vmatprep.subr.bf16.mxu0 0
        %1651 = vmatpush1.bf16.xpose.msra.mxu0 0
        %1652 = vmatprep.subr.bf16.mxu0 0
        %1653 = vmatpush1.bf16.xpose.msra.mxu0 0
        %1654 = vmatprep.subr.bf16.mxu0 0
        %1655 = vmatpush1.bf16.xpose.msra.mxu0 0
        %1656 = vmatprep.subr.bf16.mxu0 0
        %1657 = vmatpush1.bf16.xpose.msra.mxu0 0
        %1658 = vmatprep.subr.bf16.mxu0 0
        %1659 = vmatpush1.bf16.xpose.msra.mxu0 0
        %1660 = vmatprep.subr.bf16.mxu0 0
        %1661 = vmatpush1.bf16.xpose.msra.mxu0 0
        %1662 = vmatprep.subr.bf16.mxu0 0
        %1663 = vmatpush1.bf16.xpose.msra.mxu0 0
        %1664 = vmatprep.mubr.bf16.mxu0 0
        %1665 = vmatmul.mubr.bf16.gmra.mrb[0].mxu0 %v1627
        %v1666 = vpop.f32.mrb[0].mxu0
        %v1667 = vadd.f32 0.0, %v1666
        %v1668 = vpop.f32.mrb[0].mxu0
        %v1669 = vpop.f32.mrb[0].mxu0
        %v1670 = vpop.f32.mrb[0].mxu0
        %1671 = vdwg.mxu0
        %v1672 = vmul.f32 %v1667, 0.35355338
        %v1673 = vsel %vm745, %v1672, -inf
        %1674 = vmax.xlane.f32.xlu0 %v1673
        %v1675 = vpop.xlane.xlu0 %1674
        %v1676 = vsub.f32 %v1672, %v1675
        %v1677 = vmul.f32 %v1676, 1.442695
        %v1678 = vpow.pop %v1677
        %v1679 = vsel %vm745, %v1678, 0.0
        %1680 = vadd.xlane.f32.xlu0 %v1679
        %v1681 = vpop.xlane.xlu0 %1680
        %v1682 = vrcp.pop %v1681
        %v1683 = vmul.f32 %v1678, %v1682
        %v1684 = vpack.c.bf16 %v1683, %v1683
        %1685 = vrot.lane.b32.xlu0 %v1510, 56
        %v1686 = vpop.permute.xlu0 %1685
        %v1688 = vsel %vm745, %v1684, 0
        %v1691 = vsel %vm1578, %v1686, 0
        %1693 = vmatprep.subr.bf16.mxu0 0
        %1694 = vmatpush1.bf16.msra.mxu0 %v1691
        %1695 = vmatprep.subr.bf16.mxu0 0
        %1696 = vmatpush1.bf16.msra.mxu0 0
        %1697 = vmatprep.subr.bf16.mxu0 0
        %1698 = vmatpush1.bf16.msra.mxu0 0
        %1699 = vmatprep.subr.bf16.mxu0 0
        %1700 = vmatpush1.bf16.msra.mxu0 0
        %1701 = vmatprep.subr.bf16.mxu0 0
        %1702 = vmatpush1.bf16.msra.mxu0 0
        %1703 = vmatprep.subr.bf16.mxu0 0
        %1704 = vmatpush1.bf16.msra.mxu0 0
        %1705 = vmatprep.subr.bf16.mxu0 0
        %1706 = vmatpush1.bf16.msra.mxu0 0
        %1707 = vmatprep.subr.bf16.mxu0 0
        %1708 = vmatpush1.bf16.msra.mxu0 0
        %1709 = vmatprep.subr.bf16.mxu0 0
        %1710 = vmatpush1.bf16.msra.mxu0 0
        %1711 = vmatprep.subr.bf16.mxu0 0
        %1712 = vmatpush1.bf16.msra.mxu0 0
        %1713 = vmatprep.subr.bf16.mxu0 0
        %1714 = vmatpush1.bf16.msra.mxu0 0
        %1715 = vmatprep.subr.bf16.mxu0 0
        %1716 = vmatpush1.bf16.msra.mxu0 0
        %1717 = vmatprep.subr.bf16.mxu0 0
        %1718 = vmatpush1.bf16.msra.mxu0 0
        %1719 = vmatprep.subr.bf16.mxu0 0
        %1720 = vmatpush1.bf16.msra.mxu0 0
        %1721 = vmatprep.subr.bf16.mxu0 0
        %1722 = vmatpush1.bf16.msra.mxu0 0
        %1723 = vmatprep.subr.bf16.mxu0 0
        %1724 = vmatpush1.bf16.msra.mxu0 0
        %1725 = vmatprep.mubr.bf16.mxu0 0
        %1726 = vmatmul.mubr.bf16.gmra.mrb[0].mxu0 %v1688
        %v1727 = vpop.f32.mrb[0].mxu0
        %v1728 = vadd.f32 0.0, %v1727
        %v1729 = vpop.f32.mrb[0].mxu0
        %v1730 = vpop.f32.mrb[0].mxu0
        %v1731 = vpop.f32.mrb[0].mxu0
        %1732 = vdwg.mxu0
        %1733 = vrot.lane.b32.xlu0 %v1510, 112
        %v1734 = vpop.permute.xlu0 %1733
        %1735 = vrot.lane.b32.xlu0 %v1510, 80
        %v1736 = vpop.permute.xlu0 %1735
        %v1738 = vsel %vm745, %v1734, 0
        %v1741 = vsel %vm745, %v1736, 0
        %1743 = vmatprep.subr.bf16.mxu0 0
        %1744 = vmatpush1.bf16.xpose.msra.mxu0 %v1741
        %1745 = vmatprep.subr.bf16.mxu0 0
        %1746 = vmatpush1.bf16.xpose.msra.mxu0 0
        %1747 = vmatprep.subr.bf16.mxu0 0
        %1748 = vmatpush1.bf16.xpose.msra.mxu0 0
        %1749 = vmatprep.subr.bf16.mxu0 0
        %1750 = vmatpush1.bf16.xpose.msra.mxu0 0
        %1751 = vmatprep.subr.bf16.mxu0 0
        %1752 = vmatpush1.bf16.xpose.msra.mxu0 0
        %1753 = vmatprep.subr.bf16.mxu0 0
        %1754 = vmatpush1.bf16.xpose.msra.mxu0 0
        %1755 = vmatprep.subr.bf16.mxu0 0
        %1756 = vmatpush1.bf16.xpose.msra.mxu0 0
        %1757 = vmatprep.subr.bf16.mxu0 0
        %1758 = vmatpush1.bf16.xpose.msra.mxu0 0
        %1759 = vmatprep.subr.bf16.mxu0 0
        %1760 = vmatpush1.bf16.xpose.msra.mxu0 0
        %1761 = vmatprep.subr.bf16.mxu0 0
        %1762 = vmatpush1.bf16.xpose.msra.mxu0 0
        %1763 = vmatprep.subr.bf16.mxu0 0
        %1764 = vmatpush1.bf16.xpose.msra.mxu0 0
        %1765 = vmatprep.subr.bf16.mxu0 0
        %1766 = vmatpush1.bf16.xpose.msra.mxu0 0
        %1767 = vmatprep.subr.bf16.mxu0 0
        %1768 = vmatpush1.bf16.xpose.msra.mxu0 0
        %1769 = vmatprep.subr.bf16.mxu0 0
        %1770 = vmatpush1.bf16.xpose.msra.mxu0 0
        %1771 = vmatprep.subr.bf16.mxu0 0
        %1772 = vmatpush1.bf16.xpose.msra.mxu0 0
        %1773 = vmatprep.subr.bf16.mxu0 0
        %1774 = vmatpush1.bf16.xpose.msra.mxu0 0
        %1775 = vmatprep.mubr.bf16.mxu0 0
        %1776 = vmatmul.mubr.bf16.gmra.mrb[0].mxu0 %v1738
        %v1777 = vpop.f32.mrb[0].mxu0
        %v1778 = vadd.f32 0.0, %v1777
        %v1779 = vpop.f32.mrb[0].mxu0
        %v1780 = vpop.f32.mrb[0].mxu0
        %v1781 = vpop.f32.mrb[0].mxu0
        %1782 = vdwg.mxu0
        %v1783 = vmul.f32 %v1778, 0.35355338
        %v1784 = vsel %vm745, %v1783, -inf
        %1785 = vmax.xlane.f32.xlu0 %v1784
        %v1786 = vpop.xlane.xlu0 %1785
        %v1787 = vsub.f32 %v1783, %v1786
        %v1788 = vmul.f32 %v1787, 1.442695
        %v1789 = vpow.pop %v1788
        %v1790 = vsel %vm745, %v1789, 0.0
        %1791 = vadd.xlane.f32.xlu0 %v1790
        %v1792 = vpop.xlane.xlu0 %1791
        %v1793 = vrcp.pop %v1792
        %v1794 = vmul.f32 %v1789, %v1793
        %v1795 = vpack.c.bf16 %v1794, %v1794
        %1796 = vrot.lane.b32.xlu0 %v1510, 48
        %v1797 = vpop.permute.xlu0 %1796
        %v1799 = vsel %vm745, %v1795, 0
        %v1802 = vsel %vm1578, %v1797, 0
        %1804 = vmatprep.subr.bf16.mxu0 0
        %1805 = vmatpush1.bf16.msra.mxu0 %v1802
        %1806 = vmatprep.subr.bf16.mxu0 0
        %1807 = vmatpush1.bf16.msra.mxu0 0
        %1808 = vmatprep.subr.bf16.mxu0 0
        %1809 = vmatpush1.bf16.msra.mxu0 0
        %1810 = vmatprep.subr.bf16.mxu0 0
        %1811 = vmatpush1.bf16.msra.mxu0 0
        %1812 = vmatprep.subr.bf16.mxu0 0
        %1813 = vmatpush1.bf16.msra.mxu0 0
        %1814 = vmatprep.subr.bf16.mxu0 0
        %1815 = vmatpush1.bf16.msra.mxu0 0
        %1816 = vmatprep.subr.bf16.mxu0 0
        %1817 = vmatpush1.bf16.msra.mxu0 0
        %1818 = vmatprep.subr.bf16.mxu0 0
        %1819 = vmatpush1.bf16.msra.mxu0 0
        %1820 = vmatprep.subr.bf16.mxu0 0
        %1821 = vmatpush1.bf16.msra.mxu0 0
        %1822 = vmatprep.subr.bf16.mxu0 0
        %1823 = vmatpush1.bf16.msra.mxu0 0
        %1824 = vmatprep.subr.bf16.mxu0 0
        %1825 = vmatpush1.bf16.msra.mxu0 0
        %1826 = vmatprep.subr.bf16.mxu0 0
        %1827 = vmatpush1.bf16.msra.mxu0 0
        %1828 = vmatprep.subr.bf16.mxu0 0
        %1829 = vmatpush1.bf16.msra.mxu0 0
        %1830 = vmatprep.subr.bf16.mxu0 0
        %1831 = vmatpush1.bf16.msra.mxu0 0
        %1832 = vmatprep.subr.bf16.mxu0 0
        %1833 = vmatpush1.bf16.msra.mxu0 0
        %1834 = vmatprep.subr.bf16.mxu0 0
        %1835 = vmatpush1.bf16.msra.mxu0 0
        %1836 = vmatprep.mubr.bf16.mxu0 0
        %1837 = vmatmul.mubr.bf16.gmra.mrb[0].mxu0 %v1799
        %v1838 = vpop.f32.mrb[0].mxu0
        %v1839 = vadd.f32 0.0, %v1838
        %v1840 = vpop.f32.mrb[0].mxu0
        %v1841 = vpop.f32.mrb[0].mxu0
        %v1842 = vpop.f32.mrb[0].mxu0
        %1843 = vdwg.mxu0
        %1844 = vrot.lane.b32.xlu0 %v1510, 104
        %v1845 = vpop.permute.xlu0 %1844
        %1846 = vrot.lane.b32.xlu0 %v1510, 72
        %v1847 = vpop.permute.xlu0 %1846
        %v1849 = vsel %vm745, %v1845, 0
        %v1852 = vsel %vm745, %v1847, 0
        %1854 = vmatprep.subr.bf16.mxu0 0
        %1855 = vmatpush1.bf16.xpose.msra.mxu0 %v1852
        %1856 = vmatprep.subr.bf16.mxu0 0
        %1857 = vmatpush1.bf16.xpose.msra.mxu0 0
        %1858 = vmatprep.subr.bf16.mxu0 0
        %1859 = vmatpush1.bf16.xpose.msra.mxu0 0
        %1860 = vmatprep.subr.bf16.mxu0 0
        %1861 = vmatpush1.bf16.xpose.msra.mxu0 0
        %1862 = vmatprep.subr.bf16.mxu0 0
        %1863 = vmatpush1.bf16.xpose.msra.mxu0 0
        %1864 = vmatprep.subr.bf16.mxu0 0
        %1865 = vmatpush1.bf16.xpose.msra.mxu0 0
        %1866 = vmatprep.subr.bf16.mxu0 0
        %1867 = vmatpush1.bf16.xpose.msra.mxu0 0
        %1868 = vmatprep.subr.bf16.mxu0 0
        %1869 = vmatpush1.bf16.xpose.msra.mxu0 0
        %1870 = vmatprep.subr.bf16.mxu0 0
        %1871 = vmatpush1.bf16.xpose.msra.mxu0 0
        %1872 = vmatprep.subr.bf16.mxu0 0
        %1873 = vmatpush1.bf16.xpose.msra.mxu0 0
        %1874 = vmatprep.subr.bf16.mxu0 0
        %1875 = vmatpush1.bf16.xpose.msra.mxu0 0
        %1876 = vmatprep.subr.bf16.mxu0 0
        %1877 = vmatpush1.bf16.xpose.msra.mxu0 0
        %1878 = vmatprep.subr.bf16.mxu0 0
        %1879 = vmatpush1.bf16.xpose.msra.mxu0 0
        %1880 = vmatprep.subr.bf16.mxu0 0
        %1881 = vmatpush1.bf16.xpose.msra.mxu0 0
        %1882 = vmatprep.subr.bf16.mxu0 0
        %1883 = vmatpush1.bf16.xpose.msra.mxu0 0
        %1884 = vmatprep.subr.bf16.mxu0 0
        %1885 = vmatpush1.bf16.xpose.msra.mxu0 0
        %1886 = vmatprep.mubr.bf16.mxu0 0
        %1887 = vmatmul.mubr.bf16.gmra.mrb[0].mxu0 %v1849
        %v1888 = vpop.f32.mrb[0].mxu0
        %v1889 = vadd.f32 0.0, %v1888
        %v1890 = vpop.f32.mrb[0].mxu0
        %v1891 = vpop.f32.mrb[0].mxu0
        %v1892 = vpop.f32.mrb[0].mxu0
        %1893 = vdwg.mxu0
        %v1894 = vmul.f32 %v1889, 0.35355338
        %v1895 = vsel %vm745, %v1894, -inf
        %1896 = vmax.xlane.f32.xlu0 %v1895
        %v1897 = vpop.xlane.xlu0 %1896
        %v1898 = vsub.f32 %v1894, %v1897
        %v1899 = vmul.f32 %v1898, 1.442695
        %v1900 = vpow.pop %v1899
        %v1901 = vsel %vm745, %v1900, 0.0
        %1902 = vadd.xlane.f32.xlu0 %v1901
        %v1903 = vpop.xlane.xlu0 %1902
        %v1904 = vrcp.pop %v1903
        %v1905 = vmul.f32 %v1900, %v1904
        %v1906 = vpack.c.bf16 %v1905, %v1905
        %1907 = vrot.lane.b32.xlu0 %v1510, 40
        %v1908 = vpop.permute.xlu0 %1907
        %v1910 = vsel %vm745, %v1906, 0
        %v1913 = vsel %vm1578, %v1908, 0
        %1915 = vmatprep.subr.bf16.mxu0 0
        %1916 = vmatpush1.bf16.msra.mxu0 %v1913
        %1917 = vmatprep.subr.bf16.mxu0 0
        %1918 = vmatpush1.bf16.msra.mxu0 0
        %1919 = vmatprep.subr.bf16.mxu0 0
        %1920 = vmatpush1.bf16.msra.mxu0 0
        %1921 = vmatprep.subr.bf16.mxu0 0
        %1922 = vmatpush1.bf16.msra.mxu0 0
        %1923 = vmatprep.subr.bf16.mxu0 0
        %1924 = vmatpush1.bf16.msra.mxu0 0
        %1925 = vmatprep.subr.bf16.mxu0 0
        %1926 = vmatpush1.bf16.msra.mxu0 0
        %1927 = vmatprep.subr.bf16.mxu0 0
        %1928 = vmatpush1.bf16.msra.mxu0 0
        %1929 = vmatprep.subr.bf16.mxu0 0
        %1930 = vmatpush1.bf16.msra.mxu0 0
        %1931 = vmatprep.subr.bf16.mxu0 0
        %1932 = vmatpush1.bf16.msra.mxu0 0
        %1933 = vmatprep.subr.bf16.mxu0 0
        %1934 = vmatpush1.bf16.msra.mxu0 0
        %1935 = vmatprep.subr.bf16.mxu0 0
        %1936 = vmatpush1.bf16.msra.mxu0 0
        %1937 = vmatprep.subr.bf16.mxu0 0
        %1938 = vmatpush1.bf16.msra.mxu0 0
        %1939 = vmatprep.subr.bf16.mxu0 0
        %1940 = vmatpush1.bf16.msra.mxu0 0
        %1941 = vmatprep.subr.bf16.mxu0 0
        %1942 = vmatpush1.bf16.msra.mxu0 0
        %1943 = vmatprep.subr.bf16.mxu0 0
        %1944 = vmatpush1.bf16.msra.mxu0 0
        %1945 = vmatprep.subr.bf16.mxu0 0
        %1946 = vmatpush1.bf16.msra.mxu0 0
        %1947 = vmatprep.mubr.bf16.mxu0 0
        %1948 = vmatmul.mubr.bf16.gmra.mrb[0].mxu0 %v1910
        %v1949 = vpop.f32.mrb[0].mxu0
        %v1950 = vadd.f32 0.0, %v1949
        %v1951 = vpop.f32.mrb[0].mxu0
        %v1952 = vpop.f32.mrb[0].mxu0
        %v1953 = vpop.f32.mrb[0].mxu0
        %1954 = vdwg.mxu0
        %1956 = vrot.lane.b32.xlu0 %v1728, 8
        %v1957 = vpop.permute.xlu0 %1956
        %1960 = vrot.lane.b32.xlu0 %v1839, 16
        %v1961 = vpop.permute.xlu0 %1960
        %1964 = vrot.lane.b32.xlu0 %v1950, 24
        %v1965 = vpop.permute.xlu0 %1964
        %v1967 = vsel %vm745, %v1617, %v1957
        %v1968 = vsel %vm403, %v1967, %v1961
        %v1969 = vsel %vm1194, %v1968, %v1965
        %v1970 = vpack.c.bf16 %v1969, %v1969
        %v1971 = vlaneseq
        %v1972 = vshrl.u32 %v1971, 7
        %v1973 = vsub.s32 0, %v1972
        %v1974 = vrot.slane %v1509, %v1973
        %v1979 = vunpack.c.l.b16 %v1505
        %v1980 = vunpack.c.l.b16 %v1506
        %v1981 = vunpack.c.l.b16 %v1507
        %v1982 = vunpack.c.l.b16 %v1508
        %v1983 = vpack.c.b16 %v1980, %v1979
        %v1984 = vpack.c.b16 %v1982, %v1981
        %v1988 = vsel %vm279, %v1970, 0
        %1990 = vmatprep.subr.bf16.mxu0 0
        %1991 = vmatpush1.bf16.msra.mxu0 %v1983
        %1992 = vmatprep.subr.bf16.mxu0 0
        %1993 = vmatpush1.bf16.msra.mxu0 %v1984
        %1994 = vmatprep.subr.bf16.mxu0 0
        %1995 = vmatpush1.bf16.msra.mxu0 0
        %1996 = vmatprep.subr.bf16.mxu0 0
        %1997 = vmatpush1.bf16.msra.mxu0 0
        %1998 = vmatprep.subr.bf16.mxu0 0
        %1999 = vmatpush1.bf16.msra.mxu0 0
        %2000 = vmatprep.subr.bf16.mxu0 0
        %2001 = vmatpush1.bf16.msra.mxu0 0
        %2002 = vmatprep.subr.bf16.mxu0 0
        %2003 = vmatpush1.bf16.msra.mxu0 0
        %2004 = vmatprep.subr.bf16.mxu0 0
        %2005 = vmatpush1.bf16.msra.mxu0 0
        %2006 = vmatprep.subr.bf16.mxu0 0
        %2007 = vmatpush1.bf16.msra.mxu0 0
        %2008 = vmatprep.subr.bf16.mxu0 0
        %2009 = vmatpush1.bf16.msra.mxu0 0
        %2010 = vmatprep.subr.bf16.mxu0 0
        %2011 = vmatpush1.bf16.msra.mxu0 0
        %2012 = vmatprep.subr.bf16.mxu0 0
        %2013 = vmatpush1.bf16.msra.mxu0 0
        %2014 = vmatprep.subr.bf16.mxu0 0
        %2015 = vmatpush1.bf16.msra.mxu0 0
        %2016 = vmatprep.subr.bf16.mxu0 0
        %2017 = vmatpush1.bf16.msra.mxu0 0
        %2018 = vmatprep.subr.bf16.mxu0 0
        %2019 = vmatpush1.bf16.msra.mxu0 0
        %2020 = vmatprep.subr.bf16.mxu0 0
        %2021 = vmatpush1.bf16.msra.mxu0 0
        %2022 = vmatprep.mubr.bf16.mxu0 0
        %2023 = vmatmul.mubr.bf16.gmra.mrb[0].mxu0 %v1988
        %v2024 = vpop.f32.mrb[0].mxu0
        %v2025 = vadd.f32 %v1974, %v2024
        %v2026 = vpop.f32.mrb[0].mxu0
        %v2027 = vpop.f32.mrb[0].mxu0
        %v2028 = vpop.f32.mrb[0].mxu0
        %2029 = vdwg.mxu0
        %v2030 = vld [vmem:[#allocation4 + $0xc0] sm:$0xff]
        %2032 = vset.pattern.permute.xlu0 0
        %2033 = vperm.xlu0 %2032, %v2030
        %v2034 = vpop.permute.xlu0 %2033
        %v2036 = vmul.f32 %v2025, %v2034
        %v2037 = vld [vmem:[#allocation4 + $0xc8] sm:$0xff]
        %2039 = vset.pattern.permute.xlu0 0
        %2040 = vperm.xlu0 %2039, %v2037
        %v2041 = vpop.permute.xlu0 %2040
        %v2043 = vadd.f32 %v2036, %v2041
        %v2044 = vpack.c.bf16 %v2043, %v2043
        %v2045 = vld [vmem:[#allocation2 + $0xc8] sm:$0xf]
        %v2046 = vld [vmem:[#allocation2 + $0xcc] sm:$0xf]
        %v2047 = vld [vmem:[#allocation2 + $0xd0] sm:$0xf]
        %v2048 = vld [vmem:[#allocation2 + $0xd4] sm:$0xf]
        %v2049 = vld [vmem:[#allocation4 + $0x90] sm:$0x1]
        %v2050 = vlaneseq
        %v2051 = vshrl.u32 %v2050, 7
        %v2052 = vsub.s32 0, %v2051
        %v2053 = vrot.slane %v2049, %v2052
        %v2058 = vunpack.c.l.b16 %v2045
        %v2059 = vunpack.c.l.b16 %v2046
        %v2060 = vunpack.c.l.b16 %v2047
        %v2061 = vunpack.c.l.b16 %v2048
        %v2062 = vpack.c.b16 %v2059, %v2058
        %v2063 = vpack.c.b16 %v2061, %v2060
        %v2067 = vsel %vm279, %v2044, 0
        %2069 = vmatprep.subr.bf16.mxu0 0
        %2070 = vmatpush1.bf16.msra.mxu0 %v2062
        %2071 = vmatprep.subr.bf16.mxu0 0
        %2072 = vmatpush1.bf16.msra.mxu0 %v2063
        %2073 = vmatprep.subr.bf16.mxu0 0
        %2074 = vmatpush1.bf16.msra.mxu0 0
        %2075 = vmatprep.subr.bf16.mxu0 0
        %2076 = vmatpush1.bf16.msra.mxu0 0
        %2077 = vmatprep.subr.bf16.mxu0 0
        %2078 = vmatpush1.bf16.msra.mxu0 0
        %2079 = vmatprep.subr.bf16.mxu0 0
        %2080 = vmatpush1.bf16.msra.mxu0 0
        %2081 = vmatprep.subr.bf16.mxu0 0
        %2082 = vmatpush1.bf16.msra.mxu0 0
        %2083 = vmatprep.subr.bf16.mxu0 0
        %2084 = vmatpush1.bf16.msra.mxu0 0
        %2085 = vmatprep.subr.bf16.mxu0 0
        %2086 = vmatpush1.bf16.msra.mxu0 0
        %2087 = vmatprep.subr.bf16.mxu0 0
        %2088 = vmatpush1.bf16.msra.mxu0 0
        %2089 = vmatprep.subr.bf16.mxu0 0
        %2090 = vmatpush1.bf16.msra.mxu0 0
        %2091 = vmatprep.subr.bf16.mxu0 0
        %2092 = vmatpush1.bf16.msra.mxu0 0
        %2093 = vmatprep.subr.bf16.mxu0 0
        %2094 = vmatpush1.bf16.msra.mxu0 0
        %2095 = vmatprep.subr.bf16.mxu0 0
        %2096 = vmatpush1.bf16.msra.mxu0 0
        %2097 = vmatprep.subr.bf16.mxu0 0
        %2098 = vmatpush1.bf16.msra.mxu0 0
        %2099 = vmatprep.subr.bf16.mxu0 0
        %2100 = vmatpush1.bf16.msra.mxu0 0
        %2101 = vmatprep.mubr.bf16.mxu0 0
        %2102 = vmatmul.mubr.bf16.gmra.mrb[0].mxu0 %v2067
        %v2103 = vpop.f32.mrb[0].mxu0
        %v2104 = vadd.f32 %v2053, %v2103
        %v2105 = vpop.f32.mrb[0].mxu0
        %v2106 = vpop.f32.mrb[0].mxu0
        %v2107 = vpop.f32.mrb[0].mxu0
        %2108 = vdwg.mxu0
        %v2109 = vmul.f32 %v2104, 0.5
        %v2110 = vmul.f32 %v2104, 0.044715
        %v2111 = vmul.f32 %v2110, %v2104
        %v2112 = vmul.f32 %v2111, %v2104
        %v2113 = vadd.f32 %v2104, %v2112
        %v2114 = vmul.f32 %v2113, 0.7978846
        %v2115 = vtanh.pop %v2114
        %v2116 = vadd.f32 %v2115, 1.0
        %v2117 = vmul.f32 %v2109, %v2116
        %v2118 = vpack.c.bf16 %v2117, %v2117
        %v2119 = vld [vmem:[#allocation2 + $0xd8] sm:$0xf]
        %v2120 = vld [vmem:[#allocation2 + $0xdc] sm:$0xf]
        %v2121 = vld [vmem:[#allocation2 + $0xe0] sm:$0xf]
        %v2122 = vld [vmem:[#allocation2 + $0xe4] sm:$0xf]
        %v2123 = vld [vmem:[#allocation2 + $0xe8] sm:$0xf]
        %v2124 = vld [vmem:[#allocation2 + $0xec] sm:$0xf]
        %v2125 = vld [vmem:[#allocation2 + $0xf0] sm:$0xf]
        %v2126 = vld [vmem:[#allocation2 + $0xf4] sm:$0xf]
        %v2127 = vld [vmem:[#allocation4 + $0x98] sm:$0x1]
        %v2128 = vlaneseq
        %v2129 = vshrl.u32 %v2128, 7
        %v2130 = vsub.s32 0, %v2129
        %v2131 = vrot.slane %v2127, %v2130
        %v2140 = vunpack.c.l.b16 %v2119
        %v2141 = vunpack.c.l.b16 %v2120
        %v2142 = vunpack.c.l.b16 %v2121
        %v2143 = vunpack.c.l.b16 %v2122
        %v2144 = vunpack.c.l.b16 %v2123
        %v2145 = vunpack.c.l.b16 %v2124
        %v2146 = vunpack.c.l.b16 %v2125
        %v2147 = vunpack.c.l.b16 %v2126
        %v2148 = vpack.c.b16 %v2141, %v2140
        %v2149 = vpack.c.b16 %v2143, %v2142
        %v2150 = vpack.c.b16 %v2145, %v2144
        %v2151 = vpack.c.b16 %v2147, %v2146
        %v2157 = vsel %vm564, %v2118, 0
        %2159 = vmatprep.subr.bf16.mxu0 0
        %2160 = vmatpush1.bf16.msra.mxu0 %v2148
        %2161 = vmatprep.subr.bf16.mxu0 0
        %2162 = vmatpush1.bf16.msra.mxu0 %v2149
        %2163 = vmatprep.subr.bf16.mxu0 0
        %2164 = vmatpush1.bf16.msra.mxu0 %v2150
        %2165 = vmatprep.subr.bf16.mxu0 0
        %2166 = vmatpush1.bf16.msra.mxu0 %v2151
        %2167 = vmatprep.subr.bf16.mxu0 0
        %2168 = vmatpush1.bf16.msra.mxu0 0
        %2169 = vmatprep.subr.bf16.mxu0 0
        %2170 = vmatpush1.bf16.msra.mxu0 0
        %2171 = vmatprep.subr.bf16.mxu0 0
        %2172 = vmatpush1.bf16.msra.mxu0 0
        %2173 = vmatprep.subr.bf16.mxu0 0
        %2174 = vmatpush1.bf16.msra.mxu0 0
        %2175 = vmatprep.subr.bf16.mxu0 0
        %2176 = vmatpush1.bf16.msra.mxu0 0
        %2177 = vmatprep.subr.bf16.mxu0 0
        %2178 = vmatpush1.bf16.msra.mxu0 0
        %2179 = vmatprep.subr.bf16.mxu0 0
        %2180 = vmatpush1.bf16.msra.mxu0 0
        %2181 = vmatprep.subr.bf16.mxu0 0
        %2182 = vmatpush1.bf16.msra.mxu0 0
        %2183 = vmatprep.subr.bf16.mxu0 0
        %2184 = vmatpush1.bf16.msra.mxu0 0
        %2185 = vmatprep.subr.bf16.mxu0 0
        %2186 = vmatpush1.bf16.msra.mxu0 0
        %2187 = vmatprep.subr.bf16.mxu0 0
        %2188 = vmatpush1.bf16.msra.mxu0 0
        %2189 = vmatprep.subr.bf16.mxu0 0
        %2190 = vmatpush1.bf16.msra.mxu0 0
        %2191 = vmatprep.mubr.bf16.mxu0 0
        %2192 = vmatmul.mubr.bf16.gmra.mrb[0].mxu0 %v2157
        %v2193 = vpop.f32.mrb[0].mxu0
        %v2194 = vadd.f32 %v2131, %v2193
        %v2195 = vpop.f32.mrb[0].mxu0
        %v2196 = vpop.f32.mrb[0].mxu0
        %v2197 = vpop.f32.mrb[0].mxu0
        %2198 = vdwg.mxu0
        %v2199 = vadd.f32 %v2194, %v2043
        %v2200 = vld [vmem:[#allocation4 + $0xd0] sm:$0xff]
        %2202 = vset.pattern.permute.xlu0 0
        %2203 = vperm.xlu0 %2202, %v2200
        %v2204 = vpop.permute.xlu0 %2203
        %v2206 = vmul.f32 %v2199, %v2204
        %v2207 = vld [vmem:[#allocation4 + $0xd8] sm:$0xff]
        %2209 = vset.pattern.permute.xlu0 0
        %2210 = vperm.xlu0 %2209, %v2207
        %v2211 = vpop.permute.xlu0 %2210
        %v2213 = vadd.f32 %v2206, %v2211
        %v2214 = vpack.c.bf16 %v2213, %v2213
        %v2219 = vunpack.c.l.b16 %v247
        %v2220 = vunpack.c.l.b16 %v248
        %v2221 = vunpack.c.l.b16 %v249
        %v2222 = vunpack.c.l.b16 %v250
        %v2223 = vpack.c.b16 %v2220, %v2219
        %v2224 = vpack.c.b16 %v2222, %v2221
        %v2226 = vsel %vm279, %v2223, 0
        %v2229 = vsel %vm279, %v2224, 0
        %v2232 = vsel %vm279, %v2214, 0
        %2234 = vmatprep.subr.bf16.mxu0 0
        %2235 = vmatpush1.bf16.xpose.msra.mxu0 %v2232
        %2236 = vmatprep.subr.bf16.mxu0 0
        %2237 = vmatpush1.bf16.xpose.msra.mxu0 0
        %2238 = vmatprep.subr.bf16.mxu0 0
        %2239 = vmatpush1.bf16.xpose.msra.mxu0 0
        %2240 = vmatprep.subr.bf16.mxu0 0
        %2241 = vmatpush1.bf16.xpose.msra.mxu0 0
        %2242 = vmatprep.subr.bf16.mxu0 0
        %2243 = vmatpush1.bf16.xpose.msra.mxu0 0
        %2244 = vmatprep.subr.bf16.mxu0 0
        %2245 = vmatpush1.bf16.xpose.msra.mxu0 0
        %2246 = vmatprep.subr.bf16.mxu0 0
        %2247 = vmatpush1.bf16.xpose.msra.mxu0 0
        %2248 = vmatprep.subr.bf16.mxu0 0
        %2249 = vmatpush1.bf16.xpose.msra.mxu0 0
        %2250 = vmatprep.subr.bf16.mxu0 0
        %2251 = vmatpush1.bf16.xpose.msra.mxu0 0
        %2252 = vmatprep.subr.bf16.mxu0 0
        %2253 = vmatpush1.bf16.xpose.msra.mxu0 0
        %2254 = vmatprep.subr.bf16.mxu0 0
        %2255 = vmatpush1.bf16.xpose.msra.mxu0 0
        %2256 = vmatprep.subr.bf16.mxu0 0
        %2257 = vmatpush1.bf16.xpose.msra.mxu0 0
        %2258 = vmatprep.subr.bf16.mxu0 0
        %2259 = vmatpush1.bf16.xpose.msra.mxu0 0
        %2260 = vmatprep.subr.bf16.mxu0 0
        %2261 = vmatpush1.bf16.xpose.msra.mxu0 0
        %2262 = vmatprep.subr.bf16.mxu0 0
        %2263 = vmatpush1.bf16.xpose.msra.mxu0 0
        %2264 = vmatprep.subr.bf16.mxu0 0
        %2265 = vmatpush1.bf16.xpose.msra.mxu0 0
        %2266 = vmatprep.mubr.bf16.mxu0 0
        %2267 = vmatmul.mubr.bf16.gmra.mrb[0].mxu0 %v2226
        %v2268 = vpop.f32.mrb[0].mxu0
        %v2269 = vadd.f32 0.0, %v2268
        %v2270 = vpop.f32.mrb[0].mxu0
        %v2271 = vpop.f32.mrb[0].mxu0
        %v2272 = vadd.f32 0.0, %v2271
        %v2273 = vpop.f32.mrb[0].mxu0
        %2274 = vmatprep.mubr.bf16.mxu0 0
        %2275 = vmatmul.mubr.bf16.gmra.mrb[0].mxu0 %v2229
        %v2276 = vpop.f32.mrb[0].mxu0
        %v2277 = vadd.f32 0.0, %v2276
        %v2278 = vpop.f32.mrb[0].mxu0
        %v2279 = vpop.f32.mrb[0].mxu0
        %v2280 = vadd.f32 0.0, %v2279
        %v2281 = vpop.f32.mrb[0].mxu0
        %2282 = vdwg.mxu0
        %v2283 = vpack.c.bf16 %v2272, %v2269
        %v2284 = vpack.c.bf16 %v2280, %v2277
        %v2285 = vld [vmem:[#allocation2 + $0xf8] sm:$0xf]
        %v2286 = vld [vmem:[#allocation2 + $0xfc] sm:$0xf]
        %v2287 = vld [vmem:[#allocation2 + $0x100] sm:$0xf]
        %v2288 = vld [vmem:[#allocation2 + $0x104] sm:$0xf]
        %v2289 = vld [vmem:[#allocation4 + $0xe0] sm:$0x1]
        %v2290 = vlaneseq
        %v2291 = vshrl.u32 %v2290, 7
        %v2292 = vsub.s32 0, %v2291
        %v2293 = vrot.slane %v2289, %v2292
        %v2294 = vadd.f32 %v2293, %v253
        %v2296 = vsel %vm745, %v2283, 0
        %v2299 = vsel %vm1578, %v2285, 0
        %2301 = vmatprep.subr.bf16.mxu0 0
        %2302 = vmatpush1.bf16.msra.mxu0 %v2299
        %2303 = vmatprep.subr.bf16.mxu0 0
        %2304 = vmatpush1.bf16.msra.mxu0 0
        %2305 = vmatprep.subr.bf16.mxu0 0
        %2306 = vmatpush1.bf16.msra.mxu0 0
        %2307 = vmatprep.subr.bf16.mxu0 0
        %2308 = vmatpush1.bf16.msra.mxu0 0
        %2309 = vmatprep.subr.bf16.mxu0 0
        %2310 = vmatpush1.bf16.msra.mxu0 0
        %2311 = vmatprep.subr.bf16.mxu0 0
        %2312 = vmatpush1.bf16.msra.mxu0 0
        %2313 = vmatprep.subr.bf16.mxu0 0
        %2314 = vmatpush1.bf16.msra.mxu0 0
        %2315 = vmatprep.subr.bf16.mxu0 0
        %2316 = vmatpush1.bf16.msra.mxu0 0
        %2317 = vmatprep.subr.bf16.mxu0 0
        %2318 = vmatpush1.bf16.msra.mxu0 0
        %2319 = vmatprep.subr.bf16.mxu0 0
        %2320 = vmatpush1.bf16.msra.mxu0 0
        %2321 = vmatprep.subr.bf16.mxu0 0
        %2322 = vmatpush1.bf16.msra.mxu0 0
        %2323 = vmatprep.subr.bf16.mxu0 0
        %2324 = vmatpush1.bf16.msra.mxu0 0
        %2325 = vmatprep.subr.bf16.mxu0 0
        %2326 = vmatpush1.bf16.msra.mxu0 0
        %2327 = vmatprep.subr.bf16.mxu0 0
        %2328 = vmatpush1.bf16.msra.mxu0 0
        %2329 = vmatprep.subr.bf16.mxu0 0
        %2330 = vmatpush1.bf16.msra.mxu0 0
        %2331 = vmatprep.subr.bf16.mxu0 0
        %2332 = vmatpush1.bf16.msra.mxu0 0
        %2333 = vmatprep.mubr.bf16.mxu0 0
        %2334 = vmatmul.mubr.bf16.gmra.mrb[0].mxu0 %v2296
        %v2335 = vpop.f32.mrb[0].mxu0
        %v2336 = vadd.f32 0.0, %v2335
        %v2337 = vpop.f32.mrb[0].mxu0
        %v2338 = vpop.f32.mrb[0].mxu0
        %v2339 = vpop.f32.mrb[0].mxu0
        %2340 = vdwg.mxu0
        %v2341 = vadd.f32 %v2294, %v2336
        %v2343 = vrot.slane %v2283, 4
        %v2345 = vsel %vm745, %v2343, 0
        %v2348 = vsel %vm1578, %v2286, 0
        %2350 = vmatprep.subr.bf16.mxu0 0
        %2351 = vmatpush1.bf16.msra.mxu0 %v2348
        %2352 = vmatprep.subr.bf16.mxu0 0
        %2353 = vmatpush1.bf16.msra.mxu0 0
        %2354 = vmatprep.subr.bf16.mxu0 0
        %2355 = vmatpush1.bf16.msra.mxu0 0
        %2356 = vmatprep.subr.bf16.mxu0 0
        %2357 = vmatpush1.bf16.msra.mxu0 0
        %2358 = vmatprep.subr.bf16.mxu0 0
        %2359 = vmatpush1.bf16.msra.mxu0 0
        %2360 = vmatprep.subr.bf16.mxu0 0
        %2361 = vmatpush1.bf16.msra.mxu0 0
        %2362 = vmatprep.subr.bf16.mxu0 0
        %2363 = vmatpush1.bf16.msra.mxu0 0
        %2364 = vmatprep.subr.bf16.mxu0 0
        %2365 = vmatpush1.bf16.msra.mxu0 0
        %2366 = vmatprep.subr.bf16.mxu0 0
        %2367 = vmatpush1.bf16.msra.mxu0 0
        %2368 = vmatprep.subr.bf16.mxu0 0
        %2369 = vmatpush1.bf16.msra.mxu0 0
        %2370 = vmatprep.subr.bf16.mxu0 0
        %2371 = vmatpush1.bf16.msra.mxu0 0
        %2372 = vmatprep.subr.bf16.mxu0 0
        %2373 = vmatpush1.bf16.msra.mxu0 0
        %2374 = vmatprep.subr.bf16.mxu0 0
        %2375 = vmatpush1.bf16.msra.mxu0 0
        %2376 = vmatprep.subr.bf16.mxu0 0
        %2377 = vmatpush1.bf16.msra.mxu0 0
        %2378 = vmatprep.subr.bf16.mxu0 0
        %2379 = vmatpush1.bf16.msra.mxu0 0
        %2380 = vmatprep.subr.bf16.mxu0 0
        %2381 = vmatpush1.bf16.msra.mxu0 0
        %2382 = vmatprep.mubr.bf16.mxu0 0
        %2383 = vmatmul.mubr.bf16.gmra.mrb[0].mxu0 %v2345
        %v2384 = vpop.f32.mrb[0].mxu0
        %v2385 = vadd.f32 0.0, %v2384
        %v2386 = vpop.f32.mrb[0].mxu0
        %v2387 = vpop.f32.mrb[0].mxu0
        %v2388 = vpop.f32.mrb[0].mxu0
        %2389 = vdwg.mxu0
        %v2390 = vadd.f32 %v2341, %v2385
        %v2392 = vsel %vm745, %v2284, 0
        %v2395 = vsel %vm1578, %v2287, 0
        %2397 = vmatprep.subr.bf16.mxu0 0
        %2398 = vmatpush1.bf16.msra.mxu0 %v2395
        %2399 = vmatprep.subr.bf16.mxu0 0
        %2400 = vmatpush1.bf16.msra.mxu0 0
        %2401 = vmatprep.subr.bf16.mxu0 0
        %2402 = vmatpush1.bf16.msra.mxu0 0
        %2403 = vmatprep.subr.bf16.mxu0 0
        %2404 = vmatpush1.bf16.msra.mxu0 0
        %2405 = vmatprep.subr.bf16.mxu0 0
        %2406 = vmatpush1.bf16.msra.mxu0 0
        %2407 = vmatprep.subr.bf16.mxu0 0
        %2408 = vmatpush1.bf16.msra.mxu0 0
        %2409 = vmatprep.subr.bf16.mxu0 0
        %2410 = vmatpush1.bf16.msra.mxu0 0
        %2411 = vmatprep.subr.bf16.mxu0 0
        %2412 = vmatpush1.bf16.msra.mxu0 0
        %2413 = vmatprep.subr.bf16.mxu0 0
        %2414 = vmatpush1.bf16.msra.mxu0 0
        %2415 = vmatprep.subr.bf16.mxu0 0
        %2416 = vmatpush1.bf16.msra.mxu0 0
        %2417 = vmatprep.subr.bf16.mxu0 0
        %2418 = vmatpush1.bf16.msra.mxu0 0
        %2419 = vmatprep.subr.bf16.mxu0 0
        %2420 = vmatpush1.bf16.msra.mxu0 0
        %2421 = vmatprep.subr.bf16.mxu0 0
        %2422 = vmatpush1.bf16.msra.mxu0 0
        %2423 = vmatprep.subr.bf16.mxu0 0
        %2424 = vmatpush1.bf16.msra.mxu0 0
        %2425 = vmatprep.subr.bf16.mxu0 0
        %2426 = vmatpush1.bf16.msra.mxu0 0
        %2427 = vmatprep.subr.bf16.mxu0 0
        %2428 = vmatpush1.bf16.msra.mxu0 0
        %2429 = vmatprep.mubr.bf16.mxu0 0
        %2430 = vmatmul.mubr.bf16.gmra.mrb[0].mxu0 %v2392
        %v2431 = vpop.f32.mrb[0].mxu0
        %v2432 = vadd.f32 0.0, %v2431
        %v2433 = vpop.f32.mrb[0].mxu0
        %v2434 = vpop.f32.mrb[0].mxu0
        %v2435 = vpop.f32.mrb[0].mxu0
        %2436 = vdwg.mxu0
        %v2437 = vadd.f32 %v2390, %v2432
        %v2439 = vrot.slane %v2284, 4
        %v2441 = vsel %vm745, %v2439, 0
        %v2444 = vsel %vm1578, %v2288, 0
        %2446 = vmatprep.subr.bf16.mxu0 0
        %2447 = vmatpush1.bf16.msra.mxu0 %v2444
        %2448 = vmatprep.subr.bf16.mxu0 0
        %2449 = vmatpush1.bf16.msra.mxu0 0
        %2450 = vmatprep.subr.bf16.mxu0 0
        %2451 = vmatpush1.bf16.msra.mxu0 0
        %2452 = vmatprep.subr.bf16.mxu0 0
        %2453 = vmatpush1.bf16.msra.mxu0 0
        %2454 = vmatprep.subr.bf16.mxu0 0
        %2455 = vmatpush1.bf16.msra.mxu0 0
        %2456 = vmatprep.subr.bf16.mxu0 0
        %2457 = vmatpush1.bf16.msra.mxu0 0
        %2458 = vmatprep.subr.bf16.mxu0 0
        %2459 = vmatpush1.bf16.msra.mxu0 0
        %2460 = vmatprep.subr.bf16.mxu0 0
        %2461 = vmatpush1.bf16.msra.mxu0 0
        %2462 = vmatprep.subr.bf16.mxu0 0
        %2463 = vmatpush1.bf16.msra.mxu0 0
        %2464 = vmatprep.subr.bf16.mxu0 0
        %2465 = vmatpush1.bf16.msra.mxu0 0
        %2466 = vmatprep.subr.bf16.mxu0 0
        %2467 = vmatpush1.bf16.msra.mxu0 0
        %2468 = vmatprep.subr.bf16.mxu0 0
        %2469 = vmatpush1.bf16.msra.mxu0 0
        %2470 = vmatprep.subr.bf16.mxu0 0
        %2471 = vmatpush1.bf16.msra.mxu0 0
        %2472 = vmatprep.subr.bf16.mxu0 0
        %2473 = vmatpush1.bf16.msra.mxu0 0
        %2474 = vmatprep.subr.bf16.mxu0 0
        %2475 = vmatpush1.bf16.msra.mxu0 0
        %2476 = vmatprep.subr.bf16.mxu0 0
        %2477 = vmatpush1.bf16.msra.mxu0 0
        %2478 = vmatprep.mubr.bf16.mxu0 0
        %2479 = vmatmul.mubr.bf16.gmra.mrb[0].mxu0 %v2441
        %v2480 = vpop.f32.mrb[0].mxu0
        %v2481 = vadd.f32 0.0, %v2480
        %v2482 = vpop.f32.mrb[0].mxu0
        %v2483 = vpop.f32.mrb[0].mxu0
        %v2484 = vpop.f32.mrb[0].mxu0
        %2485 = vdwg.mxu0
        %v2486 = vadd.f32 %v2437, %v2481
        %v2487 = vpack.c.bf16 %v2486, %v2486
        %v2488 = vld [vmem:[#allocation2 + $0x108] sm:$0xf]
        %v2489 = vld [vmem:[#allocation2 + $0x10c] sm:$0xf]
        %v2490 = vld [vmem:[#allocation2 + $0x110] sm:$0xf]
        %v2491 = vld [vmem:[#allocation2 + $0x114] sm:$0xf]
        %v2492 = vld [vmem:[#allocation4 + $0xe8] sm:$0xff]
        %v2493 = vld [vmem:[#allocation4 + $0xf0] sm:$0xff]
        %v2494 = vld [vmem:[#allocation4 + $0xf8] sm:$0xff]
        %v2495 = vld [vmem:[#allocation4 + $0x100] sm:$0xff]
        %2497 = vset.pattern.permute.xlu0 0
        %2498 = vperm.xlu0 %2497, %v2492
        %v2499 = vpop.permute.xlu0 %2498
        %2502 = vset.pattern.permute.xlu0 0
        %2503 = vperm.xlu0 %2502, %v2493
        %v2504 = vpop.permute.xlu0 %2503
        %2507 = vset.pattern.permute.xlu0 0
        %2508 = vperm.xlu0 %2507, %v2494
        %v2509 = vpop.permute.xlu0 %2508
        %2512 = vset.pattern.permute.xlu0 0
        %2513 = vperm.xlu0 %2512, %v2495
        %v2514 = vpop.permute.xlu0 %2513
        %v2520 = vunpack.c.l.b16 %v2488
        %v2521 = vunpack.c.l.b16 %v2489
        %v2522 = vunpack.c.l.b16 %v2490
        %v2523 = vunpack.c.l.b16 %v2491
        %v2524 = vpack.c.b16 %v2521, %v2520
        %v2525 = vpack.c.b16 %v2523, %v2522
        %v2527 = vsel %vm745, %v2524, 0
        %v2530 = vsel %vm745, %v2525, 0
        %v2533 = vsel %vm1578, %v2487, 0
        %2535 = vmatprep.subr.bf16.mxu0 0
        %2536 = vmatpush1.bf16.msra.mxu0 %v2533
        %2537 = vmatprep.subr.bf16.mxu0 0
        %2538 = vmatpush1.bf16.msra.mxu0 0
        %2539 = vmatprep.subr.bf16.mxu0 0
        %2540 = vmatpush1.bf16.msra.mxu0 0
        %2541 = vmatprep.subr.bf16.mxu0 0
        %2542 = vmatpush1.bf16.msra.mxu0 0
        %2543 = vmatprep.subr.bf16.mxu0 0
        %2544 = vmatpush1.bf16.msra.mxu0 0
        %2545 = vmatprep.subr.bf16.mxu0 0
        %2546 = vmatpush1.bf16.msra.mxu0 0
        %2547 = vmatprep.subr.bf16.mxu0 0
        %2548 = vmatpush1.bf16.msra.mxu0 0
        %2549 = vmatprep.subr.bf16.mxu0 0
        %2550 = vmatpush1.bf16.msra.mxu0 0
        %2551 = vmatprep.subr.bf16.mxu0 0
        %2552 = vmatpush1.bf16.msra.mxu0 0
        %2553 = vmatprep.subr.bf16.mxu0 0
        %2554 = vmatpush1.bf16.msra.mxu0 0
        %2555 = vmatprep.subr.bf16.mxu0 0
        %2556 = vmatpush1.bf16.msra.mxu0 0
        %2557 = vmatprep.subr.bf16.mxu0 0
        %2558 = vmatpush1.bf16.msra.mxu0 0
        %2559 = vmatprep.subr.bf16.mxu0 0
        %2560 = vmatpush1.bf16.msra.mxu0 0
        %2561 = vmatprep.subr.bf16.mxu0 0
        %2562 = vmatpush1.bf16.msra.mxu0 0
        %2563 = vmatprep.subr.bf16.mxu0 0
        %2564 = vmatpush1.bf16.msra.mxu0 0
        %2565 = vmatprep.subr.bf16.mxu0 0
        %2566 = vmatpush1.bf16.msra.mxu0 0
        %2567 = vmatprep.mubr.bf16.mxu0 0
        %2568 = vmatmul.mubr.bf16.gmra.mrb[0].mxu0 %v2527
        %v2569 = vpop.f32.mrb[0].mxu0
        %v2570 = vadd.f32 %v2499, %v2569
        %v2571 = vpop.f32.mrb[0].mxu0
        %v2572 = vpop.f32.mrb[0].mxu0
        %v2573 = vadd.f32 %v2504, %v2572
        %v2574 = vpop.f32.mrb[0].mxu0
        %2575 = vmatprep.mubr.bf16.mxu0 0
        %2576 = vmatmul.mubr.bf16.gmra.mrb[0].mxu0 %v2530
        %v2577 = vpop.f32.mrb[0].mxu0
        %v2578 = vadd.f32 %v2509, %v2577
        %v2579 = vpop.f32.mrb[0].mxu0
        %v2580 = vpop.f32.mrb[0].mxu0
        %v2581 = vadd.f32 %v2514, %v2580
        %v2582 = vpop.f32.mrb[0].mxu0
        %2583 = vdwg.mxu0
        %v2584 = vmul.f32 %v2570, 0.5
        %v2585 = vmul.f32 %v2573, 0.5
        %v2586 = vmul.f32 %v2578, 0.5
        %v2587 = vmul.f32 %v2581, 0.5
        %v2588 = vmul.f32 %v2570, 0.044715
        %v2589 = vmul.f32 %v2573, 0.044715
        %v2590 = vmul.f32 %v2578, 0.044715
        %v2591 = vmul.f32 %v2581, 0.044715
        %v2592 = vmul.f32 %v2588, %v2570
        %v2593 = vmul.f32 %v2589, %v2573
        %v2594 = vmul.f32 %v2590, %v2578
        %v2595 = vmul.f32 %v2591, %v2581
        %v2596 = vmul.f32 %v2592, %v2570
        %v2597 = vmul.f32 %v2593, %v2573
        %v2598 = vmul.f32 %v2594, %v2578
        %v2599 = vmul.f32 %v2595, %v2581
        %v2600 = vadd.f32 %v2570, %v2596
        %v2601 = vadd.f32 %v2573, %v2597
        %v2602 = vadd.f32 %v2578, %v2598
        %v2603 = vadd.f32 %v2581, %v2599
        %v2604 = vmul.f32 %v2600, 0.7978846
        %v2605 = vmul.f32 %v2601, 0.7978846
        %v2606 = vmul.f32 %v2602, 0.7978846
        %v2607 = vmul.f32 %v2603, 0.7978846
        %v2608 = vtanh.pop %v2604
        %v2609 = vtanh.pop %v2605
        %v2610 = vtanh.pop %v2606
        %v2611 = vtanh.pop %v2607
        %v2612 = vadd.f32 %v2608, 1.0
        %v2613 = vadd.f32 %v2609, 1.0
        %v2614 = vadd.f32 %v2610, 1.0
        %v2615 = vadd.f32 %v2611, 1.0
        %v2616 = vmul.f32 %v2584, %v2612
        %v2617 = vmul.f32 %v2585, %v2613
        %v2618 = vmul.f32 %v2586, %v2614
        %v2619 = vmul.f32 %v2587, %v2615
        %v2620 = vld [vmem:[#allocation2 + $0x118] sm:$0x3]
        %v2621 = vpack.c.bf16 %v2617, %v2616
        %v2622 = vpack.c.bf16 %v2619, %v2618
        %v2623 = vld [vmem:[#allocation4 + $0x108] sm:$0xf]
        %2625 = vset.pattern.permute.xlu0 0
        %2626 = vperm.xlu0 %2625, %v2623
        %v2627 = vpop.permute.xlu0 %2626
        %v2630 = vsel %vm279, %v2620, 0
        %2632 = vmatprep.subr.bf16.mxu0 0
        %2633 = vmatpush1.bf16.msra.mxu0 %v2621
        %2634 = vmatprep.subr.bf16.mxu0 0
        %2635 = vmatpush1.bf16.msra.mxu0 %v2622
        %2636 = vmatprep.subr.bf16.mxu0 0
        %2637 = vmatpush1.bf16.msra.mxu0 0
        %2638 = vmatprep.subr.bf16.mxu0 0
        %2639 = vmatpush1.bf16.msra.mxu0 0
        %2640 = vmatprep.subr.bf16.mxu0 0
        %2641 = vmatpush1.bf16.msra.mxu0 0
        %2642 = vmatprep.subr.bf16.mxu0 0
        %2643 = vmatpush1.bf16.msra.mxu0 0
        %2644 = vmatprep.subr.bf16.mxu0 0
        %2645 = vmatpush1.bf16.msra.mxu0 0
        %2646 = vmatprep.subr.bf16.mxu0 0
        %2647 = vmatpush1.bf16.msra.mxu0 0
        %2648 = vmatprep.subr.bf16.mxu0 0
        %2649 = vmatpush1.bf16.msra.mxu0 0
        %2650 = vmatprep.subr.bf16.mxu0 0
        %2651 = vmatpush1.bf16.msra.mxu0 0
        %2652 = vmatprep.subr.bf16.mxu0 0
        %2653 = vmatpush1.bf16.msra.mxu0 0
        %2654 = vmatprep.subr.bf16.mxu0 0
        %2655 = vmatpush1.bf16.msra.mxu0 0
        %2656 = vmatprep.subr.bf16.mxu0 0
        %2657 = vmatpush1.bf16.msra.mxu0 0
        %2658 = vmatprep.subr.bf16.mxu0 0
        %2659 = vmatpush1.bf16.msra.mxu0 0
        %2660 = vmatprep.subr.bf16.mxu0 0
        %2661 = vmatpush1.bf16.msra.mxu0 0
        %2662 = vmatprep.subr.bf16.mxu0 0
        %2663 = vmatpush1.bf16.msra.mxu0 0
        %2664 = vmatprep.mubr.bf16.mxu0 0
        %2665 = vmatmul.mubr.bf16.gmra.mrb[0].mxu0 %v2630
        %v2666 = vpop.f32.mrb[0].mxu0
        %v2667 = vadd.f32 %v2627, %v2666
        %v2668 = vpop.f32.mrb[0].mxu0
        %v2669 = vpop.f32.mrb[0].mxu0
        %v2670 = vpop.f32.mrb[0].mxu0
        %2671 = vdwg.mxu0
        %v2672 = vpack.c.bf16 %v2667, %v2667
        %v2673 = vld [vmem:[#allocation2 + $0x120] sm:$0xf]
        %v2674 = vld [vmem:[#allocation2 + $0x124] sm:$0xf]
        %v2675 = vld [vmem:[#allocation2 + $0x128] sm:$0xf]
        %v2676 = vld [vmem:[#allocation2 + $0x12c] sm:$0xf]
        %v2677 = vld [vmem:[#allocation4 + $0x110] sm:$0x1]
        %v2678 = vlaneseq
        %v2679 = vshrl.u32 %v2678, 7
        %v2680 = vsub.s32 0, %v2679
        %v2681 = vrot.slane %v2677, %v2680
        %v2686 = vunpack.c.l.b16 %v2673
        %v2687 = vunpack.c.l.b16 %v2674
        %v2688 = vunpack.c.l.b16 %v2675
        %v2689 = vunpack.c.l.b16 %v2676
        %v2690 = vpack.c.b16 %v2687, %v2686
        %v2691 = vpack.c.b16 %v2689, %v2688
        %v2695 = vsel %vm279, %v2672, 0
        %2697 = vmatprep.subr.bf16.mxu0 0
        %2698 = vmatpush1.bf16.msra.mxu0 %v2690
        %2699 = vmatprep.subr.bf16.mxu0 0
        %2700 = vmatpush1.bf16.msra.mxu0 %v2691
        %2701 = vmatprep.subr.bf16.mxu0 0
        %2702 = vmatpush1.bf16.msra.mxu0 0
        %2703 = vmatprep.subr.bf16.mxu0 0
        %2704 = vmatpush1.bf16.msra.mxu0 0
        %2705 = vmatprep.subr.bf16.mxu0 0
        %2706 = vmatpush1.bf16.msra.mxu0 0
        %2707 = vmatprep.subr.bf16.mxu0 0
        %2708 = vmatpush1.bf16.msra.mxu0 0
        %2709 = vmatprep.subr.bf16.mxu0 0
        %2710 = vmatpush1.bf16.msra.mxu0 0
        %2711 = vmatprep.subr.bf16.mxu0 0
        %2712 = vmatpush1.bf16.msra.mxu0 0
        %2713 = vmatprep.subr.bf16.mxu0 0
        %2714 = vmatpush1.bf16.msra.mxu0 0
        %2715 = vmatprep.subr.bf16.mxu0 0
        %2716 = vmatpush1.bf16.msra.mxu0 0
        %2717 = vmatprep.subr.bf16.mxu0 0
        %2718 = vmatpush1.bf16.msra.mxu0 0
        %2719 = vmatprep.subr.bf16.mxu0 0
        %2720 = vmatpush1.bf16.msra.mxu0 0
        %2721 = vmatprep.subr.bf16.mxu0 0
        %2722 = vmatpush1.bf16.msra.mxu0 0
        %2723 = vmatprep.subr.bf16.mxu0 0
        %2724 = vmatpush1.bf16.msra.mxu0 0
        %2725 = vmatprep.subr.bf16.mxu0 0
        %2726 = vmatpush1.bf16.msra.mxu0 0
        %2727 = vmatprep.subr.bf16.mxu0 0
        %2728 = vmatpush1.bf16.msra.mxu0 0
        %2729 = vmatprep.mubr.bf16.mxu0 0
        %2730 = vmatmul.mubr.bf16.gmra.mrb[0].mxu0 %v2695
        %v2731 = vpop.f32.mrb[0].mxu0
        %v2732 = vadd.f32 %v2681, %v2731
        %v2733 = vpop.f32.mrb[0].mxu0
        %v2734 = vpop.f32.mrb[0].mxu0
        %v2735 = vpop.f32.mrb[0].mxu0
        %2736 = vdwg.mxu0
        %v2737 = vld [vmem:[#allocation2 + $0x130] sm:$0xf]
        %v2738 = vld [vmem:[#allocation2 + $0x134] sm:$0xf]
        %v2739 = vld [vmem:[#allocation2 + $0x138] sm:$0xf]
        %v2740 = vld [vmem:[#allocation2 + $0x13c] sm:$0xf]
        %v2741 = vld [vmem:[#allocation4 + $0x118] sm:$0x1]
        %v2742 = vlaneseq
        %v2743 = vshrl.u32 %v2742, 7
        %v2744 = vsub.s32 0, %v2743
        %v2745 = vrot.slane %v2741, %v2744
        %v2750 = vunpack.c.l.b16 %v2737
        %v2751 = vunpack.c.l.b16 %v2738
        %v2752 = vunpack.c.l.b16 %v2739
        %v2753 = vunpack.c.l.b16 %v2740
        %v2754 = vpack.c.b16 %v2751, %v2750
        %v2755 = vpack.c.b16 %v2753, %v2752
        %v2758 = vsel %vm279, %v2487, 0
        %2760 = vmatprep.subr.bf16.mxu0 0
        %2761 = vmatpush1.bf16.msra.mxu0 %v2754
        %2762 = vmatprep.subr.bf16.mxu0 0
        %2763 = vmatpush1.bf16.msra.mxu0 %v2755
        %2764 = vmatprep.subr.bf16.mxu0 0
        %2765 = vmatpush1.bf16.msra.mxu0 0
        %2766 = vmatprep.subr.bf16.mxu0 0
        %2767 = vmatpush1.bf16.msra.mxu0 0
        %2768 = vmatprep.subr.bf16.mxu0 0
        %2769 = vmatpush1.bf16.msra.mxu0 0
        %2770 = vmatprep.subr.bf16.mxu0 0
        %2771 = vmatpush1.bf16.msra.mxu0 0
        %2772 = vmatprep.subr.bf16.mxu0 0
        %2773 = vmatpush1.bf16.msra.mxu0 0
        %2774 = vmatprep.subr.bf16.mxu0 0
        %2775 = vmatpush1.bf16.msra.mxu0 0
        %2776 = vmatprep.subr.bf16.mxu0 0
        %2777 = vmatpush1.bf16.msra.mxu0 0
        %2778 = vmatprep.subr.bf16.mxu0 0
        %2779 = vmatpush1.bf16.msra.mxu0 0
        %2780 = vmatprep.subr.bf16.mxu0 0
        %2781 = vmatpush1.bf16.msra.mxu0 0
        %2782 = vmatprep.subr.bf16.mxu0 0
        %2783 = vmatpush1.bf16.msra.mxu0 0
        %2784 = vmatprep.subr.bf16.mxu0 0
        %2785 = vmatpush1.bf16.msra.mxu0 0
        %2786 = vmatprep.subr.bf16.mxu0 0
        %2787 = vmatpush1.bf16.msra.mxu0 0
        %2788 = vmatprep.subr.bf16.mxu0 0
        %2789 = vmatpush1.bf16.msra.mxu0 0
        %2790 = vmatprep.subr.bf16.mxu0 0
        %2791 = vmatpush1.bf16.msra.mxu0 0
        %2792 = vmatprep.mubr.bf16.mxu0 0
        %2793 = vmatmul.mubr.bf16.gmra.mrb[0].mxu0 %v2758
        %v2794 = vpop.f32.mrb[0].mxu0
        %v2795 = vadd.f32 %v2745, %v2794
        %v2796 = vpop.f32.mrb[0].mxu0
        %v2797 = vpop.f32.mrb[0].mxu0
        %v2798 = vpop.f32.mrb[0].mxu0
        %2799 = vdwg.mxu0
        %v2800 = vld [vmem:[#allocation2 + $0x140] sm:$0xf]
        %v2801 = vld [vmem:[#allocation2 + $0x144] sm:$0xf]
        %v2802 = vld [vmem:[#allocation2 + $0x148] sm:$0xf]
        %v2803 = vld [vmem:[#allocation2 + $0x14c] sm:$0xf]
        %v2804 = vld [vmem:[#allocation4 + $0x120] sm:$0x1]
        %v2805 = vpack.c.bf16 %v2732, %v2732
        %v2806 = vpack.c.bf16 %v2795, %v2795
        %v2808 = vsel %vm745, %v2805, 0
        %v2811 = vsel %vm745, %v2806, 0
        %2813 = vmatprep.subr.bf16.mxu0 0
        %2814 = vmatpush1.bf16.xpose.msra.mxu0 %v2811
        %2815 = vmatprep.subr.bf16.mxu0 0
        %2816 = vmatpush1.bf16.xpose.msra.mxu0 0
        %2817 = vmatprep.subr.bf16.mxu0 0
        %2818 = vmatpush1.bf16.xpose.msra.mxu0 0
        %2819 = vmatprep.subr.bf16.mxu0 0
        %2820 = vmatpush1.bf16.xpose.msra.mxu0 0
        %2821 = vmatprep.subr.bf16.mxu0 0
        %2822 = vmatpush1.bf16.xpose.msra.mxu0 0
        %2823 = vmatprep.subr.bf16.mxu0 0
        %2824 = vmatpush1.bf16.xpose.msra.mxu0 0
        %2825 = vmatprep.subr.bf16.mxu0 0
        %2826 = vmatpush1.bf16.xpose.msra.mxu0 0
        %2827 = vmatprep.subr.bf16.mxu0 0
        %2828 = vmatpush1.bf16.xpose.msra.mxu0 0
        %2829 = vmatprep.subr.bf16.mxu0 0
        %2830 = vmatpush1.bf16.xpose.msra.mxu0 0
        %2831 = vmatprep.subr.bf16.mxu0 0
        %2832 = vmatpush1.bf16.xpose.msra.mxu0 0
        %2833 = vmatprep.subr.bf16.mxu0 0
        %2834 = vmatpush1.bf16.xpose.msra.mxu0 0
        %2835 = vmatprep.subr.bf16.mxu0 0
        %2836 = vmatpush1.bf16.xpose.msra.mxu0 0
        %2837 = vmatprep.subr.bf16.mxu0 0
        %2838 = vmatpush1.bf16.xpose.msra.mxu0 0
        %2839 = vmatprep.subr.bf16.mxu0 0
        %2840 = vmatpush1.bf16.xpose.msra.mxu0 0
        %2841 = vmatprep.subr.bf16.mxu0 0
        %2842 = vmatpush1.bf16.xpose.msra.mxu0 0
        %2843 = vmatprep.subr.bf16.mxu0 0
        %2844 = vmatpush1.bf16.xpose.msra.mxu0 0
        %2845 = vmatprep.mubr.bf16.mxu0 0
        %2846 = vmatmul.mubr.bf16.gmra.mrb[0].mxu0 %v2808
        %v2847 = vpop.f32.mrb[0].mxu0
        %v2848 = vadd.f32 0.0, %v2847
        %v2849 = vpop.f32.mrb[0].mxu0
        %v2850 = vpop.f32.mrb[0].mxu0
        %v2851 = vpop.f32.mrb[0].mxu0
        %2852 = vdwg.mxu0
        %v2853 = vmul.f32 %v2848, 0.35355338
        %vm2854 = vcmask 60416
        %v2855 = vsel %vm2854, %v2853, -inf
        %2856 = vmax.xlane.f32.xlu0 %v2855
        %v2857 = vpop.xlane.xlu0 %2856
        %v2858 = vsub.f32 %v2853, %v2857
        %v2859 = vmul.f32 %v2858, 1.442695
        %v2860 = vpow.pop %v2859
        %v2861 = vsel %vm2854, %v2860, 0.0
        %2862 = vadd.xlane.f32.xlu0 %v2861
        %v2863 = vpop.xlane.xlu0 %2862
        %v2864 = vrcp.pop %v2863
        %v2865 = vmul.f32 %v2860, %v2864
        %v2866 = vpack.c.bf16 %v2865, %v2865
        %2868 = vrot.lane.b32.xlu0 %v2806, 96
        %v2869 = vpop.permute.xlu0 %2868
        %v2871 = vsel %vm745, %v2866, 0
        %v2874 = vsel %vm1578, %v2869, 0
        %2876 = vmatprep.subr.bf16.mxu0 0
        %2877 = vmatpush1.bf16.msra.mxu0 %v2874
        %2878 = vmatprep.subr.bf16.mxu0 0
        %2879 = vmatpush1.bf16.msra.mxu0 0
        %2880 = vmatprep.subr.bf16.mxu0 0
        %2881 = vmatpush1.bf16.msra.mxu0 0
        %2882 = vmatprep.subr.bf16.mxu0 0
        %2883 = vmatpush1.bf16.msra.mxu0 0
        %2884 = vmatprep.subr.bf16.mxu0 0
        %2885 = vmatpush1.bf16.msra.mxu0 0
        %2886 = vmatprep.subr.bf16.mxu0 0
        %2887 = vmatpush1.bf16.msra.mxu0 0
        %2888 = vmatprep.subr.bf16.mxu0 0
        %2889 = vmatpush1.bf16.msra.mxu0 0
        %2890 = vmatprep.subr.bf16.mxu0 0
        %2891 = vmatpush1.bf16.msra.mxu0 0
        %2892 = vmatprep.subr.bf16.mxu0 0
        %2893 = vmatpush1.bf16.msra.mxu0 0
        %2894 = vmatprep.subr.bf16.mxu0 0
        %2895 = vmatpush1.bf16.msra.mxu0 0
        %2896 = vmatprep.subr.bf16.mxu0 0
        %2897 = vmatpush1.bf16.msra.mxu0 0
        %2898 = vmatprep.subr.bf16.mxu0 0
        %2899 = vmatpush1.bf16.msra.mxu0 0
        %2900 = vmatprep.subr.bf16.mxu0 0
        %2901 = vmatpush1.bf16.msra.mxu0 0
        %2902 = vmatprep.subr.bf16.mxu0 0
        %2903 = vmatpush1.bf16.msra.mxu0 0
        %2904 = vmatprep.subr.bf16.mxu0 0
        %2905 = vmatpush1.bf16.msra.mxu0 0
        %2906 = vmatprep.subr.bf16.mxu0 0
        %2907 = vmatpush1.bf16.msra.mxu0 0
        %2908 = vmatprep.mubr.bf16.mxu0 0
        %2909 = vmatmul.mubr.bf16.gmra.mrb[0].mxu0 %v2871
        %v2910 = vpop.f32.mrb[0].mxu0
        %v2911 = vadd.f32 0.0, %v2910
        %v2912 = vpop.f32.mrb[0].mxu0
        %v2913 = vpop.f32.mrb[0].mxu0
        %v2914 = vpop.f32.mrb[0].mxu0
        %2915 = vdwg.mxu0
        %2917 = vrot.lane.b32.xlu0 %v2805, 120
        %v2918 = vpop.permute.xlu0 %2917
        %2919 = vrot.lane.b32.xlu0 %v2806, 120
        %v2920 = vpop.permute.xlu0 %2919
        %v2922 = vsel %vm745, %v2918, 0
        %v2925 = vsel %vm745, %v2920, 0
        %2927 = vmatprep.subr.bf16.mxu0 0
        %2928 = vmatpush1.bf16.xpose.msra.mxu0 %v2925
        %2929 = vmatprep.subr.bf16.mxu0 0
        %2930 = vmatpush1.bf16.xpose.msra.mxu0 0
        %2931 = vmatprep.subr.bf16.mxu0 0
        %2932 = vmatpush1.bf16.xpose.msra.mxu0 0
        %2933 = vmatprep.subr.bf16.mxu0 0
        %2934 = vmatpush1.bf16.xpose.msra.mxu0 0
        %2935 = vmatprep.subr.bf16.mxu0 0
        %2936 = vmatpush1.bf16.xpose.msra.mxu0 0
        %2937 = vmatprep.subr.bf16.mxu0 0
        %2938 = vmatpush1.bf16.xpose.msra.mxu0 0
        %2939 = vmatprep.subr.bf16.mxu0 0
        %2940 = vmatpush1.bf16.xpose.msra.mxu0 0
        %2941 = vmatprep.subr.bf16.mxu0 0
        %2942 = vmatpush1.bf16.xpose.msra.mxu0 0
        %2943 = vmatprep.subr.bf16.mxu0 0
        %2944 = vmatpush1.bf16.xpose.msra.mxu0 0
        %2945 = vmatprep.subr.bf16.mxu0 0
        %2946 = vmatpush1.bf16.xpose.msra.mxu0 0
        %2947 = vmatprep.subr.bf16.mxu0 0
        %2948 = vmatpush1.bf16.xpose.msra.mxu0 0
        %2949 = vmatprep.subr.bf16.mxu0 0
        %2950 = vmatpush1.bf16.xpose.msra.mxu0 0
        %2951 = vmatprep.subr.bf16.mxu0 0
        %2952 = vmatpush1.bf16.xpose.msra.mxu0 0
        %2953 = vmatprep.subr.bf16.mxu0 0
        %2954 = vmatpush1.bf16.xpose.msra.mxu0 0
        %2955 = vmatprep.subr.bf16.mxu0 0
        %2956 = vmatpush1.bf16.xpose.msra.mxu0 0
        %2957 = vmatprep.subr.bf16.mxu0 0
        %2958 = vmatpush1.bf16.xpose.msra.mxu0 0
        %2959 = vmatprep.mubr.bf16.mxu0 0
        %2960 = vmatmul.mubr.bf16.gmra.mrb[0].mxu0 %v2922
        %v2961 = vpop.f32.mrb[0].mxu0
        %v2962 = vadd.f32 0.0, %v2961
        %v2963 = vpop.f32.mrb[0].mxu0
        %v2964 = vpop.f32.mrb[0].mxu0
        %v2965 = vpop.f32.mrb[0].mxu0
        %2966 = vdwg.mxu0
        %v2967 = vmul.f32 %v2962, 0.35355338
        %v2968 = vsel %vm2854, %v2967, -inf
        %2969 = vmax.xlane.f32.xlu0 %v2968
        %v2970 = vpop.xlane.xlu0 %2969
        %v2971 = vsub.f32 %v2967, %v2970
        %v2972 = vmul.f32 %v2971, 1.442695
        %v2973 = vpow.pop %v2972
        %v2974 = vsel %vm2854, %v2973, 0.0
        %2975 = vadd.xlane.f32.xlu0 %v2974
        %v2976 = vpop.xlane.xlu0 %2975
        %v2977 = vrcp.pop %v2976
        %v2978 = vmul.f32 %v2973, %v2977
        %v2979 = vpack.c.bf16 %v2978, %v2978
        %2980 = vrot.lane.b32.xlu0 %v2806, 88
        %v2981 = vpop.permute.xlu0 %2980
        %v2983 = vsel %vm745, %v2979, 0
        %v2986 = vsel %vm1578, %v2981, 0
        %2988 = vmatprep.subr.bf16.mxu0 0
        %2989 = vmatpush1.bf16.msra.mxu0 %v2986
        %2990 = vmatprep.subr.bf16.mxu0 0
        %2991 = vmatpush1.bf16.msra.mxu0 0
        %2992 = vmatprep.subr.bf16.mxu0 0
        %2993 = vmatpush1.bf16.msra.mxu0 0
        %2994 = vmatprep.subr.bf16.mxu0 0
        %2995 = vmatpush1.bf16.msra.mxu0 0
        %2996 = vmatprep.subr.bf16.mxu0 0
        %2997 = vmatpush1.bf16.msra.mxu0 0
        %2998 = vmatprep.subr.bf16.mxu0 0
        %2999 = vmatpush1.bf16.msra.mxu0 0
        %3000 = vmatprep.subr.bf16.mxu0 0
        %3001 = vmatpush1.bf16.msra.mxu0 0
        %3002 = vmatprep.subr.bf16.mxu0 0
        %3003 = vmatpush1.bf16.msra.mxu0 0
        %3004 = vmatprep.subr.bf16.mxu0 0
        %3005 = vmatpush1.bf16.msra.mxu0 0
        %3006 = vmatprep.subr.bf16.mxu0 0
        %3007 = vmatpush1.bf16.msra.mxu0 0
        %3008 = vmatprep.subr.bf16.mxu0 0
        %3009 = vmatpush1.bf16.msra.mxu0 0
        %3010 = vmatprep.subr.bf16.mxu0 0
        %3011 = vmatpush1.bf16.msra.mxu0 0
        %3012 = vmatprep.subr.bf16.mxu0 0
        %3013 = vmatpush1.bf16.msra.mxu0 0
        %3014 = vmatprep.subr.bf16.mxu0 0
        %3015 = vmatpush1.bf16.msra.mxu0 0
        %3016 = vmatprep.subr.bf16.mxu0 0
        %3017 = vmatpush1.bf16.msra.mxu0 0
        %3018 = vmatprep.subr.bf16.mxu0 0
        %3019 = vmatpush1.bf16.msra.mxu0 0
        %3020 = vmatprep.mubr.bf16.mxu0 0
        %3021 = vmatmul.mubr.bf16.gmra.mrb[0].mxu0 %v2983
        %v3022 = vpop.f32.mrb[0].mxu0
        %v3023 = vadd.f32 0.0, %v3022
        %v3024 = vpop.f32.mrb[0].mxu0
        %v3025 = vpop.f32.mrb[0].mxu0
        %v3026 = vpop.f32.mrb[0].mxu0
        %3027 = vdwg.mxu0
        %3028 = vrot.lane.b32.xlu0 %v2805, 112
        %v3029 = vpop.permute.xlu0 %3028
        %3030 = vrot.lane.b32.xlu0 %v2806, 112
        %v3031 = vpop.permute.xlu0 %3030
        %v3033 = vsel %vm745, %v3029, 0
        %v3036 = vsel %vm745, %v3031, 0
        %3038 = vmatprep.subr.bf16.mxu0 0
        %3039 = vmatpush1.bf16.xpose.msra.mxu0 %v3036
        %3040 = vmatprep.subr.bf16.mxu0 0
        %3041 = vmatpush1.bf16.xpose.msra.mxu0 0
        %3042 = vmatprep.subr.bf16.mxu0 0
        %3043 = vmatpush1.bf16.xpose.msra.mxu0 0
        %3044 = vmatprep.subr.bf16.mxu0 0
        %3045 = vmatpush1.bf16.xpose.msra.mxu0 0
        %3046 = vmatprep.subr.bf16.mxu0 0
        %3047 = vmatpush1.bf16.xpose.msra.mxu0 0
        %3048 = vmatprep.subr.bf16.mxu0 0
        %3049 = vmatpush1.bf16.xpose.msra.mxu0 0
        %3050 = vmatprep.subr.bf16.mxu0 0
        %3051 = vmatpush1.bf16.xpose.msra.mxu0 0
        %3052 = vmatprep.subr.bf16.mxu0 0
        %3053 = vmatpush1.bf16.xpose.msra.mxu0 0
        %3054 = vmatprep.subr.bf16.mxu0 0
        %3055 = vmatpush1.bf16.xpose.msra.mxu0 0
        %3056 = vmatprep.subr.bf16.mxu0 0
        %3057 = vmatpush1.bf16.xpose.msra.mxu0 0
        %3058 = vmatprep.subr.bf16.mxu0 0
        %3059 = vmatpush1.bf16.xpose.msra.mxu0 0
        %3060 = vmatprep.subr.bf16.mxu0 0
        %3061 = vmatpush1.bf16.xpose.msra.mxu0 0
        %3062 = vmatprep.subr.bf16.mxu0 0
        %3063 = vmatpush1.bf16.xpose.msra.mxu0 0
        %3064 = vmatprep.subr.bf16.mxu0 0
        %3065 = vmatpush1.bf16.xpose.msra.mxu0 0
        %3066 = vmatprep.subr.bf16.mxu0 0
        %3067 = vmatpush1.bf16.xpose.msra.mxu0 0
        %3068 = vmatprep.subr.bf16.mxu0 0
        %3069 = vmatpush1.bf16.xpose.msra.mxu0 0
        %3070 = vmatprep.mubr.bf16.mxu0 0
        %3071 = vmatmul.mubr.bf16.gmra.mrb[0].mxu0 %v3033
        %v3072 = vpop.f32.mrb[0].mxu0
        %v3073 = vadd.f32 0.0, %v3072
        %v3074 = vpop.f32.mrb[0].mxu0
        %v3075 = vpop.f32.mrb[0].mxu0
        %v3076 = vpop.f32.mrb[0].mxu0
        %3077 = vdwg.mxu0
        %v3078 = vmul.f32 %v3073, 0.35355338
        %v3079 = vsel %vm2854, %v3078, -inf
        %3080 = vmax.xlane.f32.xlu0 %v3079
        %v3081 = vpop.xlane.xlu0 %3080
        %v3082 = vsub.f32 %v3078, %v3081
        %v3083 = vmul.f32 %v3082, 1.442695
        %v3084 = vpow.pop %v3083
        %v3085 = vsel %vm2854, %v3084, 0.0
        %3086 = vadd.xlane.f32.xlu0 %v3085
        %v3087 = vpop.xlane.xlu0 %3086
        %v3088 = vrcp.pop %v3087
        %v3089 = vmul.f32 %v3084, %v3088
        %v3090 = vpack.c.bf16 %v3089, %v3089
        %3091 = vrot.lane.b32.xlu0 %v2806, 80
        %v3092 = vpop.permute.xlu0 %3091
        %v3094 = vsel %vm745, %v3090, 0
        %v3097 = vsel %vm1578, %v3092, 0
        %3099 = vmatprep.subr.bf16.mxu0 0
        %3100 = vmatpush1.bf16.msra.mxu0 %v3097
        %3101 = vmatprep.subr.bf16.mxu0 0
        %3102 = vmatpush1.bf16.msra.mxu0 0
        %3103 = vmatprep.subr.bf16.mxu0 0
        %3104 = vmatpush1.bf16.msra.mxu0 0
        %3105 = vmatprep.subr.bf16.mxu0 0
        %3106 = vmatpush1.bf16.msra.mxu0 0
        %3107 = vmatprep.subr.bf16.mxu0 0
        %3108 = vmatpush1.bf16.msra.mxu0 0
        %3109 = vmatprep.subr.bf16.mxu0 0
        %3110 = vmatpush1.bf16.msra.mxu0 0
        %3111 = vmatprep.subr.bf16.mxu0 0
        %3112 = vmatpush1.bf16.msra.mxu0 0
        %3113 = vmatprep.subr.bf16.mxu0 0
        %3114 = vmatpush1.bf16.msra.mxu0 0
        %3115 = vmatprep.subr.bf16.mxu0 0
        %3116 = vmatpush1.bf16.msra.mxu0 0
        %3117 = vmatprep.subr.bf16.mxu0 0
        %3118 = vmatpush1.bf16.msra.mxu0 0
        %3119 = vmatprep.subr.bf16.mxu0 0
        %3120 = vmatpush1.bf16.msra.mxu0 0
        %3121 = vmatprep.subr.bf16.mxu0 0
        %3122 = vmatpush1.bf16.msra.mxu0 0
        %3123 = vmatprep.subr.bf16.mxu0 0
        %3124 = vmatpush1.bf16.msra.mxu0 0
        %3125 = vmatprep.subr.bf16.mxu0 0
        %3126 = vmatpush1.bf16.msra.mxu0 0
        %3127 = vmatprep.subr.bf16.mxu0 0
        %3128 = vmatpush1.bf16.msra.mxu0 0
        %3129 = vmatprep.subr.bf16.mxu0 0
        %3130 = vmatpush1.bf16.msra.mxu0 0
        %3131 = vmatprep.mubr.bf16.mxu0 0
        %3132 = vmatmul.mubr.bf16.gmra.mrb[0].mxu0 %v3094
        %v3133 = vpop.f32.mrb[0].mxu0
        %v3134 = vadd.f32 0.0, %v3133
        %v3135 = vpop.f32.mrb[0].mxu0
        %v3136 = vpop.f32.mrb[0].mxu0
        %v3137 = vpop.f32.mrb[0].mxu0
        %3138 = vdwg.mxu0
        %3139 = vrot.lane.b32.xlu0 %v2805, 104
        %v3140 = vpop.permute.xlu0 %3139
        %3141 = vrot.lane.b32.xlu0 %v2806, 104
        %v3142 = vpop.permute.xlu0 %3141
        %v3144 = vsel %vm745, %v3140, 0
        %v3147 = vsel %vm745, %v3142, 0
        %3149 = vmatprep.subr.bf16.mxu0 0
        %3150 = vmatpush1.bf16.xpose.msra.mxu0 %v3147
        %3151 = vmatprep.subr.bf16.mxu0 0
        %3152 = vmatpush1.bf16.xpose.msra.mxu0 0
        %3153 = vmatprep.subr.bf16.mxu0 0
        %3154 = vmatpush1.bf16.xpose.msra.mxu0 0
        %3155 = vmatprep.subr.bf16.mxu0 0
        %3156 = vmatpush1.bf16.xpose.msra.mxu0 0
        %3157 = vmatprep.subr.bf16.mxu0 0
        %3158 = vmatpush1.bf16.xpose.msra.mxu0 0
        %3159 = vmatprep.subr.bf16.mxu0 0
        %3160 = vmatpush1.bf16.xpose.msra.mxu0 0
        %3161 = vmatprep.subr.bf16.mxu0 0
        %3162 = vmatpush1.bf16.xpose.msra.mxu0 0
        %3163 = vmatprep.subr.bf16.mxu0 0
        %3164 = vmatpush1.bf16.xpose.msra.mxu0 0
        %3165 = vmatprep.subr.bf16.mxu0 0
        %3166 = vmatpush1.bf16.xpose.msra.mxu0 0
        %3167 = vmatprep.subr.bf16.mxu0 0
        %3168 = vmatpush1.bf16.xpose.msra.mxu0 0
        %3169 = vmatprep.subr.bf16.mxu0 0
        %3170 = vmatpush1.bf16.xpose.msra.mxu0 0
        %3171 = vmatprep.subr.bf16.mxu0 0
        %3172 = vmatpush1.bf16.xpose.msra.mxu0 0
        %3173 = vmatprep.subr.bf16.mxu0 0
        %3174 = vmatpush1.bf16.xpose.msra.mxu0 0
        %3175 = vmatprep.subr.bf16.mxu0 0
        %3176 = vmatpush1.bf16.xpose.msra.mxu0 0
        %3177 = vmatprep.subr.bf16.mxu0 0
        %3178 = vmatpush1.bf16.xpose.msra.mxu0 0
        %3179 = vmatprep.subr.bf16.mxu0 0
        %3180 = vmatpush1.bf16.xpose.msra.mxu0 0
        %3181 = vmatprep.mubr.bf16.mxu0 0
        %3182 = vmatmul.mubr.bf16.gmra.mrb[0].mxu0 %v3144
        %v3183 = vpop.f32.mrb[0].mxu0
        %v3184 = vadd.f32 0.0, %v3183
        %v3185 = vpop.f32.mrb[0].mxu0
        %v3186 = vpop.f32.mrb[0].mxu0
        %v3187 = vpop.f32.mrb[0].mxu0
        %3188 = vdwg.mxu0
        %v3189 = vmul.f32 %v3184, 0.35355338
        %v3190 = vsel %vm2854, %v3189, -inf
        %3191 = vmax.xlane.f32.xlu0 %v3190
        %v3192 = vpop.xlane.xlu0 %3191
        %v3193 = vsub.f32 %v3189, %v3192
        %v3194 = vmul.f32 %v3193, 1.442695
        %v3195 = vpow.pop %v3194
        %v3196 = vsel %vm2854, %v3195, 0.0
        %3197 = vadd.xlane.f32.xlu0 %v3196
        %v3198 = vpop.xlane.xlu0 %3197
        %v3199 = vrcp.pop %v3198
        %v3200 = vmul.f32 %v3195, %v3199
        %v3201 = vpack.c.bf16 %v3200, %v3200
        %3202 = vrot.lane.b32.xlu0 %v2806, 72
        %v3203 = vpop.permute.xlu0 %3202
        %v3205 = vsel %vm745, %v3201, 0
        %v3208 = vsel %vm1578, %v3203, 0
        %3210 = vmatprep.subr.bf16.mxu0 0
        %3211 = vmatpush1.bf16.msra.mxu0 %v3208
        %3212 = vmatprep.subr.bf16.mxu0 0
        %3213 = vmatpush1.bf16.msra.mxu0 0
        %3214 = vmatprep.subr.bf16.mxu0 0
        %3215 = vmatpush1.bf16.msra.mxu0 0
        %3216 = vmatprep.subr.bf16.mxu0 0
        %3217 = vmatpush1.bf16.msra.mxu0 0
        %3218 = vmatprep.subr.bf16.mxu0 0
        %3219 = vmatpush1.bf16.msra.mxu0 0
        %3220 = vmatprep.subr.bf16.mxu0 0
        %3221 = vmatpush1.bf16.msra.mxu0 0
        %3222 = vmatprep.subr.bf16.mxu0 0
        %3223 = vmatpush1.bf16.msra.mxu0 0
        %3224 = vmatprep.subr.bf16.mxu0 0
        %3225 = vmatpush1.bf16.msra.mxu0 0
        %3226 = vmatprep.subr.bf16.mxu0 0
        %3227 = vmatpush1.bf16.msra.mxu0 0
        %3228 = vmatprep.subr.bf16.mxu0 0
        %3229 = vmatpush1.bf16.msra.mxu0 0
        %3230 = vmatprep.subr.bf16.mxu0 0
        %3231 = vmatpush1.bf16.msra.mxu0 0
        %3232 = vmatprep.subr.bf16.mxu0 0
        %3233 = vmatpush1.bf16.msra.mxu0 0
        %3234 = vmatprep.subr.bf16.mxu0 0
        %3235 = vmatpush1.bf16.msra.mxu0 0
        %3236 = vmatprep.subr.bf16.mxu0 0
        %3237 = vmatpush1.bf16.msra.mxu0 0
        %3238 = vmatprep.subr.bf16.mxu0 0
        %3239 = vmatpush1.bf16.msra.mxu0 0
        %3240 = vmatprep.subr.bf16.mxu0 0
        %3241 = vmatpush1.bf16.msra.mxu0 0
        %3242 = vmatprep.mubr.bf16.mxu0 0
        %3243 = vmatmul.mubr.bf16.gmra.mrb[0].mxu0 %v3205
        %v3244 = vpop.f32.mrb[0].mxu0
        %v3245 = vadd.f32 0.0, %v3244
        %v3246 = vpop.f32.mrb[0].mxu0
        %v3247 = vpop.f32.mrb[0].mxu0
        %v3248 = vpop.f32.mrb[0].mxu0
        %3249 = vdwg.mxu0
        %3251 = vrot.lane.b32.xlu0 %v3023, 8
        %v3252 = vpop.permute.xlu0 %3251
        %3255 = vrot.lane.b32.xlu0 %v3134, 16
        %v3256 = vpop.permute.xlu0 %3255
        %3259 = vrot.lane.b32.xlu0 %v3245, 24
        %v3260 = vpop.permute.xlu0 %3259
        %v3262 = vsel %vm745, %v2911, %v3252
        %v3263 = vsel %vm403, %v3262, %v3256
        %v3264 = vsel %vm1194, %v3263, %v3260
        %v3265 = vpack.c.bf16 %v3264, %v3264
        %v3266 = vlaneseq
        %v3267 = vshrl.u32 %v3266, 7
        %v3268 = vsub.s32 0, %v3267
        %v3269 = vrot.slane %v2804, %v3268
        %v3274 = vunpack.c.l.b16 %v2800
        %v3275 = vunpack.c.l.b16 %v2801
        %v3276 = vunpack.c.l.b16 %v2802
        %v3277 = vunpack.c.l.b16 %v2803
        %v3278 = vpack.c.b16 %v3275, %v3274
        %v3279 = vpack.c.b16 %v3277, %v3276
        %v3283 = vsel %vm279, %v3265, 0
        %3285 = vmatprep.subr.bf16.mxu0 0
        %3286 = vmatpush1.bf16.msra.mxu0 %v3278
        %3287 = vmatprep.subr.bf16.mxu0 0
        %3288 = vmatpush1.bf16.msra.mxu0 %v3279
        %3289 = vmatprep.subr.bf16.mxu0 0
        %3290 = vmatpush1.bf16.msra.mxu0 0
        %3291 = vmatprep.subr.bf16.mxu0 0
        %3292 = vmatpush1.bf16.msra.mxu0 0
        %3293 = vmatprep.subr.bf16.mxu0 0
        %3294 = vmatpush1.bf16.msra.mxu0 0
        %3295 = vmatprep.subr.bf16.mxu0 0
        %3296 = vmatpush1.bf16.msra.mxu0 0
        %3297 = vmatprep.subr.bf16.mxu0 0
        %3298 = vmatpush1.bf16.msra.mxu0 0
        %3299 = vmatprep.subr.bf16.mxu0 0
        %3300 = vmatpush1.bf16.msra.mxu0 0
        %3301 = vmatprep.subr.bf16.mxu0 0
        %3302 = vmatpush1.bf16.msra.mxu0 0
        %3303 = vmatprep.subr.bf16.mxu0 0
        %3304 = vmatpush1.bf16.msra.mxu0 0
        %3305 = vmatprep.subr.bf16.mxu0 0
        %3306 = vmatpush1.bf16.msra.mxu0 0
        %3307 = vmatprep.subr.bf16.mxu0 0
        %3308 = vmatpush1.bf16.msra.mxu0 0
        %3309 = vmatprep.subr.bf16.mxu0 0
        %3310 = vmatpush1.bf16.msra.mxu0 0
        %3311 = vmatprep.subr.bf16.mxu0 0
        %3312 = vmatpush1.bf16.msra.mxu0 0
        %3313 = vmatprep.subr.bf16.mxu0 0
        %3314 = vmatpush1.bf16.msra.mxu0 0
        %3315 = vmatprep.subr.bf16.mxu0 0
        %3316 = vmatpush1.bf16.msra.mxu0 0
        %3317 = vmatprep.mubr.bf16.mxu0 0
        %3318 = vmatmul.mubr.bf16.gmra.mrb[0].mxu0 %v3283
        %v3319 = vpop.f32.mrb[0].mxu0
        %v3320 = vadd.f32 %v3269, %v3319
        %v3321 = vpop.f32.mrb[0].mxu0
        %v3322 = vpop.f32.mrb[0].mxu0
        %v3323 = vpop.f32.mrb[0].mxu0
        %3324 = vdwg.mxu0
        %v3325 = vld [vmem:[#allocation4 + $0x158] sm:$0xf]
        %3327 = vset.pattern.permute.xlu0 0
        %3328 = vperm.xlu0 %3327, %v3325
        %v3329 = vpop.permute.xlu0 %3328
        %v3331 = vmul.f32 %v3320, %v3329
        %v3332 = vld [vmem:[#allocation4 + $0x160] sm:$0xf]
        %3334 = vset.pattern.permute.xlu0 0
        %3335 = vperm.xlu0 %3334, %v3332
        %v3336 = vpop.permute.xlu0 %3335
        %v3338 = vadd.f32 %v3331, %v3336
        %v3339 = vpack.c.bf16 %v3338, %v3338
        %v3340 = vld [vmem:[#allocation2 + $0x150] sm:$0xf]
        %v3341 = vld [vmem:[#allocation2 + $0x154] sm:$0xf]
        %v3342 = vld [vmem:[#allocation2 + $0x158] sm:$0xf]
        %v3343 = vld [vmem:[#allocation2 + $0x15c] sm:$0xf]
        %v3344 = vld [vmem:[#allocation4 + $0x128] sm:$0x1]
        %v3345 = vlaneseq
        %v3346 = vshrl.u32 %v3345, 7
        %v3347 = vsub.s32 0, %v3346
        %v3348 = vrot.slane %v3344, %v3347
        %v3353 = vunpack.c.l.b16 %v3340
        %v3354 = vunpack.c.l.b16 %v3341
        %v3355 = vunpack.c.l.b16 %v3342
        %v3356 = vunpack.c.l.b16 %v3343
        %v3357 = vpack.c.b16 %v3354, %v3353
        %v3358 = vpack.c.b16 %v3356, %v3355
        %v3362 = vsel %vm279, %v3339, 0
        %3364 = vmatprep.subr.bf16.mxu0 0
        %3365 = vmatpush1.bf16.msra.mxu0 %v3357
        %3366 = vmatprep.subr.bf16.mxu0 0
        %3367 = vmatpush1.bf16.msra.mxu0 %v3358
        %3368 = vmatprep.subr.bf16.mxu0 0
        %3369 = vmatpush1.bf16.msra.mxu0 0
        %3370 = vmatprep.subr.bf16.mxu0 0
        %3371 = vmatpush1.bf16.msra.mxu0 0
        %3372 = vmatprep.subr.bf16.mxu0 0
        %3373 = vmatpush1.bf16.msra.mxu0 0
        %3374 = vmatprep.subr.bf16.mxu0 0
        %3375 = vmatpush1.bf16.msra.mxu0 0
        %3376 = vmatprep.subr.bf16.mxu0 0
        %3377 = vmatpush1.bf16.msra.mxu0 0
        %3378 = vmatprep.subr.bf16.mxu0 0
        %3379 = vmatpush1.bf16.msra.mxu0 0
        %3380 = vmatprep.subr.bf16.mxu0 0
        %3381 = vmatpush1.bf16.msra.mxu0 0
        %3382 = vmatprep.subr.bf16.mxu0 0
        %3383 = vmatpush1.bf16.msra.mxu0 0
        %3384 = vmatprep.subr.bf16.mxu0 0
        %3385 = vmatpush1.bf16.msra.mxu0 0
        %3386 = vmatprep.subr.bf16.mxu0 0
        %3387 = vmatpush1.bf16.msra.mxu0 0
        %3388 = vmatprep.subr.bf16.mxu0 0
        %3389 = vmatpush1.bf16.msra.mxu0 0
        %3390 = vmatprep.subr.bf16.mxu0 0
        %3391 = vmatpush1.bf16.msra.mxu0 0
        %3392 = vmatprep.subr.bf16.mxu0 0
        %3393 = vmatpush1.bf16.msra.mxu0 0
        %3394 = vmatprep.subr.bf16.mxu0 0
        %3395 = vmatpush1.bf16.msra.mxu0 0
        %3396 = vmatprep.mubr.bf16.mxu0 0
        %3397 = vmatmul.mubr.bf16.gmra.mrb[0].mxu0 %v3362
        %v3398 = vpop.f32.mrb[0].mxu0
        %v3399 = vadd.f32 %v3348, %v3398
        %v3400 = vpop.f32.mrb[0].mxu0
        %v3401 = vpop.f32.mrb[0].mxu0
        %v3402 = vpop.f32.mrb[0].mxu0
        %3403 = vdwg.mxu0
        %v3404 = vmul.f32 %v3399, 0.5
        %v3405 = vmul.f32 %v3399, 0.044715
        %v3406 = vmul.f32 %v3405, %v3399
        %v3407 = vmul.f32 %v3406, %v3399
        %v3408 = vadd.f32 %v3399, %v3407
        %v3409 = vmul.f32 %v3408, 0.7978846
        %v3410 = vtanh.pop %v3409
        %v3411 = vadd.f32 %v3410, 1.0
        %v3412 = vmul.f32 %v3404, %v3411
        %v3413 = vpack.c.bf16 %v3412, %v3412
        %v3414 = vld [vmem:[#allocation2 + $0x160] sm:$0xf]
        %v3415 = vld [vmem:[#allocation2 + $0x164] sm:$0xf]
        %v3416 = vld [vmem:[#allocation2 + $0x168] sm:$0xf]
        %v3417 = vld [vmem:[#allocation2 + $0x16c] sm:$0xf]
        %v3418 = vld [vmem:[#allocation2 + $0x170] sm:$0xf]
        %v3419 = vld [vmem:[#allocation2 + $0x174] sm:$0xf]
        %v3420 = vld [vmem:[#allocation2 + $0x178] sm:$0xf]
        %v3421 = vld [vmem:[#allocation2 + $0x17c] sm:$0xf]
        %v3422 = vld [vmem:[#allocation4 + $0x130] sm:$0x1]
        %v3423 = vlaneseq
        %v3424 = vshrl.u32 %v3423, 7
        %v3425 = vsub.s32 0, %v3424
        %v3426 = vrot.slane %v3422, %v3425
        %v3435 = vunpack.c.l.b16 %v3414
        %v3436 = vunpack.c.l.b16 %v3415
        %v3437 = vunpack.c.l.b16 %v3416
        %v3438 = vunpack.c.l.b16 %v3417
        %v3439 = vunpack.c.l.b16 %v3418
        %v3440 = vunpack.c.l.b16 %v3419
        %v3441 = vunpack.c.l.b16 %v3420
        %v3442 = vunpack.c.l.b16 %v3421
        %v3443 = vpack.c.b16 %v3436, %v3435
        %v3444 = vpack.c.b16 %v3438, %v3437
        %v3445 = vpack.c.b16 %v3440, %v3439
        %v3446 = vpack.c.b16 %v3442, %v3441
        %v3452 = vsel %vm564, %v3413, 0
        %3454 = vmatprep.subr.bf16.mxu0 0
        %3455 = vmatpush1.bf16.msra.mxu0 %v3443
        %3456 = vmatprep.subr.bf16.mxu0 0
        %3457 = vmatpush1.bf16.msra.mxu0 %v3444
        %3458 = vmatprep.subr.bf16.mxu0 0
        %3459 = vmatpush1.bf16.msra.mxu0 %v3445
        %3460 = vmatprep.subr.bf16.mxu0 0
        %3461 = vmatpush1.bf16.msra.mxu0 %v3446
        %3462 = vmatprep.subr.bf16.mxu0 0
        %3463 = vmatpush1.bf16.msra.mxu0 0
        %3464 = vmatprep.subr.bf16.mxu0 0
        %3465 = vmatpush1.bf16.msra.mxu0 0
        %3466 = vmatprep.subr.bf16.mxu0 0
        %3467 = vmatpush1.bf16.msra.mxu0 0
        %3468 = vmatprep.subr.bf16.mxu0 0
        %3469 = vmatpush1.bf16.msra.mxu0 0
        %3470 = vmatprep.subr.bf16.mxu0 0
        %3471 = vmatpush1.bf16.msra.mxu0 0
        %3472 = vmatprep.subr.bf16.mxu0 0
        %3473 = vmatpush1.bf16.msra.mxu0 0
        %3474 = vmatprep.subr.bf16.mxu0 0
        %3475 = vmatpush1.bf16.msra.mxu0 0
        %3476 = vmatprep.subr.bf16.mxu0 0
        %3477 = vmatpush1.bf16.msra.mxu0 0
        %3478 = vmatprep.subr.bf16.mxu0 0
        %3479 = vmatpush1.bf16.msra.mxu0 0
        %3480 = vmatprep.subr.bf16.mxu0 0
        %3481 = vmatpush1.bf16.msra.mxu0 0
        %3482 = vmatprep.subr.bf16.mxu0 0
        %3483 = vmatpush1.bf16.msra.mxu0 0
        %3484 = vmatprep.subr.bf16.mxu0 0
        %3485 = vmatpush1.bf16.msra.mxu0 0
        %3486 = vmatprep.mubr.bf16.mxu0 0
        %3487 = vmatmul.mubr.bf16.gmra.mrb[0].mxu0 %v3452
        %v3488 = vpop.f32.mrb[0].mxu0
        %v3489 = vadd.f32 %v3426, %v3488
        %v3490 = vpop.f32.mrb[0].mxu0
        %v3491 = vpop.f32.mrb[0].mxu0
        %v3492 = vpop.f32.mrb[0].mxu0
        %3493 = vdwg.mxu0
        %v3494 = vadd.f32 %v3489, %v3338
        %v3495 = vld [vmem:[#allocation4 + $0x168] sm:$0xf]
        %3497 = vset.pattern.permute.xlu0 0
        %3498 = vperm.xlu0 %3497, %v3495
        %v3499 = vpop.permute.xlu0 %3498
        %v3501 = vmul.f32 %v3494, %v3499
        %v3502 = vld [vmem:[#allocation4 + $0x170] sm:$0xf]
        %3504 = vset.pattern.permute.xlu0 0
        %3505 = vperm.xlu0 %3504, %v3502
        %v3506 = vpop.permute.xlu0 %3505
        %v3508 = vadd.f32 %v3501, %v3506
        %v3509 = vpack.c.bf16 %v3508, %v3508
        %v3510 = vld [vmem:[#allocation2 + $0x180] sm:$0xf]
        %v3511 = vld [vmem:[#allocation2 + $0x184] sm:$0xf]
        %v3512 = vld [vmem:[#allocation2 + $0x188] sm:$0xf]
        %v3513 = vld [vmem:[#allocation2 + $0x18c] sm:$0xf]
        %v3514 = vld [vmem:[#allocation4 + $0x138] sm:$0x1]
        %v3515 = vlaneseq
        %v3516 = vshrl.u32 %v3515, 7
        %v3517 = vsub.s32 0, %v3516
        %v3518 = vrot.slane %v3514, %v3517
        %v3523 = vunpack.c.l.b16 %v3510
        %v3524 = vunpack.c.l.b16 %v3511
        %v3525 = vunpack.c.l.b16 %v3512
        %v3526 = vunpack.c.l.b16 %v3513
        %v3527 = vpack.c.b16 %v3524, %v3523
        %v3528 = vpack.c.b16 %v3526, %v3525
        %v3532 = vsel %vm279, %v3509, 0
        %3534 = vmatprep.subr.bf16.mxu0 0
        %3535 = vmatpush1.bf16.msra.mxu0 %v3527
        %3536 = vmatprep.subr.bf16.mxu0 0
        %3537 = vmatpush1.bf16.msra.mxu0 %v3528
        %3538 = vmatprep.subr.bf16.mxu0 0
        %3539 = vmatpush1.bf16.msra.mxu0 0
        %3540 = vmatprep.subr.bf16.mxu0 0
        %3541 = vmatpush1.bf16.msra.mxu0 0
        %3542 = vmatprep.subr.bf16.mxu0 0
        %3543 = vmatpush1.bf16.msra.mxu0 0
        %3544 = vmatprep.subr.bf16.mxu0 0
        %3545 = vmatpush1.bf16.msra.mxu0 0
        %3546 = vmatprep.subr.bf16.mxu0 0
        %3547 = vmatpush1.bf16.msra.mxu0 0
        %3548 = vmatprep.subr.bf16.mxu0 0
        %3549 = vmatpush1.bf16.msra.mxu0 0
        %3550 = vmatprep.subr.bf16.mxu0 0
        %3551 = vmatpush1.bf16.msra.mxu0 0
        %3552 = vmatprep.subr.bf16.mxu0 0
        %3553 = vmatpush1.bf16.msra.mxu0 0
        %3554 = vmatprep.subr.bf16.mxu0 0
        %3555 = vmatpush1.bf16.msra.mxu0 0
        %3556 = vmatprep.subr.bf16.mxu0 0
        %3557 = vmatpush1.bf16.msra.mxu0 0
        %3558 = vmatprep.subr.bf16.mxu0 0
        %3559 = vmatpush1.bf16.msra.mxu0 0
        %3560 = vmatprep.subr.bf16.mxu0 0
        %3561 = vmatpush1.bf16.msra.mxu0 0
        %3562 = vmatprep.subr.bf16.mxu0 0
        %3563 = vmatpush1.bf16.msra.mxu0 0
        %3564 = vmatprep.subr.bf16.mxu0 0
        %3565 = vmatpush1.bf16.msra.mxu0 0
        %3566 = vmatprep.mubr.bf16.mxu0 0
        %3567 = vmatmul.mubr.bf16.gmra.mrb[0].mxu0 %v3532
        %v3568 = vpop.f32.mrb[0].mxu0
        %v3569 = vadd.f32 %v3518, %v3568
        %v3570 = vpop.f32.mrb[0].mxu0
        %v3571 = vpop.f32.mrb[0].mxu0
        %v3572 = vpop.f32.mrb[0].mxu0
        %3573 = vdwg.mxu0
        %v3574 = vld [vmem:[#allocation2 + $0x190] sm:$0xf]
        %v3575 = vld [vmem:[#allocation2 + $0x194] sm:$0xf]
        %v3576 = vld [vmem:[#allocation2 + $0x198] sm:$0xf]
        %v3577 = vld [vmem:[#allocation2 + $0x19c] sm:$0xf]
        %v3578 = vld [vmem:[#allocation4 + $0x140] sm:$0x1]
        %v3579 = vpack.c.bf16 %v3569, %v3569
        %3581 = vrot.lane.b32.xlu0 %v3579, 96
        %v3582 = vpop.permute.xlu0 %3581
        %v3584 = vsel %vm745, %v3579, 0
        %v3587 = vsel %vm745, %v3582, 0
        %3589 = vmatprep.subr.bf16.mxu0 0
        %3590 = vmatpush1.bf16.xpose.msra.mxu0 %v3587
        %3591 = vmatprep.subr.bf16.mxu0 0
        %3592 = vmatpush1.bf16.xpose.msra.mxu0 0
        %3593 = vmatprep.subr.bf16.mxu0 0
        %3594 = vmatpush1.bf16.xpose.msra.mxu0 0
        %3595 = vmatprep.subr.bf16.mxu0 0
        %3596 = vmatpush1.bf16.xpose.msra.mxu0 0
        %3597 = vmatprep.subr.bf16.mxu0 0
        %3598 = vmatpush1.bf16.xpose.msra.mxu0 0
        %3599 = vmatprep.subr.bf16.mxu0 0
        %3600 = vmatpush1.bf16.xpose.msra.mxu0 0
        %3601 = vmatprep.subr.bf16.mxu0 0
        %3602 = vmatpush1.bf16.xpose.msra.mxu0 0
        %3603 = vmatprep.subr.bf16.mxu0 0
        %3604 = vmatpush1.bf16.xpose.msra.mxu0 0
        %3605 = vmatprep.subr.bf16.mxu0 0
        %3606 = vmatpush1.bf16.xpose.msra.mxu0 0
        %3607 = vmatprep.subr.bf16.mxu0 0
        %3608 = vmatpush1.bf16.xpose.msra.mxu0 0
        %3609 = vmatprep.subr.bf16.mxu0 0
        %3610 = vmatpush1.bf16.xpose.msra.mxu0 0
        %3611 = vmatprep.subr.bf16.mxu0 0
        %3612 = vmatpush1.bf16.xpose.msra.mxu0 0
        %3613 = vmatprep.subr.bf16.mxu0 0
        %3614 = vmatpush1.bf16.xpose.msra.mxu0 0
        %3615 = vmatprep.subr.bf16.mxu0 0
        %3616 = vmatpush1.bf16.xpose.msra.mxu0 0
        %3617 = vmatprep.subr.bf16.mxu0 0
        %3618 = vmatpush1.bf16.xpose.msra.mxu0 0
        %3619 = vmatprep.subr.bf16.mxu0 0
        %3620 = vmatpush1.bf16.xpose.msra.mxu0 0
        %3621 = vmatprep.mubr.bf16.mxu0 0
        %3622 = vmatmul.mubr.bf16.gmra.mrb[0].mxu0 %v3584
        %v3623 = vpop.f32.mrb[0].mxu0
        %v3624 = vadd.f32 0.0, %v3623
        %v3625 = vpop.f32.mrb[0].mxu0
        %v3626 = vpop.f32.mrb[0].mxu0
        %v3627 = vpop.f32.mrb[0].mxu0
        %3628 = vdwg.mxu0
        %v3629 = vmul.f32 %v3624, 0.35355338
        %vm3630 = vcmask 27648
        %v3631 = vsel %vm3630, %v3629, -inf
        %3632 = vmax.xlane.f32.xlu0 %v3631
        %v3633 = vpop.xlane.xlu0 %3632
        %v3634 = vsub.f32 %v3629, %v3633
        %v3635 = vmul.f32 %v3634, 1.442695
        %v3636 = vpow.pop %v3635
        %v3637 = vsel %vm3630, %v3636, 0.0
        %3638 = vadd.xlane.f32.xlu0 %v3637
        %v3639 = vpop.xlane.xlu0 %3638
        %v3640 = vrcp.pop %v3639
        %v3641 = vmul.f32 %v3636, %v3640
        %v3642 = vpack.c.bf16 %v3641, %v3641
        %3643 = vrot.lane.b32.xlu0 %v3579, 64
        %v3644 = vpop.permute.xlu0 %3643
        %vm3645 = vcmask 31744
        %v3647 = vsel %vm3645, %v3642, 0
        %vm3649 = vcmask 1041408
        %v3651 = vsel %vm3649, %v3644, 0
        %3653 = vmatprep.subr.bf16.mxu0 0
        %3654 = vmatpush1.bf16.msra.mxu0 %v3651
        %3655 = vmatprep.subr.bf16.mxu0 0
        %3656 = vmatpush1.bf16.msra.mxu0 0
        %3657 = vmatprep.subr.bf16.mxu0 0
        %3658 = vmatpush1.bf16.msra.mxu0 0
        %3659 = vmatprep.subr.bf16.mxu0 0
        %3660 = vmatpush1.bf16.msra.mxu0 0
        %3661 = vmatprep.subr.bf16.mxu0 0
        %3662 = vmatpush1.bf16.msra.mxu0 0
        %3663 = vmatprep.subr.bf16.mxu0 0
        %3664 = vmatpush1.bf16.msra.mxu0 0
        %3665 = vmatprep.subr.bf16.mxu0 0
        %3666 = vmatpush1.bf16.msra.mxu0 0
        %3667 = vmatprep.subr.bf16.mxu0 0
        %3668 = vmatpush1.bf16.msra.mxu0 0
        %3669 = vmatprep.subr.bf16.mxu0 0
        %3670 = vmatpush1.bf16.msra.mxu0 0
        %3671 = vmatprep.subr.bf16.mxu0 0
        %3672 = vmatpush1.bf16.msra.mxu0 0
        %3673 = vmatprep.subr.bf16.mxu0 0
        %3674 = vmatpush1.bf16.msra.mxu0 0
        %3675 = vmatprep.subr.bf16.mxu0 0
        %3676 = vmatpush1.bf16.msra.mxu0 0
        %3677 = vmatprep.subr.bf16.mxu0 0
        %3678 = vmatpush1.bf16.msra.mxu0 0
        %3679 = vmatprep.subr.bf16.mxu0 0
        %3680 = vmatpush1.bf16.msra.mxu0 0
        %3681 = vmatprep.subr.bf16.mxu0 0
        %3682 = vmatpush1.bf16.msra.mxu0 0
        %3683 = vmatprep.subr.bf16.mxu0 0
        %3684 = vmatpush1.bf16.msra.mxu0 0
        %3685 = vmatprep.mubr.bf16.mxu0 0
        %3686 = vmatmul.mubr.bf16.gmra.mrb[0].mxu0 %v3647
        %v3687 = vpop.f32.mrb[0].mxu0
        %v3688 = vadd.f32 0.0, %v3687
        %v3689 = vpop.f32.mrb[0].mxu0
        %v3690 = vpop.f32.mrb[0].mxu0
        %v3691 = vpop.f32.mrb[0].mxu0
        %3692 = vdwg.mxu0
        %3693 = vrot.lane.b32.xlu0 %v3579, 120
        %v3694 = vpop.permute.xlu0 %3693
        %3695 = vrot.lane.b32.xlu0 %v3579, 88
        %v3696 = vpop.permute.xlu0 %3695
        %v3698 = vsel %vm745, %v3694, 0
        %v3701 = vsel %vm745, %v3696, 0
        %3703 = vmatprep.subr.bf16.mxu0 0
        %3704 = vmatpush1.bf16.xpose.msra.mxu0 %v3701
        %3705 = vmatprep.subr.bf16.mxu0 0
        %3706 = vmatpush1.bf16.xpose.msra.mxu0 0
        %3707 = vmatprep.subr.bf16.mxu0 0
        %3708 = vmatpush1.bf16.xpose.msra.mxu0 0
        %3709 = vmatprep.subr.bf16.mxu0 0
        %3710 = vmatpush1.bf16.xpose.msra.mxu0 0
        %3711 = vmatprep.subr.bf16.mxu0 0
        %3712 = vmatpush1.bf16.xpose.msra.mxu0 0
        %3713 = vmatprep.subr.bf16.mxu0 0
        %3714 = vmatpush1.bf16.xpose.msra.mxu0 0
        %3715 = vmatprep.subr.bf16.mxu0 0
        %3716 = vmatpush1.bf16.xpose.msra.mxu0 0
        %3717 = vmatprep.subr.bf16.mxu0 0
        %3718 = vmatpush1.bf16.xpose.msra.mxu0 0
        %3719 = vmatprep.subr.bf16.mxu0 0
        %3720 = vmatpush1.bf16.xpose.msra.mxu0 0
        %3721 = vmatprep.subr.bf16.mxu0 0
        %3722 = vmatpush1.bf16.xpose.msra.mxu0 0
        %3723 = vmatprep.subr.bf16.mxu0 0
        %3724 = vmatpush1.bf16.xpose.msra.mxu0 0
        %3725 = vmatprep.subr.bf16.mxu0 0
        %3726 = vmatpush1.bf16.xpose.msra.mxu0 0
        %3727 = vmatprep.subr.bf16.mxu0 0
        %3728 = vmatpush1.bf16.xpose.msra.mxu0 0
        %3729 = vmatprep.subr.bf16.mxu0 0
        %3730 = vmatpush1.bf16.xpose.msra.mxu0 0
        %3731 = vmatprep.subr.bf16.mxu0 0
        %3732 = vmatpush1.bf16.xpose.msra.mxu0 0
        %3733 = vmatprep.subr.bf16.mxu0 0
        %3734 = vmatpush1.bf16.xpose.msra.mxu0 0
        %3735 = vmatprep.mubr.bf16.mxu0 0
        %3736 = vmatmul.mubr.bf16.gmra.mrb[0].mxu0 %v3698
        %v3737 = vpop.f32.mrb[0].mxu0
        %v3738 = vadd.f32 0.0, %v3737
        %v3739 = vpop.f32.mrb[0].mxu0
        %v3740 = vpop.f32.mrb[0].mxu0
        %v3741 = vpop.f32.mrb[0].mxu0
        %3742 = vdwg.mxu0
        %v3743 = vmul.f32 %v3738, 0.35355338
        %v3744 = vsel %vm3630, %v3743, -inf
        %3745 = vmax.xlane.f32.xlu0 %v3744
        %v3746 = vpop.xlane.xlu0 %3745
        %v3747 = vsub.f32 %v3743, %v3746
        %v3748 = vmul.f32 %v3747, 1.442695
        %v3749 = vpow.pop %v3748
        %v3750 = vsel %vm3630, %v3749, 0.0
        %3751 = vadd.xlane.f32.xlu0 %v3750
        %v3752 = vpop.xlane.xlu0 %3751
        %v3753 = vrcp.pop %v3752
        %v3754 = vmul.f32 %v3749, %v3753
        %v3755 = vpack.c.bf16 %v3754, %v3754
        %3756 = vrot.lane.b32.xlu0 %v3579, 56
        %v3757 = vpop.permute.xlu0 %3756
        %v3759 = vsel %vm3645, %v3755, 0
        %v3762 = vsel %vm3649, %v3757, 0
        %3764 = vmatprep.subr.bf16.mxu0 0
        %3765 = vmatpush1.bf16.msra.mxu0 %v3762
        %3766 = vmatprep.subr.bf16.mxu0 0
        %3767 = vmatpush1.bf16.msra.mxu0 0
        %3768 = vmatprep.subr.bf16.mxu0 0
        %3769 = vmatpush1.bf16.msra.mxu0 0
        %3770 = vmatprep.subr.bf16.mxu0 0
        %3771 = vmatpush1.bf16.msra.mxu0 0
        %3772 = vmatprep.subr.bf16.mxu0 0
        %3773 = vmatpush1.bf16.msra.mxu0 0
        %3774 = vmatprep.subr.bf16.mxu0 0
        %3775 = vmatpush1.bf16.msra.mxu0 0
        %3776 = vmatprep.subr.bf16.mxu0 0
        %3777 = vmatpush1.bf16.msra.mxu0 0
        %3778 = vmatprep.subr.bf16.mxu0 0
        %3779 = vmatpush1.bf16.msra.mxu0 0
        %3780 = vmatprep.subr.bf16.mxu0 0
        %3781 = vmatpush1.bf16.msra.mxu0 0
        %3782 = vmatprep.subr.bf16.mxu0 0
        %3783 = vmatpush1.bf16.msra.mxu0 0
        %3784 = vmatprep.subr.bf16.mxu0 0
        %3785 = vmatpush1.bf16.msra.mxu0 0
        %3786 = vmatprep.subr.bf16.mxu0 0
        %3787 = vmatpush1.bf16.msra.mxu0 0
        %3788 = vmatprep.subr.bf16.mxu0 0
        %3789 = vmatpush1.bf16.msra.mxu0 0
        %3790 = vmatprep.subr.bf16.mxu0 0
        %3791 = vmatpush1.bf16.msra.mxu0 0
        %3792 = vmatprep.subr.bf16.mxu0 0
        %3793 = vmatpush1.bf16.msra.mxu0 0
        %3794 = vmatprep.subr.bf16.mxu0 0
        %3795 = vmatpush1.bf16.msra.mxu0 0
        %3796 = vmatprep.mubr.bf16.mxu0 0
        %3797 = vmatmul.mubr.bf16.gmra.mrb[0].mxu0 %v3759
        %v3798 = vpop.f32.mrb[0].mxu0
        %v3799 = vadd.f32 0.0, %v3798
        %v3800 = vpop.f32.mrb[0].mxu0
        %v3801 = vpop.f32.mrb[0].mxu0
        %v3802 = vpop.f32.mrb[0].mxu0
        %3803 = vdwg.mxu0
        %3804 = vrot.lane.b32.xlu0 %v3579, 112
        %v3805 = vpop.permute.xlu0 %3804
        %3806 = vrot.lane.b32.xlu0 %v3579, 80
        %v3807 = vpop.permute.xlu0 %3806
        %v3809 = vsel %vm745, %v3805, 0
        %v3812 = vsel %vm745, %v3807, 0
        %3814 = vmatprep.subr.bf16.mxu0 0
        %3815 = vmatpush1.bf16.xpose.msra.mxu0 %v3812
        %3816 = vmatprep.subr.bf16.mxu0 0
        %3817 = vmatpush1.bf16.xpose.msra.mxu0 0
        %3818 = vmatprep.subr.bf16.mxu0 0
        %3819 = vmatpush1.bf16.xpose.msra.mxu0 0
        %3820 = vmatprep.subr.bf16.mxu0 0
        %3821 = vmatpush1.bf16.xpose.msra.mxu0 0
        %3822 = vmatprep.subr.bf16.mxu0 0
        %3823 = vmatpush1.bf16.xpose.msra.mxu0 0
        %3824 = vmatprep.subr.bf16.mxu0 0
        %3825 = vmatpush1.bf16.xpose.msra.mxu0 0
        %3826 = vmatprep.subr.bf16.mxu0 0
        %3827 = vmatpush1.bf16.xpose.msra.mxu0 0
        %3828 = vmatprep.subr.bf16.mxu0 0
        %3829 = vmatpush1.bf16.xpose.msra.mxu0 0
        %3830 = vmatprep.subr.bf16.mxu0 0
        %3831 = vmatpush1.bf16.xpose.msra.mxu0 0
        %3832 = vmatprep.subr.bf16.mxu0 0
        %3833 = vmatpush1.bf16.xpose.msra.mxu0 0
        %3834 = vmatprep.subr.bf16.mxu0 0
        %3835 = vmatpush1.bf16.xpose.msra.mxu0 0
        %3836 = vmatprep.subr.bf16.mxu0 0
        %3837 = vmatpush1.bf16.xpose.msra.mxu0 0
        %3838 = vmatprep.subr.bf16.mxu0 0
        %3839 = vmatpush1.bf16.xpose.msra.mxu0 0
        %3840 = vmatprep.subr.bf16.mxu0 0
        %3841 = vmatpush1.bf16.xpose.msra.mxu0 0
        %3842 = vmatprep.subr.bf16.mxu0 0
        %3843 = vmatpush1.bf16.xpose.msra.mxu0 0
        %3844 = vmatprep.subr.bf16.mxu0 0
        %3845 = vmatpush1.bf16.xpose.msra.mxu0 0
        %3846 = vmatprep.mubr.bf16.mxu0 0
        %3847 = vmatmul.mubr.bf16.gmra.mrb[0].mxu0 %v3809
        %v3848 = vpop.f32.mrb[0].mxu0
        %v3849 = vadd.f32 0.0, %v3848
        %v3850 = vpop.f32.mrb[0].mxu0
        %v3851 = vpop.f32.mrb[0].mxu0
        %v3852 = vpop.f32.mrb[0].mxu0
        %3853 = vdwg.mxu0
        %v3854 = vmul.f32 %v3849, 0.35355338
        %v3855 = vsel %vm3630, %v3854, -inf
        %3856 = vmax.xlane.f32.xlu0 %v3855
        %v3857 = vpop.xlane.xlu0 %3856
        %v3858 = vsub.f32 %v3854, %v3857
        %v3859 = vmul.f32 %v3858, 1.442695
        %v3860 = vpow.pop %v3859
        %v3861 = vsel %vm3630, %v3860, 0.0
        %3862 = vadd.xlane.f32.xlu0 %v3861
        %v3863 = vpop.xlane.xlu0 %3862
        %v3864 = vrcp.pop %v3863
        %v3865 = vmul.f32 %v3860, %v3864
        %v3866 = vpack.c.bf16 %v3865, %v3865
        %3867 = vrot.lane.b32.xlu0 %v3579, 48
        %v3868 = vpop.permute.xlu0 %3867
        %v3870 = vsel %vm3645, %v3866, 0
        %v3873 = vsel %vm3649, %v3868, 0
        %3875 = vmatprep.subr.bf16.mxu0 0
        %3876 = vmatpush1.bf16.msra.mxu0 %v3873
        %3877 = vmatprep.subr.bf16.mxu0 0
        %3878 = vmatpush1.bf16.msra.mxu0 0
        %3879 = vmatprep.subr.bf16.mxu0 0
        %3880 = vmatpush1.bf16.msra.mxu0 0
        %3881 = vmatprep.subr.bf16.mxu0 0
        %3882 = vmatpush1.bf16.msra.mxu0 0
        %3883 = vmatprep.subr.bf16.mxu0 0
        %3884 = vmatpush1.bf16.msra.mxu0 0
        %3885 = vmatprep.subr.bf16.mxu0 0
        %3886 = vmatpush1.bf16.msra.mxu0 0
        %3887 = vmatprep.subr.bf16.mxu0 0
        %3888 = vmatpush1.bf16.msra.mxu0 0
        %3889 = vmatprep.subr.bf16.mxu0 0
        %3890 = vmatpush1.bf16.msra.mxu0 0
        %3891 = vmatprep.subr.bf16.mxu0 0
        %3892 = vmatpush1.bf16.msra.mxu0 0
        %3893 = vmatprep.subr.bf16.mxu0 0
        %3894 = vmatpush1.bf16.msra.mxu0 0
        %3895 = vmatprep.subr.bf16.mxu0 0
        %3896 = vmatpush1.bf16.msra.mxu0 0
        %3897 = vmatprep.subr.bf16.mxu0 0
        %3898 = vmatpush1.bf16.msra.mxu0 0
        %3899 = vmatprep.subr.bf16.mxu0 0
        %3900 = vmatpush1.bf16.msra.mxu0 0
        %3901 = vmatprep.subr.bf16.mxu0 0
        %3902 = vmatpush1.bf16.msra.mxu0 0
        %3903 = vmatprep.subr.bf16.mxu0 0
        %3904 = vmatpush1.bf16.msra.mxu0 0
        %3905 = vmatprep.subr.bf16.mxu0 0
        %3906 = vmatpush1.bf16.msra.mxu0 0
        %3907 = vmatprep.mubr.bf16.mxu0 0
        %3908 = vmatmul.mubr.bf16.gmra.mrb[0].mxu0 %v3870
        %v3909 = vpop.f32.mrb[0].mxu0
        %v3910 = vadd.f32 0.0, %v3909
        %v3911 = vpop.f32.mrb[0].mxu0
        %v3912 = vpop.f32.mrb[0].mxu0
        %v3913 = vpop.f32.mrb[0].mxu0
        %3914 = vdwg.mxu0
        %3915 = vrot.lane.b32.xlu0 %v3579, 104
        %v3916 = vpop.permute.xlu0 %3915
        %3917 = vrot.lane.b32.xlu0 %v3579, 72
        %v3918 = vpop.permute.xlu0 %3917
        %v3920 = vsel %vm745, %v3916, 0
        %v3923 = vsel %vm745, %v3918, 0
        %3925 = vmatprep.subr.bf16.mxu0 0
        %3926 = vmatpush1.bf16.xpose.msra.mxu0 %v3923
        %3927 = vmatprep.subr.bf16.mxu0 0
        %3928 = vmatpush1.bf16.xpose.msra.mxu0 0
        %3929 = vmatprep.subr.bf16.mxu0 0
        %3930 = vmatpush1.bf16.xpose.msra.mxu0 0
        %3931 = vmatprep.subr.bf16.mxu0 0
        %3932 = vmatpush1.bf16.xpose.msra.mxu0 0
        %3933 = vmatprep.subr.bf16.mxu0 0
        %3934 = vmatpush1.bf16.xpose.msra.mxu0 0
        %3935 = vmatprep.subr.bf16.mxu0 0
        %3936 = vmatpush1.bf16.xpose.msra.mxu0 0
        %3937 = vmatprep.subr.bf16.mxu0 0
        %3938 = vmatpush1.bf16.xpose.msra.mxu0 0
        %3939 = vmatprep.subr.bf16.mxu0 0
        %3940 = vmatpush1.bf16.xpose.msra.mxu0 0
        %3941 = vmatprep.subr.bf16.mxu0 0
        %3942 = vmatpush1.bf16.xpose.msra.mxu0 0
        %3943 = vmatprep.subr.bf16.mxu0 0
        %3944 = vmatpush1.bf16.xpose.msra.mxu0 0
        %3945 = vmatprep.subr.bf16.mxu0 0
        %3946 = vmatpush1.bf16.xpose.msra.mxu0 0
        %3947 = vmatprep.subr.bf16.mxu0 0
        %3948 = vmatpush1.bf16.xpose.msra.mxu0 0
        %3949 = vmatprep.subr.bf16.mxu0 0
        %3950 = vmatpush1.bf16.xpose.msra.mxu0 0
        %3951 = vmatprep.subr.bf16.mxu0 0
        %3952 = vmatpush1.bf16.xpose.msra.mxu0 0
        %3953 = vmatprep.subr.bf16.mxu0 0
        %3954 = vmatpush1.bf16.xpose.msra.mxu0 0
        %3955 = vmatprep.subr.bf16.mxu0 0
        %3956 = vmatpush1.bf16.xpose.msra.mxu0 0
        %3957 = vmatprep.mubr.bf16.mxu0 0
        %3958 = vmatmul.mubr.bf16.gmra.mrb[0].mxu0 %v3920
        %v3959 = vpop.f32.mrb[0].mxu0
        %v3960 = vadd.f32 0.0, %v3959
        %v3961 = vpop.f32.mrb[0].mxu0
        %v3962 = vpop.f32.mrb[0].mxu0
        %v3963 = vpop.f32.mrb[0].mxu0
        %3964 = vdwg.mxu0
        %v3965 = vmul.f32 %v3960, 0.35355338
        %v3966 = vsel %vm3630, %v3965, -inf
        %3967 = vmax.xlane.f32.xlu0 %v3966
        %v3968 = vpop.xlane.xlu0 %3967
        %v3969 = vsub.f32 %v3965, %v3968
        %v3970 = vmul.f32 %v3969, 1.442695
        %v3971 = vpow.pop %v3970
        %v3972 = vsel %vm3630, %v3971, 0.0
        %3973 = vadd.xlane.f32.xlu0 %v3972
        %v3974 = vpop.xlane.xlu0 %3973
        %v3975 = vrcp.pop %v3974
        %v3976 = vmul.f32 %v3971, %v3975
        %v3977 = vpack.c.bf16 %v3976, %v3976
        %3978 = vrot.lane.b32.xlu0 %v3579, 40
        %v3979 = vpop.permute.xlu0 %3978
        %v3981 = vsel %vm3645, %v3977, 0
        %v3984 = vsel %vm3649, %v3979, 0
        %3986 = vmatprep.subr.bf16.mxu0 0
        %3987 = vmatpush1.bf16.msra.mxu0 %v3984
        %3988 = vmatprep.subr.bf16.mxu0 0
        %3989 = vmatpush1.bf16.msra.mxu0 0
        %3990 = vmatprep.subr.bf16.mxu0 0
        %3991 = vmatpush1.bf16.msra.mxu0 0
        %3992 = vmatprep.subr.bf16.mxu0 0
        %3993 = vmatpush1.bf16.msra.mxu0 0
        %3994 = vmatprep.subr.bf16.mxu0 0
        %3995 = vmatpush1.bf16.msra.mxu0 0
        %3996 = vmatprep.subr.bf16.mxu0 0
        %3997 = vmatpush1.bf16.msra.mxu0 0
        %3998 = vmatprep.subr.bf16.mxu0 0
        %3999 = vmatpush1.bf16.msra.mxu0 0
        %4000 = vmatprep.subr.bf16.mxu0 0
        %4001 = vmatpush1.bf16.msra.mxu0 0
        %4002 = vmatprep.subr.bf16.mxu0 0
        %4003 = vmatpush1.bf16.msra.mxu0 0
        %4004 = vmatprep.subr.bf16.mxu0 0
        %4005 = vmatpush1.bf16.msra.mxu0 0
        %4006 = vmatprep.subr.bf16.mxu0 0
        %4007 = vmatpush1.bf16.msra.mxu0 0
        %4008 = vmatprep.subr.bf16.mxu0 0
        %4009 = vmatpush1.bf16.msra.mxu0 0
        %4010 = vmatprep.subr.bf16.mxu0 0
        %4011 = vmatpush1.bf16.msra.mxu0 0
        %4012 = vmatprep.subr.bf16.mxu0 0
        %4013 = vmatpush1.bf16.msra.mxu0 0
        %4014 = vmatprep.subr.bf16.mxu0 0
        %4015 = vmatpush1.bf16.msra.mxu0 0
        %4016 = vmatprep.subr.bf16.mxu0 0
        %4017 = vmatpush1.bf16.msra.mxu0 0
        %4018 = vmatprep.mubr.bf16.mxu0 0
        %4019 = vmatmul.mubr.bf16.gmra.mrb[0].mxu0 %v3981
        %v4020 = vpop.f32.mrb[0].mxu0
        %v4021 = vadd.f32 0.0, %v4020
        %v4022 = vpop.f32.mrb[0].mxu0
        %v4023 = vpop.f32.mrb[0].mxu0
        %v4024 = vpop.f32.mrb[0].mxu0
        %4025 = vdwg.mxu0
        %4027 = vrot.lane.b32.xlu0 %v3799, 8
        %v4028 = vpop.permute.xlu0 %4027
        %4031 = vrot.lane.b32.xlu0 %v3910, 16
        %v4032 = vpop.permute.xlu0 %4031
        %4035 = vrot.lane.b32.xlu0 %v4021, 24
        %v4036 = vpop.permute.xlu0 %4035
        %v4038 = vsel %vm745, %v3688, %v4028
        %v4039 = vsel %vm403, %v4038, %v4032
        %v4040 = vsel %vm1194, %v4039, %v4036
        %v4041 = vpack.c.bf16 %v4040, %v4040
        %v4042 = vlaneseq
        %v4043 = vshrl.u32 %v4042, 7
        %v4044 = vsub.s32 0, %v4043
        %v4045 = vrot.slane %v3578, %v4044
        %v4050 = vunpack.c.l.b16 %v3574
        %v4051 = vunpack.c.l.b16 %v3575
        %v4052 = vunpack.c.l.b16 %v3576
        %v4053 = vunpack.c.l.b16 %v3577
        %v4054 = vpack.c.b16 %v4051, %v4050
        %v4055 = vpack.c.b16 %v4053, %v4052
        %v4059 = vsel %vm279, %v4041, 0
        %4061 = vmatprep.subr.bf16.mxu0 0
        %4062 = vmatpush1.bf16.msra.mxu0 %v4054
        %4063 = vmatprep.subr.bf16.mxu0 0
        %4064 = vmatpush1.bf16.msra.mxu0 %v4055
        %4065 = vmatprep.subr.bf16.mxu0 0
        %4066 = vmatpush1.bf16.msra.mxu0 0
        %4067 = vmatprep.subr.bf16.mxu0 0
        %4068 = vmatpush1.bf16.msra.mxu0 0
        %4069 = vmatprep.subr.bf16.mxu0 0
        %4070 = vmatpush1.bf16.msra.mxu0 0
        %4071 = vmatprep.subr.bf16.mxu0 0
        %4072 = vmatpush1.bf16.msra.mxu0 0
        %4073 = vmatprep.subr.bf16.mxu0 0
        %4074 = vmatpush1.bf16.msra.mxu0 0
        %4075 = vmatprep.subr.bf16.mxu0 0
        %4076 = vmatpush1.bf16.msra.mxu0 0
        %4077 = vmatprep.subr.bf16.mxu0 0
        %4078 = vmatpush1.bf16.msra.mxu0 0
        %4079 = vmatprep.subr.bf16.mxu0 0
        %4080 = vmatpush1.bf16.msra.mxu0 0
        %4081 = vmatprep.subr.bf16.mxu0 0
        %4082 = vmatpush1.bf16.msra.mxu0 0
        %4083 = vmatprep.subr.bf16.mxu0 0
        %4084 = vmatpush1.bf16.msra.mxu0 0
        %4085 = vmatprep.subr.bf16.mxu0 0
        %4086 = vmatpush1.bf16.msra.mxu0 0
        %4087 = vmatprep.subr.bf16.mxu0 0
        %4088 = vmatpush1.bf16.msra.mxu0 0
        %4089 = vmatprep.subr.bf16.mxu0 0
        %4090 = vmatpush1.bf16.msra.mxu0 0
        %4091 = vmatprep.subr.bf16.mxu0 0
        %4092 = vmatpush1.bf16.msra.mxu0 0
        %4093 = vmatprep.mubr.bf16.mxu0 0
        %4094 = vmatmul.mubr.bf16.gmra.mrb[0].mxu0 %v4059
        %v4095 = vpop.f32.mrb[0].mxu0
        %v4096 = vadd.f32 %v4045, %v4095
        %v4097 = vpop.f32.mrb[0].mxu0
        %v4098 = vpop.f32.mrb[0].mxu0
        %v4099 = vpop.f32.mrb[0].mxu0
        %4100 = vdwg.mxu0
        %v4101 = vld [vmem:[#allocation4 + $0x178] sm:$0xf]
        %4103 = vset.pattern.permute.xlu0 0
        %4104 = vperm.xlu0 %4103, %v4101
        %v4105 = vpop.permute.xlu0 %4104
        %v4107 = vmul.f32 %v4096, %v4105
        %v4108 = vld [vmem:[#allocation4 + $0x180] sm:$0xf]
        %4110 = vset.pattern.permute.xlu0 0
        %4111 = vperm.xlu0 %4110, %v4108
        %v4112 = vpop.permute.xlu0 %4111
        %v4114 = vadd.f32 %v4107, %v4112
        %v4115 = vpack.c.bf16 %v4114, %v4114
        %v4116 = vld [vmem:[#allocation2 + $0x1a0] sm:$0xf]
        %v4117 = vld [vmem:[#allocation2 + $0x1a4] sm:$0xf]
        %v4118 = vld [vmem:[#allocation2 + $0x1a8] sm:$0xf]
        %v4119 = vld [vmem:[#allocation2 + $0x1ac] sm:$0xf]
        %v4120 = vld [vmem:[#allocation4 + $0x148] sm:$0x1]
        %v4121 = vlaneseq
        %v4122 = vshrl.u32 %v4121, 7
        %v4123 = vsub.s32 0, %v4122
        %v4124 = vrot.slane %v4120, %v4123
        %v4129 = vunpack.c.l.b16 %v4116
        %v4130 = vunpack.c.l.b16 %v4117
        %v4131 = vunpack.c.l.b16 %v4118
        %v4132 = vunpack.c.l.b16 %v4119
        %v4133 = vpack.c.b16 %v4130, %v4129
        %v4134 = vpack.c.b16 %v4132, %v4131
        %v4138 = vsel %vm279, %v4115, 0
        %4140 = vmatprep.subr.bf16.mxu0 0
        %4141 = vmatpush1.bf16.msra.mxu0 %v4133
        %4142 = vmatprep.subr.bf16.mxu0 0
        %4143 = vmatpush1.bf16.msra.mxu0 %v4134
        %4144 = vmatprep.subr.bf16.mxu0 0
        %4145 = vmatpush1.bf16.msra.mxu0 0
        %4146 = vmatprep.subr.bf16.mxu0 0
        %4147 = vmatpush1.bf16.msra.mxu0 0
        %4148 = vmatprep.subr.bf16.mxu0 0
        %4149 = vmatpush1.bf16.msra.mxu0 0
        %4150 = vmatprep.subr.bf16.mxu0 0
        %4151 = vmatpush1.bf16.msra.mxu0 0
        %4152 = vmatprep.subr.bf16.mxu0 0
        %4153 = vmatpush1.bf16.msra.mxu0 0
        %4154 = vmatprep.subr.bf16.mxu0 0
        %4155 = vmatpush1.bf16.msra.mxu0 0
        %4156 = vmatprep.subr.bf16.mxu0 0
        %4157 = vmatpush1.bf16.msra.mxu0 0
        %4158 = vmatprep.subr.bf16.mxu0 0
        %4159 = vmatpush1.bf16.msra.mxu0 0
        %4160 = vmatprep.subr.bf16.mxu0 0
        %4161 = vmatpush1.bf16.msra.mxu0 0
        %4162 = vmatprep.subr.bf16.mxu0 0
        %4163 = vmatpush1.bf16.msra.mxu0 0
        %4164 = vmatprep.subr.bf16.mxu0 0
        %4165 = vmatpush1.bf16.msra.mxu0 0
        %4166 = vmatprep.subr.bf16.mxu0 0
        %4167 = vmatpush1.bf16.msra.mxu0 0
        %4168 = vmatprep.subr.bf16.mxu0 0
        %4169 = vmatpush1.bf16.msra.mxu0 0
        %4170 = vmatprep.subr.bf16.mxu0 0
        %4171 = vmatpush1.bf16.msra.mxu0 0
        %4172 = vmatprep.mubr.bf16.mxu0 0
        %4173 = vmatmul.mubr.bf16.gmra.mrb[0].mxu0 %v4138
        %v4174 = vpop.f32.mrb[0].mxu0
        %v4175 = vadd.f32 %v4124, %v4174
        %v4176 = vpop.f32.mrb[0].mxu0
        %v4177 = vpop.f32.mrb[0].mxu0
        %v4178 = vpop.f32.mrb[0].mxu0
        %4179 = vdwg.mxu0
        %v4180 = vmul.f32 %v4175, 0.5
        %v4181 = vmul.f32 %v4175, 0.044715
        %v4182 = vmul.f32 %v4181, %v4175
        %v4183 = vmul.f32 %v4182, %v4175
        %v4184 = vadd.f32 %v4175, %v4183
        %v4185 = vmul.f32 %v4184, 0.7978846
        %v4186 = vtanh.pop %v4185
        %v4187 = vadd.f32 %v4186, 1.0
        %v4188 = vmul.f32 %v4180, %v4187
        %v4189 = vpack.c.bf16 %v4188, %v4188
        %v4190 = vld [vmem:[#allocation2 + $0x1b0] sm:$0xf]
        %v4191 = vld [vmem:[#allocation2 + $0x1b4] sm:$0xf]
        %v4192 = vld [vmem:[#allocation2 + $0x1b8] sm:$0xf]
        %v4193 = vld [vmem:[#allocation2 + $0x1bc] sm:$0xf]
        %v4194 = vld [vmem:[#allocation2 + $0x1c0] sm:$0xf]
        %v4195 = vld [vmem:[#allocation2 + $0x1c4] sm:$0xf]
        %v4196 = vld [vmem:[#allocation2 + $0x1c8] sm:$0xf]
        %v4197 = vld [vmem:[#allocation2 + $0x1cc] sm:$0xf]
        %v4198 = vld [vmem:[#allocation4 + $0x150] sm:$0x1]
        %v4199 = vlaneseq
        %v4200 = vshrl.u32 %v4199, 7
        %v4201 = vsub.s32 0, %v4200
        %v4202 = vrot.slane %v4198, %v4201
        %v4211 = vunpack.c.l.b16 %v4190
        %v4212 = vunpack.c.l.b16 %v4191
        %v4213 = vunpack.c.l.b16 %v4192
        %v4214 = vunpack.c.l.b16 %v4193
        %v4215 = vunpack.c.l.b16 %v4194
        %v4216 = vunpack.c.l.b16 %v4195
        %v4217 = vunpack.c.l.b16 %v4196
        %v4218 = vunpack.c.l.b16 %v4197
        %v4219 = vpack.c.b16 %v4212, %v4211
        %v4220 = vpack.c.b16 %v4214, %v4213
        %v4221 = vpack.c.b16 %v4216, %v4215
        %v4222 = vpack.c.b16 %v4218, %v4217
        %v4228 = vsel %vm564, %v4189, 0
        %4230 = vmatprep.subr.bf16.mxu0 0
        %4231 = vmatpush1.bf16.msra.mxu0 %v4219
        %4232 = vmatprep.subr.bf16.mxu0 0
        %4233 = vmatpush1.bf16.msra.mxu0 %v4220
        %4234 = vmatprep.subr.bf16.mxu0 0
        %4235 = vmatpush1.bf16.msra.mxu0 %v4221
        %4236 = vmatprep.subr.bf16.mxu0 0
        %4237 = vmatpush1.bf16.msra.mxu0 %v4222
        %4238 = vmatprep.subr.bf16.mxu0 0
        %4239 = vmatpush1.bf16.msra.mxu0 0
        %4240 = vmatprep.subr.bf16.mxu0 0
        %4241 = vmatpush1.bf16.msra.mxu0 0
        %4242 = vmatprep.subr.bf16.mxu0 0
        %4243 = vmatpush1.bf16.msra.mxu0 0
        %4244 = vmatprep.subr.bf16.mxu0 0
        %4245 = vmatpush1.bf16.msra.mxu0 0
        %4246 = vmatprep.subr.bf16.mxu0 0
        %4247 = vmatpush1.bf16.msra.mxu0 0
        %4248 = vmatprep.subr.bf16.mxu0 0
        %4249 = vmatpush1.bf16.msra.mxu0 0
        %4250 = vmatprep.subr.bf16.mxu0 0
        %4251 = vmatpush1.bf16.msra.mxu0 0
        %4252 = vmatprep.subr.bf16.mxu0 0
        %4253 = vmatpush1.bf16.msra.mxu0 0
        %4254 = vmatprep.subr.bf16.mxu0 0
        %4255 = vmatpush1.bf16.msra.mxu0 0
        %4256 = vmatprep.subr.bf16.mxu0 0
        %4257 = vmatpush1.bf16.msra.mxu0 0
        %4258 = vmatprep.subr.bf16.mxu0 0
        %4259 = vmatpush1.bf16.msra.mxu0 0
        %4260 = vmatprep.subr.bf16.mxu0 0
        %4261 = vmatpush1.bf16.msra.mxu0 0
        %4262 = vmatprep.mubr.bf16.mxu0 0
        %4263 = vmatmul.mubr.bf16.gmra.mrb[0].mxu0 %v4228
        %v4264 = vpop.f32.mrb[0].mxu0
        %v4265 = vadd.f32 %v4202, %v4264
        %v4266 = vpop.f32.mrb[0].mxu0
        %v4267 = vpop.f32.mrb[0].mxu0
        %v4268 = vpop.f32.mrb[0].mxu0
        %4269 = vdwg.mxu0
        %v4270 = vadd.f32 %v4265, %v4114
        %v4271 = vld [vmem:[#allocation4 + $0x188] sm:$0xf]
        %4273 = vset.pattern.permute.xlu0 0
        %4274 = vperm.xlu0 %4273, %v4271
        %v4275 = vpop.permute.xlu0 %4274
        %v4277 = vmul.f32 %v4270, %v4275
        %v4278 = vld [vmem:[#allocation4 + $0x190] sm:$0xf]
        %4280 = vset.pattern.permute.xlu0 0
        %4281 = vperm.xlu0 %4280, %v4278
        %v4282 = vpop.permute.xlu0 %4281
        %v4284 = vadd.f32 %v4277, %v4282
        %v4285 = vpack.c.bf16 %v4284, %v4284
        %v4287 = vsel %vm279, %v4285, 0
        %4289 = vmatprep.subr.bf16.mxu0 0
        %4290 = vmatpush1.bf16.xpose.msra.mxu0 %v4287
        %4291 = vmatprep.subr.bf16.mxu0 0
        %4292 = vmatpush1.bf16.xpose.msra.mxu0 0
        %4293 = vmatprep.subr.bf16.mxu0 0
        %4294 = vmatpush1.bf16.xpose.msra.mxu0 0
        %4295 = vmatprep.subr.bf16.mxu0 0
        %4296 = vmatpush1.bf16.xpose.msra.mxu0 0
        %4297 = vmatprep.subr.bf16.mxu0 0
        %4298 = vmatpush1.bf16.xpose.msra.mxu0 0
        %4299 = vmatprep.subr.bf16.mxu0 0
        %4300 = vmatpush1.bf16.xpose.msra.mxu0 0
        %4301 = vmatprep.subr.bf16.mxu0 0
        %4302 = vmatpush1.bf16.xpose.msra.mxu0 0
        %4303 = vmatprep.subr.bf16.mxu0 0
        %4304 = vmatpush1.bf16.xpose.msra.mxu0 0
        %4305 = vmatprep.subr.bf16.mxu0 0
        %4306 = vmatpush1.bf16.xpose.msra.mxu0 0
        %4307 = vmatprep.subr.bf16.mxu0 0
        %4308 = vmatpush1.bf16.xpose.msra.mxu0 0
        %4309 = vmatprep.subr.bf16.mxu0 0
        %4310 = vmatpush1.bf16.xpose.msra.mxu0 0
        %4311 = vmatprep.subr.bf16.mxu0 0
        %4312 = vmatpush1.bf16.xpose.msra.mxu0 0
        %4313 = vmatprep.subr.bf16.mxu0 0
        %4314 = vmatpush1.bf16.xpose.msra.mxu0 0
        %4315 = vmatprep.subr.bf16.mxu0 0
        %4316 = vmatpush1.bf16.xpose.msra.mxu0 0
        %4317 = vmatprep.subr.bf16.mxu0 0
        %4318 = vmatpush1.bf16.xpose.msra.mxu0 0
        %4319 = vmatprep.subr.bf16.mxu0 0
        %4320 = vmatpush1.bf16.xpose.msra.mxu0 0
        %4321 = vmatprep.mubr.bf16.mxu0 0
        %4322 = vmatmul.mubr.bf16.gmra.mrb[0].mxu0 %v2226
        %v4323 = vpop.f32.mrb[0].mxu0
        %v4324 = vadd.f32 0.0, %v4323
        %v4325 = vpop.f32.mrb[0].mxu0
        %v4326 = vpop.f32.mrb[0].mxu0
        %v4327 = vadd.f32 0.0, %v4326
        %v4328 = vpop.f32.mrb[0].mxu0
        %4329 = vmatprep.mubr.bf16.mxu0 0
        %4330 = vmatmul.mubr.bf16.gmra.mrb[0].mxu0 %v2229
        %v4331 = vpop.f32.mrb[0].mxu0
        %v4332 = vadd.f32 0.0, %v4331
        %v4333 = vpop.f32.mrb[0].mxu0
        %v4334 = vpop.f32.mrb[0].mxu0
        %v4335 = vadd.f32 0.0, %v4334
        %v4336 = vpop.f32.mrb[0].mxu0
        %4337 = vdwg.mxu0
        %v4338 = vpack.c.bf16 %v4327, %v4324
        %v4339 = vpack.c.bf16 %v4335, %v4332
        %v4340 = vld [vmem:[#allocation2 + $0x1d0] sm:$0xf]
        %v4341 = vld [vmem:[#allocation2 + $0x1d4] sm:$0xf]
        %v4342 = vld [vmem:[#allocation2 + $0x1d8] sm:$0xf]
        %v4343 = vld [vmem:[#allocation2 + $0x1dc] sm:$0xf]
        %v4344 = vld [vmem:[#allocation4 + $0x198] sm:$0x1]
        %v4345 = vlaneseq
        %v4346 = vshrl.u32 %v4345, 7
        %v4347 = vsub.s32 0, %v4346
        %v4348 = vrot.slane %v4344, %v4347
        %v4349 = vadd.f32 %v4348, %v254
        %v4351 = vsel %vm3645, %v4338, 0
        %v4354 = vsel %vm3649, %v4340, 0
        %4356 = vmatprep.subr.bf16.mxu0 0
        %4357 = vmatpush1.bf16.msra.mxu0 %v4354
        %4358 = vmatprep.subr.bf16.mxu0 0
        %4359 = vmatpush1.bf16.msra.mxu0 0
        %4360 = vmatprep.subr.bf16.mxu0 0
        %4361 = vmatpush1.bf16.msra.mxu0 0
        %4362 = vmatprep.subr.bf16.mxu0 0
        %4363 = vmatpush1.bf16.msra.mxu0 0
        %4364 = vmatprep.subr.bf16.mxu0 0
        %4365 = vmatpush1.bf16.msra.mxu0 0
        %4366 = vmatprep.subr.bf16.mxu0 0
        %4367 = vmatpush1.bf16.msra.mxu0 0
        %4368 = vmatprep.subr.bf16.mxu0 0
        %4369 = vmatpush1.bf16.msra.mxu0 0
        %4370 = vmatprep.subr.bf16.mxu0 0
        %4371 = vmatpush1.bf16.msra.mxu0 0
        %4372 = vmatprep.subr.bf16.mxu0 0
        %4373 = vmatpush1.bf16.msra.mxu0 0
        %4374 = vmatprep.subr.bf16.mxu0 0
        %4375 = vmatpush1.bf16.msra.mxu0 0
        %4376 = vmatprep.subr.bf16.mxu0 0
        %4377 = vmatpush1.bf16.msra.mxu0 0
        %4378 = vmatprep.subr.bf16.mxu0 0
        %4379 = vmatpush1.bf16.msra.mxu0 0
        %4380 = vmatprep.subr.bf16.mxu0 0
        %4381 = vmatpush1.bf16.msra.mxu0 0
        %4382 = vmatprep.subr.bf16.mxu0 0
        %4383 = vmatpush1.bf16.msra.mxu0 0
        %4384 = vmatprep.subr.bf16.mxu0 0
        %4385 = vmatpush1.bf16.msra.mxu0 0
        %4386 = vmatprep.subr.bf16.mxu0 0
        %4387 = vmatpush1.bf16.msra.mxu0 0
        %4388 = vmatprep.mubr.bf16.mxu0 0
        %4389 = vmatmul.mubr.bf16.gmra.mrb[0].mxu0 %v4351
        %v4390 = vpop.f32.mrb[0].mxu0
        %v4391 = vadd.f32 0.0, %v4390
        %v4392 = vpop.f32.mrb[0].mxu0
        %v4393 = vpop.f32.mrb[0].mxu0
        %v4394 = vpop.f32.mrb[0].mxu0
        %4395 = vdwg.mxu0
        %v4396 = vadd.f32 %v4349, %v4391
        %v4398 = vrot.slane %v4338, 2
        %v4400 = vunpack.c.l.b16 %v4340
        %v4401 = vpack.c.b16 %v4400, %v4400
        %v4402 = vrot.slane %v4401, 2
        %v4404 = vsel %vm3645, %v4398, 0
        %v4407 = vsel %vm3649, %v4402, 0
        %4409 = vmatprep.subr.bf16.mxu0 0
        %4410 = vmatpush1.bf16.msra.mxu0 %v4407
        %4411 = vmatprep.subr.bf16.mxu0 0
        %4412 = vmatpush1.bf16.msra.mxu0 0
        %4413 = vmatprep.subr.bf16.mxu0 0
        %4414 = vmatpush1.bf16.msra.mxu0 0
        %4415 = vmatprep.subr.bf16.mxu0 0
        %4416 = vmatpush1.bf16.msra.mxu0 0
        %4417 = vmatprep.subr.bf16.mxu0 0
        %4418 = vmatpush1.bf16.msra.mxu0 0
        %4419 = vmatprep.subr.bf16.mxu0 0
        %4420 = vmatpush1.bf16.msra.mxu0 0
        %4421 = vmatprep.subr.bf16.mxu0 0
        %4422 = vmatpush1.bf16.msra.mxu0 0
        %4423 = vmatprep.subr.bf16.mxu0 0
        %4424 = vmatpush1.bf16.msra.mxu0 0
        %4425 = vmatprep.subr.bf16.mxu0 0
        %4426 = vmatpush1.bf16.msra.mxu0 0
        %4427 = vmatprep.subr.bf16.mxu0 0
        %4428 = vmatpush1.bf16.msra.mxu0 0
        %4429 = vmatprep.subr.bf16.mxu0 0
        %4430 = vmatpush1.bf16.msra.mxu0 0
        %4431 = vmatprep.subr.bf16.mxu0 0
        %4432 = vmatpush1.bf16.msra.mxu0 0
        %4433 = vmatprep.subr.bf16.mxu0 0
        %4434 = vmatpush1.bf16.msra.mxu0 0
        %4435 = vmatprep.subr.bf16.mxu0 0
        %4436 = vmatpush1.bf16.msra.mxu0 0
        %4437 = vmatprep.subr.bf16.mxu0 0
        %4438 = vmatpush1.bf16.msra.mxu0 0
        %4439 = vmatprep.subr.bf16.mxu0 0
        %4440 = vmatpush1.bf16.msra.mxu0 0
        %4441 = vmatprep.mubr.bf16.mxu0 0
        %4442 = vmatmul.mubr.bf16.gmra.mrb[0].mxu0 %v4404
        %v4443 = vpop.f32.mrb[0].mxu0
        %v4444 = vadd.f32 0.0, %v4443
        %v4445 = vpop.f32.mrb[0].mxu0
        %v4446 = vpop.f32.mrb[0].mxu0
        %v4447 = vpop.f32.mrb[0].mxu0
        %4448 = vdwg.mxu0
        %v4449 = vadd.f32 %v4396, %v4444
        %v4450 = vrot.slane %v4338, 4
        %v4452 = vsel %vm3645, %v4450, 0
        %v4455 = vsel %vm3649, %v4341, 0
        %4457 = vmatprep.subr.bf16.mxu0 0
        %4458 = vmatpush1.bf16.msra.mxu0 %v4455
        %4459 = vmatprep.subr.bf16.mxu0 0
        %4460 = vmatpush1.bf16.msra.mxu0 0
        %4461 = vmatprep.subr.bf16.mxu0 0
        %4462 = vmatpush1.bf16.msra.mxu0 0
        %4463 = vmatprep.subr.bf16.mxu0 0
        %4464 = vmatpush1.bf16.msra.mxu0 0
        %4465 = vmatprep.subr.bf16.mxu0 0
        %4466 = vmatpush1.bf16.msra.mxu0 0
        %4467 = vmatprep.subr.bf16.mxu0 0
        %4468 = vmatpush1.bf16.msra.mxu0 0
        %4469 = vmatprep.subr.bf16.mxu0 0
        %4470 = vmatpush1.bf16.msra.mxu0 0
        %4471 = vmatprep.subr.bf16.mxu0 0
        %4472 = vmatpush1.bf16.msra.mxu0 0
        %4473 = vmatprep.subr.bf16.mxu0 0
        %4474 = vmatpush1.bf16.msra.mxu0 0
        %4475 = vmatprep.subr.bf16.mxu0 0
        %4476 = vmatpush1.bf16.msra.mxu0 0
        %4477 = vmatprep.subr.bf16.mxu0 0
        %4478 = vmatpush1.bf16.msra.mxu0 0
        %4479 = vmatprep.subr.bf16.mxu0 0
        %4480 = vmatpush1.bf16.msra.mxu0 0
        %4481 = vmatprep.subr.bf16.mxu0 0
        %4482 = vmatpush1.bf16.msra.mxu0 0
        %4483 = vmatprep.subr.bf16.mxu0 0
        %4484 = vmatpush1.bf16.msra.mxu0 0
        %4485 = vmatprep.subr.bf16.mxu0 0
        %4486 = vmatpush1.bf16.msra.mxu0 0
        %4487 = vmatprep.subr.bf16.mxu0 0
        %4488 = vmatpush1.bf16.msra.mxu0 0
        %4489 = vmatprep.mubr.bf16.mxu0 0
        %4490 = vmatmul.mubr.bf16.gmra.mrb[0].mxu0 %v4452
        %v4491 = vpop.f32.mrb[0].mxu0
        %v4492 = vadd.f32 0.0, %v4491
        %v4493 = vpop.f32.mrb[0].mxu0
        %v4494 = vpop.f32.mrb[0].mxu0
        %v4495 = vpop.f32.mrb[0].mxu0
        %4496 = vdwg.mxu0
        %v4497 = vadd.f32 %v4449, %v4492
        %v4498 = vrot.slane %v4338, 6
        %v4500 = vunpack.c.l.b16 %v4341
        %v4501 = vpack.c.b16 %v4500, %v4500
        %v4502 = vrot.slane %v4501, 2
        %v4504 = vsel %vm3645, %v4498, 0
        %v4507 = vsel %vm3649, %v4502, 0
        %4509 = vmatprep.subr.bf16.mxu0 0
        %4510 = vmatpush1.bf16.msra.mxu0 %v4507
        %4511 = vmatprep.subr.bf16.mxu0 0
        %4512 = vmatpush1.bf16.msra.mxu0 0
        %4513 = vmatprep.subr.bf16.mxu0 0
        %4514 = vmatpush1.bf16.msra.mxu0 0
        %4515 = vmatprep.subr.bf16.mxu0 0
        %4516 = vmatpush1.bf16.msra.mxu0 0
        %4517 = vmatprep.subr.bf16.mxu0 0
        %4518 = vmatpush1.bf16.msra.mxu0 0
        %4519 = vmatprep.subr.bf16.mxu0 0
        %4520 = vmatpush1.bf16.msra.mxu0 0
        %4521 = vmatprep.subr.bf16.mxu0 0
        %4522 = vmatpush1.bf16.msra.mxu0 0
        %4523 = vmatprep.subr.bf16.mxu0 0
        %4524 = vmatpush1.bf16.msra.mxu0 0
        %4525 = vmatprep.subr.bf16.mxu0 0
        %4526 = vmatpush1.bf16.msra.mxu0 0
        %4527 = vmatprep.subr.bf16.mxu0 0
        %4528 = vmatpush1.bf16.msra.mxu0 0
        %4529 = vmatprep.subr.bf16.mxu0 0
        %4530 = vmatpush1.bf16.msra.mxu0 0
        %4531 = vmatprep.subr.bf16.mxu0 0
        %4532 = vmatpush1.bf16.msra.mxu0 0
        %4533 = vmatprep.subr.bf16.mxu0 0
        %4534 = vmatpush1.bf16.msra.mxu0 0
        %4535 = vmatprep.subr.bf16.mxu0 0
        %4536 = vmatpush1.bf16.msra.mxu0 0
        %4537 = vmatprep.subr.bf16.mxu0 0
        %4538 = vmatpush1.bf16.msra.mxu0 0
        %4539 = vmatprep.subr.bf16.mxu0 0
        %4540 = vmatpush1.bf16.msra.mxu0 0
        %4541 = vmatprep.mubr.bf16.mxu0 0
        %4542 = vmatmul.mubr.bf16.gmra.mrb[0].mxu0 %v4504
        %v4543 = vpop.f32.mrb[0].mxu0
        %v4544 = vadd.f32 0.0, %v4543
        %v4545 = vpop.f32.mrb[0].mxu0
        %v4546 = vpop.f32.mrb[0].mxu0
        %v4547 = vpop.f32.mrb[0].mxu0
        %4548 = vdwg.mxu0
        %v4549 = vadd.f32 %v4497, %v4544
        %v4551 = vsel %vm3645, %v4339, 0
        %v4554 = vsel %vm3649, %v4342, 0
        %4556 = vmatprep.subr.bf16.mxu0 0
        %4557 = vmatpush1.bf16.msra.mxu0 %v4554
        %4558 = vmatprep.subr.bf16.mxu0 0
        %4559 = vmatpush1.bf16.msra.mxu0 0
        %4560 = vmatprep.subr.bf16.mxu0 0
        %4561 = vmatpush1.bf16.msra.mxu0 0
        %4562 = vmatprep.subr.bf16.mxu0 0
        %4563 = vmatpush1.bf16.msra.mxu0 0
        %4564 = vmatprep.subr.bf16.mxu0 0
        %4565 = vmatpush1.bf16.msra.mxu0 0
        %4566 = vmatprep.subr.bf16.mxu0 0
        %4567 = vmatpush1.bf16.msra.mxu0 0
        %4568 = vmatprep.subr.bf16.mxu0 0
        %4569 = vmatpush1.bf16.msra.mxu0 0
        %4570 = vmatprep.subr.bf16.mxu0 0
        %4571 = vmatpush1.bf16.msra.mxu0 0
        %4572 = vmatprep.subr.bf16.mxu0 0
        %4573 = vmatpush1.bf16.msra.mxu0 0
        %4574 = vmatprep.subr.bf16.mxu0 0
        %4575 = vmatpush1.bf16.msra.mxu0 0
        %4576 = vmatprep.subr.bf16.mxu0 0
        %4577 = vmatpush1.bf16.msra.mxu0 0
        %4578 = vmatprep.subr.bf16.mxu0 0
        %4579 = vmatpush1.bf16.msra.mxu0 0
        %4580 = vmatprep.subr.bf16.mxu0 0
        %4581 = vmatpush1.bf16.msra.mxu0 0
        %4582 = vmatprep.subr.bf16.mxu0 0
        %4583 = vmatpush1.bf16.msra.mxu0 0
        %4584 = vmatprep.subr.bf16.mxu0 0
        %4585 = vmatpush1.bf16.msra.mxu0 0
        %4586 = vmatprep.subr.bf16.mxu0 0
        %4587 = vmatpush1.bf16.msra.mxu0 0
        %4588 = vmatprep.mubr.bf16.mxu0 0
        %4589 = vmatmul.mubr.bf16.gmra.mrb[0].mxu0 %v4551
        %v4590 = vpop.f32.mrb[0].mxu0
        %v4591 = vadd.f32 0.0, %v4590
        %v4592 = vpop.f32.mrb[0].mxu0
        %v4593 = vpop.f32.mrb[0].mxu0
        %v4594 = vpop.f32.mrb[0].mxu0
        %4595 = vdwg.mxu0
        %v4596 = vadd.f32 %v4549, %v4591
        %v4598 = vrot.slane %v4339, 2
        %v4600 = vunpack.c.l.b16 %v4342
        %v4601 = vpack.c.b16 %v4600, %v4600
        %v4602 = vrot.slane %v4601, 2
        %v4604 = vsel %vm3645, %v4598, 0
        %v4607 = vsel %vm3649, %v4602, 0
        %4609 = vmatprep.subr.bf16.mxu0 0
        %4610 = vmatpush1.bf16.msra.mxu0 %v4607
        %4611 = vmatprep.subr.bf16.mxu0 0
        %4612 = vmatpush1.bf16.msra.mxu0 0
        %4613 = vmatprep.subr.bf16.mxu0 0
        %4614 = vmatpush1.bf16.msra.mxu0 0
        %4615 = vmatprep.subr.bf16.mxu0 0
        %4616 = vmatpush1.bf16.msra.mxu0 0
        %4617 = vmatprep.subr.bf16.mxu0 0
        %4618 = vmatpush1.bf16.msra.mxu0 0
        %4619 = vmatprep.subr.bf16.mxu0 0
        %4620 = vmatpush1.bf16.msra.mxu0 0
        %4621 = vmatprep.subr.bf16.mxu0 0
        %4622 = vmatpush1.bf16.msra.mxu0 0
        %4623 = vmatprep.subr.bf16.mxu0 0
        %4624 = vmatpush1.bf16.msra.mxu0 0
        %4625 = vmatprep.subr.bf16.mxu0 0
        %4626 = vmatpush1.bf16.msra.mxu0 0
        %4627 = vmatprep.subr.bf16.mxu0 0
        %4628 = vmatpush1.bf16.msra.mxu0 0
        %4629 = vmatprep.subr.bf16.mxu0 0
        %4630 = vmatpush1.bf16.msra.mxu0 0
        %4631 = vmatprep.subr.bf16.mxu0 0
        %4632 = vmatpush1.bf16.msra.mxu0 0
        %4633 = vmatprep.subr.bf16.mxu0 0
        %4634 = vmatpush1.bf16.msra.mxu0 0
        %4635 = vmatprep.subr.bf16.mxu0 0
        %4636 = vmatpush1.bf16.msra.mxu0 0
        %4637 = vmatprep.subr.bf16.mxu0 0
        %4638 = vmatpush1.bf16.msra.mxu0 0
        %4639 = vmatprep.subr.bf16.mxu0 0
        %4640 = vmatpush1.bf16.msra.mxu0 0
        %4641 = vmatprep.mubr.bf16.mxu0 0
        %4642 = vmatmul.mubr.bf16.gmra.mrb[0].mxu0 %v4604
        %v4643 = vpop.f32.mrb[0].mxu0
        %v4644 = vadd.f32 0.0, %v4643
        %v4645 = vpop.f32.mrb[0].mxu0
        %v4646 = vpop.f32.mrb[0].mxu0
        %v4647 = vpop.f32.mrb[0].mxu0
        %4648 = vdwg.mxu0
        %v4649 = vadd.f32 %v4596, %v4644
        %v4650 = vrot.slane %v4339, 4
        %v4652 = vsel %vm3645, %v4650, 0
        %v4655 = vsel %vm3649, %v4343, 0
        %4657 = vmatprep.subr.bf16.mxu0 0
        %4658 = vmatpush1.bf16.msra.mxu0 %v4655
        %4659 = vmatprep.subr.bf16.mxu0 0
        %4660 = vmatpush1.bf16.msra.mxu0 0
        %4661 = vmatprep.subr.bf16.mxu0 0
        %4662 = vmatpush1.bf16.msra.mxu0 0
        %4663 = vmatprep.subr.bf16.mxu0 0
        %4664 = vmatpush1.bf16.msra.mxu0 0
        %4665 = vmatprep.subr.bf16.mxu0 0
        %4666 = vmatpush1.bf16.msra.mxu0 0
        %4667 = vmatprep.subr.bf16.mxu0 0
        %4668 = vmatpush1.bf16.msra.mxu0 0
        %4669 = vmatprep.subr.bf16.mxu0 0
        %4670 = vmatpush1.bf16.msra.mxu0 0
        %4671 = vmatprep.subr.bf16.mxu0 0
        %4672 = vmatpush1.bf16.msra.mxu0 0
        %4673 = vmatprep.subr.bf16.mxu0 0
        %4674 = vmatpush1.bf16.msra.mxu0 0
        %4675 = vmatprep.subr.bf16.mxu0 0
        %4676 = vmatpush1.bf16.msra.mxu0 0
        %4677 = vmatprep.subr.bf16.mxu0 0
        %4678 = vmatpush1.bf16.msra.mxu0 0
        %4679 = vmatprep.subr.bf16.mxu0 0
        %4680 = vmatpush1.bf16.msra.mxu0 0
        %4681 = vmatprep.subr.bf16.mxu0 0
        %4682 = vmatpush1.bf16.msra.mxu0 0
        %4683 = vmatprep.subr.bf16.mxu0 0
        %4684 = vmatpush1.bf16.msra.mxu0 0
        %4685 = vmatprep.subr.bf16.mxu0 0
        %4686 = vmatpush1.bf16.msra.mxu0 0
        %4687 = vmatprep.subr.bf16.mxu0 0
        %4688 = vmatpush1.bf16.msra.mxu0 0
        %4689 = vmatprep.mubr.bf16.mxu0 0
        %4690 = vmatmul.mubr.bf16.gmra.mrb[0].mxu0 %v4652
        %v4691 = vpop.f32.mrb[0].mxu0
        %v4692 = vadd.f32 0.0, %v4691
        %v4693 = vpop.f32.mrb[0].mxu0
        %v4694 = vpop.f32.mrb[0].mxu0
        %v4695 = vpop.f32.mrb[0].mxu0
        %4696 = vdwg.mxu0
        %v4697 = vadd.f32 %v4649, %v4692
        %v4698 = vrot.slane %v4339, 6
        %v4700 = vunpack.c.l.b16 %v4343
        %v4701 = vpack.c.b16 %v4700, %v4700
        %v4702 = vrot.slane %v4701, 2
        %v4704 = vsel %vm3645, %v4698, 0
        %v4707 = vsel %vm3649, %v4702, 0
        %4709 = vmatprep.subr.bf16.mxu0 0
        %4710 = vmatpush1.bf16.msra.mxu0 %v4707
        %4711 = vmatprep.subr.bf16.mxu0 0
        %4712 = vmatpush1.bf16.msra.mxu0 0
        %4713 = vmatprep.subr.bf16.mxu0 0
        %4714 = vmatpush1.bf16.msra.mxu0 0
        %4715 = vmatprep.subr.bf16.mxu0 0
        %4716 = vmatpush1.bf16.msra.mxu0 0
        %4717 = vmatprep.subr.bf16.mxu0 0
        %4718 = vmatpush1.bf16.msra.mxu0 0
        %4719 = vmatprep.subr.bf16.mxu0 0
        %4720 = vmatpush1.bf16.msra.mxu0 0
        %4721 = vmatprep.subr.bf16.mxu0 0
        %4722 = vmatpush1.bf16.msra.mxu0 0
        %4723 = vmatprep.subr.bf16.mxu0 0
        %4724 = vmatpush1.bf16.msra.mxu0 0
        %4725 = vmatprep.subr.bf16.mxu0 0
        %4726 = vmatpush1.bf16.msra.mxu0 0
        %4727 = vmatprep.subr.bf16.mxu0 0
        %4728 = vmatpush1.bf16.msra.mxu0 0
        %4729 = vmatprep.subr.bf16.mxu0 0
        %4730 = vmatpush1.bf16.msra.mxu0 0
        %4731 = vmatprep.subr.bf16.mxu0 0
        %4732 = vmatpush1.bf16.msra.mxu0 0
        %4733 = vmatprep.subr.bf16.mxu0 0
        %4734 = vmatpush1.bf16.msra.mxu0 0
        %4735 = vmatprep.subr.bf16.mxu0 0
        %4736 = vmatpush1.bf16.msra.mxu0 0
        %4737 = vmatprep.subr.bf16.mxu0 0
        %4738 = vmatpush1.bf16.msra.mxu0 0
        %4739 = vmatprep.subr.bf16.mxu0 0
        %4740 = vmatpush1.bf16.msra.mxu0 0
        %4741 = vmatprep.mubr.bf16.mxu0 0
        %4742 = vmatmul.mubr.bf16.gmra.mrb[0].mxu0 %v4704
        %v4743 = vpop.f32.mrb[0].mxu0
        %v4744 = vadd.f32 0.0, %v4743
        %v4745 = vpop.f32.mrb[0].mxu0
        %v4746 = vpop.f32.mrb[0].mxu0
        %v4747 = vpop.f32.mrb[0].mxu0
        %4748 = vdwg.mxu0
        %v4749 = vadd.f32 %v4697, %v4744
        %v4750 = vpack.c.bf16 %v4749, %v4749
        %v4751 = vld [vmem:[#allocation2 + $0x1e0] sm:$0xf]
        %v4752 = vld [vmem:[#allocation2 + $0x1e4] sm:$0xf]
        %v4753 = vld [vmem:[#allocation4 + $0x1a0] sm:$0xff]
        %v4754 = vld [vmem:[#allocation4 + $0x1a8] sm:$0xff]
        %4756 = vset.pattern.permute.xlu0 0
        %4757 = vperm.xlu0 %4756, %v4753
        %v4758 = vpop.permute.xlu0 %4757
        %4761 = vset.pattern.permute.xlu0 0
        %4762 = vperm.xlu0 %4761, %v4754
        %v4763 = vpop.permute.xlu0 %4762
        %v4767 = vunpack.c.l.b16 %v4751
        %v4768 = vunpack.c.l.b16 %v4752
        %v4769 = vpack.c.b16 %v4768, %v4767
        %v4771 = vsel %vm3645, %v4769, 0
        %v4774 = vsel %vm3649, %v4750, 0
        %4776 = vmatprep.subr.bf16.mxu0 0
        %4777 = vmatpush1.bf16.msra.mxu0 %v4774
        %4778 = vmatprep.subr.bf16.mxu0 0
        %4779 = vmatpush1.bf16.msra.mxu0 0
        %4780 = vmatprep.subr.bf16.mxu0 0
        %4781 = vmatpush1.bf16.msra.mxu0 0
        %4782 = vmatprep.subr.bf16.mxu0 0
        %4783 = vmatpush1.bf16.msra.mxu0 0
        %4784 = vmatprep.subr.bf16.mxu0 0
        %4785 = vmatpush1.bf16.msra.mxu0 0
        %4786 = vmatprep.subr.bf16.mxu0 0
        %4787 = vmatpush1.bf16.msra.mxu0 0
        %4788 = vmatprep.subr.bf16.mxu0 0
        %4789 = vmatpush1.bf16.msra.mxu0 0
        %4790 = vmatprep.subr.bf16.mxu0 0
        %4791 = vmatpush1.bf16.msra.mxu0 0
        %4792 = vmatprep.subr.bf16.mxu0 0
        %4793 = vmatpush1.bf16.msra.mxu0 0
        %4794 = vmatprep.subr.bf16.mxu0 0
        %4795 = vmatpush1.bf16.msra.mxu0 0
        %4796 = vmatprep.subr.bf16.mxu0 0
        %4797 = vmatpush1.bf16.msra.mxu0 0
        %4798 = vmatprep.subr.bf16.mxu0 0
        %4799 = vmatpush1.bf16.msra.mxu0 0
        %4800 = vmatprep.subr.bf16.mxu0 0
        %4801 = vmatpush1.bf16.msra.mxu0 0
        %4802 = vmatprep.subr.bf16.mxu0 0
        %4803 = vmatpush1.bf16.msra.mxu0 0
        %4804 = vmatprep.subr.bf16.mxu0 0
        %4805 = vmatpush1.bf16.msra.mxu0 0
        %4806 = vmatprep.subr.bf16.mxu0 0
        %4807 = vmatpush1.bf16.msra.mxu0 0
        %4808 = vmatprep.mubr.bf16.mxu0 0
        %4809 = vmatmul.mubr.bf16.gmra.mrb[0].mxu0 %v4771
        %v4810 = vpop.f32.mrb[0].mxu0
        %v4811 = vadd.f32 %v4758, %v4810
        %v4812 = vpop.f32.mrb[0].mxu0
        %v4813 = vpop.f32.mrb[0].mxu0
        %v4814 = vadd.f32 %v4763, %v4813
        %v4815 = vpop.f32.mrb[0].mxu0
        %4816 = vdwg.mxu0
        %v4817 = vmul.f32 %v4811, 0.5
        %v4818 = vmul.f32 %v4814, 0.5
        %v4819 = vmul.f32 %v4811, 0.044715
        %v4820 = vmul.f32 %v4814, 0.044715
        %v4821 = vmul.f32 %v4819, %v4811
        %v4822 = vmul.f32 %v4820, %v4814
        %v4823 = vmul.f32 %v4821, %v4811
        %v4824 = vmul.f32 %v4822, %v4814
        %v4825 = vadd.f32 %v4811, %v4823
        %v4826 = vadd.f32 %v4814, %v4824
        %v4827 = vmul.f32 %v4825, 0.7978846
        %v4828 = vmul.f32 %v4826, 0.7978846
        %v4829 = vtanh.pop %v4827
        %v4830 = vtanh.pop %v4828
        %v4831 = vadd.f32 %v4829, 1.0
        %v4832 = vadd.f32 %v4830, 1.0
        %v4833 = vmul.f32 %v4817, %v4831
        %v4834 = vmul.f32 %v4818, %v4832
        %v4835 = vld [vmem:[#allocation2 + $0x1e8] sm:$0x1]
        %v4836 = vpack.c.bf16 %v4834, %v4833
        %v4837 = vld [vmem:[#allocation4 + $0x1b0] sm:$0x3]
        %4839 = vset.pattern.permute.xlu0 0
        %4840 = vperm.xlu0 %4839, %v4837
        %v4841 = vpop.permute.xlu0 %4840
        %v4844 = vsel %vm403, %v4835, 0
        %4846 = vmatprep.subr.bf16.mxu0 0
        %4847 = vmatpush1.bf16.msra.mxu0 %v4836
        %4848 = vmatprep.subr.bf16.mxu0 0
        %4849 = vmatpush1.bf16.msra.mxu0 0
        %4850 = vmatprep.subr.bf16.mxu0 0
        %4851 = vmatpush1.bf16.msra.mxu0 0
        %4852 = vmatprep.subr.bf16.mxu0 0
        %4853 = vmatpush1.bf16.msra.mxu0 0
        %4854 = vmatprep.subr.bf16.mxu0 0
        %4855 = vmatpush1.bf16.msra.mxu0 0
        %4856 = vmatprep.subr.bf16.mxu0 0
        %4857 = vmatpush1.bf16.msra.mxu0 0
        %4858 = vmatprep.subr.bf16.mxu0 0
        %4859 = vmatpush1.bf16.msra.mxu0 0
        %4860 = vmatprep.subr.bf16.mxu0 0
        %4861 = vmatpush1.bf16.msra.mxu0 0
        %4862 = vmatprep.subr.bf16.mxu0 0
        %4863 = vmatpush1.bf16.msra.mxu0 0
        %4864 = vmatprep.subr.bf16.mxu0 0
        %4865 = vmatpush1.bf16.msra.mxu0 0
        %4866 = vmatprep.subr.bf16.mxu0 0
        %4867 = vmatpush1.bf16.msra.mxu0 0
        %4868 = vmatprep.subr.bf16.mxu0 0
        %4869 = vmatpush1.bf16.msra.mxu0 0
        %4870 = vmatprep.subr.bf16.mxu0 0
        %4871 = vmatpush1.bf16.msra.mxu0 0
        %4872 = vmatprep.subr.bf16.mxu0 0
        %4873 = vmatpush1.bf16.msra.mxu0 0
        %4874 = vmatprep.subr.bf16.mxu0 0
        %4875 = vmatpush1.bf16.msra.mxu0 0
        %4876 = vmatprep.subr.bf16.mxu0 0
        %4877 = vmatpush1.bf16.msra.mxu0 0
        %4878 = vmatprep.mubr.bf16.mxu0 0
        %4879 = vmatmul.mubr.bf16.gmra.mrb[0].mxu0 %v4844
        %v4880 = vpop.f32.mrb[0].mxu0
        %v4881 = vadd.f32 %v4841, %v4880
        %v4882 = vpop.f32.mrb[0].mxu0
        %v4883 = vpop.f32.mrb[0].mxu0
        %v4884 = vpop.f32.mrb[0].mxu0
        %4885 = vdwg.mxu0
        %v4886 = vpack.c.bf16 %v4881, %v4881
        %v4887 = vld [vmem:[#allocation2 + $0x1f0] sm:$0xf]
        %v4888 = vld [vmem:[#allocation2 + $0x1f4] sm:$0xf]
        %v4889 = vld [vmem:[#allocation2 + $0x1f8] sm:$0xf]
        %v4890 = vld [vmem:[#allocation2 + $0x1fc] sm:$0xf]
        %v4891 = vld [vmem:[#allocation4 + $0x1b8] sm:$0x1]
        %v4892 = vlaneseq
        %v4893 = vshrl.u32 %v4892, 7
        %v4894 = vsub.s32 0, %v4893
        %v4895 = vrot.slane %v4891, %v4894
        %v4900 = vunpack.c.l.b16 %v4887
        %v4901 = vunpack.c.l.b16 %v4888
        %v4902 = vunpack.c.l.b16 %v4889
        %v4903 = vunpack.c.l.b16 %v4890
        %v4904 = vpack.c.b16 %v4901, %v4900
        %v4905 = vpack.c.b16 %v4903, %v4902
        %v4909 = vsel %vm279, %v4886, 0
        %4911 = vmatprep.subr.bf16.mxu0 0
        %4912 = vmatpush1.bf16.msra.mxu0 %v4904
        %4913 = vmatprep.subr.bf16.mxu0 0
        %4914 = vmatpush1.bf16.msra.mxu0 %v4905
        %4915 = vmatprep.subr.bf16.mxu0 0
        %4916 = vmatpush1.bf16.msra.mxu0 0
        %4917 = vmatprep.subr.bf16.mxu0 0
        %4918 = vmatpush1.bf16.msra.mxu0 0
        %4919 = vmatprep.subr.bf16.mxu0 0
        %4920 = vmatpush1.bf16.msra.mxu0 0
        %4921 = vmatprep.subr.bf16.mxu0 0
        %4922 = vmatpush1.bf16.msra.mxu0 0
        %4923 = vmatprep.subr.bf16.mxu0 0
        %4924 = vmatpush1.bf16.msra.mxu0 0
        %4925 = vmatprep.subr.bf16.mxu0 0
        %4926 = vmatpush1.bf16.msra.mxu0 0
        %4927 = vmatprep.subr.bf16.mxu0 0
        %4928 = vmatpush1.bf16.msra.mxu0 0
        %4929 = vmatprep.subr.bf16.mxu0 0
        %4930 = vmatpush1.bf16.msra.mxu0 0
        %4931 = vmatprep.subr.bf16.mxu0 0
        %4932 = vmatpush1.bf16.msra.mxu0 0
        %4933 = vmatprep.subr.bf16.mxu0 0
        %4934 = vmatpush1.bf16.msra.mxu0 0
        %4935 = vmatprep.subr.bf16.mxu0 0
        %4936 = vmatpush1.bf16.msra.mxu0 0
        %4937 = vmatprep.subr.bf16.mxu0 0
        %4938 = vmatpush1.bf16.msra.mxu0 0
        %4939 = vmatprep.subr.bf16.mxu0 0
        %4940 = vmatpush1.bf16.msra.mxu0 0
        %4941 = vmatprep.subr.bf16.mxu0 0
        %4942 = vmatpush1.bf16.msra.mxu0 0
        %4943 = vmatprep.mubr.bf16.mxu0 0
        %4944 = vmatmul.mubr.bf16.gmra.mrb[0].mxu0 %v4909
        %v4945 = vpop.f32.mrb[0].mxu0
        %v4946 = vadd.f32 %v4895, %v4945
        %v4947 = vpop.f32.mrb[0].mxu0
        %v4948 = vpop.f32.mrb[0].mxu0
        %v4949 = vpop.f32.mrb[0].mxu0
        %4950 = vdwg.mxu0
        %v4951 = vld [vmem:[#allocation2 + $0x200] sm:$0xf]
        %v4952 = vld [vmem:[#allocation2 + $0x204] sm:$0xf]
        %v4953 = vld [vmem:[#allocation2 + $0x208] sm:$0xf]
        %v4954 = vld [vmem:[#allocation2 + $0x20c] sm:$0xf]
        %v4955 = vld [vmem:[#allocation4 + $0x1c0] sm:$0x1]
        %v4956 = vlaneseq
        %v4957 = vshrl.u32 %v4956, 7
        %v4958 = vsub.s32 0, %v4957
        %v4959 = vrot.slane %v4955, %v4958
        %v4964 = vunpack.c.l.b16 %v4951
        %v4965 = vunpack.c.l.b16 %v4952
        %v4966 = vunpack.c.l.b16 %v4953
        %v4967 = vunpack.c.l.b16 %v4954
        %v4968 = vpack.c.b16 %v4965, %v4964
        %v4969 = vpack.c.b16 %v4967, %v4966
        %v4972 = vsel %vm279, %v4750, 0
        %4974 = vmatprep.subr.bf16.mxu0 0
        %4975 = vmatpush1.bf16.msra.mxu0 %v4968
        %4976 = vmatprep.subr.bf16.mxu0 0
        %4977 = vmatpush1.bf16.msra.mxu0 %v4969
        %4978 = vmatprep.subr.bf16.mxu0 0
        %4979 = vmatpush1.bf16.msra.mxu0 0
        %4980 = vmatprep.subr.bf16.mxu0 0
        %4981 = vmatpush1.bf16.msra.mxu0 0
        %4982 = vmatprep.subr.bf16.mxu0 0
        %4983 = vmatpush1.bf16.msra.mxu0 0
        %4984 = vmatprep.subr.bf16.mxu0 0
        %4985 = vmatpush1.bf16.msra.mxu0 0
        %4986 = vmatprep.subr.bf16.mxu0 0
        %4987 = vmatpush1.bf16.msra.mxu0 0
        %4988 = vmatprep.subr.bf16.mxu0 0
        %4989 = vmatpush1.bf16.msra.mxu0 0
        %4990 = vmatprep.subr.bf16.mxu0 0
        %4991 = vmatpush1.bf16.msra.mxu0 0
        %4992 = vmatprep.subr.bf16.mxu0 0
        %4993 = vmatpush1.bf16.msra.mxu0 0
        %4994 = vmatprep.subr.bf16.mxu0 0
        %4995 = vmatpush1.bf16.msra.mxu0 0
        %4996 = vmatprep.subr.bf16.mxu0 0
        %4997 = vmatpush1.bf16.msra.mxu0 0
        %4998 = vmatprep.subr.bf16.mxu0 0
        %4999 = vmatpush1.bf16.msra.mxu0 0
        %5000 = vmatprep.subr.bf16.mxu0 0
        %5001 = vmatpush1.bf16.msra.mxu0 0
        %5002 = vmatprep.subr.bf16.mxu0 0
        %5003 = vmatpush1.bf16.msra.mxu0 0
        %5004 = vmatprep.subr.bf16.mxu0 0
        %5005 = vmatpush1.bf16.msra.mxu0 0
        %5006 = vmatprep.mubr.bf16.mxu0 0
        %5007 = vmatmul.mubr.bf16.gmra.mrb[0].mxu0 %v4972
        %v5008 = vpop.f32.mrb[0].mxu0
        %v5009 = vadd.f32 %v4959, %v5008
        %v5010 = vpop.f32.mrb[0].mxu0
        %v5011 = vpop.f32.mrb[0].mxu0
        %v5012 = vpop.f32.mrb[0].mxu0
        %5013 = vdwg.mxu0
        %v5014 = vld [vmem:[#allocation2 + $0x210] sm:$0xf]
        %v5015 = vld [vmem:[#allocation2 + $0x214] sm:$0xf]
        %v5016 = vld [vmem:[#allocation2 + $0x218] sm:$0xf]
        %v5017 = vld [vmem:[#allocation2 + $0x21c] sm:$0xf]
        %v5018 = vld [vmem:[#allocation4 + $0x1c8] sm:$0x1]
        %v5019 = vpack.c.bf16 %v4946, %v4946
        %v5020 = vpack.c.bf16 %v5009, %v5009
        %v5022 = vsel %vm745, %v5019, 0
        %v5025 = vsel %vm745, %v5020, 0
        %5027 = vmatprep.subr.bf16.mxu0 0
        %5028 = vmatpush1.bf16.xpose.msra.mxu0 %v5025
        %5029 = vmatprep.subr.bf16.mxu0 0
        %5030 = vmatpush1.bf16.xpose.msra.mxu0 0
        %5031 = vmatprep.subr.bf16.mxu0 0
        %5032 = vmatpush1.bf16.xpose.msra.mxu0 0
        %5033 = vmatprep.subr.bf16.mxu0 0
        %5034 = vmatpush1.bf16.xpose.msra.mxu0 0
        %5035 = vmatprep.subr.bf16.mxu0 0
        %5036 = vmatpush1.bf16.xpose.msra.mxu0 0
        %5037 = vmatprep.subr.bf16.mxu0 0
        %5038 = vmatpush1.bf16.xpose.msra.mxu0 0
        %5039 = vmatprep.subr.bf16.mxu0 0
        %5040 = vmatpush1.bf16.xpose.msra.mxu0 0
        %5041 = vmatprep.subr.bf16.mxu0 0
        %5042 = vmatpush1.bf16.xpose.msra.mxu0 0
        %5043 = vmatprep.subr.bf16.mxu0 0
        %5044 = vmatpush1.bf16.xpose.msra.mxu0 0
        %5045 = vmatprep.subr.bf16.mxu0 0
        %5046 = vmatpush1.bf16.xpose.msra.mxu0 0
        %5047 = vmatprep.subr.bf16.mxu0 0
        %5048 = vmatpush1.bf16.xpose.msra.mxu0 0
        %5049 = vmatprep.subr.bf16.mxu0 0
        %5050 = vmatpush1.bf16.xpose.msra.mxu0 0
        %5051 = vmatprep.subr.bf16.mxu0 0
        %5052 = vmatpush1.bf16.xpose.msra.mxu0 0
        %5053 = vmatprep.subr.bf16.mxu0 0
        %5054 = vmatpush1.bf16.xpose.msra.mxu0 0
        %5055 = vmatprep.subr.bf16.mxu0 0
        %5056 = vmatpush1.bf16.xpose.msra.mxu0 0
        %5057 = vmatprep.subr.bf16.mxu0 0
        %5058 = vmatpush1.bf16.xpose.msra.mxu0 0
        %5059 = vmatprep.mubr.bf16.mxu0 0
        %5060 = vmatmul.mubr.bf16.gmra.mrb[0].mxu0 %v5022
        %v5061 = vpop.f32.mrb[0].mxu0
        %v5062 = vadd.f32 0.0, %v5061
        %v5063 = vpop.f32.mrb[0].mxu0
        %v5064 = vpop.f32.mrb[0].mxu0
        %v5065 = vpop.f32.mrb[0].mxu0
        %5066 = vdwg.mxu0
        %v5067 = vmul.f32 %v5062, 0.35355338
        %vm5068 = vcmask 25600
        %v5069 = vsel %vm5068, %v5067, -inf
        %5070 = vmax.xlane.f32.xlu0 %v5069
        %v5071 = vpop.xlane.xlu0 %5070
        %v5072 = vsub.f32 %v5067, %v5071
        %v5073 = vmul.f32 %v5072, 1.442695
        %v5074 = vpow.pop %v5073
        %v5075 = vsel %vm5068, %v5074, 0.0
        %5076 = vadd.xlane.f32.xlu0 %v5075
        %v5077 = vpop.xlane.xlu0 %5076
        %v5078 = vrcp.pop %v5077
        %v5079 = vmul.f32 %v5074, %v5078
        %v5080 = vpack.c.bf16 %v5079, %v5079
        %5082 = vrot.lane.b32.xlu0 %v5020, 96
        %v5083 = vpop.permute.xlu0 %5082
        %v5085 = vsel %vm3645, %v5080, 0
        %v5088 = vsel %vm3649, %v5083, 0
        %5090 = vmatprep.subr.bf16.mxu0 0
        %5091 = vmatpush1.bf16.msra.mxu0 %v5088
        %5092 = vmatprep.subr.bf16.mxu0 0
        %5093 = vmatpush1.bf16.msra.mxu0 0
        %5094 = vmatprep.subr.bf16.mxu0 0
        %5095 = vmatpush1.bf16.msra.mxu0 0
        %5096 = vmatprep.subr.bf16.mxu0 0
        %5097 = vmatpush1.bf16.msra.mxu0 0
        %5098 = vmatprep.subr.bf16.mxu0 0
        %5099 = vmatpush1.bf16.msra.mxu0 0
        %5100 = vmatprep.subr.bf16.mxu0 0
        %5101 = vmatpush1.bf16.msra.mxu0 0
        %5102 = vmatprep.subr.bf16.mxu0 0
        %5103 = vmatpush1.bf16.msra.mxu0 0
        %5104 = vmatprep.subr.bf16.mxu0 0
        %5105 = vmatpush1.bf16.msra.mxu0 0
        %5106 = vmatprep.subr.bf16.mxu0 0
        %5107 = vmatpush1.bf16.msra.mxu0 0
        %5108 = vmatprep.subr.bf16.mxu0 0
        %5109 = vmatpush1.bf16.msra.mxu0 0
        %5110 = vmatprep.subr.bf16.mxu0 0
        %5111 = vmatpush1.bf16.msra.mxu0 0
        %5112 = vmatprep.subr.bf16.mxu0 0
        %5113 = vmatpush1.bf16.msra.mxu0 0
        %5114 = vmatprep.subr.bf16.mxu0 0
        %5115 = vmatpush1.bf16.msra.mxu0 0
        %5116 = vmatprep.subr.bf16.mxu0 0
        %5117 = vmatpush1.bf16.msra.mxu0 0
        %5118 = vmatprep.subr.bf16.mxu0 0
        %5119 = vmatpush1.bf16.msra.mxu0 0
        %5120 = vmatprep.subr.bf16.mxu0 0
        %5121 = vmatpush1.bf16.msra.mxu0 0
        %5122 = vmatprep.mubr.bf16.mxu0 0
        %5123 = vmatmul.mubr.bf16.gmra.mrb[0].mxu0 %v5085
        %v5124 = vpop.f32.mrb[0].mxu0
        %v5125 = vadd.f32 0.0, %v5124
        %v5126 = vpop.f32.mrb[0].mxu0
        %v5127 = vpop.f32.mrb[0].mxu0
        %v5128 = vpop.f32.mrb[0].mxu0
        %5129 = vdwg.mxu0
        %5131 = vrot.lane.b32.xlu0 %v5019, 120
        %v5132 = vpop.permute.xlu0 %5131
        %5133 = vrot.lane.b32.xlu0 %v5020, 120
        %v5134 = vpop.permute.xlu0 %5133
        %v5136 = vsel %vm745, %v5132, 0
        %v5139 = vsel %vm745, %v5134, 0
        %5141 = vmatprep.subr.bf16.mxu0 0
        %5142 = vmatpush1.bf16.xpose.msra.mxu0 %v5139
        %5143 = vmatprep.subr.bf16.mxu0 0
        %5144 = vmatpush1.bf16.xpose.msra.mxu0 0
        %5145 = vmatprep.subr.bf16.mxu0 0
        %5146 = vmatpush1.bf16.xpose.msra.mxu0 0
        %5147 = vmatprep.subr.bf16.mxu0 0
        %5148 = vmatpush1.bf16.xpose.msra.mxu0 0
        %5149 = vmatprep.subr.bf16.mxu0 0
        %5150 = vmatpush1.bf16.xpose.msra.mxu0 0
        %5151 = vmatprep.subr.bf16.mxu0 0
        %5152 = vmatpush1.bf16.xpose.msra.mxu0 0
        %5153 = vmatprep.subr.bf16.mxu0 0
        %5154 = vmatpush1.bf16.xpose.msra.mxu0 0
        %5155 = vmatprep.subr.bf16.mxu0 0
        %5156 = vmatpush1.bf16.xpose.msra.mxu0 0
        %5157 = vmatprep.subr.bf16.mxu0 0
        %5158 = vmatpush1.bf16.xpose.msra.mxu0 0
        %5159 = vmatprep.subr.bf16.mxu0 0
        %5160 = vmatpush1.bf16.xpose.msra.mxu0 0
        %5161 = vmatprep.subr.bf16.mxu0 0
        %5162 = vmatpush1.bf16.xpose.msra.mxu0 0
        %5163 = vmatprep.subr.bf16.mxu0 0
        %5164 = vmatpush1.bf16.xpose.msra.mxu0 0
        %5165 = vmatprep.subr.bf16.mxu0 0
        %5166 = vmatpush1.bf16.xpose.msra.mxu0 0
        %5167 = vmatprep.subr.bf16.mxu0 0
        %5168 = vmatpush1.bf16.xpose.msra.mxu0 0
        %5169 = vmatprep.subr.bf16.mxu0 0
        %5170 = vmatpush1.bf16.xpose.msra.mxu0 0
        %5171 = vmatprep.subr.bf16.mxu0 0
        %5172 = vmatpush1.bf16.xpose.msra.mxu0 0
        %5173 = vmatprep.mubr.bf16.mxu0 0
        %5174 = vmatmul.mubr.bf16.gmra.mrb[0].mxu0 %v5136
        %v5175 = vpop.f32.mrb[0].mxu0
        %v5176 = vadd.f32 0.0, %v5175
        %v5177 = vpop.f32.mrb[0].mxu0
        %v5178 = vpop.f32.mrb[0].mxu0
        %v5179 = vpop.f32.mrb[0].mxu0
        %5180 = vdwg.mxu0
        %v5181 = vmul.f32 %v5176, 0.35355338
        %v5182 = vsel %vm5068, %v5181, -inf
        %5183 = vmax.xlane.f32.xlu0 %v5182
        %v5184 = vpop.xlane.xlu0 %5183
        %v5185 = vsub.f32 %v5181, %v5184
        %v5186 = vmul.f32 %v5185, 1.442695
        %v5187 = vpow.pop %v5186
        %v5188 = vsel %vm5068, %v5187, 0.0
        %5189 = vadd.xlane.f32.xlu0 %v5188
        %v5190 = vpop.xlane.xlu0 %5189
        %v5191 = vrcp.pop %v5190
        %v5192 = vmul.f32 %v5187, %v5191
        %v5193 = vpack.c.bf16 %v5192, %v5192
        %5194 = vrot.lane.b32.xlu0 %v5020, 88
        %v5195 = vpop.permute.xlu0 %5194
        %v5197 = vsel %vm3645, %v5193, 0
        %v5200 = vsel %vm3649, %v5195, 0
        %5202 = vmatprep.subr.bf16.mxu0 0
        %5203 = vmatpush1.bf16.msra.mxu0 %v5200
        %5204 = vmatprep.subr.bf16.mxu0 0
        %5205 = vmatpush1.bf16.msra.mxu0 0
        %5206 = vmatprep.subr.bf16.mxu0 0
        %5207 = vmatpush1.bf16.msra.mxu0 0
        %5208 = vmatprep.subr.bf16.mxu0 0
        %5209 = vmatpush1.bf16.msra.mxu0 0
        %5210 = vmatprep.subr.bf16.mxu0 0
        %5211 = vmatpush1.bf16.msra.mxu0 0
        %5212 = vmatprep.subr.bf16.mxu0 0
        %5213 = vmatpush1.bf16.msra.mxu0 0
        %5214 = vmatprep.subr.bf16.mxu0 0
        %5215 = vmatpush1.bf16.msra.mxu0 0
        %5216 = vmatprep.subr.bf16.mxu0 0
        %5217 = vmatpush1.bf16.msra.mxu0 0
        %5218 = vmatprep.subr.bf16.mxu0 0
        %5219 = vmatpush1.bf16.msra.mxu0 0
        %5220 = vmatprep.subr.bf16.mxu0 0
        %5221 = vmatpush1.bf16.msra.mxu0 0
        %5222 = vmatprep.subr.bf16.mxu0 0
        %5223 = vmatpush1.bf16.msra.mxu0 0
        %5224 = vmatprep.subr.bf16.mxu0 0
        %5225 = vmatpush1.bf16.msra.mxu0 0
        %5226 = vmatprep.subr.bf16.mxu0 0
        %5227 = vmatpush1.bf16.msra.mxu0 0
        %5228 = vmatprep.subr.bf16.mxu0 0
        %5229 = vmatpush1.bf16.msra.mxu0 0
        %5230 = vmatprep.subr.bf16.mxu0 0
        %5231 = vmatpush1.bf16.msra.mxu0 0
        %5232 = vmatprep.subr.bf16.mxu0 0
        %5233 = vmatpush1.bf16.msra.mxu0 0
        %5234 = vmatprep.mubr.bf16.mxu0 0
        %5235 = vmatmul.mubr.bf16.gmra.mrb[0].mxu0 %v5197
        %v5236 = vpop.f32.mrb[0].mxu0
        %v5237 = vadd.f32 0.0, %v5236
        %v5238 = vpop.f32.mrb[0].mxu0
        %v5239 = vpop.f32.mrb[0].mxu0
        %v5240 = vpop.f32.mrb[0].mxu0
        %5241 = vdwg.mxu0
        %5242 = vrot.lane.b32.xlu0 %v5019, 112
        %v5243 = vpop.permute.xlu0 %5242
        %5244 = vrot.lane.b32.xlu0 %v5020, 112
        %v5245 = vpop.permute.xlu0 %5244
        %v5247 = vsel %vm745, %v5243, 0
        %v5250 = vsel %vm745, %v5245, 0
        %5252 = vmatprep.subr.bf16.mxu0 0
        %5253 = vmatpush1.bf16.xpose.msra.mxu0 %v5250
        %5254 = vmatprep.subr.bf16.mxu0 0
        %5255 = vmatpush1.bf16.xpose.msra.mxu0 0
        %5256 = vmatprep.subr.bf16.mxu0 0
        %5257 = vmatpush1.bf16.xpose.msra.mxu0 0
        %5258 = vmatprep.subr.bf16.mxu0 0
        %5259 = vmatpush1.bf16.xpose.msra.mxu0 0
        %5260 = vmatprep.subr.bf16.mxu0 0
        %5261 = vmatpush1.bf16.xpose.msra.mxu0 0
        %5262 = vmatprep.subr.bf16.mxu0 0
        %5263 = vmatpush1.bf16.xpose.msra.mxu0 0
        %5264 = vmatprep.subr.bf16.mxu0 0
        %5265 = vmatpush1.bf16.xpose.msra.mxu0 0
        %5266 = vmatprep.subr.bf16.mxu0 0
        %5267 = vmatpush1.bf16.xpose.msra.mxu0 0
        %5268 = vmatprep.subr.bf16.mxu0 0
        %5269 = vmatpush1.bf16.xpose.msra.mxu0 0
        %5270 = vmatprep.subr.bf16.mxu0 0
        %5271 = vmatpush1.bf16.xpose.msra.mxu0 0
        %5272 = vmatprep.subr.bf16.mxu0 0
        %5273 = vmatpush1.bf16.xpose.msra.mxu0 0
        %5274 = vmatprep.subr.bf16.mxu0 0
        %5275 = vmatpush1.bf16.xpose.msra.mxu0 0
        %5276 = vmatprep.subr.bf16.mxu0 0
        %5277 = vmatpush1.bf16.xpose.msra.mxu0 0
        %5278 = vmatprep.subr.bf16.mxu0 0
        %5279 = vmatpush1.bf16.xpose.msra.mxu0 0
        %5280 = vmatprep.subr.bf16.mxu0 0
        %5281 = vmatpush1.bf16.xpose.msra.mxu0 0
        %5282 = vmatprep.subr.bf16.mxu0 0
        %5283 = vmatpush1.bf16.xpose.msra.mxu0 0
        %5284 = vmatprep.mubr.bf16.mxu0 0
        %5285 = vmatmul.mubr.bf16.gmra.mrb[0].mxu0 %v5247
        %v5286 = vpop.f32.mrb[0].mxu0
        %v5287 = vadd.f32 0.0, %v5286
        %v5288 = vpop.f32.mrb[0].mxu0
        %v5289 = vpop.f32.mrb[0].mxu0
        %v5290 = vpop.f32.mrb[0].mxu0
        %5291 = vdwg.mxu0
        %v5292 = vmul.f32 %v5287, 0.35355338
        %v5293 = vsel %vm5068, %v5292, -inf
        %5294 = vmax.xlane.f32.xlu0 %v5293
        %v5295 = vpop.xlane.xlu0 %5294
        %v5296 = vsub.f32 %v5292, %v5295
        %v5297 = vmul.f32 %v5296, 1.442695
        %v5298 = vpow.pop %v5297
        %v5299 = vsel %vm5068, %v5298, 0.0
        %5300 = vadd.xlane.f32.xlu0 %v5299
        %v5301 = vpop.xlane.xlu0 %5300
        %v5302 = vrcp.pop %v5301
        %v5303 = vmul.f32 %v5298, %v5302
        %v5304 = vpack.c.bf16 %v5303, %v5303
        %5305 = vrot.lane.b32.xlu0 %v5020, 80
        %v5306 = vpop.permute.xlu0 %5305
        %v5308 = vsel %vm3645, %v5304, 0
        %v5311 = vsel %vm3649, %v5306, 0
        %5313 = vmatprep.subr.bf16.mxu0 0
        %5314 = vmatpush1.bf16.msra.mxu0 %v5311
        %5315 = vmatprep.subr.bf16.mxu0 0
        %5316 = vmatpush1.bf16.msra.mxu0 0
        %5317 = vmatprep.subr.bf16.mxu0 0
        %5318 = vmatpush1.bf16.msra.mxu0 0
        %5319 = vmatprep.subr.bf16.mxu0 0
        %5320 = vmatpush1.bf16.msra.mxu0 0
        %5321 = vmatprep.subr.bf16.mxu0 0
        %5322 = vmatpush1.bf16.msra.mxu0 0
        %5323 = vmatprep.subr.bf16.mxu0 0
        %5324 = vmatpush1.bf16.msra.mxu0 0
        %5325 = vmatprep.subr.bf16.mxu0 0
        %5326 = vmatpush1.bf16.msra.mxu0 0
        %5327 = vmatprep.subr.bf16.mxu0 0
        %5328 = vmatpush1.bf16.msra.mxu0 0
        %5329 = vmatprep.subr.bf16.mxu0 0
        %5330 = vmatpush1.bf16.msra.mxu0 0
        %5331 = vmatprep.subr.bf16.mxu0 0
        %5332 = vmatpush1.bf16.msra.mxu0 0
        %5333 = vmatprep.subr.bf16.mxu0 0
        %5334 = vmatpush1.bf16.msra.mxu0 0
        %5335 = vmatprep.subr.bf16.mxu0 0
        %5336 = vmatpush1.bf16.msra.mxu0 0
        %5337 = vmatprep.subr.bf16.mxu0 0
        %5338 = vmatpush1.bf16.msra.mxu0 0
        %5339 = vmatprep.subr.bf16.mxu0 0
        %5340 = vmatpush1.bf16.msra.mxu0 0
        %5341 = vmatprep.subr.bf16.mxu0 0
        %5342 = vmatpush1.bf16.msra.mxu0 0
        %5343 = vmatprep.subr.bf16.mxu0 0
        %5344 = vmatpush1.bf16.msra.mxu0 0
        %5345 = vmatprep.mubr.bf16.mxu0 0
        %5346 = vmatmul.mubr.bf16.gmra.mrb[0].mxu0 %v5308
        %v5347 = vpop.f32.mrb[0].mxu0
        %v5348 = vadd.f32 0.0, %v5347
        %v5349 = vpop.f32.mrb[0].mxu0
        %v5350 = vpop.f32.mrb[0].mxu0
        %v5351 = vpop.f32.mrb[0].mxu0
        %5352 = vdwg.mxu0
        %5353 = vrot.lane.b32.xlu0 %v5019, 104
        %v5354 = vpop.permute.xlu0 %5353
        %5355 = vrot.lane.b32.xlu0 %v5020, 104
        %v5356 = vpop.permute.xlu0 %5355
        %v5358 = vsel %vm745, %v5354, 0
        %v5361 = vsel %vm745, %v5356, 0
        %5363 = vmatprep.subr.bf16.mxu0 0
        %5364 = vmatpush1.bf16.xpose.msra.mxu0 %v5361
        %5365 = vmatprep.subr.bf16.mxu0 0
        %5366 = vmatpush1.bf16.xpose.msra.mxu0 0
        %5367 = vmatprep.subr.bf16.mxu0 0
        %5368 = vmatpush1.bf16.xpose.msra.mxu0 0
        %5369 = vmatprep.subr.bf16.mxu0 0
        %5370 = vmatpush1.bf16.xpose.msra.mxu0 0
        %5371 = vmatprep.subr.bf16.mxu0 0
        %5372 = vmatpush1.bf16.xpose.msra.mxu0 0
        %5373 = vmatprep.subr.bf16.mxu0 0
        %5374 = vmatpush1.bf16.xpose.msra.mxu0 0
        %5375 = vmatprep.subr.bf16.mxu0 0
        %5376 = vmatpush1.bf16.xpose.msra.mxu0 0
        %5377 = vmatprep.subr.bf16.mxu0 0
        %5378 = vmatpush1.bf16.xpose.msra.mxu0 0
        %5379 = vmatprep.subr.bf16.mxu0 0
        %5380 = vmatpush1.bf16.xpose.msra.mxu0 0
        %5381 = vmatprep.subr.bf16.mxu0 0
        %5382 = vmatpush1.bf16.xpose.msra.mxu0 0
        %5383 = vmatprep.subr.bf16.mxu0 0
        %5384 = vmatpush1.bf16.xpose.msra.mxu0 0
        %5385 = vmatprep.subr.bf16.mxu0 0
        %5386 = vmatpush1.bf16.xpose.msra.mxu0 0
        %5387 = vmatprep.subr.bf16.mxu0 0
        %5388 = vmatpush1.bf16.xpose.msra.mxu0 0
        %5389 = vmatprep.subr.bf16.mxu0 0
        %5390 = vmatpush1.bf16.xpose.msra.mxu0 0
        %5391 = vmatprep.subr.bf16.mxu0 0
        %5392 = vmatpush1.bf16.xpose.msra.mxu0 0
        %5393 = vmatprep.subr.bf16.mxu0 0
        %5394 = vmatpush1.bf16.xpose.msra.mxu0 0
        %5395 = vmatprep.mubr.bf16.mxu0 0
        %5396 = vmatmul.mubr.bf16.gmra.mrb[0].mxu0 %v5358
        %v5397 = vpop.f32.mrb[0].mxu0
        %v5398 = vadd.f32 0.0, %v5397
        %v5399 = vpop.f32.mrb[0].mxu0
        %v5400 = vpop.f32.mrb[0].mxu0
        %v5401 = vpop.f32.mrb[0].mxu0
        %5402 = vdwg.mxu0
        %v5403 = vmul.f32 %v5398, 0.35355338
        %v5404 = vsel %vm5068, %v5403, -inf
        %5405 = vmax.xlane.f32.xlu0 %v5404
        %v5406 = vpop.xlane.xlu0 %5405
        %v5407 = vsub.f32 %v5403, %v5406
        %v5408 = vmul.f32 %v5407, 1.442695
        %v5409 = vpow.pop %v5408
        %v5410 = vsel %vm5068, %v5409, 0.0
        %5411 = vadd.xlane.f32.xlu0 %v5410
        %v5412 = vpop.xlane.xlu0 %5411
        %v5413 = vrcp.pop %v5412
        %v5414 = vmul.f32 %v5409, %v5413
        %v5415 = vpack.c.bf16 %v5414, %v5414
        %5416 = vrot.lane.b32.xlu0 %v5020, 72
        %v5417 = vpop.permute.xlu0 %5416
        %v5419 = vsel %vm3645, %v5415, 0
        %v5422 = vsel %vm3649, %v5417, 0
        %5424 = vmatprep.subr.bf16.mxu0 0
        %5425 = vmatpush1.bf16.msra.mxu0 %v5422
        %5426 = vmatprep.subr.bf16.mxu0 0
        %5427 = vmatpush1.bf16.msra.mxu0 0
        %5428 = vmatprep.subr.bf16.mxu0 0
        %5429 = vmatpush1.bf16.msra.mxu0 0
        %5430 = vmatprep.subr.bf16.mxu0 0
        %5431 = vmatpush1.bf16.msra.mxu0 0
        %5432 = vmatprep.subr.bf16.mxu0 0
        %5433 = vmatpush1.bf16.msra.mxu0 0
        %5434 = vmatprep.subr.bf16.mxu0 0
        %5435 = vmatpush1.bf16.msra.mxu0 0
        %5436 = vmatprep.subr.bf16.mxu0 0
        %5437 = vmatpush1.bf16.msra.mxu0 0
        %5438 = vmatprep.subr.bf16.mxu0 0
        %5439 = vmatpush1.bf16.msra.mxu0 0
        %5440 = vmatprep.subr.bf16.mxu0 0
        %5441 = vmatpush1.bf16.msra.mxu0 0
        %5442 = vmatprep.subr.bf16.mxu0 0
        %5443 = vmatpush1.bf16.msra.mxu0 0
        %5444 = vmatprep.subr.bf16.mxu0 0
        %5445 = vmatpush1.bf16.msra.mxu0 0
        %5446 = vmatprep.subr.bf16.mxu0 0
        %5447 = vmatpush1.bf16.msra.mxu0 0
        %5448 = vmatprep.subr.bf16.mxu0 0
        %5449 = vmatpush1.bf16.msra.mxu0 0
        %5450 = vmatprep.subr.bf16.mxu0 0
        %5451 = vmatpush1.bf16.msra.mxu0 0
        %5452 = vmatprep.subr.bf16.mxu0 0
        %5453 = vmatpush1.bf16.msra.mxu0 0
        %5454 = vmatprep.subr.bf16.mxu0 0
        %5455 = vmatpush1.bf16.msra.mxu0 0
        %5456 = vmatprep.mubr.bf16.mxu0 0
        %5457 = vmatmul.mubr.bf16.gmra.mrb[0].mxu0 %v5419
        %v5458 = vpop.f32.mrb[0].mxu0
        %v5459 = vadd.f32 0.0, %v5458
        %v5460 = vpop.f32.mrb[0].mxu0
        %v5461 = vpop.f32.mrb[0].mxu0
        %v5462 = vpop.f32.mrb[0].mxu0
        %5463 = vdwg.mxu0
        %5465 = vrot.lane.b32.xlu0 %v5237, 8
        %v5466 = vpop.permute.xlu0 %5465
        %5469 = vrot.lane.b32.xlu0 %v5348, 16
        %v5470 = vpop.permute.xlu0 %5469
        %5473 = vrot.lane.b32.xlu0 %v5459, 24
        %v5474 = vpop.permute.xlu0 %5473
        %v5476 = vsel %vm745, %v5125, %v5466
        %v5477 = vsel %vm403, %v5476, %v5470
        %v5478 = vsel %vm1194, %v5477, %v5474
        %v5479 = vpack.c.bf16 %v5478, %v5478
        %v5480 = vlaneseq
        %v5481 = vshrl.u32 %v5480, 7
        %v5482 = vsub.s32 0, %v5481
        %v5483 = vrot.slane %v5018, %v5482
        %v5488 = vunpack.c.l.b16 %v5014
        %v5489 = vunpack.c.l.b16 %v5015
        %v5490 = vunpack.c.l.b16 %v5016
        %v5491 = vunpack.c.l.b16 %v5017
        %v5492 = vpack.c.b16 %v5489, %v5488
        %v5493 = vpack.c.b16 %v5491, %v5490
        %v5497 = vsel %vm279, %v5479, 0
        %5499 = vmatprep.subr.bf16.mxu0 0
        %5500 = vmatpush1.bf16.msra.mxu0 %v5492
        %5501 = vmatprep.subr.bf16.mxu0 0
        %5502 = vmatpush1.bf16.msra.mxu0 %v5493
        %5503 = vmatprep.subr.bf16.mxu0 0
        %5504 = vmatpush1.bf16.msra.mxu0 0
        %5505 = vmatprep.subr.bf16.mxu0 0
        %5506 = vmatpush1.bf16.msra.mxu0 0
        %5507 = vmatprep.subr.bf16.mxu0 0
        %5508 = vmatpush1.bf16.msra.mxu0 0
        %5509 = vmatprep.subr.bf16.mxu0 0
        %5510 = vmatpush1.bf16.msra.mxu0 0
        %5511 = vmatprep.subr.bf16.mxu0 0
        %5512 = vmatpush1.bf16.msra.mxu0 0
        %5513 = vmatprep.subr.bf16.mxu0 0
        %5514 = vmatpush1.bf16.msra.mxu0 0
        %5515 = vmatprep.subr.bf16.mxu0 0
        %5516 = vmatpush1.bf16.msra.mxu0 0
        %5517 = vmatprep.subr.bf16.mxu0 0
        %5518 = vmatpush1.bf16.msra.mxu0 0
        %5519 = vmatprep.subr.bf16.mxu0 0
        %5520 = vmatpush1.bf16.msra.mxu0 0
        %5521 = vmatprep.subr.bf16.mxu0 0
        %5522 = vmatpush1.bf16.msra.mxu0 0
        %5523 = vmatprep.subr.bf16.mxu0 0
        %5524 = vmatpush1.bf16.msra.mxu0 0
        %5525 = vmatprep.subr.bf16.mxu0 0
        %5526 = vmatpush1.bf16.msra.mxu0 0
        %5527 = vmatprep.subr.bf16.mxu0 0
        %5528 = vmatpush1.bf16.msra.mxu0 0
        %5529 = vmatprep.subr.bf16.mxu0 0
        %5530 = vmatpush1.bf16.msra.mxu0 0
        %5531 = vmatprep.mubr.bf16.mxu0 0
        %5532 = vmatmul.mubr.bf16.gmra.mrb[0].mxu0 %v5497
        %v5533 = vpop.f32.mrb[0].mxu0
        %v5534 = vadd.f32 %v5483, %v5533
        %v5535 = vpop.f32.mrb[0].mxu0
        %v5536 = vpop.f32.mrb[0].mxu0
        %v5537 = vpop.f32.mrb[0].mxu0
        %5538 = vdwg.mxu0
        %v5539 = vld [vmem:[#allocation4 + $0x200] sm:$0x3]
        %5541 = vset.pattern.permute.xlu0 0
        %5542 = vperm.xlu0 %5541, %v5539
        %v5543 = vpop.permute.xlu0 %5542
        %v5545 = vmul.f32 %v5534, %v5543
        %v5546 = vld [vmem:[#allocation4 + $0x208] sm:$0x3]
        %5548 = vset.pattern.permute.xlu0 0
        %5549 = vperm.xlu0 %5548, %v5546
        %v5550 = vpop.permute.xlu0 %5549
        %v5552 = vadd.f32 %v5545, %v5550
        %v5553 = vpack.c.bf16 %v5552, %v5552
        %v5554 = vld [vmem:[#allocation2 + $0x220] sm:$0xf]
        %v5555 = vld [vmem:[#allocation2 + $0x224] sm:$0xf]
        %v5556 = vld [vmem:[#allocation2 + $0x228] sm:$0xf]
        %v5557 = vld [vmem:[#allocation2 + $0x22c] sm:$0xf]
        %v5558 = vld [vmem:[#allocation4 + $0x1d0] sm:$0x1]
        %v5559 = vlaneseq
        %v5560 = vshrl.u32 %v5559, 7
        %v5561 = vsub.s32 0, %v5560
        %v5562 = vrot.slane %v5558, %v5561
        %v5567 = vunpack.c.l.b16 %v5554
        %v5568 = vunpack.c.l.b16 %v5555
        %v5569 = vunpack.c.l.b16 %v5556
        %v5570 = vunpack.c.l.b16 %v5557
        %v5571 = vpack.c.b16 %v5568, %v5567
        %v5572 = vpack.c.b16 %v5570, %v5569
        %v5576 = vsel %vm279, %v5553, 0
        %5578 = vmatprep.subr.bf16.mxu0 0
        %5579 = vmatpush1.bf16.msra.mxu0 %v5571
        %5580 = vmatprep.subr.bf16.mxu0 0
        %5581 = vmatpush1.bf16.msra.mxu0 %v5572
        %5582 = vmatprep.subr.bf16.mxu0 0
        %5583 = vmatpush1.bf16.msra.mxu0 0
        %5584 = vmatprep.subr.bf16.mxu0 0
        %5585 = vmatpush1.bf16.msra.mxu0 0
        %5586 = vmatprep.subr.bf16.mxu0 0
        %5587 = vmatpush1.bf16.msra.mxu0 0
        %5588 = vmatprep.subr.bf16.mxu0 0
        %5589 = vmatpush1.bf16.msra.mxu0 0
        %5590 = vmatprep.subr.bf16.mxu0 0
        %5591 = vmatpush1.bf16.msra.mxu0 0
        %5592 = vmatprep.subr.bf16.mxu0 0
        %5593 = vmatpush1.bf16.msra.mxu0 0
        %5594 = vmatprep.subr.bf16.mxu0 0
        %5595 = vmatpush1.bf16.msra.mxu0 0
        %5596 = vmatprep.subr.bf16.mxu0 0
        %5597 = vmatpush1.bf16.msra.mxu0 0
        %5598 = vmatprep.subr.bf16.mxu0 0
        %5599 = vmatpush1.bf16.msra.mxu0 0
        %5600 = vmatprep.subr.bf16.mxu0 0
        %5601 = vmatpush1.bf16.msra.mxu0 0
        %5602 = vmatprep.subr.bf16.mxu0 0
        %5603 = vmatpush1.bf16.msra.mxu0 0
        %5604 = vmatprep.subr.bf16.mxu0 0
        %5605 = vmatpush1.bf16.msra.mxu0 0
        %5606 = vmatprep.subr.bf16.mxu0 0
        %5607 = vmatpush1.bf16.msra.mxu0 0
        %5608 = vmatprep.subr.bf16.mxu0 0
        %5609 = vmatpush1.bf16.msra.mxu0 0
        %5610 = vmatprep.mubr.bf16.mxu0 0
        %5611 = vmatmul.mubr.bf16.gmra.mrb[0].mxu0 %v5576
        %v5612 = vpop.f32.mrb[0].mxu0
        %v5613 = vadd.f32 %v5562, %v5612
        %v5614 = vpop.f32.mrb[0].mxu0
        %v5615 = vpop.f32.mrb[0].mxu0
        %v5616 = vpop.f32.mrb[0].mxu0
        %5617 = vdwg.mxu0
        %v5618 = vmul.f32 %v5613, 0.5
        %v5619 = vmul.f32 %v5613, 0.044715
        %v5620 = vmul.f32 %v5619, %v5613
        %v5621 = vmul.f32 %v5620, %v5613
        %v5622 = vadd.f32 %v5613, %v5621
        %v5623 = vmul.f32 %v5622, 0.7978846
        %v5624 = vtanh.pop %v5623
        %v5625 = vadd.f32 %v5624, 1.0
        %v5626 = vmul.f32 %v5618, %v5625
        %v5627 = vpack.c.bf16 %v5626, %v5626
        %v5628 = vld [vmem:[#allocation2 + $0x230] sm:$0xf]
        %v5629 = vld [vmem:[#allocation2 + $0x234] sm:$0xf]
        %v5630 = vld [vmem:[#allocation2 + $0x238] sm:$0xf]
        %v5631 = vld [vmem:[#allocation2 + $0x23c] sm:$0xf]
        %v5632 = vld [vmem:[#allocation2 + $0x240] sm:$0xf]
        %v5633 = vld [vmem:[#allocation2 + $0x244] sm:$0xf]
        %v5634 = vld [vmem:[#allocation2 + $0x248] sm:$0xf]
        %v5635 = vld [vmem:[#allocation2 + $0x24c] sm:$0xf]
        %v5636 = vld [vmem:[#allocation4 + $0x1d8] sm:$0x1]
        %v5637 = vlaneseq
        %v5638 = vshrl.u32 %v5637, 7
        %v5639 = vsub.s32 0, %v5638
        %v5640 = vrot.slane %v5636, %v5639
        %v5649 = vunpack.c.l.b16 %v5628
        %v5650 = vunpack.c.l.b16 %v5629
        %v5651 = vunpack.c.l.b16 %v5630
        %v5652 = vunpack.c.l.b16 %v5631
        %v5653 = vunpack.c.l.b16 %v5632
        %v5654 = vunpack.c.l.b16 %v5633
        %v5655 = vunpack.c.l.b16 %v5634
        %v5656 = vunpack.c.l.b16 %v5635
        %v5657 = vpack.c.b16 %v5650, %v5649
        %v5658 = vpack.c.b16 %v5652, %v5651
        %v5659 = vpack.c.b16 %v5654, %v5653
        %v5660 = vpack.c.b16 %v5656, %v5655
        %v5666 = vsel %vm564, %v5627, 0
        %5668 = vmatprep.subr.bf16.mxu0 0
        %5669 = vmatpush1.bf16.msra.mxu0 %v5657
        %5670 = vmatprep.subr.bf16.mxu0 0
        %5671 = vmatpush1.bf16.msra.mxu0 %v5658
        %5672 = vmatprep.subr.bf16.mxu0 0
        %5673 = vmatpush1.bf16.msra.mxu0 %v5659
        %5674 = vmatprep.subr.bf16.mxu0 0
        %5675 = vmatpush1.bf16.msra.mxu0 %v5660
        %5676 = vmatprep.subr.bf16.mxu0 0
        %5677 = vmatpush1.bf16.msra.mxu0 0
        %5678 = vmatprep.subr.bf16.mxu0 0
        %5679 = vmatpush1.bf16.msra.mxu0 0
        %5680 = vmatprep.subr.bf16.mxu0 0
        %5681 = vmatpush1.bf16.msra.mxu0 0
        %5682 = vmatprep.subr.bf16.mxu0 0
        %5683 = vmatpush1.bf16.msra.mxu0 0
        %5684 = vmatprep.subr.bf16.mxu0 0
        %5685 = vmatpush1.bf16.msra.mxu0 0
        %5686 = vmatprep.subr.bf16.mxu0 0
        %5687 = vmatpush1.bf16.msra.mxu0 0
        %5688 = vmatprep.subr.bf16.mxu0 0
        %5689 = vmatpush1.bf16.msra.mxu0 0
        %5690 = vmatprep.subr.bf16.mxu0 0
        %5691 = vmatpush1.bf16.msra.mxu0 0
        %5692 = vmatprep.subr.bf16.mxu0 0
        %5693 = vmatpush1.bf16.msra.mxu0 0
        %5694 = vmatprep.subr.bf16.mxu0 0
        %5695 = vmatpush1.bf16.msra.mxu0 0
        %5696 = vmatprep.subr.bf16.mxu0 0
        %5697 = vmatpush1.bf16.msra.mxu0 0
        %5698 = vmatprep.subr.bf16.mxu0 0
        %5699 = vmatpush1.bf16.msra.mxu0 0
        %5700 = vmatprep.mubr.bf16.mxu0 0
        %5701 = vmatmul.mubr.bf16.gmra.mrb[0].mxu0 %v5666
        %v5702 = vpop.f32.mrb[0].mxu0
        %v5703 = vadd.f32 %v5640, %v5702
        %v5704 = vpop.f32.mrb[0].mxu0
        %v5705 = vpop.f32.mrb[0].mxu0
        %v5706 = vpop.f32.mrb[0].mxu0
        %5707 = vdwg.mxu0
        %v5708 = vadd.f32 %v5703, %v5552
        %v5709 = vld [vmem:[#allocation4 + $0x210] sm:$0x3]
        %5711 = vset.pattern.permute.xlu0 0
        %5712 = vperm.xlu0 %5711, %v5709
        %v5713 = vpop.permute.xlu0 %5712
        %v5715 = vmul.f32 %v5708, %v5713
        %v5716 = vld [vmem:[#allocation4 + $0x218] sm:$0x3]
        %5718 = vset.pattern.permute.xlu0 0
        %5719 = vperm.xlu0 %5718, %v5716
        %v5720 = vpop.permute.xlu0 %5719
        %v5722 = vadd.f32 %v5715, %v5720
        %v5723 = vpack.c.bf16 %v5722, %v5722
        %v5724 = vld [vmem:[#allocation2 + $0x250] sm:$0xf]
        %v5725 = vld [vmem:[#allocation2 + $0x254] sm:$0xf]
        %v5726 = vld [vmem:[#allocation2 + $0x258] sm:$0xf]
        %v5727 = vld [vmem:[#allocation2 + $0x25c] sm:$0xf]
        %v5728 = vld [vmem:[#allocation4 + $0x1e0] sm:$0x1]
        %v5729 = vlaneseq
        %v5730 = vshrl.u32 %v5729, 7
        %v5731 = vsub.s32 0, %v5730
        %v5732 = vrot.slane %v5728, %v5731
        %v5737 = vunpack.c.l.b16 %v5724
        %v5738 = vunpack.c.l.b16 %v5725
        %v5739 = vunpack.c.l.b16 %v5726
        %v5740 = vunpack.c.l.b16 %v5727
        %v5741 = vpack.c.b16 %v5738, %v5737
        %v5742 = vpack.c.b16 %v5740, %v5739
        %v5746 = vsel %vm279, %v5723, 0
        %5748 = vmatprep.subr.bf16.mxu0 0
        %5749 = vmatpush1.bf16.msra.mxu0 %v5741
        %5750 = vmatprep.subr.bf16.mxu0 0
        %5751 = vmatpush1.bf16.msra.mxu0 %v5742
        %5752 = vmatprep.subr.bf16.mxu0 0
        %5753 = vmatpush1.bf16.msra.mxu0 0
        %5754 = vmatprep.subr.bf16.mxu0 0
        %5755 = vmatpush1.bf16.msra.mxu0 0
        %5756 = vmatprep.subr.bf16.mxu0 0
        %5757 = vmatpush1.bf16.msra.mxu0 0
        %5758 = vmatprep.subr.bf16.mxu0 0
        %5759 = vmatpush1.bf16.msra.mxu0 0
        %5760 = vmatprep.subr.bf16.mxu0 0
        %5761 = vmatpush1.bf16.msra.mxu0 0
        %5762 = vmatprep.subr.bf16.mxu0 0
        %5763 = vmatpush1.bf16.msra.mxu0 0
        %5764 = vmatprep.subr.bf16.mxu0 0
        %5765 = vmatpush1.bf16.msra.mxu0 0
        %5766 = vmatprep.subr.bf16.mxu0 0
        %5767 = vmatpush1.bf16.msra.mxu0 0
        %5768 = vmatprep.subr.bf16.mxu0 0
        %5769 = vmatpush1.bf16.msra.mxu0 0
        %5770 = vmatprep.subr.bf16.mxu0 0
        %5771 = vmatpush1.bf16.msra.mxu0 0
        %5772 = vmatprep.subr.bf16.mxu0 0
        %5773 = vmatpush1.bf16.msra.mxu0 0
        %5774 = vmatprep.subr.bf16.mxu0 0
        %5775 = vmatpush1.bf16.msra.mxu0 0
        %5776 = vmatprep.subr.bf16.mxu0 0
        %5777 = vmatpush1.bf16.msra.mxu0 0
        %5778 = vmatprep.subr.bf16.mxu0 0
        %5779 = vmatpush1.bf16.msra.mxu0 0
        %5780 = vmatprep.mubr.bf16.mxu0 0
        %5781 = vmatmul.mubr.bf16.gmra.mrb[0].mxu0 %v5746
        %v5782 = vpop.f32.mrb[0].mxu0
        %v5783 = vadd.f32 %v5732, %v5782
        %v5784 = vpop.f32.mrb[0].mxu0
        %v5785 = vpop.f32.mrb[0].mxu0
        %v5786 = vpop.f32.mrb[0].mxu0
        %5787 = vdwg.mxu0
        %v5788 = vld [vmem:[#allocation2 + $0x260] sm:$0xf]
        %v5789 = vld [vmem:[#allocation2 + $0x264] sm:$0xf]
        %v5790 = vld [vmem:[#allocation2 + $0x268] sm:$0xf]
        %v5791 = vld [vmem:[#allocation2 + $0x26c] sm:$0xf]
        %v5792 = vld [vmem:[#allocation4 + $0x1e8] sm:$0x1]
        %v5793 = vpack.c.bf16 %v5783, %v5783
        %5795 = vrot.lane.b32.xlu0 %v5793, 96
        %v5796 = vpop.permute.xlu0 %5795
        %v5798 = vsel %vm745, %v5793, 0
        %v5801 = vsel %vm745, %v5796, 0
        %5803 = vmatprep.subr.bf16.mxu0 0
        %5804 = vmatpush1.bf16.xpose.msra.mxu0 %v5801
        %5805 = vmatprep.subr.bf16.mxu0 0
        %5806 = vmatpush1.bf16.xpose.msra.mxu0 0
        %5807 = vmatprep.subr.bf16.mxu0 0
        %5808 = vmatpush1.bf16.xpose.msra.mxu0 0
        %5809 = vmatprep.subr.bf16.mxu0 0
        %5810 = vmatpush1.bf16.xpose.msra.mxu0 0
        %5811 = vmatprep.subr.bf16.mxu0 0
        %5812 = vmatpush1.bf16.xpose.msra.mxu0 0
        %5813 = vmatprep.subr.bf16.mxu0 0
        %5814 = vmatpush1.bf16.xpose.msra.mxu0 0
        %5815 = vmatprep.subr.bf16.mxu0 0
        %5816 = vmatpush1.bf16.xpose.msra.mxu0 0
        %5817 = vmatprep.subr.bf16.mxu0 0
        %5818 = vmatpush1.bf16.xpose.msra.mxu0 0
        %5819 = vmatprep.subr.bf16.mxu0 0
        %5820 = vmatpush1.bf16.xpose.msra.mxu0 0
        %5821 = vmatprep.subr.bf16.mxu0 0
        %5822 = vmatpush1.bf16.xpose.msra.mxu0 0
        %5823 = vmatprep.subr.bf16.mxu0 0
        %5824 = vmatpush1.bf16.xpose.msra.mxu0 0
        %5825 = vmatprep.subr.bf16.mxu0 0
        %5826 = vmatpush1.bf16.xpose.msra.mxu0 0
        %5827 = vmatprep.subr.bf16.mxu0 0
        %5828 = vmatpush1.bf16.xpose.msra.mxu0 0
        %5829 = vmatprep.subr.bf16.mxu0 0
        %5830 = vmatpush1.bf16.xpose.msra.mxu0 0
        %5831 = vmatprep.subr.bf16.mxu0 0
        %5832 = vmatpush1.bf16.xpose.msra.mxu0 0
        %5833 = vmatprep.subr.bf16.mxu0 0
        %5834 = vmatpush1.bf16.xpose.msra.mxu0 0
        %5835 = vmatprep.mubr.bf16.mxu0 0
        %5836 = vmatmul.mubr.bf16.gmra.mrb[0].mxu0 %v5798
        %v5837 = vpop.f32.mrb[0].mxu0
        %v5838 = vadd.f32 0.0, %v5837
        %v5839 = vpop.f32.mrb[0].mxu0
        %v5840 = vpop.f32.mrb[0].mxu0
        %v5841 = vpop.f32.mrb[0].mxu0
        %5842 = vdwg.mxu0
        %v5843 = vmul.f32 %v5838, 0.35355338
        %vm5844 = vcmask 9216
        %v5845 = vsel %vm5844, %v5843, -inf
        %5846 = vmax.xlane.f32.xlu0 %v5845
        %v5847 = vpop.xlane.xlu0 %5846
        %v5848 = vsub.f32 %v5843, %v5847
        %v5849 = vmul.f32 %v5848, 1.442695
        %v5850 = vpow.pop %v5849
        %v5851 = vsel %vm5844, %v5850, 0.0
        %5852 = vadd.xlane.f32.xlu0 %v5851
        %v5853 = vpop.xlane.xlu0 %5852
        %v5854 = vrcp.pop %v5853
        %v5855 = vmul.f32 %v5850, %v5854
        %v5856 = vpack.c.bf16 %v5855, %v5855
        %5857 = vrot.lane.b32.xlu0 %v5793, 64
        %v5858 = vpop.permute.xlu0 %5857
        %vm5859 = vcmask 15360
        %v5861 = vsel %vm5859, %v5856, 0
        %vm5863 = vcmask 1040384
        %v5865 = vsel %vm5863, %v5858, 0
        %5867 = vmatprep.subr.bf16.mxu0 0
        %5868 = vmatpush1.bf16.msra.mxu0 %v5865
        %5869 = vmatprep.subr.bf16.mxu0 0
        %5870 = vmatpush1.bf16.msra.mxu0 0
        %5871 = vmatprep.subr.bf16.mxu0 0
        %5872 = vmatpush1.bf16.msra.mxu0 0
        %5873 = vmatprep.subr.bf16.mxu0 0
        %5874 = vmatpush1.bf16.msra.mxu0 0
        %5875 = vmatprep.subr.bf16.mxu0 0
        %5876 = vmatpush1.bf16.msra.mxu0 0
        %5877 = vmatprep.subr.bf16.mxu0 0
        %5878 = vmatpush1.bf16.msra.mxu0 0
        %5879 = vmatprep.subr.bf16.mxu0 0
        %5880 = vmatpush1.bf16.msra.mxu0 0
        %5881 = vmatprep.subr.bf16.mxu0 0
        %5882 = vmatpush1.bf16.msra.mxu0 0
        %5883 = vmatprep.subr.bf16.mxu0 0
        %5884 = vmatpush1.bf16.msra.mxu0 0
        %5885 = vmatprep.subr.bf16.mxu0 0
        %5886 = vmatpush1.bf16.msra.mxu0 0
        %5887 = vmatprep.subr.bf16.mxu0 0
        %5888 = vmatpush1.bf16.msra.mxu0 0
        %5889 = vmatprep.subr.bf16.mxu0 0
        %5890 = vmatpush1.bf16.msra.mxu0 0
        %5891 = vmatprep.subr.bf16.mxu0 0
        %5892 = vmatpush1.bf16.msra.mxu0 0
        %5893 = vmatprep.subr.bf16.mxu0 0
        %5894 = vmatpush1.bf16.msra.mxu0 0
        %5895 = vmatprep.subr.bf16.mxu0 0
        %5896 = vmatpush1.bf16.msra.mxu0 0
        %5897 = vmatprep.subr.bf16.mxu0 0
        %5898 = vmatpush1.bf16.msra.mxu0 0
        %5899 = vmatprep.mubr.bf16.mxu0 0
        %5900 = vmatmul.mubr.bf16.gmra.mrb[0].mxu0 %v5861
        %v5901 = vpop.f32.mrb[0].mxu0
        %v5902 = vadd.f32 0.0, %v5901
        %v5903 = vpop.f32.mrb[0].mxu0
        %v5904 = vpop.f32.mrb[0].mxu0
        %v5905 = vpop.f32.mrb[0].mxu0
        %5906 = vdwg.mxu0
        %5907 = vrot.lane.b32.xlu0 %v5793, 120
        %v5908 = vpop.permute.xlu0 %5907
        %5909 = vrot.lane.b32.xlu0 %v5793, 88
        %v5910 = vpop.permute.xlu0 %5909
        %v5912 = vsel %vm745, %v5908, 0
        %v5915 = vsel %vm745, %v5910, 0
        %5917 = vmatprep.subr.bf16.mxu0 0
        %5918 = vmatpush1.bf16.xpose.msra.mxu0 %v5915
        %5919 = vmatprep.subr.bf16.mxu0 0
        %5920 = vmatpush1.bf16.xpose.msra.mxu0 0
        %5921 = vmatprep.subr.bf16.mxu0 0
        %5922 = vmatpush1.bf16.xpose.msra.mxu0 0
        %5923 = vmatprep.subr.bf16.mxu0 0
        %5924 = vmatpush1.bf16.xpose.msra.mxu0 0
        %5925 = vmatprep.subr.bf16.mxu0 0
        %5926 = vmatpush1.bf16.xpose.msra.mxu0 0
        %5927 = vmatprep.subr.bf16.mxu0 0
        %5928 = vmatpush1.bf16.xpose.msra.mxu0 0
        %5929 = vmatprep.subr.bf16.mxu0 0
        %5930 = vmatpush1.bf16.xpose.msra.mxu0 0
        %5931 = vmatprep.subr.bf16.mxu0 0
        %5932 = vmatpush1.bf16.xpose.msra.mxu0 0
        %5933 = vmatprep.subr.bf16.mxu0 0
        %5934 = vmatpush1.bf16.xpose.msra.mxu0 0
        %5935 = vmatprep.subr.bf16.mxu0 0
        %5936 = vmatpush1.bf16.xpose.msra.mxu0 0
        %5937 = vmatprep.subr.bf16.mxu0 0
        %5938 = vmatpush1.bf16.xpose.msra.mxu0 0
        %5939 = vmatprep.subr.bf16.mxu0 0
        %5940 = vmatpush1.bf16.xpose.msra.mxu0 0
        %5941 = vmatprep.subr.bf16.mxu0 0
        %5942 = vmatpush1.bf16.xpose.msra.mxu0 0
        %5943 = vmatprep.subr.bf16.mxu0 0
        %5944 = vmatpush1.bf16.xpose.msra.mxu0 0
        %5945 = vmatprep.subr.bf16.mxu0 0
        %5946 = vmatpush1.bf16.xpose.msra.mxu0 0
        %5947 = vmatprep.subr.bf16.mxu0 0
        %5948 = vmatpush1.bf16.xpose.msra.mxu0 0
        %5949 = vmatprep.mubr.bf16.mxu0 0
        %5950 = vmatmul.mubr.bf16.gmra.mrb[0].mxu0 %v5912
        %v5951 = vpop.f32.mrb[0].mxu0
        %v5952 = vadd.f32 0.0, %v5951
        %v5953 = vpop.f32.mrb[0].mxu0
        %v5954 = vpop.f32.mrb[0].mxu0
        %v5955 = vpop.f32.mrb[0].mxu0
        %5956 = vdwg.mxu0
        %v5957 = vmul.f32 %v5952, 0.35355338
        %v5958 = vsel %vm5844, %v5957, -inf
        %5959 = vmax.xlane.f32.xlu0 %v5958
        %v5960 = vpop.xlane.xlu0 %5959
        %v5961 = vsub.f32 %v5957, %v5960
        %v5962 = vmul.f32 %v5961, 1.442695
        %v5963 = vpow.pop %v5962
        %v5964 = vsel %vm5844, %v5963, 0.0
        %5965 = vadd.xlane.f32.xlu0 %v5964
        %v5966 = vpop.xlane.xlu0 %5965
        %v5967 = vrcp.pop %v5966
        %v5968 = vmul.f32 %v5963, %v5967
        %v5969 = vpack.c.bf16 %v5968, %v5968
        %5970 = vrot.lane.b32.xlu0 %v5793, 56
        %v5971 = vpop.permute.xlu0 %5970
        %v5973 = vsel %vm5859, %v5969, 0
        %v5976 = vsel %vm5863, %v5971, 0
        %5978 = vmatprep.subr.bf16.mxu0 0
        %5979 = vmatpush1.bf16.msra.mxu0 %v5976
        %5980 = vmatprep.subr.bf16.mxu0 0
        %5981 = vmatpush1.bf16.msra.mxu0 0
        %5982 = vmatprep.subr.bf16.mxu0 0
        %5983 = vmatpush1.bf16.msra.mxu0 0
        %5984 = vmatprep.subr.bf16.mxu0 0
        %5985 = vmatpush1.bf16.msra.mxu0 0
        %5986 = vmatprep.subr.bf16.mxu0 0
        %5987 = vmatpush1.bf16.msra.mxu0 0
        %5988 = vmatprep.subr.bf16.mxu0 0
        %5989 = vmatpush1.bf16.msra.mxu0 0
        %5990 = vmatprep.subr.bf16.mxu0 0
        %5991 = vmatpush1.bf16.msra.mxu0 0
        %5992 = vmatprep.subr.bf16.mxu0 0
        %5993 = vmatpush1.bf16.msra.mxu0 0
        %5994 = vmatprep.subr.bf16.mxu0 0
        %5995 = vmatpush1.bf16.msra.mxu0 0
        %5996 = vmatprep.subr.bf16.mxu0 0
        %5997 = vmatpush1.bf16.msra.mxu0 0
        %5998 = vmatprep.subr.bf16.mxu0 0
        %5999 = vmatpush1.bf16.msra.mxu0 0
        %6000 = vmatprep.subr.bf16.mxu0 0
        %6001 = vmatpush1.bf16.msra.mxu0 0
        %6002 = vmatprep.subr.bf16.mxu0 0
        %6003 = vmatpush1.bf16.msra.mxu0 0
        %6004 = vmatprep.subr.bf16.mxu0 0
        %6005 = vmatpush1.bf16.msra.mxu0 0
        %6006 = vmatprep.subr.bf16.mxu0 0
        %6007 = vmatpush1.bf16.msra.mxu0 0
        %6008 = vmatprep.subr.bf16.mxu0 0
        %6009 = vmatpush1.bf16.msra.mxu0 0
        %6010 = vmatprep.mubr.bf16.mxu0 0
        %6011 = vmatmul.mubr.bf16.gmra.mrb[0].mxu0 %v5973
        %v6012 = vpop.f32.mrb[0].mxu0
        %v6013 = vadd.f32 0.0, %v6012
        %v6014 = vpop.f32.mrb[0].mxu0
        %v6015 = vpop.f32.mrb[0].mxu0
        %v6016 = vpop.f32.mrb[0].mxu0
        %6017 = vdwg.mxu0
        %6018 = vrot.lane.b32.xlu0 %v5793, 112
        %v6019 = vpop.permute.xlu0 %6018
        %6020 = vrot.lane.b32.xlu0 %v5793, 80
        %v6021 = vpop.permute.xlu0 %6020
        %v6023 = vsel %vm745, %v6019, 0
        %v6026 = vsel %vm745, %v6021, 0
        %6028 = vmatprep.subr.bf16.mxu0 0
        %6029 = vmatpush1.bf16.xpose.msra.mxu0 %v6026
        %6030 = vmatprep.subr.bf16.mxu0 0
        %6031 = vmatpush1.bf16.xpose.msra.mxu0 0
        %6032 = vmatprep.subr.bf16.mxu0 0
        %6033 = vmatpush1.bf16.xpose.msra.mxu0 0
        %6034 = vmatprep.subr.bf16.mxu0 0
        %6035 = vmatpush1.bf16.xpose.msra.mxu0 0
        %6036 = vmatprep.subr.bf16.mxu0 0
        %6037 = vmatpush1.bf16.xpose.msra.mxu0 0
        %6038 = vmatprep.subr.bf16.mxu0 0
        %6039 = vmatpush1.bf16.xpose.msra.mxu0 0
        %6040 = vmatprep.subr.bf16.mxu0 0
        %6041 = vmatpush1.bf16.xpose.msra.mxu0 0
        %6042 = vmatprep.subr.bf16.mxu0 0
        %6043 = vmatpush1.bf16.xpose.msra.mxu0 0
        %6044 = vmatprep.subr.bf16.mxu0 0
        %6045 = vmatpush1.bf16.xpose.msra.mxu0 0
        %6046 = vmatprep.subr.bf16.mxu0 0
        %6047 = vmatpush1.bf16.xpose.msra.mxu0 0
        %6048 = vmatprep.subr.bf16.mxu0 0
        %6049 = vmatpush1.bf16.xpose.msra.mxu0 0
        %6050 = vmatprep.subr.bf16.mxu0 0
        %6051 = vmatpush1.bf16.xpose.msra.mxu0 0
        %6052 = vmatprep.subr.bf16.mxu0 0
        %6053 = vmatpush1.bf16.xpose.msra.mxu0 0
        %6054 = vmatprep.subr.bf16.mxu0 0
        %6055 = vmatpush1.bf16.xpose.msra.mxu0 0
        %6056 = vmatprep.subr.bf16.mxu0 0
        %6057 = vmatpush1.bf16.xpose.msra.mxu0 0
        %6058 = vmatprep.subr.bf16.mxu0 0
        %6059 = vmatpush1.bf16.xpose.msra.mxu0 0
        %6060 = vmatprep.mubr.bf16.mxu0 0
        %6061 = vmatmul.mubr.bf16.gmra.mrb[0].mxu0 %v6023
        %v6062 = vpop.f32.mrb[0].mxu0
        %v6063 = vadd.f32 0.0, %v6062
        %v6064 = vpop.f32.mrb[0].mxu0
        %v6065 = vpop.f32.mrb[0].mxu0
        %v6066 = vpop.f32.mrb[0].mxu0
        %6067 = vdwg.mxu0
        %v6068 = vmul.f32 %v6063, 0.35355338
        %v6069 = vsel %vm5844, %v6068, -inf
        %6070 = vmax.xlane.f32.xlu0 %v6069
        %v6071 = vpop.xlane.xlu0 %6070
        %v6072 = vsub.f32 %v6068, %v6071
        %v6073 = vmul.f32 %v6072, 1.442695
        %v6074 = vpow.pop %v6073
        %v6075 = vsel %vm5844, %v6074, 0.0
        %6076 = vadd.xlane.f32.xlu0 %v6075
        %v6077 = vpop.xlane.xlu0 %6076
        %v6078 = vrcp.pop %v6077
        %v6079 = vmul.f32 %v6074, %v6078
        %v6080 = vpack.c.bf16 %v6079, %v6079
        %6081 = vrot.lane.b32.xlu0 %v5793, 48
        %v6082 = vpop.permute.xlu0 %6081
        %v6084 = vsel %vm5859, %v6080, 0
        %v6087 = vsel %vm5863, %v6082, 0
        %6089 = vmatprep.subr.bf16.mxu0 0
        %6090 = vmatpush1.bf16.msra.mxu0 %v6087
        %6091 = vmatprep.subr.bf16.mxu0 0
        %6092 = vmatpush1.bf16.msra.mxu0 0
        %6093 = vmatprep.subr.bf16.mxu0 0
        %6094 = vmatpush1.bf16.msra.mxu0 0
        %6095 = vmatprep.subr.bf16.mxu0 0
        %6096 = vmatpush1.bf16.msra.mxu0 0
        %6097 = vmatprep.subr.bf16.mxu0 0
        %6098 = vmatpush1.bf16.msra.mxu0 0
        %6099 = vmatprep.subr.bf16.mxu0 0
        %6100 = vmatpush1.bf16.msra.mxu0 0
        %6101 = vmatprep.subr.bf16.mxu0 0
        %6102 = vmatpush1.bf16.msra.mxu0 0
        %6103 = vmatprep.subr.bf16.mxu0 0
        %6104 = vmatpush1.bf16.msra.mxu0 0
        %6105 = vmatprep.subr.bf16.mxu0 0
        %6106 = vmatpush1.bf16.msra.mxu0 0
        %6107 = vmatprep.subr.bf16.mxu0 0
        %6108 = vmatpush1.bf16.msra.mxu0 0
        %6109 = vmatprep.subr.bf16.mxu0 0
        %6110 = vmatpush1.bf16.msra.mxu0 0
        %6111 = vmatprep.subr.bf16.mxu0 0
        %6112 = vmatpush1.bf16.msra.mxu0 0
        %6113 = vmatprep.subr.bf16.mxu0 0
        %6114 = vmatpush1.bf16.msra.mxu0 0
        %6115 = vmatprep.subr.bf16.mxu0 0
        %6116 = vmatpush1.bf16.msra.mxu0 0
        %6117 = vmatprep.subr.bf16.mxu0 0
        %6118 = vmatpush1.bf16.msra.mxu0 0
        %6119 = vmatprep.subr.bf16.mxu0 0
        %6120 = vmatpush1.bf16.msra.mxu0 0
        %6121 = vmatprep.mubr.bf16.mxu0 0
        %6122 = vmatmul.mubr.bf16.gmra.mrb[0].mxu0 %v6084
        %v6123 = vpop.f32.mrb[0].mxu0
        %v6124 = vadd.f32 0.0, %v6123
        %v6125 = vpop.f32.mrb[0].mxu0
        %v6126 = vpop.f32.mrb[0].mxu0
        %v6127 = vpop.f32.mrb[0].mxu0
        %6128 = vdwg.mxu0
        %6129 = vrot.lane.b32.xlu0 %v5793, 104
        %v6130 = vpop.permute.xlu0 %6129
        %6131 = vrot.lane.b32.xlu0 %v5793, 72
        %v6132 = vpop.permute.xlu0 %6131
        %v6134 = vsel %vm745, %v6130, 0
        %v6137 = vsel %vm745, %v6132, 0
        %6139 = vmatprep.subr.bf16.mxu0 0
        %6140 = vmatpush1.bf16.xpose.msra.mxu0 %v6137
        %6141 = vmatprep.subr.bf16.mxu0 0
        %6142 = vmatpush1.bf16.xpose.msra.mxu0 0
        %6143 = vmatprep.subr.bf16.mxu0 0
        %6144 = vmatpush1.bf16.xpose.msra.mxu0 0
        %6145 = vmatprep.subr.bf16.mxu0 0
        %6146 = vmatpush1.bf16.xpose.msra.mxu0 0
        %6147 = vmatprep.subr.bf16.mxu0 0
        %6148 = vmatpush1.bf16.xpose.msra.mxu0 0
        %6149 = vmatprep.subr.bf16.mxu0 0
        %6150 = vmatpush1.bf16.xpose.msra.mxu0 0
        %6151 = vmatprep.subr.bf16.mxu0 0
        %6152 = vmatpush1.bf16.xpose.msra.mxu0 0
        %6153 = vmatprep.subr.bf16.mxu0 0
        %6154 = vmatpush1.bf16.xpose.msra.mxu0 0
        %6155 = vmatprep.subr.bf16.mxu0 0
        %6156 = vmatpush1.bf16.xpose.msra.mxu0 0
        %6157 = vmatprep.subr.bf16.mxu0 0
        %6158 = vmatpush1.bf16.xpose.msra.mxu0 0
        %6159 = vmatprep.subr.bf16.mxu0 0
        %6160 = vmatpush1.bf16.xpose.msra.mxu0 0
        %6161 = vmatprep.subr.bf16.mxu0 0
        %6162 = vmatpush1.bf16.xpose.msra.mxu0 0
        %6163 = vmatprep.subr.bf16.mxu0 0
        %6164 = vmatpush1.bf16.xpose.msra.mxu0 0
        %6165 = vmatprep.subr.bf16.mxu0 0
        %6166 = vmatpush1.bf16.xpose.msra.mxu0 0
        %6167 = vmatprep.subr.bf16.mxu0 0
        %6168 = vmatpush1.bf16.xpose.msra.mxu0 0
        %6169 = vmatprep.subr.bf16.mxu0 0
        %6170 = vmatpush1.bf16.xpose.msra.mxu0 0
        %6171 = vmatprep.mubr.bf16.mxu0 0
        %6172 = vmatmul.mubr.bf16.gmra.mrb[0].mxu0 %v6134
        %v6173 = vpop.f32.mrb[0].mxu0
        %v6174 = vadd.f32 0.0, %v6173
        %v6175 = vpop.f32.mrb[0].mxu0
        %v6176 = vpop.f32.mrb[0].mxu0
        %v6177 = vpop.f32.mrb[0].mxu0
        %6178 = vdwg.mxu0
        %v6179 = vmul.f32 %v6174, 0.35355338
        %v6180 = vsel %vm5844, %v6179, -inf
        %6181 = vmax.xlane.f32.xlu0 %v6180
        %v6182 = vpop.xlane.xlu0 %6181
        %v6183 = vsub.f32 %v6179, %v6182
        %v6184 = vmul.f32 %v6183, 1.442695
        %v6185 = vpow.pop %v6184
        %v6186 = vsel %vm5844, %v6185, 0.0
        %6187 = vadd.xlane.f32.xlu0 %v6186
        %v6188 = vpop.xlane.xlu0 %6187
        %v6189 = vrcp.pop %v6188
        %v6190 = vmul.f32 %v6185, %v6189
        %v6191 = vpack.c.bf16 %v6190, %v6190
        %6192 = vrot.lane.b32.xlu0 %v5793, 40
        %v6193 = vpop.permute.xlu0 %6192
        %v6195 = vsel %vm5859, %v6191, 0
        %v6198 = vsel %vm5863, %v6193, 0
        %6200 = vmatprep.subr.bf16.mxu0 0
        %6201 = vmatpush1.bf16.msra.mxu0 %v6198
        %6202 = vmatprep.subr.bf16.mxu0 0
        %6203 = vmatpush1.bf16.msra.mxu0 0
        %6204 = vmatprep.subr.bf16.mxu0 0
        %6205 = vmatpush1.bf16.msra.mxu0 0
        %6206 = vmatprep.subr.bf16.mxu0 0
        %6207 = vmatpush1.bf16.msra.mxu0 0
        %6208 = vmatprep.subr.bf16.mxu0 0
        %6209 = vmatpush1.bf16.msra.mxu0 0
        %6210 = vmatprep.subr.bf16.mxu0 0
        %6211 = vmatpush1.bf16.msra.mxu0 0
        %6212 = vmatprep.subr.bf16.mxu0 0
        %6213 = vmatpush1.bf16.msra.mxu0 0
        %6214 = vmatprep.subr.bf16.mxu0 0
        %6215 = vmatpush1.bf16.msra.mxu0 0
        %6216 = vmatprep.subr.bf16.mxu0 0
        %6217 = vmatpush1.bf16.msra.mxu0 0
        %6218 = vmatprep.subr.bf16.mxu0 0
        %6219 = vmatpush1.bf16.msra.mxu0 0
        %6220 = vmatprep.subr.bf16.mxu0 0
        %6221 = vmatpush1.bf16.msra.mxu0 0
        %6222 = vmatprep.subr.bf16.mxu0 0
        %6223 = vmatpush1.bf16.msra.mxu0 0
        %6224 = vmatprep.subr.bf16.mxu0 0
        %6225 = vmatpush1.bf16.msra.mxu0 0
        %6226 = vmatprep.subr.bf16.mxu0 0
        %6227 = vmatpush1.bf16.msra.mxu0 0
        %6228 = vmatprep.subr.bf16.mxu0 0
        %6229 = vmatpush1.bf16.msra.mxu0 0
        %6230 = vmatprep.subr.bf16.mxu0 0
        %6231 = vmatpush1.bf16.msra.mxu0 0
        %6232 = vmatprep.mubr.bf16.mxu0 0
        %6233 = vmatmul.mubr.bf16.gmra.mrb[0].mxu0 %v6195
        %v6234 = vpop.f32.mrb[0].mxu0
        %v6235 = vadd.f32 0.0, %v6234
        %v6236 = vpop.f32.mrb[0].mxu0
        %v6237 = vpop.f32.mrb[0].mxu0
        %v6238 = vpop.f32.mrb[0].mxu0
        %6239 = vdwg.mxu0
        %6241 = vrot.lane.b32.xlu0 %v6013, 8
        %v6242 = vpop.permute.xlu0 %6241
        %6245 = vrot.lane.b32.xlu0 %v6124, 16
        %v6246 = vpop.permute.xlu0 %6245
        %6249 = vrot.lane.b32.xlu0 %v6235, 24
        %v6250 = vpop.permute.xlu0 %6249
        %v6252 = vsel %vm745, %v5902, %v6242
        %v6253 = vsel %vm403, %v6252, %v6246
        %v6254 = vsel %vm1194, %v6253, %v6250
        %v6255 = vpack.c.bf16 %v6254, %v6254
        %v6256 = vlaneseq
        %v6257 = vshrl.u32 %v6256, 7
        %v6258 = vsub.s32 0, %v6257
        %v6259 = vrot.slane %v5792, %v6258
        %v6264 = vunpack.c.l.b16 %v5788
        %v6265 = vunpack.c.l.b16 %v5789
        %v6266 = vunpack.c.l.b16 %v5790
        %v6267 = vunpack.c.l.b16 %v5791
        %v6268 = vpack.c.b16 %v6265, %v6264
        %v6269 = vpack.c.b16 %v6267, %v6266
        %v6273 = vsel %vm279, %v6255, 0
        %6275 = vmatprep.subr.bf16.mxu0 0
        %6276 = vmatpush1.bf16.msra.mxu0 %v6268
        %6277 = vmatprep.subr.bf16.mxu0 0
        %6278 = vmatpush1.bf16.msra.mxu0 %v6269
        %6279 = vmatprep.subr.bf16.mxu0 0
        %6280 = vmatpush1.bf16.msra.mxu0 0
        %6281 = vmatprep.subr.bf16.mxu0 0
        %6282 = vmatpush1.bf16.msra.mxu0 0
        %6283 = vmatprep.subr.bf16.mxu0 0
        %6284 = vmatpush1.bf16.msra.mxu0 0
        %6285 = vmatprep.subr.bf16.mxu0 0
        %6286 = vmatpush1.bf16.msra.mxu0 0
        %6287 = vmatprep.subr.bf16.mxu0 0
        %6288 = vmatpush1.bf16.msra.mxu0 0
        %6289 = vmatprep.subr.bf16.mxu0 0
        %6290 = vmatpush1.bf16.msra.mxu0 0
        %6291 = vmatprep.subr.bf16.mxu0 0
        %6292 = vmatpush1.bf16.msra.mxu0 0
        %6293 = vmatprep.subr.bf16.mxu0 0
        %6294 = vmatpush1.bf16.msra.mxu0 0
        %6295 = vmatprep.subr.bf16.mxu0 0
        %6296 = vmatpush1.bf16.msra.mxu0 0
        %6297 = vmatprep.subr.bf16.mxu0 0
        %6298 = vmatpush1.bf16.msra.mxu0 0
        %6299 = vmatprep.subr.bf16.mxu0 0
        %6300 = vmatpush1.bf16.msra.mxu0 0
        %6301 = vmatprep.subr.bf16.mxu0 0
        %6302 = vmatpush1.bf16.msra.mxu0 0
        %6303 = vmatprep.subr.bf16.mxu0 0
        %6304 = vmatpush1.bf16.msra.mxu0 0
        %6305 = vmatprep.subr.bf16.mxu0 0
        %6306 = vmatpush1.bf16.msra.mxu0 0
        %6307 = vmatprep.mubr.bf16.mxu0 0
        %6308 = vmatmul.mubr.bf16.gmra.mrb[0].mxu0 %v6273
        %v6309 = vpop.f32.mrb[0].mxu0
        %v6310 = vadd.f32 %v6259, %v6309
        %v6311 = vpop.f32.mrb[0].mxu0
        %v6312 = vpop.f32.mrb[0].mxu0
        %v6313 = vpop.f32.mrb[0].mxu0
        %6314 = vdwg.mxu0
        %v6315 = vld [vmem:[#allocation4 + $0x220] sm:$0x3]
        %6317 = vset.pattern.permute.xlu0 0
        %6318 = vperm.xlu0 %6317, %v6315
        %v6319 = vpop.permute.xlu0 %6318
        %v6321 = vmul.f32 %v6310, %v6319
        %v6322 = vld [vmem:[#allocation4 + $0x228] sm:$0x3]
        %6324 = vset.pattern.permute.xlu0 0
        %6325 = vperm.xlu0 %6324, %v6322
        %v6326 = vpop.permute.xlu0 %6325
        %v6328 = vadd.f32 %v6321, %v6326
        %v6329 = vpack.c.bf16 %v6328, %v6328
        %v6330 = vld [vmem:[#allocation2 + $0x270] sm:$0xf]
        %v6331 = vld [vmem:[#allocation2 + $0x274] sm:$0xf]
        %v6332 = vld [vmem:[#allocation2 + $0x278] sm:$0xf]
        %v6333 = vld [vmem:[#allocation2 + $0x27c] sm:$0xf]
        %v6334 = vld [vmem:[#allocation4 + $0x1f0] sm:$0x1]
        %v6335 = vlaneseq
        %v6336 = vshrl.u32 %v6335, 7
        %v6337 = vsub.s32 0, %v6336
        %v6338 = vrot.slane %v6334, %v6337
        %v6343 = vunpack.c.l.b16 %v6330
        %v6344 = vunpack.c.l.b16 %v6331
        %v6345 = vunpack.c.l.b16 %v6332
        %v6346 = vunpack.c.l.b16 %v6333
        %v6347 = vpack.c.b16 %v6344, %v6343
        %v6348 = vpack.c.b16 %v6346, %v6345
        %v6352 = vsel %vm279, %v6329, 0
        %6354 = vmatprep.subr.bf16.mxu0 0
        %6355 = vmatpush1.bf16.msra.mxu0 %v6347
        %6356 = vmatprep.subr.bf16.mxu0 0
        %6357 = vmatpush1.bf16.msra.mxu0 %v6348
        %6358 = vmatprep.subr.bf16.mxu0 0
        %6359 = vmatpush1.bf16.msra.mxu0 0
        %6360 = vmatprep.subr.bf16.mxu0 0
        %6361 = vmatpush1.bf16.msra.mxu0 0
        %6362 = vmatprep.subr.bf16.mxu0 0
        %6363 = vmatpush1.bf16.msra.mxu0 0
        %6364 = vmatprep.subr.bf16.mxu0 0
        %6365 = vmatpush1.bf16.msra.mxu0 0
        %6366 = vmatprep.subr.bf16.mxu0 0
        %6367 = vmatpush1.bf16.msra.mxu0 0
        %6368 = vmatprep.subr.bf16.mxu0 0
        %6369 = vmatpush1.bf16.msra.mxu0 0
        %6370 = vmatprep.subr.bf16.mxu0 0
        %6371 = vmatpush1.bf16.msra.mxu0 0
        %6372 = vmatprep.subr.bf16.mxu0 0
        %6373 = vmatpush1.bf16.msra.mxu0 0
        %6374 = vmatprep.subr.bf16.mxu0 0
        %6375 = vmatpush1.bf16.msra.mxu0 0
        %6376 = vmatprep.subr.bf16.mxu0 0
        %6377 = vmatpush1.bf16.msra.mxu0 0
        %6378 = vmatprep.subr.bf16.mxu0 0
        %6379 = vmatpush1.bf16.msra.mxu0 0
        %6380 = vmatprep.subr.bf16.mxu0 0
        %6381 = vmatpush1.bf16.msra.mxu0 0
        %6382 = vmatprep.subr.bf16.mxu0 0
        %6383 = vmatpush1.bf16.msra.mxu0 0
        %6384 = vmatprep.subr.bf16.mxu0 0
        %6385 = vmatpush1.bf16.msra.mxu0 0
        %6386 = vmatprep.mubr.bf16.mxu0 0
        %6387 = vmatmul.mubr.bf16.gmra.mrb[0].mxu0 %v6352
        %v6388 = vpop.f32.mrb[0].mxu0
        %v6389 = vadd.f32 %v6338, %v6388
        %v6390 = vpop.f32.mrb[0].mxu0
        %v6391 = vpop.f32.mrb[0].mxu0
        %v6392 = vpop.f32.mrb[0].mxu0
        %6393 = vdwg.mxu0
        %v6394 = vmul.f32 %v6389, 0.5
        %v6395 = vmul.f32 %v6389, 0.044715
        %v6396 = vmul.f32 %v6395, %v6389
        %v6397 = vmul.f32 %v6396, %v6389
        %v6398 = vadd.f32 %v6389, %v6397
        %v6399 = vmul.f32 %v6398, 0.7978846
        %v6400 = vtanh.pop %v6399
        %v6401 = vadd.f32 %v6400, 1.0
        %v6402 = vmul.f32 %v6394, %v6401
        %v6403 = vpack.c.bf16 %v6402, %v6402
        %v6404 = vld [vmem:[#allocation2 + $0x280] sm:$0xf]
        %v6405 = vld [vmem:[#allocation2 + $0x284] sm:$0xf]
        %v6406 = vld [vmem:[#allocation2 + $0x288] sm:$0xf]
        %v6407 = vld [vmem:[#allocation2 + $0x28c] sm:$0xf]
        %v6408 = vld [vmem:[#allocation2 + $0x290] sm:$0xf]
        %v6409 = vld [vmem:[#allocation2 + $0x294] sm:$0xf]
        %v6410 = vld [vmem:[#allocation2 + $0x298] sm:$0xf]
        %v6411 = vld [vmem:[#allocation2 + $0x29c] sm:$0xf]
        %v6412 = vld [vmem:[#allocation4 + $0x1f8] sm:$0x1]
        %v6413 = vlaneseq
        %v6414 = vshrl.u32 %v6413, 7
        %v6415 = vsub.s32 0, %v6414
        %v6416 = vrot.slane %v6412, %v6415
        %v6425 = vunpack.c.l.b16 %v6404
        %v6426 = vunpack.c.l.b16 %v6405
        %v6427 = vunpack.c.l.b16 %v6406
        %v6428 = vunpack.c.l.b16 %v6407
        %v6429 = vunpack.c.l.b16 %v6408
        %v6430 = vunpack.c.l.b16 %v6409
        %v6431 = vunpack.c.l.b16 %v6410
        %v6432 = vunpack.c.l.b16 %v6411
        %v6433 = vpack.c.b16 %v6426, %v6425
        %v6434 = vpack.c.b16 %v6428, %v6427
        %v6435 = vpack.c.b16 %v6430, %v6429
        %v6436 = vpack.c.b16 %v6432, %v6431
        %v6442 = vsel %vm564, %v6403, 0
        %6444 = vmatprep.subr.bf16.mxu0 0
        %6445 = vmatpush1.bf16.msra.mxu0 %v6433
        %6446 = vmatprep.subr.bf16.mxu0 0
        %6447 = vmatpush1.bf16.msra.mxu0 %v6434
        %6448 = vmatprep.subr.bf16.mxu0 0
        %6449 = vmatpush1.bf16.msra.mxu0 %v6435
        %6450 = vmatprep.subr.bf16.mxu0 0
        %6451 = vmatpush1.bf16.msra.mxu0 %v6436
        %6452 = vmatprep.subr.bf16.mxu0 0
        %6453 = vmatpush1.bf16.msra.mxu0 0
        %6454 = vmatprep.subr.bf16.mxu0 0
        %6455 = vmatpush1.bf16.msra.mxu0 0
        %6456 = vmatprep.subr.bf16.mxu0 0
        %6457 = vmatpush1.bf16.msra.mxu0 0
        %6458 = vmatprep.subr.bf16.mxu0 0
        %6459 = vmatpush1.bf16.msra.mxu0 0
        %6460 = vmatprep.subr.bf16.mxu0 0
        %6461 = vmatpush1.bf16.msra.mxu0 0
        %6462 = vmatprep.subr.bf16.mxu0 0
        %6463 = vmatpush1.bf16.msra.mxu0 0
        %6464 = vmatprep.subr.bf16.mxu0 0
        %6465 = vmatpush1.bf16.msra.mxu0 0
        %6466 = vmatprep.subr.bf16.mxu0 0
        %6467 = vmatpush1.bf16.msra.mxu0 0
        %6468 = vmatprep.subr.bf16.mxu0 0
        %6469 = vmatpush1.bf16.msra.mxu0 0
        %6470 = vmatprep.subr.bf16.mxu0 0
        %6471 = vmatpush1.bf16.msra.mxu0 0
        %6472 = vmatprep.subr.bf16.mxu0 0
        %6473 = vmatpush1.bf16.msra.mxu0 0
        %6474 = vmatprep.subr.bf16.mxu0 0
        %6475 = vmatpush1.bf16.msra.mxu0 0
        %6476 = vmatprep.mubr.bf16.mxu0 0
        %6477 = vmatmul.mubr.bf16.gmra.mrb[0].mxu0 %v6442
        %v6478 = vpop.f32.mrb[0].mxu0
        %v6479 = vadd.f32 %v6416, %v6478
        %v6480 = vpop.f32.mrb[0].mxu0
        %v6481 = vpop.f32.mrb[0].mxu0
        %v6482 = vpop.f32.mrb[0].mxu0
        %6483 = vdwg.mxu0
        %v6484 = vadd.f32 %v6479, %v6328
        %v6485 = vld [vmem:[#allocation4 + $0x230] sm:$0x3]
        %6487 = vset.pattern.permute.xlu0 0
        %6488 = vperm.xlu0 %6487, %v6485
        %v6489 = vpop.permute.xlu0 %6488
        %v6491 = vmul.f32 %v6484, %v6489
        %v6492 = vld [vmem:[#allocation4 + $0x238] sm:$0x3]
        %6494 = vset.pattern.permute.xlu0 0
        %6495 = vperm.xlu0 %6494, %v6492
        %v6496 = vpop.permute.xlu0 %6495
        %v6498 = vadd.f32 %v6491, %v6496
        %v6499 = vld [vmem:[#allocation4] sm:$0xff]
        %6501 = vrot.lane.b32.xlu0 %v603, 32
        %v6502 = vpop.permute.xlu0 %6501
        %v6504 = vsel %vm279, %v2213, %v6502
        %6506 = vrot.lane.b32.xlu0 %v2667, 32
        %v6507 = vpop.permute.xlu0 %6506
        %v6509 = vsel %vm279, %v4284, %v6507
        %6511 = vrot.lane.b32.xlu0 %v4881, 32
        %v6512 = vpop.permute.xlu0 %6511
        %v6514 = vsel %vm279, %v6498, %v6512
        %6516 = vrot.lane.b32.xlu0 %v6499, 124
        %v6517 = vpop.permute.xlu0 %6516
        %v6518 = vsel %vm5859, %v6517, 0
        %v6521 = vsel %vm3649, %v6514, 0
        %6523 = vmatprep.subr.mxu0 0.0
        %6524 = vmatpush1.msra.mxu0 %v6521
        %6525 = vmatprep.subr.mxu0 0.0
        %6526 = vmatpush1.msra.mxu0 0.0
        %6527 = vmatprep.subr.mxu0 0.0
        %6528 = vmatpush1.msra.mxu0 0.0
        %6529 = vmatprep.subr.mxu0 0.0
        %6530 = vmatpush1.msra.mxu0 0.0
        %6531 = vmatprep.subr.mxu0 0.0
        %6532 = vmatpush1.msra.mxu0 0.0
        %6533 = vmatprep.subr.mxu0 0.0
        %6534 = vmatpush1.msra.mxu0 0.0
        %6535 = vmatprep.subr.mxu0 0.0
        %6536 = vmatpush1.msra.mxu0 0.0
        %6537 = vmatprep.subr.mxu0 0.0
        %6538 = vmatpush1.msra.mxu0 0.0
        %6539 = vmatprep.subr.mxu0 0.0
        %6540 = vmatpush1.msra.mxu0 0.0
        %6541 = vmatprep.subr.mxu0 0.0
        %6542 = vmatpush1.msra.mxu0 0.0
        %6543 = vmatprep.subr.mxu0 0.0
        %6544 = vmatpush1.msra.mxu0 0.0
        %6545 = vmatprep.subr.mxu0 0.0
        %6546 = vmatpush1.msra.mxu0 0.0
        %6547 = vmatprep.subr.mxu0 0.0
        %6548 = vmatpush1.msra.mxu0 0.0
        %6549 = vmatprep.subr.mxu0 0.0
        %6550 = vmatpush1.msra.mxu0 0.0
        %6551 = vmatprep.subr.mxu0 0.0
        %6552 = vmatpush1.msra.mxu0 0.0
        %6553 = vmatprep.subr.mxu0 0.0
        %6554 = vmatpush1.msra.mxu0 0.0
        %6555 = vmatprep.subr.mxu0 0.0
        %6556 = vmatpush1.msra.mxu0 0.0
        %6557 = vmatprep.subr.mxu0 0.0
        %6558 = vmatpush1.msra.mxu0 0.0
        %6559 = vmatprep.subr.mxu0 0.0
        %6560 = vmatpush1.msra.mxu0 0.0
        %6561 = vmatprep.subr.mxu0 0.0
        %6562 = vmatpush1.msra.mxu0 0.0
        %6563 = vmatprep.subr.mxu0 0.0
        %6564 = vmatpush1.msra.mxu0 0.0
        %6565 = vmatprep.subr.mxu0 0.0
        %6566 = vmatpush1.msra.mxu0 0.0
        %6567 = vmatprep.subr.mxu0 0.0
        %6568 = vmatpush1.msra.mxu0 0.0
        %6569 = vmatprep.subr.mxu0 0.0
        %6570 = vmatpush1.msra.mxu0 0.0
        %6571 = vmatprep.subr.mxu0 0.0
        %6572 = vmatpush1.msra.mxu0 0.0
        %6573 = vmatprep.subr.mxu0 0.0
        %6574 = vmatpush1.msra.mxu0 0.0
        %6575 = vmatprep.subr.mxu0 0.0
        %6576 = vmatpush1.msra.mxu0 0.0
        %6577 = vmatprep.subr.mxu0 0.0
        %6578 = vmatpush1.msra.mxu0 0.0
        %6579 = vmatprep.subr.mxu0 0.0
        %6580 = vmatpush1.msra.mxu0 0.0
        %6581 = vmatprep.subr.mxu0 0.0
        %6582 = vmatpush1.msra.mxu0 0.0
        %6583 = vmatprep.subr.mxu0 0.0
        %6584 = vmatpush1.msra.mxu0 0.0
        %6585 = vmatprep.subr.mxu0 0.0
        %6586 = vmatpush1.msra.mxu0 0.0
        %6587 = vmatprep.mubr.f32.mxu0 0.0
        %6588 = vmatmul.mubr.f32.gmra.mrb[0].mxu0 %v6518
        %v6589 = vpop.f32.mrb[0].mxu0
        %v6590 = vadd.f32 0.0, %v6589
        %v6591 = vpop.f32.mrb[0].mxu0
        %6592 = vdwg.mxu0
        %v6593 = vsel %vm3645, %v6499, 0
        %v6596 = vsel %vm1578, %v6509, 0
        %6598 = vmatprep.subr.mxu0 0.0
        %6599 = vmatpush1.msra.mxu0 %v6596
        %6600 = vmatprep.subr.mxu0 0.0
        %6601 = vmatpush1.msra.mxu0 0.0
        %6602 = vmatprep.subr.mxu0 0.0
        %6603 = vmatpush1.msra.mxu0 0.0
        %6604 = vmatprep.subr.mxu0 0.0
        %6605 = vmatpush1.msra.mxu0 0.0
        %6606 = vmatprep.subr.mxu0 0.0
        %6607 = vmatpush1.msra.mxu0 0.0
        %6608 = vmatprep.subr.mxu0 0.0
        %6609 = vmatpush1.msra.mxu0 0.0
        %6610 = vmatprep.subr.mxu0 0.0
        %6611 = vmatpush1.msra.mxu0 0.0
        %6612 = vmatprep.subr.mxu0 0.0
        %6613 = vmatpush1.msra.mxu0 0.0
        %6614 = vmatprep.subr.mxu0 0.0
        %6615 = vmatpush1.msra.mxu0 0.0
        %6616 = vmatprep.subr.mxu0 0.0
        %6617 = vmatpush1.msra.mxu0 0.0
        %6618 = vmatprep.subr.mxu0 0.0
        %6619 = vmatpush1.msra.mxu0 0.0
        %6620 = vmatprep.subr.mxu0 0.0
        %6621 = vmatpush1.msra.mxu0 0.0
        %6622 = vmatprep.subr.mxu0 0.0
        %6623 = vmatpush1.msra.mxu0 0.0
        %6624 = vmatprep.subr.mxu0 0.0
        %6625 = vmatpush1.msra.mxu0 0.0
        %6626 = vmatprep.subr.mxu0 0.0
        %6627 = vmatpush1.msra.mxu0 0.0
        %6628 = vmatprep.subr.mxu0 0.0
        %6629 = vmatpush1.msra.mxu0 0.0
        %6630 = vmatprep.subr.mxu0 0.0
        %6631 = vmatpush1.msra.mxu0 0.0
        %6632 = vmatprep.subr.mxu0 0.0
        %6633 = vmatpush1.msra.mxu0 0.0
        %6634 = vmatprep.subr.mxu0 0.0
        %6635 = vmatpush1.msra.mxu0 0.0
        %6636 = vmatprep.subr.mxu0 0.0
        %6637 = vmatpush1.msra.mxu0 0.0
        %6638 = vmatprep.subr.mxu0 0.0
        %6639 = vmatpush1.msra.mxu0 0.0
        %6640 = vmatprep.subr.mxu0 0.0
        %6641 = vmatpush1.msra.mxu0 0.0
        %6642 = vmatprep.subr.mxu0 0.0
        %6643 = vmatpush1.msra.mxu0 0.0
        %6644 = vmatprep.subr.mxu0 0.0
        %6645 = vmatpush1.msra.mxu0 0.0
        %6646 = vmatprep.subr.mxu0 0.0
        %6647 = vmatpush1.msra.mxu0 0.0
        %6648 = vmatprep.subr.mxu0 0.0
        %6649 = vmatpush1.msra.mxu0 0.0
        %6650 = vmatprep.subr.mxu0 0.0
        %6651 = vmatpush1.msra.mxu0 0.0
        %6652 = vmatprep.subr.mxu0 0.0
        %6653 = vmatpush1.msra.mxu0 0.0
        %6654 = vmatprep.subr.mxu0 0.0
        %6655 = vmatpush1.msra.mxu0 0.0
        %6656 = vmatprep.subr.mxu0 0.0
        %6657 = vmatpush1.msra.mxu0 0.0
        %6658 = vmatprep.subr.mxu0 0.0
        %6659 = vmatpush1.msra.mxu0 0.0
        %6660 = vmatprep.subr.mxu0 0.0
        %6661 = vmatpush1.msra.mxu0 0.0
        %6662 = vmatprep.mubr.f32.mxu0 0.0
        %6663 = vmatmul.mubr.f32.gmra.mrb[0].mxu0 %v6593
        %v6664 = vpop.f32.mrb[0].mxu0
        %v6665 = vadd.f32 %v6590, %v6664
        %v6666 = vpop.f32.mrb[0].mxu0
        %6667 = vdwg.mxu0
        %6669 = vrot.lane.b32.xlu0 %v6665, 64
        %v6670 = vpop.permute.xlu0 %6669
        %v6672 = vsel %vm564, %v6504, %v6670
        %6673 = vst [vmem:[%s245] sm:$0xff] %v6672
        %p6674 = scmp.lt.s32.totalorder %s17, 1
        %s6675 = scalar_select %p6674, %s17, 1
        %s6676 = smul.addr %s6675, 8
        %s6677 = scalar_lea.vmem %s4, %s6676
        // Predicated region
        $region45: #{cap_encoder_forward.1} parent=35 // pred_check
          %p6678 = pneg %p129
        $region46: #{cap_encoder_forward.1} parent=35 // pred_check_branch
          %6680 = sbr.rel (%p6678) target = $region48
        $region47: #{cap_encoder_forward.1} parent=35 // pred_region
          _
        $region48: #{cap_encoder_forward.1} parent=35 // pred_fallthru
          _
      $region36: #{cap_encoder_forward.1} parent=5 // pred_fallthru
        _
      %p6681 = scmp.le.s32.totalorder 2, %s12
      // Predicated region
      $region49: #{cap_encoder_forward.1} parent=5 // pred_check
        %p6682 = pneg %p6681
      $region50: #{cap_encoder_forward.1} parent=5 // pred_check_branch
        %6684 = sbr.rel (%p6682) target = $region52
      $region51: #{cap_encoder_forward.1} parent=5 // pred_region
        %s6685 = ssub.s32 %s12, 2
        // Predicated region
        $region53: #{cap_encoder_forward.1} parent=51 // pred_check
          %p6686 = pneg %p135
        $region54: #{cap_encoder_forward.1} parent=51 // pred_check_branch
          %6688 = sbr.rel (%p6686) target = $region56
        $region55: #{cap_encoder_forward.1} parent=51 // pred_region
          %p6689 = scmp.lt.s32.totalorder %s18, 1
          %s6690 = scalar_select %p6689, %s18, 1
          %s6691 = smul.addr %s6690, 8
          %s6692 = scalar_lea.vmem %s4, %s6691
        $region56: #{cap_encoder_forward.1} parent=51 // pred_fallthru
          _
      $region52: #{cap_encoder_forward.1} parent=5 // pred_fallthru
        _
    $region6: #{cap_encoder_forward.1} parent=1 // loop_footer
      %s16 = sadd.s32 1, %s12
    $region7: #{cap_encoder_forward.1} parent=1 // loop_footer_branch
      %11 = sbr.rel target = $region3
    $region8: #{cap_encoder_forward.1} parent=1 // loop_exit
      _
    %6693 = vsyncpa [#allocation3], 1
    %s6694 = scalar_lea.sflag [#allocation3], 1
    %6695 = vsyncpa %s6694, 1
    %6696 = vsyncpa [#allocation5], 1

</llo_original>
